<compile_context>
chip_gen: v7x
topology: tpu7x:2x2x1
jax: 0.10.0
libtpu: 0.0.40
codegen_flags: <defaults>
</compile_context>

<pallas_src>
import functools

import jax
import jax.numpy as jnp
from jax import lax
from jax.experimental import pallas as pl
from jax.experimental.pallas import tpu as pltpu


# ----------------------------------------------------------------------------
# Kernel 1: row-tiled fused linear   out = sum_k x_k @ w_k + b
# Used for the hoisted gate pre-projection of each LSTM direction and for the
# MLP head (with 1 or 2 activation inputs).
# ----------------------------------------------------------------------------
def _fused_linear_kernel(*refs):
    n = (len(refs) - 2) // 2
    x_refs, w_refs = refs[:n], refs[n:2 * n]
    b_ref, o_ref = refs[2 * n], refs[2 * n + 1]
    acc = jnp.dot(x_refs[0][...], w_refs[0][...],
                  preferred_element_type=jnp.float32) + b_ref[...]
    for x_ref, w_ref in zip(x_refs[1:], w_refs[1:]):
        acc = acc + jnp.dot(x_ref[...], w_ref[...],
                            preferred_element_type=jnp.float32)
    o_ref[...] = acc.astype(o_ref.dtype)


def fused_linear(xs, ws, b, *, row_tile=None):
    """xs: list of (N, D_k) f32, ws: list of (D_k, D_out), b: (1, D_out)."""
    n_rows = xs[0].shape[0]
    d_out = ws[0].shape[1]
    if row_tile is None:
        row_tile = n_rows
        for cand in (512, 256, 128, 64, 32, 16, 8):
            if n_rows % cand == 0:
                row_tile = cand
                break
    assert n_rows % row_tile == 0
    in_specs = (
        [pl.BlockSpec((row_tile, x.shape[1]), lambda i: (i, 0)) for x in xs]
        + [pl.BlockSpec(w.shape, lambda i: (0, 0)) for w in ws]
        + [pl.BlockSpec((1, d_out), lambda i: (0, 0))]
    )
    return pl.pallas_call(
        _fused_linear_kernel,
        out_shape=jax.ShapeDtypeStruct((n_rows, d_out), jnp.float32),
        grid=(n_rows // row_tile,),
        in_specs=in_specs,
        out_specs=pl.BlockSpec((row_tile, d_out), lambda i: (i, 0)),
        compiler_params=pltpu.CompilerParams(
            dimension_semantics=("parallel",)),
    )(*xs, *ws, b)


# ----------------------------------------------------------------------------
# Kernel 2: fused bidirectional LSTM recurrence.
# Grid iterates over time blocks of size t_block.  The forward direction reads
# gate block g, the backward direction reads gate block (n_blk-1-g) and walks
# it in reverse local order, so both recurrences advance together in a single
# sequential sweep.  Gates already contain x@W_ih + b; only h@W_hh remains on
# the serial chain.
# ----------------------------------------------------------------------------
def _make_bilstm_rec_kernel(t_block, hidden):
    H = hidden

    def kernel(gf_ref, gb_ref, mf_ref, mb_ref, whhf_ref, whhb_ref,
               of_ref, ob_ref, hf, cf, hb, cb):
        @pl.when(pl.program_id(0) == 0)
        def _():
            hf[...] = jnp.zeros_like(hf)
            cf[...] = jnp.zeros_like(cf)
            hb[...] = jnp.zeros_like(hb)
            cb[...] = jnp.zeros_like(cb)

        def lstm_cell(pre, h_prev, c_prev, whh_ref):
            g = pre + jnp.dot(h_prev, whh_ref[...],
                              preferred_element_type=jnp.float32)
            i = jax.nn.sigmoid(g[:, 0:H])
            f = jax.nn.sigmoid(g[:, H:2 * H])
            gg = jnp.tanh(g[:, 2 * H:3 * H])
            o = jax.nn.sigmoid(g[:, 3 * H:4 * H])
            c = f * c_prev + i * gg
            h = o * jnp.tanh(c)
            return h, c

        def step(s, carry):
            # ---- forward direction (local time s, increasing) ----
            h_new, c_new = lstm_cell(gf_ref[s], hf[...], cf[...], whhf_ref)
            hf[...] = h_new
            cf[...] = c_new
            of_ref[s] = (h_new * mf_ref[s]).astype(of_ref.dtype)
            # ---- backward direction (local time t_block-1-s, decreasing) ----
            r = t_block - 1 - s
            hb_new, cb_new = lstm_cell(gb_ref[r], hb[...], cb[...], whhb_ref)
            valid = mb_ref[r] > 0.0          # state frozen at 0 until t < len
            hb[...] = jnp.where(valid, hb_new, hb[...])
            cb[...] = jnp.where(valid, cb_new, cb[...])
            ob_ref[r] = hb[...].astype(ob_ref.dtype)
            return carry

        lax.fori_loop(0, t_block, step, 0, unroll=True)

    return kernel


def bilstm_recurrence(gates_f, gates_b, mask, whh_f, whh_b, *, t_block):
    """gates_*: (T, B, 4H) time-major precomputed gates; mask: (T, B, 1)."""
    T, B, _ = gates_f.shape
    H = whh_f.shape[0]
    assert T % t_block == 0
    n_blk = T // t_block
    last = n_blk - 1
    kernel = _make_bilstm_rec_kernel(t_block, H)
    return pl.pallas_call(
        kernel,
        out_shape=(jax.ShapeDtypeStruct((T, B, H), jnp.float32),
                   jax.ShapeDtypeStruct((T, B, H), jnp.float32)),
        grid=(n_blk,),
        in_specs=[
            pl.BlockSpec((t_block, B, 4 * H), lambda g: (g, 0, 0)),
            pl.BlockSpec((t_block, B, 4 * H), lambda g: (last - g, 0, 0)),
            pl.BlockSpec((t_block, B, 1), lambda g: (g, 0, 0)),
            pl.BlockSpec((t_block, B, 1), lambda g: (last - g, 0, 0)),
            pl.BlockSpec((H, 4 * H), lambda g: (0, 0)),
            pl.BlockSpec((H, 4 * H), lambda g: (0, 0)),
        ],
        out_specs=[
            pl.BlockSpec((t_block, B, H), lambda g: (g, 0, 0)),
            pl.BlockSpec((t_block, B, H), lambda g: (last - g, 0, 0)),
        ],
        scratch_shapes=[
            pltpu.VMEM((B, H), jnp.float32),
            pltpu.VMEM((B, H), jnp.float32),
            pltpu.VMEM((B, H), jnp.float32),
            pltpu.VMEM((B, H), jnp.float32),
        ],
        compiler_params=pltpu.CompilerParams(
            dimension_semantics=("arbitrary",)),
    )(gates_f, gates_b, mask, mask, whh_f, whh_b)


# ----------------------------------------------------------------------------
# Model driver (time-major throughout; concat of directions never materialized)
# ----------------------------------------------------------------------------
def bilstm_layer(xs, layer_params, mask, *, t_block):
    T, B = xs[0].shape[0], xs[0].shape[1]
    fwd_wih, fwd_whh, fwd_b = layer_params["fwd"]
    bwd_wih, bwd_whh, bwd_b = layer_params["bwd"]

    def split_rows(w):
        if len(xs) == 1:
            return (w,)
        h_in = xs[0].shape[2]
        return (w[:h_in], w[h_in:])

    flat = [x.reshape(T * B, x.shape[2]) for x in xs]
    gates_f = fused_linear(flat, split_rows(fwd_wih), fwd_b).reshape(T, B, -1)
    gates_b = fused_linear(flat, split_rows(bwd_wih), bwd_b).reshape(T, B, -1)
    return bilstm_recurrence(gates_f, gates_b, mask, fwd_whh, bwd_whh,
                             t_block=t_block)


def bilstm_forward(params, words, seq_len, *, t_block=8):
    """Equivalent of bilstm.forward(words, seq_len) -> pred (B, T, out_size)."""
    emb = jnp.take(params["embedding"], words, axis=0)        # (B, T, E)
    x = jnp.transpose(emb, (1, 0, 2))                         # (T, B, E)
    T, B, _ = x.shape
    mask = (jnp.arange(T)[:, None] < seq_len[None, :]).astype(jnp.float32)
    mask = mask[:, :, None]                                   # (T, B, 1)
    xs = (x,)
    for lp in params["lstm"]:
        xs = bilstm_layer(xs, lp, mask, t_block=t_block)
    h_f, h_b = xs
    H = h_f.shape[2]
    pred = fused_linear([h_f.reshape(T * B, H), h_b.reshape(T * B, H)],
                        (params["mlp_w_t"][:H], params["mlp_w_t"][H:]),
                        params["mlp_b"])
    # TODO(synk): training-time dropout and the CrossEntropy loss branch
    # (target != None) are not implemented here.
    return jnp.transpose(pred.reshape(T, B, -1), (1, 0, 2))   # (B, T, out)


# ----------------------------------------------------------------------------
# Pure-JAX reference (lax.scan + per-sequence reversal) for correctness check
# ----------------------------------------------------------------------------
def reverse_by_len(x_bte, seq_len):
    B, T = x_bte.shape[0], x_bte.shape[1]
    t = jnp.arange(T)[None, :]
    idx = jnp.where(t < seq_len[:, None], seq_len[:, None] - 1 - t, t)
    return jnp.take_along_axis(x_bte, idx[:, :, None], axis=1)


def lstm_direction_ref(x_tbe, w_ih_t, w_hh_t, b):
    H = w_hh_t.shape[0]
    B = x_tbe.shape[1]

    def step(carry, x_t):
        h, c = carry
        gates = x_t @ w_ih_t + h @ w_hh_t + b
        i = jax.nn.sigmoid(gates[:, :H])
        f = jax.nn.sigmoid(gates[:, H:2 * H])
        g = jnp.tanh(gates[:, 2 * H:3 * H])
        o = jax.nn.sigmoid(gates[:, 3 * H:])
        c = f * c + i * g
        h = o * jnp.tanh(c)
        return (h, c), h

    init = (jnp.zeros((B, H), jnp.float32), jnp.zeros((B, H), jnp.float32))
    _, hs = jax.lax.scan(step, init, x_tbe)
    return hs


def bilstm_forward_ref(params, words, seq_len):
    emb = jnp.take(params["embedding"], words, axis=0)
    x = emb
    for lp in params["lstm"]:
        B, T, _ = x.shape
        h_f = jnp.transpose(
            lstm_direction_ref(jnp.transpose(x, (1, 0, 2)), *lp["fwd"]),
            (1, 0, 2))
        x_rev = reverse_by_len(x, seq_len)
        h_b = lstm_direction_ref(jnp.transpose(x_rev, (1, 0, 2)), *lp["bwd"])
        h_b = reverse_by_len(jnp.transpose(h_b, (1, 0, 2)), seq_len)
        out = jnp.concatenate([h_f, h_b], axis=-1)
        m = (jnp.arange(T)[None, :] < seq_len[:, None]).astype(out.dtype)
        x = out * m[..., None]
    B, T, D = x.shape
    pred = x.reshape(B * T, D) @ params["mlp_w_t"] + params["mlp_b"]
    return pred.reshape(B, T, -1)


# ----------------------------------------------------------------------------
# Deterministic parameter init
# ----------------------------------------------------------------------------
def init_params(key, vocab_size, emb_size, hidden_size, out_size, num_layers):
    keys = iter(jax.random.split(key, 64))
    H = hidden_size

    def uniform(k, shape, scale):
        return jax.random.uniform(k, shape, jnp.float32, -scale, scale)

    params = {"embedding": jax.random.normal(next(keys),
                                             (vocab_size, emb_size),
                                             jnp.float32)}
    lstm_params = []
    scale = 1.0 / jnp.sqrt(H)
    in_size = emb_size
    for _ in range(num_layers):
        layer = {}
        for d in ("fwd", "bwd"):
            w_ih = uniform(next(keys), (4 * H, in_size), scale)
            w_hh = uniform(next(keys), (4 * H, H), scale)
            b_ih = uniform(next(keys), (4 * H,), scale)
            b_hh = uniform(next(keys), (4 * H,), scale)
            # pre-transposed weights + fused bias for the kernels
            layer[d] = (w_ih.T, w_hh.T, (b_ih + b_hh)[None, :])
        lstm_params.append(layer)
        in_size = 2 * H
    params["lstm"] = lstm_params

    mlp_scale = 1.0 / jnp.sqrt(2 * H)
    mlp_w = uniform(next(keys), (out_size, 2 * H), mlp_scale)
    mlp_b = uniform(next(keys), (out_size,), mlp_scale)
    params["mlp_w_t"] = mlp_w.T
    params["mlp_b"] = mlp_b[None, :]
    return params


if __name__ == "__main__":
    # Small shapes consistent with the module (hidden_size matches the
    # module's default 128 so gate slices are lane-aligned).
    VOCAB, EMB, HIDDEN, OUT = 50, 64, 128, 8
    NUM_LAYERS = 2
    B, T = 8, 16

    key = jax.random.PRNGKey(0)
    k_params, k_words = jax.random.split(key)
    params = init_params(k_params, VOCAB, EMB, HIDDEN, OUT, NUM_LAYERS)

    words = jax.random.randint(k_words, (B, T), 0, VOCAB, dtype=jnp.int32)
    seq_len = jnp.array([16, 13, 16, 9, 8, 16, 5, 11], dtype=jnp.int32)

    fwd = jax.jit(functools.partial(bilstm_forward, params, t_block=8))
    pred = fwd(words, seq_len)
    jax.block_until_ready(pred)

    pred_ref = bilstm_forward_ref(params, words, seq_len)
    assert pred.shape == (B, T, OUT)
    assert jnp.allclose(pred, pred_ref, atol=1e-4, rtol=1e-4), (
        float(jnp.max(jnp.abs(pred - pred_ref))))

    print("KERNEL_OK")
</pallas_src>

<mosaic_0001>
module attributes {stable_mosaic.version = 11 : i64} {
  func.func @_fused_linear_kernel(%arg0: i32, %arg1: memref<128x64xf32, #tpu.memory_space<vmem>>, %arg2: memref<64x512xf32, #tpu.memory_space<vmem>>, %arg3: memref<1x512xf32, #tpu.memory_space<vmem>>, %arg4: memref<128x512xf32, #tpu.memory_space<vmem>>) attributes {dimension_semantics = [#tpu.dimension_semantics<parallel>], iteration_bounds = array<i64: 1>, scalar_prefetch = 0 : i64, scratch_operands = 0 : i64, tpu.core_type = #tpu.core_type<tc>, window_params = [{transform_indices = @transform_0, window_bounds = array<i64: 128, 64>}, {pipeline_mode = #tpu.pipeline_mode<synchronous>, transform_indices = @transform_1, window_bounds = array<i64: 64, 512>}, {pipeline_mode = #tpu.pipeline_mode<synchronous>, transform_indices = @transform_2, window_bounds = array<i64: 1, 512>}, {transform_indices = @transform_3, window_bounds = array<i64: 128, 512>}]} {
    %c0 = arith.constant 0 : index
    %c0_0 = arith.constant 0 : index
    %0 = vector.load %arg1[%c0, %c0_0] : memref<128x64xf32, #tpu.memory_space<vmem>>, vector<128x64xf32>
    %c0_1 = arith.constant 0 : index
    %c0_2 = arith.constant 0 : index
    %1 = vector.load %arg2[%c0_1, %c0_2] : memref<64x512xf32, #tpu.memory_space<vmem>>, vector<64x512xf32>
    %cst = arith.constant dense<0.000000e+00> : vector<128x512xf32>
    %2 = tpu.matmul %0, %1, %cst {dimension_numbers = #tpu.dot_dimension_numbers<[1], [0], [0], [1], [0, 0, 1, 1], [], []>} : vector<128x64xf32>, vector<64x512xf32>, vector<128x512xf32> -> vector<128x512xf32>
    %c0_3 = arith.constant 0 : index
    %c0_4 = arith.constant 0 : index
    %3 = vector.load %arg3[%c0_3, %c0_4] : memref<1x512xf32, #tpu.memory_space<vmem>>, vector<1x512xf32>
    %4 = vector.broadcast %3 : vector<1x512xf32> to vector<128x512xf32>
    %5 = arith.addf %2, %4 : vector<128x512xf32>
    %c0_5 = arith.constant 0 : index
    %c0_6 = arith.constant 0 : index
    %6 = vector.load %arg4[%c0_5, %c0_6] : memref<128x512xf32, #tpu.memory_space<vmem>>, vector<128x512xf32>
    tpu.vector_store %arg4[%c0_5, %c0_6], %5 {strides = array<i32>} : memref<128x512xf32, #tpu.memory_space<vmem>>, vector<128x512xf32>,
    return
  }
  func.func @transform_0(%arg0: i32) -> (i32, i32) {
    %c0_i32 = arith.constant 0 : i32
    %c0_i32_0 = arith.constant 0 : i32
    return %arg0, %c0_i32 : i32, i32
  }
  func.func @transform_1(%arg0: i32) -> (i32, i32) {
    %c0_i32 = arith.constant 0 : i32
    %c0_i32_0 = arith.constant 0 : i32
    %c0_i32_1 = arith.constant 0 : i32
    return %c0_i32, %c0_i32_0 : i32, i32
  }
  func.func @transform_2(%arg0: i32) -> (i32, i32) {
    %c0_i32 = arith.constant 0 : i32
    %c0_i32_0 = arith.constant 0 : i32
    %c0_i32_1 = arith.constant 0 : i32
    return %c0_i32, %c0_i32_0 : i32, i32
  }
  func.func @transform_3(%arg0: i32) -> (i32, i32) {
    %c0_i32 = arith.constant 0 : i32
    %c0_i32_0 = arith.constant 0 : i32
    return %arg0, %c0_i32 : i32, i32
  }
}

module attributes {stable_mosaic.version = 11 : i64} {
  func.func @_fused_linear_kernel(%arg0: i32, %arg1: memref<128x128xf32, #tpu.memory_space<vmem>>, %arg2: memref<128x128xf32, #tpu.memory_space<vmem>>, %arg3: memref<128x512xf32, #tpu.memory_space<vmem>>, %arg4: memref<128x512xf32, #tpu.memory_space<vmem>>, %arg5: memref<1x512xf32, #tpu.memory_space<vmem>>, %arg6: memref<128x512xf32, #tpu.memory_space<vmem>>) attributes {dimension_semantics = [#tpu.dimension_semantics<parallel>], iteration_bounds = array<i64: 1>, scalar_prefetch = 0 : i64, scratch_operands = 0 : i64, tpu.core_type = #tpu.core_type<tc>, window_params = [{transform_indices = @transform_0, window_bounds = array<i64: 128, 128>}, {transform_indices = @transform_1, window_bounds = array<i64: 128, 128>}, {pipeline_mode = #tpu.pipeline_mode<synchronous>, transform_indices = @transform_2, window_bounds = array<i64: 128, 512>}, {pipeline_mode = #tpu.pipeline_mode<synchronous>, transform_indices = @transform_3, window_bounds = array<i64: 128, 512>}, {pipeline_mode = #tpu.pipeline_mode<synchronous>, transform_indices = @transform_4, window_bounds = array<i64: 1, 512>}, {transform_indices = @transform_5, window_bounds = array<i64: 128, 512>}]} {
    %c0 = arith.constant 0 : index
    %c0_0 = arith.constant 0 : index
    %0 = vector.load %arg1[%c0, %c0_0] : memref<128x128xf32, #tpu.memory_space<vmem>>, vector<128x128xf32>
    %c0_1 = arith.constant 0 : index
    %c0_2 = arith.constant 0 : index
    %1 = vector.load %arg3[%c0_1, %c0_2] : memref<128x512xf32, #tpu.memory_space<vmem>>, vector<128x512xf32>
    %cst = arith.constant dense<0.000000e+00> : vector<128x512xf32>
    %2 = tpu.matmul %0, %1, %cst {dimension_numbers = #tpu.dot_dimension_numbers<[1], [0], [0], [1], [0, 0, 1, 1], [], []>} : vector<128x128xf32>, vector<128x512xf32>, vector<128x512xf32> -> vector<128x512xf32>
    %c0_3 = arith.constant 0 : index
    %c0_4 = arith.constant 0 : index
    %3 = vector.load %arg5[%c0_3, %c0_4] : memref<1x512xf32, #tpu.memory_space<vmem>>, vector<1x512xf32>
    %4 = vector.broadcast %3 : vector<1x512xf32> to vector<128x512xf32>
    %5 = arith.addf %2, %4 : vector<128x512xf32>
    %c0_5 = arith.constant 0 : index
    %c0_6 = arith.constant 0 : index
    %6 = vector.load %arg2[%c0_5, %c0_6] : memref<128x128xf32, #tpu.memory_space<vmem>>, vector<128x128xf32>
    %c0_7 = arith.constant 0 : index
    %c0_8 = arith.constant 0 : index
    %7 = vector.load %arg4[%c0_7, %c0_8] : memref<128x512xf32, #tpu.memory_space<vmem>>, vector<128x512xf32>
    %cst_9 = arith.constant dense<0.000000e+00> : vector<128x512xf32>
    %8 = tpu.matmul %6, %7, %cst_9 {dimension_numbers = #tpu.dot_dimension_numbers<[1], [0], [0], [1], [0, 0, 1, 1], [], []>} : vector<128x128xf32>, vector<128x512xf32>, vector<128x512xf32> -> vector<128x512xf32>
    %9 = arith.addf %5, %8 : vector<128x512xf32>
    %c0_10 = arith.constant 0 : index
    %c0_11 = arith.constant 0 : index
    %10 = vector.load %arg6[%c0_10, %c0_11] : memref<128x512xf32, #tpu.memory_space<vmem>>, vector<128x512xf32>
    tpu.vector_store %arg6[%c0_10, %c0_11], %9 {strides = array<i32>} : memref<128x512xf32, #tpu.memory_space<vmem>>, vector<128x512xf32>,
    return
  }
  func.func @transform_0(%arg0: i32) -> (i32, i32) {
    %c0_i32 = arith.constant 0 : i32
    %c0_i32_0 = arith.constant 0 : i32
    return %arg0, %c0_i32 : i32, i32
  }
  func.func @transform_1(%arg0: i32) -> (i32, i32) {
    %c0_i32 = arith.constant 0 : i32
    %c0_i32_0 = arith.constant 0 : i32
    return %arg0, %c0_i32 : i32, i32
  }
  func.func @transform_2(%arg0: i32) -> (i32, i32) {
    %c0_i32 = arith.constant 0 : i32
    %c0_i32_0 = arith.constant 0 : i32
    %c0_i32_1 = arith.constant 0 : i32
    return %c0_i32, %c0_i32_0 : i32, i32
  }
  func.func @transform_3(%arg0: i32) -> (i32, i32) {
    %c0_i32 = arith.constant 0 : i32
    %c0_i32_0 = arith.constant 0 : i32
    %c0_i32_1 = arith.constant 0 : i32
    return %c0_i32, %c0_i32_0 : i32, i32
  }
  func.func @transform_4(%arg0: i32) -> (i32, i32) {
    %c0_i32 = arith.constant 0 : i32
    %c0_i32_0 = arith.constant 0 : i32
    %c0_i32_1 = arith.constant 0 : i32
    return %c0_i32, %c0_i32_0 : i32, i32
  }
  func.func @transform_5(%arg0: i32) -> (i32, i32) {
    %c0_i32 = arith.constant 0 : i32
    %c0_i32_0 = arith.constant 0 : i32
    return %arg0, %c0_i32 : i32, i32
  }
}

module attributes {stable_mosaic.version = 11 : i64} {
  func.func @kernel(%arg0: i32, %arg1: memref<8x8x512xf32, #tpu.memory_space<vmem>>, %arg2: memref<8x8x512xf32, #tpu.memory_space<vmem>>, %arg3: memref<8x8x1xf32, #tpu.memory_space<vmem>>, %arg4: memref<8x8x1xf32, #tpu.memory_space<vmem>>, %arg5: memref<128x512xf32, #tpu.memory_space<vmem>>, %arg6: memref<128x512xf32, #tpu.memory_space<vmem>>, %arg7: memref<8x8x128xf32, #tpu.memory_space<vmem>>, %arg8: memref<8x8x128xf32, #tpu.memory_space<vmem>>, %arg9: memref<8x128xf32, #tpu.memory_space<vmem>>, %arg10: memref<8x128xf32, #tpu.memory_space<vmem>>, %arg11: memref<8x128xf32, #tpu.memory_space<vmem>>, %arg12: memref<8x128xf32, #tpu.memory_space<vmem>>) attributes {dimension_semantics = [#tpu.dimension_semantics<arbitrary>], iteration_bounds = array<i64: 2>, scalar_prefetch = 0 : i64, scratch_operands = 4 : i64, tpu.core_type = #tpu.core_type<tc>, window_params = [{transform_indices = @transform_0, window_bounds = array<i64: 8, 8, 512>}, {transform_indices = @transform_1, window_bounds = array<i64: 8, 8, 512>}, {transform_indices = @transform_2, window_bounds = array<i64: 8, 8, 1>}, {transform_indices = @transform_3, window_bounds = array<i64: 8, 8, 1>}, {pipeline_mode = #tpu.pipeline_mode<synchronous>, transform_indices = @transform_4, window_bounds = array<i64: 128, 512>}, {pipeline_mode = #tpu.pipeline_mode<synchronous>, transform_indices = @transform_5, window_bounds = array<i64: 128, 512>}, {transform_indices = @transform_6, window_bounds = array<i64: 8, 8, 128>}, {transform_indices = @transform_7, window_bounds = array<i64: 8, 8, 128>}]} {
    %c0_i32 = arith.constant 0 : i32
    %0 = arith.cmpi eq, %arg0, %c0_i32 : i32
    %1 = arith.extui %0 : i1 to i32
    %c0_i32_0 = arith.constant 0 : i32
    %2 = arith.cmpi ne, %1, %c0_i32_0 : i32
    scf.if %2 {
      %cst_384 = arith.constant 0.000000e+00 : f32
      %787 = vector.broadcast %cst_384 : f32 to vector<8x128xf32>
      %c0_385 = arith.constant 0 : index
      %c0_386 = arith.constant 0 : index
      %788 = vector.load %arg9[%c0_385, %c0_386] : memref<8x128xf32, #tpu.memory_space<vmem>>, vector<8x128xf32>
      tpu.vector_store %arg9[%c0_385, %c0_386], %787 {strides = array<i32>} : memref<8x128xf32, #tpu.memory_space<vmem>>, vector<8x128xf32>,
      %cst_387 = arith.constant 0.000000e+00 : f32
      %789 = vector.broadcast %cst_387 : f32 to vector<8x128xf32>
      %c0_388 = arith.constant 0 : index
      %c0_389 = arith.constant 0 : index
      %790 = vector.load %arg10[%c0_388, %c0_389] : memref<8x128xf32, #tpu.memory_space<vmem>>, vector<8x128xf32>
      tpu.vector_store %arg10[%c0_388, %c0_389], %789 {strides = array<i32>} : memref<8x128xf32, #tpu.memory_space<vmem>>, vector<8x128xf32>,
      %cst_390 = arith.constant 0.000000e+00 : f32
      %791 = vector.broadcast %cst_390 : f32 to vector<8x128xf32>
      %c0_391 = arith.constant 0 : index
      %c0_392 = arith.constant 0 : index
      %792 = vector.load %arg11[%c0_391, %c0_392] : memref<8x128xf32, #tpu.memory_space<vmem>>, vector<8x128xf32>
      tpu.vector_store %arg11[%c0_391, %c0_392], %791 {strides = array<i32>} : memref<8x128xf32, #tpu.memory_space<vmem>>, vector<8x128xf32>,
      %cst_393 = arith.constant 0.000000e+00 : f32
      %793 = vector.broadcast %cst_393 : f32 to vector<8x128xf32>
      %c0_394 = arith.constant 0 : index
      %c0_395 = arith.constant 0 : index
      %794 = vector.load %arg12[%c0_394, %c0_395] : memref<8x128xf32, #tpu.memory_space<vmem>>, vector<8x128xf32>
      tpu.vector_store %arg12[%c0_394, %c0_395], %793 {strides = array<i32>} : memref<8x128xf32, #tpu.memory_space<vmem>>, vector<8x128xf32>,
    } else {
    }
    %c0_i32_1 = arith.constant 0 : i32
    %3 = arith.index_cast %c0_i32_1 : i32 to index
    %c0 = arith.constant 0 : index
    %c0_2 = arith.constant 0 : index
    %4 = vector.load %arg1[%3, %c0, %c0_2] : memref<8x8x512xf32, #tpu.memory_space<vmem>>, vector<1x8x512xf32>
    %5 = vector.shape_cast %4 : vector<1x8x512xf32> to vector<8x512xf32>
    %c0_3 = arith.constant 0 : index
    %c0_4 = arith.constant 0 : index
    %6 = vector.load %arg9[%c0_3, %c0_4] : memref<8x128xf32, #tpu.memory_space<vmem>>, vector<8x128xf32>
    %c0_5 = arith.constant 0 : index
    %c0_6 = arith.constant 0 : index
    %7 = vector.load %arg10[%c0_5, %c0_6] : memref<8x128xf32, #tpu.memory_space<vmem>>, vector<8x128xf32>
    %c0_7 = arith.constant 0 : index
    %c0_8 = arith.constant 0 : index
    %8 = vector.load %arg5[%c0_7, %c0_8] : memref<128x512xf32, #tpu.memory_space<vmem>>, vector<128x512xf32>
    %cst = arith.constant dense<0.000000e+00> : vector<8x512xf32>
    %9 = tpu.matmul %6, %8, %cst {dimension_numbers = #tpu.dot_dimension_numbers<[1], [0], [0], [1], [0, 0, 1, 1], [], []>} : vector<8x128xf32>, vector<128x512xf32>, vector<8x512xf32> -> vector<8x512xf32>
    %10 = arith.addf %5, %9 : vector<8x512xf32>
    %11 = vector.extract_strided_slice %10 {offsets = [0, 0], sizes = [8, 128], strides = [1, 1]} : vector<8x512xf32> to vector<8x128xf32>
    %12 = arith.negf %11 : vector<8x128xf32>
    %13 = math.exp %12 : vector<8x128xf32>
    %cst_9 = arith.constant 1.000000e+00 : f32
    %14 = vector.broadcast %cst_9 : f32 to vector<8x128xf32>
    %15 = arith.addf %14, %13 : vector<8x128xf32>
    %16 = arith.divf %14, %15 : vector<8x128xf32>
    %17 = vector.extract_strided_slice %10 {offsets = [0, 128], sizes = [8, 128], strides = [1, 1]} : vector<8x512xf32> to vector<8x128xf32>
    %18 = arith.negf %17 : vector<8x128xf32>
    %19 = math.exp %18 : vector<8x128xf32>
    %cst_10 = arith.constant 1.000000e+00 : f32
    %20 = vector.broadcast %cst_10 : f32 to vector<8x128xf32>
    %21 = arith.addf %20, %19 : vector<8x128xf32>
    %22 = arith.divf %20, %21 : vector<8x128xf32>
    %23 = vector.extract_strided_slice %10 {offsets = [0, 256], sizes = [8, 128], strides = [1, 1]} : vector<8x512xf32> to vector<8x128xf32>
    %24 = math.tanh %23 : vector<8x128xf32>
    %25 = vector.extract_strided_slice %10 {offsets = [0, 384], sizes = [8, 128], strides = [1, 1]} : vector<8x512xf32> to vector<8x128xf32>
    %26 = arith.negf %25 : vector<8x128xf32>
    %27 = math.exp %26 : vector<8x128xf32>
    %cst_11 = arith.constant 1.000000e+00 : f32
    %28 = vector.broadcast %cst_11 : f32 to vector<8x128xf32>
    %29 = arith.addf %28, %27 : vector<8x128xf32>
    %30 = arith.divf %28, %29 : vector<8x128xf32>
    %31 = arith.mulf %22, %7 : vector<8x128xf32>
    %32 = arith.mulf %16, %24 : vector<8x128xf32>
    %33 = arith.addf %31, %32 : vector<8x128xf32>
    %34 = math.tanh %33 : vector<8x128xf32>
    %35 = arith.mulf %30, %34 : vector<8x128xf32>
    %c0_12 = arith.constant 0 : index
    %c0_13 = arith.constant 0 : index
    %36 = vector.load %arg9[%c0_12, %c0_13] : memref<8x128xf32, #tpu.memory_space<vmem>>, vector<8x128xf32>
    tpu.vector_store %arg9[%c0_12, %c0_13], %35 {strides = array<i32>} : memref<8x128xf32, #tpu.memory_space<vmem>>, vector<8x128xf32>,
    %c0_14 = arith.constant 0 : index
    %c0_15 = arith.constant 0 : index
    %37 = vector.load %arg10[%c0_14, %c0_15] : memref<8x128xf32, #tpu.memory_space<vmem>>, vector<8x128xf32>
    tpu.vector_store %arg10[%c0_14, %c0_15], %33 {strides = array<i32>} : memref<8x128xf32, #tpu.memory_space<vmem>>, vector<8x128xf32>,
    %38 = arith.index_cast %c0_i32_1 : i32 to index
    %c0_16 = arith.constant 0 : index
    %c0_17 = arith.constant 0 : index
    %39 = vector.load %arg3[%38, %c0_16, %c0_17] : memref<8x8x1xf32, #tpu.memory_space<vmem>>, vector<1x8x1xf32>
    %40 = vector.shape_cast %39 : vector<1x8x1xf32> to vector<8x1xf32>
    %41 = vector.broadcast %40 : vector<8x1xf32> to vector<8x128xf32>
    %42 = arith.mulf %35, %41 : vector<8x128xf32>
    %43 = arith.index_cast %c0_i32_1 : i32 to index
    %c0_18 = arith.constant 0 : index
    %c0_19 = arith.constant 0 : index
    %44 = vector.load %arg7[%43, %c0_18, %c0_19] : memref<8x8x128xf32, #tpu.memory_space<vmem>>, vector<1x8x128xf32>
    %45 = vector.shape_cast %44 : vector<1x8x128xf32> to vector<8x128xf32>
    %46 = vector.shape_cast %42 : vector<8x128xf32> to vector<1x8x128xf32>
    tpu.vector_store %arg7[%43, %c0_18, %c0_19], %46 {strides = array<i32>} : memref<8x8x128xf32, #tpu.memory_space<vmem>>, vector<1x8x128xf32>,
    %c7_i32 = arith.constant 7 : i32
    %47 = arith.subi %c7_i32, %c0_i32_1 : i32
    %48 = arith.index_cast %47 : i32 to index
    %c0_20 = arith.constant 0 : index
    %c0_21 = arith.constant 0 : index
    %49 = vector.load %arg2[%48, %c0_20, %c0_21] : memref<8x8x512xf32, #tpu.memory_space<vmem>>, vector<1x8x512xf32>
    %50 = vector.shape_cast %49 : vector<1x8x512xf32> to vector<8x512xf32>
    %c0_22 = arith.constant 0 : index
    %c0_23 = arith.constant 0 : index
    %51 = vector.load %arg11[%c0_22, %c0_23] : memref<8x128xf32, #tpu.memory_space<vmem>>, vector<8x128xf32>
    %c0_24 = arith.constant 0 : index
    %c0_25 = arith.constant 0 : index
    %52 = vector.load %arg12[%c0_24, %c0_25] : memref<8x128xf32, #tpu.memory_space<vmem>>, vector<8x128xf32>
    %c0_26 = arith.constant 0 : index
    %c0_27 = arith.constant 0 : index
    %53 = vector.load %arg6[%c0_26, %c0_27] : memref<128x512xf32, #tpu.memory_space<vmem>>, vector<128x512xf32>
    %cst_28 = arith.constant dense<0.000000e+00> : vector<8x512xf32>
    %54 = tpu.matmul %51, %53, %cst_28 {dimension_numbers = #tpu.dot_dimension_numbers<[1], [0], [0], [1], [0, 0, 1, 1], [], []>} : vector<8x128xf32>, vector<128x512xf32>, vector<8x512xf32> -> vector<8x512xf32>
    %55 = arith.addf %50, %54 : vector<8x512xf32>
    %56 = vector.extract_strided_slice %55 {offsets = [0, 0], sizes = [8, 128], strides = [1, 1]} : vector<8x512xf32> to vector<8x128xf32>
    %57 = arith.negf %56 : vector<8x128xf32>
    %58 = math.exp %57 : vector<8x128xf32>
    %cst_29 = arith.constant 1.000000e+00 : f32
    %59 = vector.broadcast %cst_29 : f32 to vector<8x128xf32>
    %60 = arith.addf %59, %58 : vector<8x128xf32>
    %61 = arith.divf %59, %60 : vector<8x128xf32>
    %62 = vector.extract_strided_slice %55 {offsets = [0, 128], sizes = [8, 128], strides = [1, 1]} : vector<8x512xf32> to vector<8x128xf32>
    %63 = arith.negf %62 : vector<8x128xf32>
    %64 = math.exp %63 : vector<8x128xf32>
    %cst_30 = arith.constant 1.000000e+00 : f32
    %65 = vector.broadcast %cst_30 : f32 to vector<8x128xf32>
    %66 = arith.addf %65, %64 : vector<8x128xf32>
    %67 = arith.divf %65, %66 : vector<8x128xf32>
    %68 = vector.extract_strided_slice %55 {offsets = [0, 256], sizes = [8, 128], strides = [1, 1]} : vector<8x512xf32> to vector<8x128xf32>
    %69 = math.tanh %68 : vector<8x128xf32>
    %70 = vector.extract_strided_slice %55 {offsets = [0, 384], sizes = [8, 128], strides = [1, 1]} : vector<8x512xf32> to vector<8x128xf32>
    %71 = arith.negf %70 : vector<8x128xf32>
    %72 = math.exp %71 : vector<8x128xf32>
    %cst_31 = arith.constant 1.000000e+00 : f32
    %73 = vector.broadcast %cst_31 : f32 to vector<8x128xf32>
    %74 = arith.addf %73, %72 : vector<8x128xf32>
    %75 = arith.divf %73, %74 : vector<8x128xf32>
    %76 = arith.mulf %67, %52 : vector<8x128xf32>
    %77 = arith.mulf %61, %69 : vector<8x128xf32>
    %78 = arith.addf %76, %77 : vector<8x128xf32>
    %79 = math.tanh %78 : vector<8x128xf32>
    %80 = arith.mulf %75, %79 : vector<8x128xf32>
    %81 = arith.index_cast %47 : i32 to index
    %c0_32 = arith.constant 0 : index
    %c0_33 = arith.constant 0 : index
    %82 = vector.load %arg4[%81, %c0_32, %c0_33] : memref<8x8x1xf32, #tpu.memory_space<vmem>>, vector<1x8x1xf32>
    %83 = vector.shape_cast %82 : vector<1x8x1xf32> to vector<8x1xf32>
    %cst_34 = arith.constant 0.000000e+00 : f32
    %84 = vector.broadcast %cst_34 : f32 to vector<8x1xf32>
    %85 = arith.cmpf ogt, %83, %84 : vector<8x1xf32>
    %c0_35 = arith.constant 0 : index
    %c0_36 = arith.constant 0 : index
    %86 = vector.load %arg11[%c0_35, %c0_36] : memref<8x128xf32, #tpu.memory_space<vmem>>, vector<8x128xf32>
    %87 = vector.shape_cast %85 : vector<8x1xi1> to vector<8x1xi1>
    %88 = vector.broadcast %87 : vector<8x1xi1> to vector<8x128xi1>
    %89 = arith.select %88, %80, %86 : vector<8x128xi1>, vector<8x128xf32>
    %c0_37 = arith.constant 0 : index
    %c0_38 = arith.constant 0 : index
    %90 = vector.load %arg11[%c0_37, %c0_38] : memref<8x128xf32, #tpu.memory_space<vmem>>, vector<8x128xf32>
    tpu.vector_store %arg11[%c0_37, %c0_38], %89 {strides = array<i32>} : memref<8x128xf32, #tpu.memory_space<vmem>>, vector<8x128xf32>,
    %c0_39 = arith.constant 0 : index
    %c0_40 = arith.constant 0 : index
    %91 = vector.load %arg12[%c0_39, %c0_40] : memref<8x128xf32, #tpu.memory_space<vmem>>, vector<8x128xf32>
    %92 = vector.shape_cast %85 : vector<8x1xi1> to vector<8x1xi1>
    %93 = vector.broadcast %92 : vector<8x1xi1> to vector<8x128xi1>
    %94 = arith.select %93, %78, %91 : vector<8x128xi1>, vector<8x128xf32>
    %c0_41 = arith.constant 0 : index
    %c0_42 = arith.constant 0 : index
    %95 = vector.load %arg12[%c0_41, %c0_42] : memref<8x128xf32, #tpu.memory_space<vmem>>, vector<8x128xf32>
    tpu.vector_store %arg12[%c0_41, %c0_42], %94 {strides = array<i32>} : memref<8x128xf32, #tpu.memory_space<vmem>>, vector<8x128xf32>,
    %c0_43 = arith.constant 0 : index
    %c0_44 = arith.constant 0 : index
    %96 = vector.load %arg11[%c0_43, %c0_44] : memref<8x128xf32, #tpu.memory_space<vmem>>, vector<8x128xf32>
    %97 = arith.index_cast %47 : i32 to index
    %c0_45 = arith.constant 0 : index
    %c0_46 = arith.constant 0 : index
    %98 = vector.load %arg8[%97, %c0_45, %c0_46] : memref<8x8x128xf32, #tpu.memory_space<vmem>>, vector<1x8x128xf32>
    %99 = vector.shape_cast %98 : vector<1x8x128xf32> to vector<8x128xf32>
    %100 = vector.shape_cast %96 : vector<8x128xf32> to vector<1x8x128xf32>
    tpu.vector_store %arg8[%97, %c0_45, %c0_46], %100 {strides = array<i32>} : memref<8x8x128xf32, #tpu.memory_space<vmem>>, vector<1x8x128xf32>,
    %c1_i32 = arith.constant 1 : i32
    %101 = arith.index_cast %c1_i32 : i32 to index
    %c0_47 = arith.constant 0 : index
    %c0_48 = arith.constant 0 : index
    %102 = vector.load %arg1[%101, %c0_47, %c0_48] : memref<8x8x512xf32, #tpu.memory_space<vmem>>, vector<1x8x512xf32>
    %103 = vector.shape_cast %102 : vector<1x8x512xf32> to vector<8x512xf32>
    %c0_49 = arith.constant 0 : index
    %c0_50 = arith.constant 0 : index
    %104 = vector.load %arg9[%c0_49, %c0_50] : memref<8x128xf32, #tpu.memory_space<vmem>>, vector<8x128xf32>
    %c0_51 = arith.constant 0 : index
    %c0_52 = arith.constant 0 : index
    %105 = vector.load %arg10[%c0_51, %c0_52] : memref<8x128xf32, #tpu.memory_space<vmem>>, vector<8x128xf32>
    %c0_53 = arith.constant 0 : index
    %c0_54 = arith.constant 0 : index
    %106 = vector.load %arg5[%c0_53, %c0_54] : memref<128x512xf32, #tpu.memory_space<vmem>>, vector<128x512xf32>
    %cst_55 = arith.constant dense<0.000000e+00> : vector<8x512xf32>
    %107 = tpu.matmul %104, %106, %cst_55 {dimension_numbers = #tpu.dot_dimension_numbers<[1], [0], [0], [1], [0, 0, 1, 1], [], []>} : vector<8x128xf32>, vector<128x512xf32>, vector<8x512xf32> -> vector<8x512xf32>
    %108 = arith.addf %103, %107 : vector<8x512xf32>
    %109 = vector.extract_strided_slice %108 {offsets = [0, 0], sizes = [8, 128], strides = [1, 1]} : vector<8x512xf32> to vector<8x128xf32>
    %110 = arith.negf %109 : vector<8x128xf32>
    %111 = math.exp %110 : vector<8x128xf32>
    %cst_56 = arith.constant 1.000000e+00 : f32
    %112 = vector.broadcast %cst_56 : f32 to vector<8x128xf32>
    %113 = arith.addf %112, %111 : vector<8x128xf32>
    %114 = arith.divf %112, %113 : vector<8x128xf32>
    %115 = vector.extract_strided_slice %108 {offsets = [0, 128], sizes = [8, 128], strides = [1, 1]} : vector<8x512xf32> to vector<8x128xf32>
    %116 = arith.negf %115 : vector<8x128xf32>
    %117 = math.exp %116 : vector<8x128xf32>
    %cst_57 = arith.constant 1.000000e+00 : f32
    %118 = vector.broadcast %cst_57 : f32 to vector<8x128xf32>
    %119 = arith.addf %118, %117 : vector<8x128xf32>
    %120 = arith.divf %118, %119 : vector<8x128xf32>
    %121 = vector.extract_strided_slice %108 {offsets = [0, 256], sizes = [8, 128], strides = [1, 1]} : vector<8x512xf32> to vector<8x128xf32>
    %122 = math.tanh %121 : vector<8x128xf32>
    %123 = vector.extract_strided_slice %108 {offsets = [0, 384], sizes = [8, 128], strides = [1, 1]} : vector<8x512xf32> to vector<8x128xf32>
    %124 = arith.negf %123 : vector<8x128xf32>
    %125 = math.exp %124 : vector<8x128xf32>
    %cst_58 = arith.constant 1.000000e+00 : f32
    %126 = vector.broadcast %cst_58 : f32 to vector<8x128xf32>
    %127 = arith.addf %126, %125 : vector<8x128xf32>
    %128 = arith.divf %126, %127 : vector<8x128xf32>
    %129 = arith.mulf %120, %105 : vector<8x128xf32>
    %130 = arith.mulf %114, %122 : vector<8x128xf32>
    %131 = arith.addf %129, %130 : vector<8x128xf32>
    %132 = math.tanh %131 : vector<8x128xf32>
    %133 = arith.mulf %128, %132 : vector<8x128xf32>
    %c0_59 = arith.constant 0 : index
    %c0_60 = arith.constant 0 : index
    %134 = vector.load %arg9[%c0_59, %c0_60] : memref<8x128xf32, #tpu.memory_space<vmem>>, vector<8x128xf32>
    tpu.vector_store %arg9[%c0_59, %c0_60], %133 {strides = array<i32>} : memref<8x128xf32, #tpu.memory_space<vmem>>, vector<8x128xf32>,
    %c0_61 = arith.constant 0 : index
    %c0_62 = arith.constant 0 : index
    %135 = vector.load %arg10[%c0_61, %c0_62] : memref<8x128xf32, #tpu.memory_space<vmem>>, vector<8x128xf32>
    tpu.vector_store %arg10[%c0_61, %c0_62], %131 {strides = array<i32>} : memref<8x128xf32, #tpu.memory_space<vmem>>, vector<8x128xf32>,
    %136 = arith.index_cast %c1_i32 : i32 to index
    %c0_63 = arith.constant 0 : index
    %c0_64 = arith.constant 0 : index
    %137 = vector.load %arg3[%136, %c0_63, %c0_64] : memref<8x8x1xf32, #tpu.memory_space<vmem>>, vector<1x8x1xf32>
    %138 = vector.shape_cast %137 : vector<1x8x1xf32> to vector<8x1xf32>
    %139 = vector.broadcast %138 : vector<8x1xf32> to vector<8x128xf32>
    %140 = arith.mulf %133, %139 : vector<8x128xf32>
    %141 = arith.index_cast %c1_i32 : i32 to index
    %c0_65 = arith.constant 0 : index
    %c0_66 = arith.constant 0 : index
    %142 = vector.load %arg7[%141, %c0_65, %c0_66] : memref<8x8x128xf32, #tpu.memory_space<vmem>>, vector<1x8x128xf32>
    %143 = vector.shape_cast %142 : vector<1x8x128xf32> to vector<8x128xf32>
    %144 = vector.shape_cast %140 : vector<8x128xf32> to vector<1x8x128xf32>
    tpu.vector_store %arg7[%141, %c0_65, %c0_66], %144 {strides = array<i32>} : memref<8x8x128xf32, #tpu.memory_space<vmem>>, vector<1x8x128xf32>,
    %c7_i32_67 = arith.constant 7 : i32
    %145 = arith.subi %c7_i32_67, %c1_i32 : i32
    %146 = arith.index_cast %145 : i32 to index
    %c0_68 = arith.constant 0 : index
    %c0_69 = arith.constant 0 : index
    %147 = vector.load %arg2[%146, %c0_68, %c0_69] : memref<8x8x512xf32, #tpu.memory_space<vmem>>, vector<1x8x512xf32>
    %148 = vector.shape_cast %147 : vector<1x8x512xf32> to vector<8x512xf32>
    %c0_70 = arith.constant 0 : index
    %c0_71 = arith.constant 0 : index
    %149 = vector.load %arg11[%c0_70, %c0_71] : memref<8x128xf32, #tpu.memory_space<vmem>>, vector<8x128xf32>
    %c0_72 = arith.constant 0 : index
    %c0_73 = arith.constant 0 : index
    %150 = vector.load %arg12[%c0_72, %c0_73] : memref<8x128xf32, #tpu.memory_space<vmem>>, vector<8x128xf32>
    %c0_74 = arith.constant 0 : index
    %c0_75 = arith.constant 0 : index
    %151 = vector.load %arg6[%c0_74, %c0_75] : memref<128x512xf32, #tpu.memory_space<vmem>>, vector<128x512xf32>
    %cst_76 = arith.constant dense<0.000000e+00> : vector<8x512xf32>
    %152 = tpu.matmul %149, %151, %cst_76 {dimension_numbers = #tpu.dot_dimension_numbers<[1], [0], [0], [1], [0, 0, 1, 1], [], []>} : vector<8x128xf32>, vector<128x512xf32>, vector<8x512xf32> -> vector<8x512xf32>
    %153 = arith.addf %148, %152 : vector<8x512xf32>
    %154 = vector.extract_strided_slice %153 {offsets = [0, 0], sizes = [8, 128], strides = [1, 1]} : vector<8x512xf32> to vector<8x128xf32>
    %155 = arith.negf %154 : vector<8x128xf32>
    %156 = math.exp %155 : vector<8x128xf32>
    %cst_77 = arith.constant 1.000000e+00 : f32
    %157 = vector.broadcast %cst_77 : f32 to vector<8x128xf32>
    %158 = arith.addf %157, %156 : vector<8x128xf32>
    %159 = arith.divf %157, %158 : vector<8x128xf32>
    %160 = vector.extract_strided_slice %153 {offsets = [0, 128], sizes = [8, 128], strides = [1, 1]} : vector<8x512xf32> to vector<8x128xf32>
    %161 = arith.negf %160 : vector<8x128xf32>
    %162 = math.exp %161 : vector<8x128xf32>
    %cst_78 = arith.constant 1.000000e+00 : f32
    %163 = vector.broadcast %cst_78 : f32 to vector<8x128xf32>
    %164 = arith.addf %163, %162 : vector<8x128xf32>
    %165 = arith.divf %163, %164 : vector<8x128xf32>
    %166 = vector.extract_strided_slice %153 {offsets = [0, 256], sizes = [8, 128], strides = [1, 1]} : vector<8x512xf32> to vector<8x128xf32>
    %167 = math.tanh %166 : vector<8x128xf32>
    %168 = vector.extract_strided_slice %153 {offsets = [0, 384], sizes = [8, 128], strides = [1, 1]} : vector<8x512xf32> to vector<8x128xf32>
    %169 = arith.negf %168 : vector<8x128xf32>
    %170 = math.exp %169 : vector<8x128xf32>
    %cst_79 = arith.constant 1.000000e+00 : f32
    %171 = vector.broadcast %cst_79 : f32 to vector<8x128xf32>
    %172 = arith.addf %171, %170 : vector<8x128xf32>
    %173 = arith.divf %171, %172 : vector<8x128xf32>
    %174 = arith.mulf %165, %150 : vector<8x128xf32>
    %175 = arith.mulf %159, %167 : vector<8x128xf32>
    %176 = arith.addf %174, %175 : vector<8x128xf32>
    %177 = math.tanh %176 : vector<8x128xf32>
    %178 = arith.mulf %173, %177 : vector<8x128xf32>
    %179 = arith.index_cast %145 : i32 to index
    %c0_80 = arith.constant 0 : index
    %c0_81 = arith.constant 0 : index
    %180 = vector.load %arg4[%179, %c0_80, %c0_81] : memref<8x8x1xf32, #tpu.memory_space<vmem>>, vector<1x8x1xf32>
    %181 = vector.shape_cast %180 : vector<1x8x1xf32> to vector<8x1xf32>
    %cst_82 = arith.constant 0.000000e+00 : f32
    %182 = vector.broadcast %cst_82 : f32 to vector<8x1xf32>
    %183 = arith.cmpf ogt, %181, %182 : vector<8x1xf32>
    %c0_83 = arith.constant 0 : index
    %c0_84 = arith.constant 0 : index
    %184 = vector.load %arg11[%c0_83, %c0_84] : memref<8x128xf32, #tpu.memory_space<vmem>>, vector<8x128xf32>
    %185 = vector.shape_cast %183 : vector<8x1xi1> to vector<8x1xi1>
    %186 = vector.broadcast %185 : vector<8x1xi1> to vector<8x128xi1>
    %187 = arith.select %186, %178, %184 : vector<8x128xi1>, vector<8x128xf32>
    %c0_85 = arith.constant 0 : index
    %c0_86 = arith.constant 0 : index
    %188 = vector.load %arg11[%c0_85, %c0_86] : memref<8x128xf32, #tpu.memory_space<vmem>>, vector<8x128xf32>
    tpu.vector_store %arg11[%c0_85, %c0_86], %187 {strides = array<i32>} : memref<8x128xf32, #tpu.memory_space<vmem>>, vector<8x128xf32>,
    %c0_87 = arith.constant 0 : index
    %c0_88 = arith.constant 0 : index
    %189 = vector.load %arg12[%c0_87, %c0_88] : memref<8x128xf32, #tpu.memory_space<vmem>>, vector<8x128xf32>
    %190 = vector.shape_cast %183 : vector<8x1xi1> to vector<8x1xi1>
    %191 = vector.broadcast %190 : vector<8x1xi1> to vector<8x128xi1>
    %192 = arith.select %191, %176, %189 : vector<8x128xi1>, vector<8x128xf32>
    %c0_89 = arith.constant 0 : index
    %c0_90 = arith.constant 0 : index
    %193 = vector.load %arg12[%c0_89, %c0_90] : memref<8x128xf32, #tpu.memory_space<vmem>>, vector<8x128xf32>
    tpu.vector_store %arg12[%c0_89, %c0_90], %192 {strides = array<i32>} : memref<8x128xf32, #tpu.memory_space<vmem>>, vector<8x128xf32>,
    %c0_91 = arith.constant 0 : index
    %c0_92 = arith.constant 0 : index
    %194 = vector.load %arg11[%c0_91, %c0_92] : memref<8x128xf32, #tpu.memory_space<vmem>>, vector<8x128xf32>
    %195 = arith.index_cast %145 : i32 to index
    %c0_93 = arith.constant 0 : index
    %c0_94 = arith.constant 0 : index
    %196 = vector.load %arg8[%195, %c0_93, %c0_94] : memref<8x8x128xf32, #tpu.memory_space<vmem>>, vector<1x8x128xf32>
    %197 = vector.shape_cast %196 : vector<1x8x128xf32> to vector<8x128xf32>
    %198 = vector.shape_cast %194 : vector<8x128xf32> to vector<1x8x128xf32>
    tpu.vector_store %arg8[%195, %c0_93, %c0_94], %198 {strides = array<i32>} : memref<8x8x128xf32, #tpu.memory_space<vmem>>, vector<1x8x128xf32>,
    %c2_i32 = arith.constant 2 : i32
    %199 = arith.index_cast %c2_i32 : i32 to index
    %c0_95 = arith.constant 0 : index
    %c0_96 = arith.constant 0 : index
    %200 = vector.load %arg1[%199, %c0_95, %c0_96] : memref<8x8x512xf32, #tpu.memory_space<vmem>>, vector<1x8x512xf32>
    %201 = vector.shape_cast %200 : vector<1x8x512xf32> to vector<8x512xf32>
    %c0_97 = arith.constant 0 : index
    %c0_98 = arith.constant 0 : index
    %202 = vector.load %arg9[%c0_97, %c0_98] : memref<8x128xf32, #tpu.memory_space<vmem>>, vector<8x128xf32>
    %c0_99 = arith.constant 0 : index
    %c0_100 = arith.constant 0 : index
    %203 = vector.load %arg10[%c0_99, %c0_100] : memref<8x128xf32, #tpu.memory_space<vmem>>, vector<8x128xf32>
    %c0_101 = arith.constant 0 : index
    %c0_102 = arith.constant 0 : index
    %204 = vector.load %arg5[%c0_101, %c0_102] : memref<128x512xf32, #tpu.memory_space<vmem>>, vector<128x512xf32>
    %cst_103 = arith.constant dense<0.000000e+00> : vector<8x512xf32>
    %205 = tpu.matmul %202, %204, %cst_103 {dimension_numbers = #tpu.dot_dimension_numbers<[1], [0], [0], [1], [0, 0, 1, 1], [], []>} : vector<8x128xf32>, vector<128x512xf32>, vector<8x512xf32> -> vector<8x512xf32>
    %206 = arith.addf %201, %205 : vector<8x512xf32>
    %207 = vector.extract_strided_slice %206 {offsets = [0, 0], sizes = [8, 128], strides = [1, 1]} : vector<8x512xf32> to vector<8x128xf32>
    %208 = arith.negf %207 : vector<8x128xf32>
    %209 = math.exp %208 : vector<8x128xf32>
    %cst_104 = arith.constant 1.000000e+00 : f32
    %210 = vector.broadcast %cst_104 : f32 to vector<8x128xf32>
    %211 = arith.addf %210, %209 : vector<8x128xf32>
    %212 = arith.divf %210, %211 : vector<8x128xf32>
    %213 = vector.extract_strided_slice %206 {offsets = [0, 128], sizes = [8, 128], strides = [1, 1]} : vector<8x512xf32> to vector<8x128xf32>
    %214 = arith.negf %213 : vector<8x128xf32>
    %215 = math.exp %214 : vector<8x128xf32>
    %cst_105 = arith.constant 1.000000e+00 : f32
    %216 = vector.broadcast %cst_105 : f32 to vector<8x128xf32>
    %217 = arith.addf %216, %215 : vector<8x128xf32>
    %218 = arith.divf %216, %217 : vector<8x128xf32>
    %219 = vector.extract_strided_slice %206 {offsets = [0, 256], sizes = [8, 128], strides = [1, 1]} : vector<8x512xf32> to vector<8x128xf32>
    %220 = math.tanh %219 : vector<8x128xf32>
    %221 = vector.extract_strided_slice %206 {offsets = [0, 384], sizes = [8, 128], strides = [1, 1]} : vector<8x512xf32> to vector<8x128xf32>
    %222 = arith.negf %221 : vector<8x128xf32>
    %223 = math.exp %222 : vector<8x128xf32>
    %cst_106 = arith.constant 1.000000e+00 : f32
    %224 = vector.broadcast %cst_106 : f32 to vector<8x128xf32>
    %225 = arith.addf %224, %223 : vector<8x128xf32>
    %226 = arith.divf %224, %225 : vector<8x128xf32>
    %227 = arith.mulf %218, %203 : vector<8x128xf32>
    %228 = arith.mulf %212, %220 : vector<8x128xf32>
    %229 = arith.addf %227, %228 : vector<8x128xf32>
    %230 = math.tanh %229 : vector<8x128xf32>
    %231 = arith.mulf %226, %230 : vector<8x128xf32>
    %c0_107 = arith.constant 0 : index
    %c0_108 = arith.constant 0 : index
    %232 = vector.load %arg9[%c0_107, %c0_108] : memref<8x128xf32, #tpu.memory_space<vmem>>, vector<8x128xf32>
    tpu.vector_store %arg9[%c0_107, %c0_108], %231 {strides = array<i32>} : memref<8x128xf32, #tpu.memory_space<vmem>>, vector<8x128xf32>,
    %c0_109 = arith.constant 0 : index
    %c0_110 = arith.constant 0 : index
    %233 = vector.load %arg10[%c0_109, %c0_110] : memref<8x128xf32, #tpu.memory_space<vmem>>, vector<8x128xf32>
    tpu.vector_store %arg10[%c0_109, %c0_110], %229 {strides = array<i32>} : memref<8x128xf32, #tpu.memory_space<vmem>>, vector<8x128xf32>,
    %234 = arith.index_cast %c2_i32 : i32 to index
    %c0_111 = arith.constant 0 : index
    %c0_112 = arith.constant 0 : index
    %235 = vector.load %arg3[%234, %c0_111, %c0_112] : memref<8x8x1xf32, #tpu.memory_space<vmem>>, vector<1x8x1xf32>
    %236 = vector.shape_cast %235 : vector<1x8x1xf32> to vector<8x1xf32>
    %237 = vector.broadcast %236 : vector<8x1xf32> to vector<8x128xf32>
    %238 = arith.mulf %231, %237 : vector<8x128xf32>
    %239 = arith.index_cast %c2_i32 : i32 to index
    %c0_113 = arith.constant 0 : index
    %c0_114 = arith.constant 0 : index
    %240 = vector.load %arg7[%239, %c0_113, %c0_114] : memref<8x8x128xf32, #tpu.memory_space<vmem>>, vector<1x8x128xf32>
    %241 = vector.shape_cast %240 : vector<1x8x128xf32> to vector<8x128xf32>
    %242 = vector.shape_cast %238 : vector<8x128xf32> to vector<1x8x128xf32>
    tpu.vector_store %arg7[%239, %c0_113, %c0_114], %242 {strides = array<i32>} : memref<8x8x128xf32, #tpu.memory_space<vmem>>, vector<1x8x128xf32>,
    %c7_i32_115 = arith.constant 7 : i32
    %243 = arith.subi %c7_i32_115, %c2_i32 : i32
    %244 = arith.index_cast %243 : i32 to index
    %c0_116 = arith.constant 0 : index
    %c0_117 = arith.constant 0 : index
    %245 = vector.load %arg2[%244, %c0_116, %c0_117] : memref<8x8x512xf32, #tpu.memory_space<vmem>>, vector<1x8x512xf32>
    %246 = vector.shape_cast %245 : vector<1x8x512xf32> to vector<8x512xf32>
    %c0_118 = arith.constant 0 : index
    %c0_119 = arith.constant 0 : index
    %247 = vector.load %arg11[%c0_118, %c0_119] : memref<8x128xf32, #tpu.memory_space<vmem>>, vector<8x128xf32>
    %c0_120 = arith.constant 0 : index
    %c0_121 = arith.constant 0 : index
    %248 = vector.load %arg12[%c0_120, %c0_121] : memref<8x128xf32, #tpu.memory_space<vmem>>, vector<8x128xf32>
    %c0_122 = arith.constant 0 : index
    %c0_123 = arith.constant 0 : index
    %249 = vector.load %arg6[%c0_122, %c0_123] : memref<128x512xf32, #tpu.memory_space<vmem>>, vector<128x512xf32>
    %cst_124 = arith.constant dense<0.000000e+00> : vector<8x512xf32>
    %250 = tpu.matmul %247, %249, %cst_124 {dimension_numbers = #tpu.dot_dimension_numbers<[1], [0], [0], [1], [0, 0, 1, 1], [], []>} : vector<8x128xf32>, vector<128x512xf32>, vector<8x512xf32> -> vector<8x512xf32>
    %251 = arith.addf %246, %250 : vector<8x512xf32>
    %252 = vector.extract_strided_slice %251 {offsets = [0, 0], sizes = [8, 128], strides = [1, 1]} : vector<8x512xf32> to vector<8x128xf32>
    %253 = arith.negf %252 : vector<8x128xf32>
    %254 = math.exp %253 : vector<8x128xf32>
    %cst_125 = arith.constant 1.000000e+00 : f32
    %255 = vector.broadcast %cst_125 : f32 to vector<8x128xf32>
    %256 = arith.addf %255, %254 : vector<8x128xf32>
    %257 = arith.divf %255, %256 : vector<8x128xf32>
    %258 = vector.extract_strided_slice %251 {offsets = [0, 128], sizes = [8, 128], strides = [1, 1]} : vector<8x512xf32> to vector<8x128xf32>
    %259 = arith.negf %258 : vector<8x128xf32>
    %260 = math.exp %259 : vector<8x128xf32>
    %cst_126 = arith.constant 1.000000e+00 : f32
    %261 = vector.broadcast %cst_126 : f32 to vector<8x128xf32>
    %262 = arith.addf %261, %260 : vector<8x128xf32>
    %263 = arith.divf %261, %262 : vector<8x128xf32>
    %264 = vector.extract_strided_slice %251 {offsets = [0, 256], sizes = [8, 128], strides = [1, 1]} : vector<8x512xf32> to vector<8x128xf32>
    %265 = math.tanh %264 : vector<8x128xf32>
    %266 = vector.extract_strided_slice %251 {offsets = [0, 384], sizes = [8, 128], strides = [1, 1]} : vector<8x512xf32> to vector<8x128xf32>
    %267 = arith.negf %266 : vector<8x128xf32>
    %268 = math.exp %267 : vector<8x128xf32>
    %cst_127 = arith.constant 1.000000e+00 : f32
    %269 = vector.broadcast %cst_127 : f32 to vector<8x128xf32>
    %270 = arith.addf %269, %268 : vector<8x128xf32>
    %271 = arith.divf %269, %270 : vector<8x128xf32>
    %272 = arith.mulf %263, %248 : vector<8x128xf32>
    %273 = arith.mulf %257, %265 : vector<8x128xf32>
    %274 = arith.addf %272, %273 : vector<8x128xf32>
    %275 = math.tanh %274 : vector<8x128xf32>
    %276 = arith.mulf %271, %275 : vector<8x128xf32>
    %277 = arith.index_cast %243 : i32 to index
    %c0_128 = arith.constant 0 : index
    %c0_129 = arith.constant 0 : index
    %278 = vector.load %arg4[%277, %c0_128, %c0_129] : memref<8x8x1xf32, #tpu.memory_space<vmem>>, vector<1x8x1xf32>
    %279 = vector.shape_cast %278 : vector<1x8x1xf32> to vector<8x1xf32>
    %cst_130 = arith.constant 0.000000e+00 : f32
    %280 = vector.broadcast %cst_130 : f32 to vector<8x1xf32>
    %281 = arith.cmpf ogt, %279, %280 : vector<8x1xf32>
    %c0_131 = arith.constant 0 : index
    %c0_132 = arith.constant 0 : index
    %282 = vector.load %arg11[%c0_131, %c0_132] : memref<8x128xf32, #tpu.memory_space<vmem>>, vector<8x128xf32>
    %283 = vector.shape_cast %281 : vector<8x1xi1> to vector<8x1xi1>
    %284 = vector.broadcast %283 : vector<8x1xi1> to vector<8x128xi1>
    %285 = arith.select %284, %276, %282 : vector<8x128xi1>, vector<8x128xf32>
    %c0_133 = arith.constant 0 : index
    %c0_134 = arith.constant 0 : index
    %286 = vector.load %arg11[%c0_133, %c0_134] : memref<8x128xf32, #tpu.memory_space<vmem>>, vector<8x128xf32>
    tpu.vector_store %arg11[%c0_133, %c0_134], %285 {strides = array<i32>} : memref<8x128xf32, #tpu.memory_space<vmem>>, vector<8x128xf32>,
    %c0_135 = arith.constant 0 : index
    %c0_136 = arith.constant 0 : index
    %287 = vector.load %arg12[%c0_135, %c0_136] : memref<8x128xf32, #tpu.memory_space<vmem>>, vector<8x128xf32>
    %288 = vector.shape_cast %281 : vector<8x1xi1> to vector<8x1xi1>
    %289 = vector.broadcast %288 : vector<8x1xi1> to vector<8x128xi1>
    %290 = arith.select %289, %274, %287 : vector<8x128xi1>, vector<8x128xf32>
    %c0_137 = arith.constant 0 : index
    %c0_138 = arith.constant 0 : index
    %291 = vector.load %arg12[%c0_137, %c0_138] : memref<8x128xf32, #tpu.memory_space<vmem>>, vector<8x128xf32>
    tpu.vector_store %arg12[%c0_137, %c0_138], %290 {strides = array<i32>} : memref<8x128xf32, #tpu.memory_space<vmem>>, vector<8x128xf32>,
    %c0_139 = arith.constant 0 : index
    %c0_140 = arith.constant 0 : index
    %292 = vector.load %arg11[%c0_139, %c0_140] : memref<8x128xf32, #tpu.memory_space<vmem>>, vector<8x128xf32>
    %293 = arith.index_cast %243 : i32 to index
    %c0_141 = arith.constant 0 : index
    %c0_142 = arith.constant 0 : index
    %294 = vector.load %arg8[%293, %c0_141, %c0_142] : memref<8x8x128xf32, #tpu.memory_space<vmem>>, vector<1x8x128xf32>
    %295 = vector.shape_cast %294 : vector<1x8x128xf32> to vector<8x128xf32>
    %296 = vector.shape_cast %292 : vector<8x128xf32> to vector<1x8x128xf32>
    tpu.vector_store %arg8[%293, %c0_141, %c0_142], %296 {strides = array<i32>} : memref<8x8x128xf32, #tpu.memory_space<vmem>>, vector<1x8x128xf32>,
    %c3_i32 = arith.constant 3 : i32
    %297 = arith.index_cast %c3_i32 : i32 to index
    %c0_143 = arith.constant 0 : index
    %c0_144 = arith.constant 0 : index
    %298 = vector.load %arg1[%297, %c0_143, %c0_144] : memref<8x8x512xf32, #tpu.memory_space<vmem>>, vector<1x8x512xf32>
    %299 = vector.shape_cast %298 : vector<1x8x512xf32> to vector<8x512xf32>
    %c0_145 = arith.constant 0 : index
    %c0_146 = arith.constant 0 : index
    %300 = vector.load %arg9[%c0_145, %c0_146] : memref<8x128xf32, #tpu.memory_space<vmem>>, vector<8x128xf32>
    %c0_147 = arith.constant 0 : index
    %c0_148 = arith.constant 0 : index
    %301 = vector.load %arg10[%c0_147, %c0_148] : memref<8x128xf32, #tpu.memory_space<vmem>>, vector<8x128xf32>
    %c0_149 = arith.constant 0 : index
    %c0_150 = arith.constant 0 : index
    %302 = vector.load %arg5[%c0_149, %c0_150] : memref<128x512xf32, #tpu.memory_space<vmem>>, vector<128x512xf32>
    %cst_151 = arith.constant dense<0.000000e+00> : vector<8x512xf32>
    %303 = tpu.matmul %300, %302, %cst_151 {dimension_numbers = #tpu.dot_dimension_numbers<[1], [0], [0], [1], [0, 0, 1, 1], [], []>} : vector<8x128xf32>, vector<128x512xf32>, vector<8x512xf32> -> vector<8x512xf32>
    %304 = arith.addf %299, %303 : vector<8x512xf32>
    %305 = vector.extract_strided_slice %304 {offsets = [0, 0], sizes = [8, 128], strides = [1, 1]} : vector<8x512xf32> to vector<8x128xf32>
    %306 = arith.negf %305 : vector<8x128xf32>
    %307 = math.exp %306 : vector<8x128xf32>
    %cst_152 = arith.constant 1.000000e+00 : f32
    %308 = vector.broadcast %cst_152 : f32 to vector<8x128xf32>
    %309 = arith.addf %308, %307 : vector<8x128xf32>
    %310 = arith.divf %308, %309 : vector<8x128xf32>
    %311 = vector.extract_strided_slice %304 {offsets = [0, 128], sizes = [8, 128], strides = [1, 1]} : vector<8x512xf32> to vector<8x128xf32>
    %312 = arith.negf %311 : vector<8x128xf32>
    %313 = math.exp %312 : vector<8x128xf32>
    %cst_153 = arith.constant 1.000000e+00 : f32
    %314 = vector.broadcast %cst_153 : f32 to vector<8x128xf32>
    %315 = arith.addf %314, %313 : vector<8x128xf32>
    %316 = arith.divf %314, %315 : vector<8x128xf32>
    %317 = vector.extract_strided_slice %304 {offsets = [0, 256], sizes = [8, 128], strides = [1, 1]} : vector<8x512xf32> to vector<8x128xf32>
    %318 = math.tanh %317 : vector<8x128xf32>
    %319 = vector.extract_strided_slice %304 {offsets = [0, 384], sizes = [8, 128], strides = [1, 1]} : vector<8x512xf32> to vector<8x128xf32>
    %320 = arith.negf %319 : vector<8x128xf32>
    %321 = math.exp %320 : vector<8x128xf32>
    %cst_154 = arith.constant 1.000000e+00 : f32
    %322 = vector.broadcast %cst_154 : f32 to vector<8x128xf32>
    %323 = arith.addf %322, %321 : vector<8x128xf32>
    %324 = arith.divf %322, %323 : vector<8x128xf32>
    %325 = arith.mulf %316, %301 : vector<8x128xf32>
    %326 = arith.mulf %310, %318 : vector<8x128xf32>
    %327 = arith.addf %325, %326 : vector<8x128xf32>
    %328 = math.tanh %327 : vector<8x128xf32>
    %329 = arith.mulf %324, %328 : vector<8x128xf32>
    %c0_155 = arith.constant 0 : index
    %c0_156 = arith.constant 0 : index
    %330 = vector.load %arg9[%c0_155, %c0_156] : memref<8x128xf32, #tpu.memory_space<vmem>>, vector<8x128xf32>
    tpu.vector_store %arg9[%c0_155, %c0_156], %329 {strides = array<i32>} : memref<8x128xf32, #tpu.memory_space<vmem>>, vector<8x128xf32>,
    %c0_157 = arith.constant 0 : index
    %c0_158 = arith.constant 0 : index
    %331 = vector.load %arg10[%c0_157, %c0_158] : memref<8x128xf32, #tpu.memory_space<vmem>>, vector<8x128xf32>
    tpu.vector_store %arg10[%c0_157, %c0_158], %327 {strides = array<i32>} : memref<8x128xf32, #tpu.memory_space<vmem>>, vector<8x128xf32>,
    %332 = arith.index_cast %c3_i32 : i32 to index
    %c0_159 = arith.constant 0 : index
    %c0_160 = arith.constant 0 : index
    %333 = vector.load %arg3[%332, %c0_159, %c0_160] : memref<8x8x1xf32, #tpu.memory_space<vmem>>, vector<1x8x1xf32>
    %334 = vector.shape_cast %333 : vector<1x8x1xf32> to vector<8x1xf32>
    %335 = vector.broadcast %334 : vector<8x1xf32> to vector<8x128xf32>
    %336 = arith.mulf %329, %335 : vector<8x128xf32>
    %337 = arith.index_cast %c3_i32 : i32 to index
    %c0_161 = arith.constant 0 : index
    %c0_162 = arith.constant 0 : index
    %338 = vector.load %arg7[%337, %c0_161, %c0_162] : memref<8x8x128xf32, #tpu.memory_space<vmem>>, vector<1x8x128xf32>
    %339 = vector.shape_cast %338 : vector<1x8x128xf32> to vector<8x128xf32>
    %340 = vector.shape_cast %336 : vector<8x128xf32> to vector<1x8x128xf32>
    tpu.vector_store %arg7[%337, %c0_161, %c0_162], %340 {strides = array<i32>} : memref<8x8x128xf32, #tpu.memory_space<vmem>>, vector<1x8x128xf32>,
    %c7_i32_163 = arith.constant 7 : i32
    %341 = arith.subi %c7_i32_163, %c3_i32 : i32
    %342 = arith.index_cast %341 : i32 to index
    %c0_164 = arith.constant 0 : index
    %c0_165 = arith.constant 0 : index
    %343 = vector.load %arg2[%342, %c0_164, %c0_165] : memref<8x8x512xf32, #tpu.memory_space<vmem>>, vector<1x8x512xf32>
    %344 = vector.shape_cast %343 : vector<1x8x512xf32> to vector<8x512xf32>
    %c0_166 = arith.constant 0 : index
    %c0_167 = arith.constant 0 : index
    %345 = vector.load %arg11[%c0_166, %c0_167] : memref<8x128xf32, #tpu.memory_space<vmem>>, vector<8x128xf32>
    %c0_168 = arith.constant 0 : index
    %c0_169 = arith.constant 0 : index
    %346 = vector.load %arg12[%c0_168, %c0_169] : memref<8x128xf32, #tpu.memory_space<vmem>>, vector<8x128xf32>
    %c0_170 = arith.constant 0 : index
    %c0_171 = arith.constant 0 : index
    %347 = vector.load %arg6[%c0_170, %c0_171] : memref<128x512xf32, #tpu.memory_space<vmem>>, vector<128x512xf32>
    %cst_172 = arith.constant dense<0.000000e+00> : vector<8x512xf32>
    %348 = tpu.matmul %345, %347, %cst_172 {dimension_numbers = #tpu.dot_dimension_numbers<[1], [0], [0], [1], [0, 0, 1, 1], [], []>} : vector<8x128xf32>, vector<128x512xf32>, vector<8x512xf32> -> vector<8x512xf32>
    %349 = arith.addf %344, %348 : vector<8x512xf32>
    %350 = vector.extract_strided_slice %349 {offsets = [0, 0], sizes = [8, 128], strides = [1, 1]} : vector<8x512xf32> to vector<8x128xf32>
    %351 = arith.negf %350 : vector<8x128xf32>
    %352 = math.exp %351 : vector<8x128xf32>
    %cst_173 = arith.constant 1.000000e+00 : f32
    %353 = vector.broadcast %cst_173 : f32 to vector<8x128xf32>
    %354 = arith.addf %353, %352 : vector<8x128xf32>
    %355 = arith.divf %353, %354 : vector<8x128xf32>
    %356 = vector.extract_strided_slice %349 {offsets = [0, 128], sizes = [8, 128], strides = [1, 1]} : vector<8x512xf32> to vector<8x128xf32>
    %357 = arith.negf %356 : vector<8x128xf32>
    %358 = math.exp %357 : vector<8x128xf32>
    %cst_174 = arith.constant 1.000000e+00 : f32
    %359 = vector.broadcast %cst_174 : f32 to vector<8x128xf32>
    %360 = arith.addf %359, %358 : vector<8x128xf32>
    %361 = arith.divf %359, %360 : vector<8x128xf32>
    %362 = vector.extract_strided_slice %349 {offsets = [0, 256], sizes = [8, 128], strides = [1, 1]} : vector<8x512xf32> to vector<8x128xf32>
    %363 = math.tanh %362 : vector<8x128xf32>
    %364 = vector.extract_strided_slice %349 {offsets = [0, 384], sizes = [8, 128], strides = [1, 1]} : vector<8x512xf32> to vector<8x128xf32>
    %365 = arith.negf %364 : vector<8x128xf32>
    %366 = math.exp %365 : vector<8x128xf32>
    %cst_175 = arith.constant 1.000000e+00 : f32
    %367 = vector.broadcast %cst_175 : f32 to vector<8x128xf32>
    %368 = arith.addf %367, %366 : vector<8x128xf32>
    %369 = arith.divf %367, %368 : vector<8x128xf32>
    %370 = arith.mulf %361, %346 : vector<8x128xf32>
    %371 = arith.mulf %355, %363 : vector<8x128xf32>
    %372 = arith.addf %370, %371 : vector<8x128xf32>
    %373 = math.tanh %372 : vector<8x128xf32>
    %374 = arith.mulf %369, %373 : vector<8x128xf32>
    %375 = arith.index_cast %341 : i32 to index
    %c0_176 = arith.constant 0 : index
    %c0_177 = arith.constant 0 : index
    %376 = vector.load %arg4[%375, %c0_176, %c0_177] : memref<8x8x1xf32, #tpu.memory_space<vmem>>, vector<1x8x1xf32>
    %377 = vector.shape_cast %376 : vector<1x8x1xf32> to vector<8x1xf32>
    %cst_178 = arith.constant 0.000000e+00 : f32
    %378 = vector.broadcast %cst_178 : f32 to vector<8x1xf32>
    %379 = arith.cmpf ogt, %377, %378 : vector<8x1xf32>
    %c0_179 = arith.constant 0 : index
    %c0_180 = arith.constant 0 : index
    %380 = vector.load %arg11[%c0_179, %c0_180] : memref<8x128xf32, #tpu.memory_space<vmem>>, vector<8x128xf32>
    %381 = vector.shape_cast %379 : vector<8x1xi1> to vector<8x1xi1>
    %382 = vector.broadcast %381 : vector<8x1xi1> to vector<8x128xi1>
    %383 = arith.select %382, %374, %380 : vector<8x128xi1>, vector<8x128xf32>
    %c0_181 = arith.constant 0 : index
    %c0_182 = arith.constant 0 : index
    %384 = vector.load %arg11[%c0_181, %c0_182] : memref<8x128xf32, #tpu.memory_space<vmem>>, vector<8x128xf32>
    tpu.vector_store %arg11[%c0_181, %c0_182], %383 {strides = array<i32>} : memref<8x128xf32, #tpu.memory_space<vmem>>, vector<8x128xf32>,
    %c0_183 = arith.constant 0 : index
    %c0_184 = arith.constant 0 : index
    %385 = vector.load %arg12[%c0_183, %c0_184] : memref<8x128xf32, #tpu.memory_space<vmem>>, vector<8x128xf32>
    %386 = vector.shape_cast %379 : vector<8x1xi1> to vector<8x1xi1>
    %387 = vector.broadcast %386 : vector<8x1xi1> to vector<8x128xi1>
    %388 = arith.select %387, %372, %385 : vector<8x128xi1>, vector<8x128xf32>
    %c0_185 = arith.constant 0 : index
    %c0_186 = arith.constant 0 : index
    %389 = vector.load %arg12[%c0_185, %c0_186] : memref<8x128xf32, #tpu.memory_space<vmem>>, vector<8x128xf32>
    tpu.vector_store %arg12[%c0_185, %c0_186], %388 {strides = array<i32>} : memref<8x128xf32, #tpu.memory_space<vmem>>, vector<8x128xf32>,
    %c0_187 = arith.constant 0 : index
    %c0_188 = arith.constant 0 : index
    %390 = vector.load %arg11[%c0_187, %c0_188] : memref<8x128xf32, #tpu.memory_space<vmem>>, vector<8x128xf32>
    %391 = arith.index_cast %341 : i32 to index
    %c0_189 = arith.constant 0 : index
    %c0_190 = arith.constant 0 : index
    %392 = vector.load %arg8[%391, %c0_189, %c0_190] : memref<8x8x128xf32, #tpu.memory_space<vmem>>, vector<1x8x128xf32>
    %393 = vector.shape_cast %392 : vector<1x8x128xf32> to vector<8x128xf32>
    %394 = vector.shape_cast %390 : vector<8x128xf32> to vector<1x8x128xf32>
    tpu.vector_store %arg8[%391, %c0_189, %c0_190], %394 {strides = array<i32>} : memref<8x8x128xf32, #tpu.memory_space<vmem>>, vector<1x8x128xf32>,
    %c4_i32 = arith.constant 4 : i32
    %395 = arith.index_cast %c4_i32 : i32 to index
    %c0_191 = arith.constant 0 : index
    %c0_192 = arith.constant 0 : index
    %396 = vector.load %arg1[%395, %c0_191, %c0_192] : memref<8x8x512xf32, #tpu.memory_space<vmem>>, vector<1x8x512xf32>
    %397 = vector.shape_cast %396 : vector<1x8x512xf32> to vector<8x512xf32>
    %c0_193 = arith.constant 0 : index
    %c0_194 = arith.constant 0 : index
    %398 = vector.load %arg9[%c0_193, %c0_194] : memref<8x128xf32, #tpu.memory_space<vmem>>, vector<8x128xf32>
    %c0_195 = arith.constant 0 : index
    %c0_196 = arith.constant 0 : index
    %399 = vector.load %arg10[%c0_195, %c0_196] : memref<8x128xf32, #tpu.memory_space<vmem>>, vector<8x128xf32>
    %c0_197 = arith.constant 0 : index
    %c0_198 = arith.constant 0 : index
    %400 = vector.load %arg5[%c0_197, %c0_198] : memref<128x512xf32, #tpu.memory_space<vmem>>, vector<128x512xf32>
    %cst_199 = arith.constant dense<0.000000e+00> : vector<8x512xf32>
    %401 = tpu.matmul %398, %400, %cst_199 {dimension_numbers = #tpu.dot_dimension_numbers<[1], [0], [0], [1], [0, 0, 1, 1], [], []>} : vector<8x128xf32>, vector<128x512xf32>, vector<8x512xf32> -> vector<8x512xf32>
    %402 = arith.addf %397, %401 : vector<8x512xf32>
    %403 = vector.extract_strided_slice %402 {offsets = [0, 0], sizes = [8, 128], strides = [1, 1]} : vector<8x512xf32> to vector<8x128xf32>
    %404 = arith.negf %403 : vector<8x128xf32>
    %405 = math.exp %404 : vector<8x128xf32>
    %cst_200 = arith.constant 1.000000e+00 : f32
    %406 = vector.broadcast %cst_200 : f32 to vector<8x128xf32>
    %407 = arith.addf %406, %405 : vector<8x128xf32>
    %408 = arith.divf %406, %407 : vector<8x128xf32>
    %409 = vector.extract_strided_slice %402 {offsets = [0, 128], sizes = [8, 128], strides = [1, 1]} : vector<8x512xf32> to vector<8x128xf32>
    %410 = arith.negf %409 : vector<8x128xf32>
    %411 = math.exp %410 : vector<8x128xf32>
    %cst_201 = arith.constant 1.000000e+00 : f32
    %412 = vector.broadcast %cst_201 : f32 to vector<8x128xf32>
    %413 = arith.addf %412, %411 : vector<8x128xf32>
    %414 = arith.divf %412, %413 : vector<8x128xf32>
    %415 = vector.extract_strided_slice %402 {offsets = [0, 256], sizes = [8, 128], strides = [1, 1]} : vector<8x512xf32> to vector<8x128xf32>
    %416 = math.tanh %415 : vector<8x128xf32>
    %417 = vector.extract_strided_slice %402 {offsets = [0, 384], sizes = [8, 128], strides = [1, 1]} : vector<8x512xf32> to vector<8x128xf32>
    %418 = arith.negf %417 : vector<8x128xf32>
    %419 = math.exp %418 : vector<8x128xf32>
    %cst_202 = arith.constant 1.000000e+00 : f32
    %420 = vector.broadcast %cst_202 : f32 to vector<8x128xf32>
    %421 = arith.addf %420, %419 : vector<8x128xf32>
    %422 = arith.divf %420, %421 : vector<8x128xf32>
    %423 = arith.mulf %414, %399 : vector<8x128xf32>
    %424 = arith.mulf %408, %416 : vector<8x128xf32>
    %425 = arith.addf %423, %424 : vector<8x128xf32>
    %426 = math.tanh %425 : vector<8x128xf32>
    %427 = arith.mulf %422, %426 : vector<8x128xf32>
    %c0_203 = arith.constant 0 : index
    %c0_204 = arith.constant 0 : index
    %428 = vector.load %arg9[%c0_203, %c0_204] : memref<8x128xf32, #tpu.memory_space<vmem>>, vector<8x128xf32>
    tpu.vector_store %arg9[%c0_203, %c0_204], %427 {strides = array<i32>} : memref<8x128xf32, #tpu.memory_space<vmem>>, vector<8x128xf32>,
    %c0_205 = arith.constant 0 : index
    %c0_206 = arith.constant 0 : index
    %429 = vector.load %arg10[%c0_205, %c0_206] : memref<8x128xf32, #tpu.memory_space<vmem>>, vector<8x128xf32>
    tpu.vector_store %arg10[%c0_205, %c0_206], %425 {strides = array<i32>} : memref<8x128xf32, #tpu.memory_space<vmem>>, vector<8x128xf32>,
    %430 = arith.index_cast %c4_i32 : i32 to index
    %c0_207 = arith.constant 0 : index
    %c0_208 = arith.constant 0 : index
    %431 = vector.load %arg3[%430, %c0_207, %c0_208] : memref<8x8x1xf32, #tpu.memory_space<vmem>>, vector<1x8x1xf32>
    %432 = vector.shape_cast %431 : vector<1x8x1xf32> to vector<8x1xf32>
    %433 = vector.broadcast %432 : vector<8x1xf32> to vector<8x128xf32>
    %434 = arith.mulf %427, %433 : vector<8x128xf32>
    %435 = arith.index_cast %c4_i32 : i32 to index
    %c0_209 = arith.constant 0 : index
    %c0_210 = arith.constant 0 : index
    %436 = vector.load %arg7[%435, %c0_209, %c0_210] : memref<8x8x128xf32, #tpu.memory_space<vmem>>, vector<1x8x128xf32>
    %437 = vector.shape_cast %436 : vector<1x8x128xf32> to vector<8x128xf32>
    %438 = vector.shape_cast %434 : vector<8x128xf32> to vector<1x8x128xf32>
    tpu.vector_store %arg7[%435, %c0_209, %c0_210], %438 {strides = array<i32>} : memref<8x8x128xf32, #tpu.memory_space<vmem>>, vector<1x8x128xf32>,
    %c7_i32_211 = arith.constant 7 : i32
    %439 = arith.subi %c7_i32_211, %c4_i32 : i32
    %440 = arith.index_cast %439 : i32 to index
    %c0_212 = arith.constant 0 : index
    %c0_213 = arith.constant 0 : index
    %441 = vector.load %arg2[%440, %c0_212, %c0_213] : memref<8x8x512xf32, #tpu.memory_space<vmem>>, vector<1x8x512xf32>
    %442 = vector.shape_cast %441 : vector<1x8x512xf32> to vector<8x512xf32>
    %c0_214 = arith.constant 0 : index
    %c0_215 = arith.constant 0 : index
    %443 = vector.load %arg11[%c0_214, %c0_215] : memref<8x128xf32, #tpu.memory_space<vmem>>, vector<8x128xf32>
    %c0_216 = arith.constant 0 : index
    %c0_217 = arith.constant 0 : index
    %444 = vector.load %arg12[%c0_216, %c0_217] : memref<8x128xf32, #tpu.memory_space<vmem>>, vector<8x128xf32>
    %c0_218 = arith.constant 0 : index
    %c0_219 = arith.constant 0 : index
    %445 = vector.load %arg6[%c0_218, %c0_219] : memref<128x512xf32, #tpu.memory_space<vmem>>, vector<128x512xf32>
    %cst_220 = arith.constant dense<0.000000e+00> : vector<8x512xf32>
    %446 = tpu.matmul %443, %445, %cst_220 {dimension_numbers = #tpu.dot_dimension_numbers<[1], [0], [0], [1], [0, 0, 1, 1], [], []>} : vector<8x128xf32>, vector<128x512xf32>, vector<8x512xf32> -> vector<8x512xf32>
    %447 = arith.addf %442, %446 : vector<8x512xf32>
    %448 = vector.extract_strided_slice %447 {offsets = [0, 0], sizes = [8, 128], strides = [1, 1]} : vector<8x512xf32> to vector<8x128xf32>
    %449 = arith.negf %448 : vector<8x128xf32>
    %450 = math.exp %449 : vector<8x128xf32>
    %cst_221 = arith.constant 1.000000e+00 : f32
    %451 = vector.broadcast %cst_221 : f32 to vector<8x128xf32>
    %452 = arith.addf %451, %450 : vector<8x128xf32>
    %453 = arith.divf %451, %452 : vector<8x128xf32>
    %454 = vector.extract_strided_slice %447 {offsets = [0, 128], sizes = [8, 128], strides = [1, 1]} : vector<8x512xf32> to vector<8x128xf32>
    %455 = arith.negf %454 : vector<8x128xf32>
    %456 = math.exp %455 : vector<8x128xf32>
    %cst_222 = arith.constant 1.000000e+00 : f32
    %457 = vector.broadcast %cst_222 : f32 to vector<8x128xf32>
    %458 = arith.addf %457, %456 : vector<8x128xf32>
    %459 = arith.divf %457, %458 : vector<8x128xf32>
    %460 = vector.extract_strided_slice %447 {offsets = [0, 256], sizes = [8, 128], strides = [1, 1]} : vector<8x512xf32> to vector<8x128xf32>
    %461 = math.tanh %460 : vector<8x128xf32>
    %462 = vector.extract_strided_slice %447 {offsets = [0, 384], sizes = [8, 128], strides = [1, 1]} : vector<8x512xf32> to vector<8x128xf32>
    %463 = arith.negf %462 : vector<8x128xf32>
    %464 = math.exp %463 : vector<8x128xf32>
    %cst_223 = arith.constant 1.000000e+00 : f32
    %465 = vector.broadcast %cst_223 : f32 to vector<8x128xf32>
    %466 = arith.addf %465, %464 : vector<8x128xf32>
    %467 = arith.divf %465, %466 : vector<8x128xf32>
    %468 = arith.mulf %459, %444 : vector<8x128xf32>
    %469 = arith.mulf %453, %461 : vector<8x128xf32>
    %470 = arith.addf %468, %469 : vector<8x128xf32>
    %471 = math.tanh %470 : vector<8x128xf32>
    %472 = arith.mulf %467, %471 : vector<8x128xf32>
    %473 = arith.index_cast %439 : i32 to index
    %c0_224 = arith.constant 0 : index
    %c0_225 = arith.constant 0 : index
    %474 = vector.load %arg4[%473, %c0_224, %c0_225] : memref<8x8x1xf32, #tpu.memory_space<vmem>>, vector<1x8x1xf32>
    %475 = vector.shape_cast %474 : vector<1x8x1xf32> to vector<8x1xf32>
    %cst_226 = arith.constant 0.000000e+00 : f32
    %476 = vector.broadcast %cst_226 : f32 to vector<8x1xf32>
    %477 = arith.cmpf ogt, %475, %476 : vector<8x1xf32>
    %c0_227 = arith.constant 0 : index
    %c0_228 = arith.constant 0 : index
    %478 = vector.load %arg11[%c0_227, %c0_228] : memref<8x128xf32, #tpu.memory_space<vmem>>, vector<8x128xf32>
    %479 = vector.shape_cast %477 : vector<8x1xi1> to vector<8x1xi1>
    %480 = vector.broadcast %479 : vector<8x1xi1> to vector<8x128xi1>
    %481 = arith.select %480, %472, %478 : vector<8x128xi1>, vector<8x128xf32>
    %c0_229 = arith.constant 0 : index
    %c0_230 = arith.constant 0 : index
    %482 = vector.load %arg11[%c0_229, %c0_230] : memref<8x128xf32, #tpu.memory_space<vmem>>, vector<8x128xf32>
    tpu.vector_store %arg11[%c0_229, %c0_230], %481 {strides = array<i32>} : memref<8x128xf32, #tpu.memory_space<vmem>>, vector<8x128xf32>,
    %c0_231 = arith.constant 0 : index
    %c0_232 = arith.constant 0 : index
    %483 = vector.load %arg12[%c0_231, %c0_232] : memref<8x128xf32, #tpu.memory_space<vmem>>, vector<8x128xf32>
    %484 = vector.shape_cast %477 : vector<8x1xi1> to vector<8x1xi1>
    %485 = vector.broadcast %484 : vector<8x1xi1> to vector<8x128xi1>
    %486 = arith.select %485, %470, %483 : vector<8x128xi1>, vector<8x128xf32>
    %c0_233 = arith.constant 0 : index
    %c0_234 = arith.constant 0 : index
    %487 = vector.load %arg12[%c0_233, %c0_234] : memref<8x128xf32, #tpu.memory_space<vmem>>, vector<8x128xf32>
    tpu.vector_store %arg12[%c0_233, %c0_234], %486 {strides = array<i32>} : memref<8x128xf32, #tpu.memory_space<vmem>>, vector<8x128xf32>,
    %c0_235 = arith.constant 0 : index
    %c0_236 = arith.constant 0 : index
    %488 = vector.load %arg11[%c0_235, %c0_236] : memref<8x128xf32, #tpu.memory_space<vmem>>, vector<8x128xf32>
    %489 = arith.index_cast %439 : i32 to index
    %c0_237 = arith.constant 0 : index
    %c0_238 = arith.constant 0 : index
    %490 = vector.load %arg8[%489, %c0_237, %c0_238] : memref<8x8x128xf32, #tpu.memory_space<vmem>>, vector<1x8x128xf32>
    %491 = vector.shape_cast %490 : vector<1x8x128xf32> to vector<8x128xf32>
    %492 = vector.shape_cast %488 : vector<8x128xf32> to vector<1x8x128xf32>
    tpu.vector_store %arg8[%489, %c0_237, %c0_238], %492 {strides = array<i32>} : memref<8x8x128xf32, #tpu.memory_space<vmem>>, vector<1x8x128xf32>,
    %c5_i32 = arith.constant 5 : i32
    %493 = arith.index_cast %c5_i32 : i32 to index
    %c0_239 = arith.constant 0 : index
    %c0_240 = arith.constant 0 : index
    %494 = vector.load %arg1[%493, %c0_239, %c0_240] : memref<8x8x512xf32, #tpu.memory_space<vmem>>, vector<1x8x512xf32>
    %495 = vector.shape_cast %494 : vector<1x8x512xf32> to vector<8x512xf32>
    %c0_241 = arith.constant 0 : index
    %c0_242 = arith.constant 0 : index
    %496 = vector.load %arg9[%c0_241, %c0_242] : memref<8x128xf32, #tpu.memory_space<vmem>>, vector<8x128xf32>
    %c0_243 = arith.constant 0 : index
    %c0_244 = arith.constant 0 : index
    %497 = vector.load %arg10[%c0_243, %c0_244] : memref<8x128xf32, #tpu.memory_space<vmem>>, vector<8x128xf32>
    %c0_245 = arith.constant 0 : index
    %c0_246 = arith.constant 0 : index
    %498 = vector.load %arg5[%c0_245, %c0_246] : memref<128x512xf32, #tpu.memory_space<vmem>>, vector<128x512xf32>
    %cst_247 = arith.constant dense<0.000000e+00> : vector<8x512xf32>
    %499 = tpu.matmul %496, %498, %cst_247 {dimension_numbers = #tpu.dot_dimension_numbers<[1], [0], [0], [1], [0, 0, 1, 1], [], []>} : vector<8x128xf32>, vector<128x512xf32>, vector<8x512xf32> -> vector<8x512xf32>
    %500 = arith.addf %495, %499 : vector<8x512xf32>
    %501 = vector.extract_strided_slice %500 {offsets = [0, 0], sizes = [8, 128], strides = [1, 1]} : vector<8x512xf32> to vector<8x128xf32>
    %502 = arith.negf %501 : vector<8x128xf32>
    %503 = math.exp %502 : vector<8x128xf32>
    %cst_248 = arith.constant 1.000000e+00 : f32
    %504 = vector.broadcast %cst_248 : f32 to vector<8x128xf32>
    %505 = arith.addf %504, %503 : vector<8x128xf32>
    %506 = arith.divf %504, %505 : vector<8x128xf32>
    %507 = vector.extract_strided_slice %500 {offsets = [0, 128], sizes = [8, 128], strides = [1, 1]} : vector<8x512xf32> to vector<8x128xf32>
    %508 = arith.negf %507 : vector<8x128xf32>
    %509 = math.exp %508 : vector<8x128xf32>
    %cst_249 = arith.constant 1.000000e+00 : f32
    %510 = vector.broadcast %cst_249 : f32 to vector<8x128xf32>
    %511 = arith.addf %510, %509 : vector<8x128xf32>
    %512 = arith.divf %510, %511 : vector<8x128xf32>
    %513 = vector.extract_strided_slice %500 {offsets = [0, 256], sizes = [8, 128], strides = [1, 1]} : vector<8x512xf32> to vector<8x128xf32>
    %514 = math.tanh %513 : vector<8x128xf32>
    %515 = vector.extract_strided_slice %500 {offsets = [0, 384], sizes = [8, 128], strides = [1, 1]} : vector<8x512xf32> to vector<8x128xf32>
    %516 = arith.negf %515 : vector<8x128xf32>
    %517 = math.exp %516 : vector<8x128xf32>
    %cst_250 = arith.constant 1.000000e+00 : f32
    %518 = vector.broadcast %cst_250 : f32 to vector<8x128xf32>
    %519 = arith.addf %518, %517 : vector<8x128xf32>
    %520 = arith.divf %518, %519 : vector<8x128xf32>
    %521 = arith.mulf %512, %497 : vector<8x128xf32>
    %522 = arith.mulf %506, %514 : vector<8x128xf32>
    %523 = arith.addf %521, %522 : vector<8x128xf32>
    %524 = math.tanh %523 : vector<8x128xf32>
    %525 = arith.mulf %520, %524 : vector<8x128xf32>
    %c0_251 = arith.constant 0 : index
    %c0_252 = arith.constant 0 : index
    %526 = vector.load %arg9[%c0_251, %c0_252] : memref<8x128xf32, #tpu.memory_space<vmem>>, vector<8x128xf32>
    tpu.vector_store %arg9[%c0_251, %c0_252], %525 {strides = array<i32>} : memref<8x128xf32, #tpu.memory_space<vmem>>, vector<8x128xf32>,
    %c0_253 = arith.constant 0 : index
    %c0_254 = arith.constant 0 : index
    %527 = vector.load %arg10[%c0_253, %c0_254] : memref<8x128xf32, #tpu.memory_space<vmem>>, vector<8x128xf32>
    tpu.vector_store %arg10[%c0_253, %c0_254], %523 {strides = array<i32>} : memref<8x128xf32, #tpu.memory_space<vmem>>, vector<8x128xf32>,
    %528 = arith.index_cast %c5_i32 : i32 to index
    %c0_255 = arith.constant 0 : index
    %c0_256 = arith.constant 0 : index
    %529 = vector.load %arg3[%528, %c0_255, %c0_256] : memref<8x8x1xf32, #tpu.memory_space<vmem>>, vector<1x8x1xf32>
    %530 = vector.shape_cast %529 : vector<1x8x1xf32> to vector<8x1xf32>
    %531 = vector.broadcast %530 : vector<8x1xf32> to vector<8x128xf32>
    %532 = arith.mulf %525, %531 : vector<8x128xf32>
    %533 = arith.index_cast %c5_i32 : i32 to index
    %c0_257 = arith.constant 0 : index
    %c0_258 = arith.constant 0 : index
    %534 = vector.load %arg7[%533, %c0_257, %c0_258] : memref<8x8x128xf32, #tpu.memory_space<vmem>>, vector<1x8x128xf32>
    %535 = vector.shape_cast %534 : vector<1x8x128xf32> to vector<8x128xf32>
    %536 = vector.shape_cast %532 : vector<8x128xf32> to vector<1x8x128xf32>
    tpu.vector_store %arg7[%533, %c0_257, %c0_258], %536 {strides = array<i32>} : memref<8x8x128xf32, #tpu.memory_space<vmem>>, vector<1x8x128xf32>,
    %c7_i32_259 = arith.constant 7 : i32
    %537 = arith.subi %c7_i32_259, %c5_i32 : i32
    %538 = arith.index_cast %537 : i32 to index
    %c0_260 = arith.constant 0 : index
    %c0_261 = arith.constant 0 : index
    %539 = vector.load %arg2[%538, %c0_260, %c0_261] : memref<8x8x512xf32, #tpu.memory_space<vmem>>, vector<1x8x512xf32>
    %540 = vector.shape_cast %539 : vector<1x8x512xf32> to vector<8x512xf32>
    %c0_262 = arith.constant 0 : index
    %c0_263 = arith.constant 0 : index
    %541 = vector.load %arg11[%c0_262, %c0_263] : memref<8x128xf32, #tpu.memory_space<vmem>>, vector<8x128xf32>
    %c0_264 = arith.constant 0 : index
    %c0_265 = arith.constant 0 : index
    %542 = vector.load %arg12[%c0_264, %c0_265] : memref<8x128xf32, #tpu.memory_space<vmem>>, vector<8x128xf32>
    %c0_266 = arith.constant 0 : index
    %c0_267 = arith.constant 0 : index
    %543 = vector.load %arg6[%c0_266, %c0_267] : memref<128x512xf32, #tpu.memory_space<vmem>>, vector<128x512xf32>
    %cst_268 = arith.constant dense<0.000000e+00> : vector<8x512xf32>
    %544 = tpu.matmul %541, %543, %cst_268 {dimension_numbers = #tpu.dot_dimension_numbers<[1], [0], [0], [1], [0, 0, 1, 1], [], []>} : vector<8x128xf32>, vector<128x512xf32>, vector<8x512xf32> -> vector<8x512xf32>
    %545 = arith.addf %540, %544 : vector<8x512xf32>
    %546 = vector.extract_strided_slice %545 {offsets = [0, 0], sizes = [8, 128], strides = [1, 1]} : vector<8x512xf32> to vector<8x128xf32>
    %547 = arith.negf %546 : vector<8x128xf32>
    %548 = math.exp %547 : vector<8x128xf32>
    %cst_269 = arith.constant 1.000000e+00 : f32
    %549 = vector.broadcast %cst_269 : f32 to vector<8x128xf32>
    %550 = arith.addf %549, %548 : vector<8x128xf32>
    %551 = arith.divf %549, %550 : vector<8x128xf32>
    %552 = vector.extract_strided_slice %545 {offsets = [0, 128], sizes = [8, 128], strides = [1, 1]} : vector<8x512xf32> to vector<8x128xf32>
    %553 = arith.negf %552 : vector<8x128xf32>
    %554 = math.exp %553 : vector<8x128xf32>
    %cst_270 = arith.constant 1.000000e+00 : f32
    %555 = vector.broadcast %cst_270 : f32 to vector<8x128xf32>
    %556 = arith.addf %555, %554 : vector<8x128xf32>
    %557 = arith.divf %555, %556 : vector<8x128xf32>
    %558 = vector.extract_strided_slice %545 {offsets = [0, 256], sizes = [8, 128], strides = [1, 1]} : vector<8x512xf32> to vector<8x128xf32>
    %559 = math.tanh %558 : vector<8x128xf32>
    %560 = vector.extract_strided_slice %545 {offsets = [0, 384], sizes = [8, 128], strides = [1, 1]} : vector<8x512xf32> to vector<8x128xf32>
    %561 = arith.negf %560 : vector<8x128xf32>
    %562 = math.exp %561 : vector<8x128xf32>
    %cst_271 = arith.constant 1.000000e+00 : f32
    %563 = vector.broadcast %cst_271 : f32 to vector<8x128xf32>
    %564 = arith.addf %563, %562 : vector<8x128xf32>
    %565 = arith.divf %563, %564 : vector<8x128xf32>
    %566 = arith.mulf %557, %542 : vector<8x128xf32>
    %567 = arith.mulf %551, %559 : vector<8x128xf32>
    %568 = arith.addf %566, %567 : vector<8x128xf32>
    %569 = math.tanh %568 : vector<8x128xf32>
    %570 = arith.mulf %565, %569 : vector<8x128xf32>
    %571 = arith.index_cast %537 : i32 to index
    %c0_272 = arith.constant 0 : index
    %c0_273 = arith.constant 0 : index
    %572 = vector.load %arg4[%571, %c0_272, %c0_273] : memref<8x8x1xf32, #tpu.memory_space<vmem>>, vector<1x8x1xf32>
    %573 = vector.shape_cast %572 : vector<1x8x1xf32> to vector<8x1xf32>
    %cst_274 = arith.constant 0.000000e+00 : f32
    %574 = vector.broadcast %cst_274 : f32 to vector<8x1xf32>
    %575 = arith.cmpf ogt, %573, %574 : vector<8x1xf32>
    %c0_275 = arith.constant 0 : index
    %c0_276 = arith.constant 0 : index
    %576 = vector.load %arg11[%c0_275, %c0_276] : memref<8x128xf32, #tpu.memory_space<vmem>>, vector<8x128xf32>
    %577 = vector.shape_cast %575 : vector<8x1xi1> to vector<8x1xi1>
    %578 = vector.broadcast %577 : vector<8x1xi1> to vector<8x128xi1>
    %579 = arith.select %578, %570, %576 : vector<8x128xi1>, vector<8x128xf32>
    %c0_277 = arith.constant 0 : index
    %c0_278 = arith.constant 0 : index
    %580 = vector.load %arg11[%c0_277, %c0_278] : memref<8x128xf32, #tpu.memory_space<vmem>>, vector<8x128xf32>
    tpu.vector_store %arg11[%c0_277, %c0_278], %579 {strides = array<i32>} : memref<8x128xf32, #tpu.memory_space<vmem>>, vector<8x128xf32>,
    %c0_279 = arith.constant 0 : index
    %c0_280 = arith.constant 0 : index
    %581 = vector.load %arg12[%c0_279, %c0_280] : memref<8x128xf32, #tpu.memory_space<vmem>>, vector<8x128xf32>
    %582 = vector.shape_cast %575 : vector<8x1xi1> to vector<8x1xi1>
    %583 = vector.broadcast %582 : vector<8x1xi1> to vector<8x128xi1>
    %584 = arith.select %583, %568, %581 : vector<8x128xi1>, vector<8x128xf32>
    %c0_281 = arith.constant 0 : index
    %c0_282 = arith.constant 0 : index
    %585 = vector.load %arg12[%c0_281, %c0_282] : memref<8x128xf32, #tpu.memory_space<vmem>>, vector<8x128xf32>
    tpu.vector_store %arg12[%c0_281, %c0_282], %584 {strides = array<i32>} : memref<8x128xf32, #tpu.memory_space<vmem>>, vector<8x128xf32>,
    %c0_283 = arith.constant 0 : index
    %c0_284 = arith.constant 0 : index
    %586 = vector.load %arg11[%c0_283, %c0_284] : memref<8x128xf32, #tpu.memory_space<vmem>>, vector<8x128xf32>
    %587 = arith.index_cast %537 : i32 to index
    %c0_285 = arith.constant 0 : index
    %c0_286 = arith.constant 0 : index
    %588 = vector.load %arg8[%587, %c0_285, %c0_286] : memref<8x8x128xf32, #tpu.memory_space<vmem>>, vector<1x8x128xf32>
    %589 = vector.shape_cast %588 : vector<1x8x128xf32> to vector<8x128xf32>
    %590 = vector.shape_cast %586 : vector<8x128xf32> to vector<1x8x128xf32>
    tpu.vector_store %arg8[%587, %c0_285, %c0_286], %590 {strides = array<i32>} : memref<8x8x128xf32, #tpu.memory_space<vmem>>, vector<1x8x128xf32>,
    %c6_i32 = arith.constant 6 : i32
    %591 = arith.index_cast %c6_i32 : i32 to index
    %c0_287 = arith.constant 0 : index
    %c0_288 = arith.constant 0 : index
    %592 = vector.load %arg1[%591, %c0_287, %c0_288] : memref<8x8x512xf32, #tpu.memory_space<vmem>>, vector<1x8x512xf32>
    %593 = vector.shape_cast %592 : vector<1x8x512xf32> to vector<8x512xf32>
    %c0_289 = arith.constant 0 : index
    %c0_290 = arith.constant 0 : index
    %594 = vector.load %arg9[%c0_289, %c0_290] : memref<8x128xf32, #tpu.memory_space<vmem>>, vector<8x128xf32>
    %c0_291 = arith.constant 0 : index
    %c0_292 = arith.constant 0 : index
    %595 = vector.load %arg10[%c0_291, %c0_292] : memref<8x128xf32, #tpu.memory_space<vmem>>, vector<8x128xf32>
    %c0_293 = arith.constant 0 : index
    %c0_294 = arith.constant 0 : index
    %596 = vector.load %arg5[%c0_293, %c0_294] : memref<128x512xf32, #tpu.memory_space<vmem>>, vector<128x512xf32>
    %cst_295 = arith.constant dense<0.000000e+00> : vector<8x512xf32>
    %597 = tpu.matmul %594, %596, %cst_295 {dimension_numbers = #tpu.dot_dimension_numbers<[1], [0], [0], [1], [0, 0, 1, 1], [], []>} : vector<8x128xf32>, vector<128x512xf32>, vector<8x512xf32> -> vector<8x512xf32>
    %598 = arith.addf %593, %597 : vector<8x512xf32>
    %599 = vector.extract_strided_slice %598 {offsets = [0, 0], sizes = [8, 128], strides = [1, 1]} : vector<8x512xf32> to vector<8x128xf32>
    %600 = arith.negf %599 : vector<8x128xf32>
    %601 = math.exp %600 : vector<8x128xf32>
    %cst_296 = arith.constant 1.000000e+00 : f32
    %602 = vector.broadcast %cst_296 : f32 to vector<8x128xf32>
    %603 = arith.addf %602, %601 : vector<8x128xf32>
    %604 = arith.divf %602, %603 : vector<8x128xf32>
    %605 = vector.extract_strided_slice %598 {offsets = [0, 128], sizes = [8, 128], strides = [1, 1]} : vector<8x512xf32> to vector<8x128xf32>
    %606 = arith.negf %605 : vector<8x128xf32>
    %607 = math.exp %606 : vector<8x128xf32>
    %cst_297 = arith.constant 1.000000e+00 : f32
    %608 = vector.broadcast %cst_297 : f32 to vector<8x128xf32>
    %609 = arith.addf %608, %607 : vector<8x128xf32>
    %610 = arith.divf %608, %609 : vector<8x128xf32>
    %611 = vector.extract_strided_slice %598 {offsets = [0, 256], sizes = [8, 128], strides = [1, 1]} : vector<8x512xf32> to vector<8x128xf32>
    %612 = math.tanh %611 : vector<8x128xf32>
    %613 = vector.extract_strided_slice %598 {offsets = [0, 384], sizes = [8, 128], strides = [1, 1]} : vector<8x512xf32> to vector<8x128xf32>
    %614 = arith.negf %613 : vector<8x128xf32>
    %615 = math.exp %614 : vector<8x128xf32>
    %cst_298 = arith.constant 1.000000e+00 : f32
    %616 = vector.broadcast %cst_298 : f32 to vector<8x128xf32>
    %617 = arith.addf %616, %615 : vector<8x128xf32>
    %618 = arith.divf %616, %617 : vector<8x128xf32>
    %619 = arith.mulf %610, %595 : vector<8x128xf32>
    %620 = arith.mulf %604, %612 : vector<8x128xf32>
    %621 = arith.addf %619, %620 : vector<8x128xf32>
    %622 = math.tanh %621 : vector<8x128xf32>
    %623 = arith.mulf %618, %622 : vector<8x128xf32>
    %c0_299 = arith.constant 0 : index
    %c0_300 = arith.constant 0 : index
    %624 = vector.load %arg9[%c0_299, %c0_300] : memref<8x128xf32, #tpu.memory_space<vmem>>, vector<8x128xf32>
    tpu.vector_store %arg9[%c0_299, %c0_300], %623 {strides = array<i32>} : memref<8x128xf32, #tpu.memory_space<vmem>>, vector<8x128xf32>,
    %c0_301 = arith.constant 0 : index
    %c0_302 = arith.constant 0 : index
    %625 = vector.load %arg10[%c0_301, %c0_302] : memref<8x128xf32, #tpu.memory_space<vmem>>, vector<8x128xf32>
    tpu.vector_store %arg10[%c0_301, %c0_302], %621 {strides = array<i32>} : memref<8x128xf32, #tpu.memory_space<vmem>>, vector<8x128xf32>,
    %626 = arith.index_cast %c6_i32 : i32 to index
    %c0_303 = arith.constant 0 : index
    %c0_304 = arith.constant 0 : index
    %627 = vector.load %arg3[%626, %c0_303, %c0_304] : memref<8x8x1xf32, #tpu.memory_space<vmem>>, vector<1x8x1xf32>
    %628 = vector.shape_cast %627 : vector<1x8x1xf32> to vector<8x1xf32>
    %629 = vector.broadcast %628 : vector<8x1xf32> to vector<8x128xf32>
    %630 = arith.mulf %623, %629 : vector<8x128xf32>
    %631 = arith.index_cast %c6_i32 : i32 to index
    %c0_305 = arith.constant 0 : index
    %c0_306 = arith.constant 0 : index
    %632 = vector.load %arg7[%631, %c0_305, %c0_306] : memref<8x8x128xf32, #tpu.memory_space<vmem>>, vector<1x8x128xf32>
    %633 = vector.shape_cast %632 : vector<1x8x128xf32> to vector<8x128xf32>
    %634 = vector.shape_cast %630 : vector<8x128xf32> to vector<1x8x128xf32>
    tpu.vector_store %arg7[%631, %c0_305, %c0_306], %634 {strides = array<i32>} : memref<8x8x128xf32, #tpu.memory_space<vmem>>, vector<1x8x128xf32>,
    %c7_i32_307 = arith.constant 7 : i32
    %635 = arith.subi %c7_i32_307, %c6_i32 : i32
    %636 = arith.index_cast %635 : i32 to index
    %c0_308 = arith.constant 0 : index
    %c0_309 = arith.constant 0 : index
    %637 = vector.load %arg2[%636, %c0_308, %c0_309] : memref<8x8x512xf32, #tpu.memory_space<vmem>>, vector<1x8x512xf32>
    %638 = vector.shape_cast %637 : vector<1x8x512xf32> to vector<8x512xf32>
    %c0_310 = arith.constant 0 : index
    %c0_311 = arith.constant 0 : index
    %639 = vector.load %arg11[%c0_310, %c0_311] : memref<8x128xf32, #tpu.memory_space<vmem>>, vector<8x128xf32>
    %c0_312 = arith.constant 0 : index
    %c0_313 = arith.constant 0 : index
    %640 = vector.load %arg12[%c0_312, %c0_313] : memref<8x128xf32, #tpu.memory_space<vmem>>, vector<8x128xf32>
    %c0_314 = arith.constant 0 : index
    %c0_315 = arith.constant 0 : index
    %641 = vector.load %arg6[%c0_314, %c0_315] : memref<128x512xf32, #tpu.memory_space<vmem>>, vector<128x512xf32>
    %cst_316 = arith.constant dense<0.000000e+00> : vector<8x512xf32>
    %642 = tpu.matmul %639, %641, %cst_316 {dimension_numbers = #tpu.dot_dimension_numbers<[1], [0], [0], [1], [0, 0, 1, 1], [], []>} : vector<8x128xf32>, vector<128x512xf32>, vector<8x512xf32> -> vector<8x512xf32>
    %643 = arith.addf %638, %642 : vector<8x512xf32>
    %644 = vector.extract_strided_slice %643 {offsets = [0, 0], sizes = [8, 128], strides = [1, 1]} : vector<8x512xf32> to vector<8x128xf32>
    %645 = arith.negf %644 : vector<8x128xf32>
    %646 = math.exp %645 : vector<8x128xf32>
    %cst_317 = arith.constant 1.000000e+00 : f32
    %647 = vector.broadcast %cst_317 : f32 to vector<8x128xf32>
    %648 = arith.addf %647, %646 : vector<8x128xf32>
    %649 = arith.divf %647, %648 : vector<8x128xf32>
    %650 = vector.extract_strided_slice %643 {offsets = [0, 128], sizes = [8, 128], strides = [1, 1]} : vector<8x512xf32> to vector<8x128xf32>
    %651 = arith.negf %650 : vector<8x128xf32>
    %652 = math.exp %651 : vector<8x128xf32>
    %cst_318 = arith.constant 1.000000e+00 : f32
    %653 = vector.broadcast %cst_318 : f32 to vector<8x128xf32>
    %654 = arith.addf %653, %652 : vector<8x128xf32>
    %655 = arith.divf %653, %654 : vector<8x128xf32>
    %656 = vector.extract_strided_slice %643 {offsets = [0, 256], sizes = [8, 128], strides = [1, 1]} : vector<8x512xf32> to vector<8x128xf32>
    %657 = math.tanh %656 : vector<8x128xf32>
    %658 = vector.extract_strided_slice %643 {offsets = [0, 384], sizes = [8, 128], strides = [1, 1]} : vector<8x512xf32> to vector<8x128xf32>
    %659 = arith.negf %658 : vector<8x128xf32>
    %660 = math.exp %659 : vector<8x128xf32>
    %cst_319 = arith.constant 1.000000e+00 : f32
    %661 = vector.broadcast %cst_319 : f32 to vector<8x128xf32>
    %662 = arith.addf %661, %660 : vector<8x128xf32>
    %663 = arith.divf %661, %662 : vector<8x128xf32>
    %664 = arith.mulf %655, %640 : vector<8x128xf32>
    %665 = arith.mulf %649, %657 : vector<8x128xf32>
    %666 = arith.addf %664, %665 : vector<8x128xf32>
    %667 = math.tanh %666 : vector<8x128xf32>
    %668 = arith.mulf %663, %667 : vector<8x128xf32>
    %669 = arith.index_cast %635 : i32 to index
    %c0_320 = arith.constant 0 : index
    %c0_321 = arith.constant 0 : index
    %670 = vector.load %arg4[%669, %c0_320, %c0_321] : memref<8x8x1xf32, #tpu.memory_space<vmem>>, vector<1x8x1xf32>
    %671 = vector.shape_cast %670 : vector<1x8x1xf32> to vector<8x1xf32>
    %cst_322 = arith.constant 0.000000e+00 : f32
    %672 = vector.broadcast %cst_322 : f32 to vector<8x1xf32>
    %673 = arith.cmpf ogt, %671, %672 : vector<8x1xf32>
    %c0_323 = arith.constant 0 : index
    %c0_324 = arith.constant 0 : index
    %674 = vector.load %arg11[%c0_323, %c0_324] : memref<8x128xf32, #tpu.memory_space<vmem>>, vector<8x128xf32>
    %675 = vector.shape_cast %673 : vector<8x1xi1> to vector<8x1xi1>
    %676 = vector.broadcast %675 : vector<8x1xi1> to vector<8x128xi1>
    %677 = arith.select %676, %668, %674 : vector<8x128xi1>, vector<8x128xf32>
    %c0_325 = arith.constant 0 : index
    %c0_326 = arith.constant 0 : index
    %678 = vector.load %arg11[%c0_325, %c0_326] : memref<8x128xf32, #tpu.memory_space<vmem>>, vector<8x128xf32>
    tpu.vector_store %arg11[%c0_325, %c0_326], %677 {strides = array<i32>} : memref<8x128xf32, #tpu.memory_space<vmem>>, vector<8x128xf32>,
    %c0_327 = arith.constant 0 : index
    %c0_328 = arith.constant 0 : index
    %679 = vector.load %arg12[%c0_327, %c0_328] : memref<8x128xf32, #tpu.memory_space<vmem>>, vector<8x128xf32>
    %680 = vector.shape_cast %673 : vector<8x1xi1> to vector<8x1xi1>
    %681 = vector.broadcast %680 : vector<8x1xi1> to vector<8x128xi1>
    %682 = arith.select %681, %666, %679 : vector<8x128xi1>, vector<8x128xf32>
    %c0_329 = arith.constant 0 : index
    %c0_330 = arith.constant 0 : index
    %683 = vector.load %arg12[%c0_329, %c0_330] : memref<8x128xf32, #tpu.memory_space<vmem>>, vector<8x128xf32>
    tpu.vector_store %arg12[%c0_329, %c0_330], %682 {strides = array<i32>} : memref<8x128xf32, #tpu.memory_space<vmem>>, vector<8x128xf32>,
    %c0_331 = arith.constant 0 : index
    %c0_332 = arith.constant 0 : index
    %684 = vector.load %arg11[%c0_331, %c0_332] : memref<8x128xf32, #tpu.memory_space<vmem>>, vector<8x128xf32>
    %685 = arith.index_cast %635 : i32 to index
    %c0_333 = arith.constant 0 : index
    %c0_334 = arith.constant 0 : index
    %686 = vector.load %arg8[%685, %c0_333, %c0_334] : memref<8x8x128xf32, #tpu.memory_space<vmem>>, vector<1x8x128xf32>
    %687 = vector.shape_cast %686 : vector<1x8x128xf32> to vector<8x128xf32>
    %688 = vector.shape_cast %684 : vector<8x128xf32> to vector<1x8x128xf32>
    tpu.vector_store %arg8[%685, %c0_333, %c0_334], %688 {strides = array<i32>} : memref<8x8x128xf32, #tpu.memory_space<vmem>>, vector<1x8x128xf32>,
    %c7_i32_335 = arith.constant 7 : i32
    %689 = arith.index_cast %c7_i32_335 : i32 to index
    %c0_336 = arith.constant 0 : index
    %c0_337 = arith.constant 0 : index
    %690 = vector.load %arg1[%689, %c0_336, %c0_337] : memref<8x8x512xf32, #tpu.memory_space<vmem>>, vector<1x8x512xf32>
    %691 = vector.shape_cast %690 : vector<1x8x512xf32> to vector<8x512xf32>
    %c0_338 = arith.constant 0 : index
    %c0_339 = arith.constant 0 : index
    %692 = vector.load %arg9[%c0_338, %c0_339] : memref<8x128xf32, #tpu.memory_space<vmem>>, vector<8x128xf32>
    %c0_340 = arith.constant 0 : index
    %c0_341 = arith.constant 0 : index
    %693 = vector.load %arg10[%c0_340, %c0_341] : memref<8x128xf32, #tpu.memory_space<vmem>>, vector<8x128xf32>
    %c0_342 = arith.constant 0 : index
    %c0_343 = arith.constant 0 : index
    %694 = vector.load %arg5[%c0_342, %c0_343] : memref<128x512xf32, #tpu.memory_space<vmem>>, vector<128x512xf32>
    %cst_344 = arith.constant dense<0.000000e+00> : vector<8x512xf32>
    %695 = tpu.matmul %692, %694, %cst_344 {dimension_numbers = #tpu.dot_dimension_numbers<[1], [0], [0], [1], [0, 0, 1, 1], [], []>} : vector<8x128xf32>, vector<128x512xf32>, vector<8x512xf32> -> vector<8x512xf32>
    %696 = arith.addf %691, %695 : vector<8x512xf32>
    %697 = vector.extract_strided_slice %696 {offsets = [0, 0], sizes = [8, 128], strides = [1, 1]} : vector<8x512xf32> to vector<8x128xf32>
    %698 = arith.negf %697 : vector<8x128xf32>
    %699 = math.exp %698 : vector<8x128xf32>
    %cst_345 = arith.constant 1.000000e+00 : f32
    %700 = vector.broadcast %cst_345 : f32 to vector<8x128xf32>
    %701 = arith.addf %700, %699 : vector<8x128xf32>
    %702 = arith.divf %700, %701 : vector<8x128xf32>
    %703 = vector.extract_strided_slice %696 {offsets = [0, 128], sizes = [8, 128], strides = [1, 1]} : vector<8x512xf32> to vector<8x128xf32>
    %704 = arith.negf %703 : vector<8x128xf32>
    %705 = math.exp %704 : vector<8x128xf32>
    %cst_346 = arith.constant 1.000000e+00 : f32
    %706 = vector.broadcast %cst_346 : f32 to vector<8x128xf32>
    %707 = arith.addf %706, %705 : vector<8x128xf32>
    %708 = arith.divf %706, %707 : vector<8x128xf32>
    %709 = vector.extract_strided_slice %696 {offsets = [0, 256], sizes = [8, 128], strides = [1, 1]} : vector<8x512xf32> to vector<8x128xf32>
    %710 = math.tanh %709 : vector<8x128xf32>
    %711 = vector.extract_strided_slice %696 {offsets = [0, 384], sizes = [8, 128], strides = [1, 1]} : vector<8x512xf32> to vector<8x128xf32>
    %712 = arith.negf %711 : vector<8x128xf32>
    %713 = math.exp %712 : vector<8x128xf32>
    %cst_347 = arith.constant 1.000000e+00 : f32
    %714 = vector.broadcast %cst_347 : f32 to vector<8x128xf32>
    %715 = arith.addf %714, %713 : vector<8x128xf32>
    %716 = arith.divf %714, %715 : vector<8x128xf32>
    %717 = arith.mulf %708, %693 : vector<8x128xf32>
    %718 = arith.mulf %702, %710 : vector<8x128xf32>
    %719 = arith.addf %717, %718 : vector<8x128xf32>
    %720 = math.tanh %719 : vector<8x128xf32>
    %721 = arith.mulf %716, %720 : vector<8x128xf32>
    %c0_348 = arith.constant 0 : index
    %c0_349 = arith.constant 0 : index
    %722 = vector.load %arg9[%c0_348, %c0_349] : memref<8x128xf32, #tpu.memory_space<vmem>>, vector<8x128xf32>
    tpu.vector_store %arg9[%c0_348, %c0_349], %721 {strides = array<i32>} : memref<8x128xf32, #tpu.memory_space<vmem>>, vector<8x128xf32>,
    %c0_350 = arith.constant 0 : index
    %c0_351 = arith.constant 0 : index
    %723 = vector.load %arg10[%c0_350, %c0_351] : memref<8x128xf32, #tpu.memory_space<vmem>>, vector<8x128xf32>
    tpu.vector_store %arg10[%c0_350, %c0_351], %719 {strides = array<i32>} : memref<8x128xf32, #tpu.memory_space<vmem>>, vector<8x128xf32>,
    %724 = arith.index_cast %c7_i32_335 : i32 to index
    %c0_352 = arith.constant 0 : index
    %c0_353 = arith.constant 0 : index
    %725 = vector.load %arg3[%724, %c0_352, %c0_353] : memref<8x8x1xf32, #tpu.memory_space<vmem>>, vector<1x8x1xf32>
    %726 = vector.shape_cast %725 : vector<1x8x1xf32> to vector<8x1xf32>
    %727 = vector.broadcast %726 : vector<8x1xf32> to vector<8x128xf32>
    %728 = arith.mulf %721, %727 : vector<8x128xf32>
    %729 = arith.index_cast %c7_i32_335 : i32 to index
    %c0_354 = arith.constant 0 : index
    %c0_355 = arith.constant 0 : index
    %730 = vector.load %arg7[%729, %c0_354, %c0_355] : memref<8x8x128xf32, #tpu.memory_space<vmem>>, vector<1x8x128xf32>
    %731 = vector.shape_cast %730 : vector<1x8x128xf32> to vector<8x128xf32>
    %732 = vector.shape_cast %728 : vector<8x128xf32> to vector<1x8x128xf32>
    tpu.vector_store %arg7[%729, %c0_354, %c0_355], %732 {strides = array<i32>} : memref<8x8x128xf32, #tpu.memory_space<vmem>>, vector<1x8x128xf32>,
    %c7_i32_356 = arith.constant 7 : i32
    %733 = arith.subi %c7_i32_356, %c7_i32_335 : i32
    %734 = arith.index_cast %733 : i32 to index
    %c0_357 = arith.constant 0 : index
    %c0_358 = arith.constant 0 : index
    %735 = vector.load %arg2[%734, %c0_357, %c0_358] : memref<8x8x512xf32, #tpu.memory_space<vmem>>, vector<1x8x512xf32>
    %736 = vector.shape_cast %735 : vector<1x8x512xf32> to vector<8x512xf32>
    %c0_359 = arith.constant 0 : index
    %c0_360 = arith.constant 0 : index
    %737 = vector.load %arg11[%c0_359, %c0_360] : memref<8x128xf32, #tpu.memory_space<vmem>>, vector<8x128xf32>
    %c0_361 = arith.constant 0 : index
    %c0_362 = arith.constant 0 : index
    %738 = vector.load %arg12[%c0_361, %c0_362] : memref<8x128xf32, #tpu.memory_space<vmem>>, vector<8x128xf32>
    %c0_363 = arith.constant 0 : index
    %c0_364 = arith.constant 0 : index
    %739 = vector.load %arg6[%c0_363, %c0_364] : memref<128x512xf32, #tpu.memory_space<vmem>>, vector<128x512xf32>
    %cst_365 = arith.constant dense<0.000000e+00> : vector<8x512xf32>
    %740 = tpu.matmul %737, %739, %cst_365 {dimension_numbers = #tpu.dot_dimension_numbers<[1], [0], [0], [1], [0, 0, 1, 1], [], []>} : vector<8x128xf32>, vector<128x512xf32>, vector<8x512xf32> -> vector<8x512xf32>
    %741 = arith.addf %736, %740 : vector<8x512xf32>
    %742 = vector.extract_strided_slice %741 {offsets = [0, 0], sizes = [8, 128], strides = [1, 1]} : vector<8x512xf32> to vector<8x128xf32>
    %743 = arith.negf %742 : vector<8x128xf32>
    %744 = math.exp %743 : vector<8x128xf32>
    %cst_366 = arith.constant 1.000000e+00 : f32
    %745 = vector.broadcast %cst_366 : f32 to vector<8x128xf32>
    %746 = arith.addf %745, %744 : vector<8x128xf32>
    %747 = arith.divf %745, %746 : vector<8x128xf32>
    %748 = vector.extract_strided_slice %741 {offsets = [0, 128], sizes = [8, 128], strides = [1, 1]} : vector<8x512xf32> to vector<8x128xf32>
    %749 = arith.negf %748 : vector<8x128xf32>
    %750 = math.exp %749 : vector<8x128xf32>
    %cst_367 = arith.constant 1.000000e+00 : f32
    %751 = vector.broadcast %cst_367 : f32 to vector<8x128xf32>
    %752 = arith.addf %751, %750 : vector<8x128xf32>
    %753 = arith.divf %751, %752 : vector<8x128xf32>
    %754 = vector.extract_strided_slice %741 {offsets = [0, 256], sizes = [8, 128], strides = [1, 1]} : vector<8x512xf32> to vector<8x128xf32>
    %755 = math.tanh %754 : vector<8x128xf32>
    %756 = vector.extract_strided_slice %741 {offsets = [0, 384], sizes = [8, 128], strides = [1, 1]} : vector<8x512xf32> to vector<8x128xf32>
    %757 = arith.negf %756 : vector<8x128xf32>
    %758 = math.exp %757 : vector<8x128xf32>
    %cst_368 = arith.constant 1.000000e+00 : f32
    %759 = vector.broadcast %cst_368 : f32 to vector<8x128xf32>
    %760 = arith.addf %759, %758 : vector<8x128xf32>
    %761 = arith.divf %759, %760 : vector<8x128xf32>
    %762 = arith.mulf %753, %738 : vector<8x128xf32>
    %763 = arith.mulf %747, %755 : vector<8x128xf32>
    %764 = arith.addf %762, %763 : vector<8x128xf32>
    %765 = math.tanh %764 : vector<8x128xf32>
    %766 = arith.mulf %761, %765 : vector<8x128xf32>
    %767 = arith.index_cast %733 : i32 to index
    %c0_369 = arith.constant 0 : index
    %c0_370 = arith.constant 0 : index
    %768 = vector.load %arg4[%767, %c0_369, %c0_370] : memref<8x8x1xf32, #tpu.memory_space<vmem>>, vector<1x8x1xf32>
    %769 = vector.shape_cast %768 : vector<1x8x1xf32> to vector<8x1xf32>
    %cst_371 = arith.constant 0.000000e+00 : f32
    %770 = vector.broadcast %cst_371 : f32 to vector<8x1xf32>
    %771 = arith.cmpf ogt, %769, %770 : vector<8x1xf32>
    %c0_372 = arith.constant 0 : index
    %c0_373 = arith.constant 0 : index
    %772 = vector.load %arg11[%c0_372, %c0_373] : memref<8x128xf32, #tpu.memory_space<vmem>>, vector<8x128xf32>
    %773 = vector.shape_cast %771 : vector<8x1xi1> to vector<8x1xi1>
    %774 = vector.broadcast %773 : vector<8x1xi1> to vector<8x128xi1>
    %775 = arith.select %774, %766, %772 : vector<8x128xi1>, vector<8x128xf32>
    %c0_374 = arith.constant 0 : index
    %c0_375 = arith.constant 0 : index
    %776 = vector.load %arg11[%c0_374, %c0_375] : memref<8x128xf32, #tpu.memory_space<vmem>>, vector<8x128xf32>
    tpu.vector_store %arg11[%c0_374, %c0_375], %775 {strides = array<i32>} : memref<8x128xf32, #tpu.memory_space<vmem>>, vector<8x128xf32>,
    %c0_376 = arith.constant 0 : index
    %c0_377 = arith.constant 0 : index
    %777 = vector.load %arg12[%c0_376, %c0_377] : memref<8x128xf32, #tpu.memory_space<vmem>>, vector<8x128xf32>
    %778 = vector.shape_cast %771 : vector<8x1xi1> to vector<8x1xi1>
    %779 = vector.broadcast %778 : vector<8x1xi1> to vector<8x128xi1>
    %780 = arith.select %779, %764, %777 : vector<8x128xi1>, vector<8x128xf32>
    %c0_378 = arith.constant 0 : index
    %c0_379 = arith.constant 0 : index
    %781 = vector.load %arg12[%c0_378, %c0_379] : memref<8x128xf32, #tpu.memory_space<vmem>>, vector<8x128xf32>
    tpu.vector_store %arg12[%c0_378, %c0_379], %780 {strides = array<i32>} : memref<8x128xf32, #tpu.memory_space<vmem>>, vector<8x128xf32>,
    %c0_380 = arith.constant 0 : index
    %c0_381 = arith.constant 0 : index
    %782 = vector.load %arg11[%c0_380, %c0_381] : memref<8x128xf32, #tpu.memory_space<vmem>>, vector<8x128xf32>
    %783 = arith.index_cast %733 : i32 to index
    %c0_382 = arith.constant 0 : index
    %c0_383 = arith.constant 0 : index
    %784 = vector.load %arg8[%783, %c0_382, %c0_383] : memref<8x8x128xf32, #tpu.memory_space<vmem>>, vector<1x8x128xf32>
    %785 = vector.shape_cast %784 : vector<1x8x128xf32> to vector<8x128xf32>
    %786 = vector.shape_cast %782 : vector<8x128xf32> to vector<1x8x128xf32>
    tpu.vector_store %arg8[%783, %c0_382, %c0_383], %786 {strides = array<i32>} : memref<8x8x128xf32, #tpu.memory_space<vmem>>, vector<1x8x128xf32>,
    %c8_i32 = arith.constant 8 : i32
    return
  }
  func.func @transform_0(%arg0: i32) -> (i32, i32, i32) {
    %c0_i32 = arith.constant 0 : i32
    %c0_i32_0 = arith.constant 0 : i32
    %c0_i32_1 = arith.constant 0 : i32
    return %arg0, %c0_i32, %c0_i32_0 : i32, i32, i32
  }
  func.func @transform_1(%arg0: i32) -> (i32, i32, i32) {
    %c1_i32 = arith.constant 1 : i32
    %0 = arith.subi %c1_i32, %arg0 : i32
    %c0_i32 = arith.constant 0 : i32
    %c0_i32_0 = arith.constant 0 : i32
    %c0_i32_1 = arith.constant 0 : i32
    return %0, %c0_i32, %c0_i32_0 : i32, i32, i32
  }
  func.func @transform_2(%arg0: i32) -> (i32, i32, i32) {
    %c0_i32 = arith.constant 0 : i32
    %c0_i32_0 = arith.constant 0 : i32
    %c0_i32_1 = arith.constant 0 : i32
    return %arg0, %c0_i32, %c0_i32_0 : i32, i32, i32
  }
  func.func @transform_3(%arg0: i32) -> (i32, i32, i32) {
    %c1_i32 = arith.constant 1 : i32
    %0 = arith.subi %c1_i32, %arg0 : i32
    %c0_i32 = arith.constant 0 : i32
    %c0_i32_0 = arith.constant 0 : i32
    %c0_i32_1 = arith.constant 0 : i32
    return %0, %c0_i32, %c0_i32_0 : i32, i32, i32
  }
  func.func @transform_4(%arg0: i32) -> (i32, i32) {
    %c0_i32 = arith.constant 0 : i32
    %c0_i32_0 = arith.constant 0 : i32
    %c0_i32_1 = arith.constant 0 : i32
    return %c0_i32, %c0_i32_0 : i32, i32
  }
  func.func @transform_5(%arg0: i32) -> (i32, i32) {
    %c0_i32 = arith.constant 0 : i32
    %c0_i32_0 = arith.constant 0 : i32
    %c0_i32_1 = arith.constant 0 : i32
    return %c0_i32, %c0_i32_0 : i32, i32
  }
  func.func @transform_6(%arg0: i32) -> (i32, i32, i32) {
    %c0_i32 = arith.constant 0 : i32
    %c0_i32_0 = arith.constant 0 : i32
    %c0_i32_1 = arith.constant 0 : i32
    return %arg0, %c0_i32, %c0_i32_0 : i32, i32, i32
  }
  func.func @transform_7(%arg0: i32) -> (i32, i32, i32) {
    %c1_i32 = arith.constant 1 : i32
    %0 = arith.subi %c1_i32, %arg0 : i32
    %c0_i32 = arith.constant 0 : i32
    %c0_i32_0 = arith.constant 0 : i32
    %c0_i32_1 = arith.constant 0 : i32
    return %0, %c0_i32, %c0_i32_0 : i32, i32, i32
  }
}

module attributes {stable_mosaic.version = 11 : i64} {
  func.func @_fused_linear_kernel(%arg0: i32, %arg1: memref<128x128xf32, #tpu.memory_space<vmem>>, %arg2: memref<128x128xf32, #tpu.memory_space<vmem>>, %arg3: memref<128x8xf32, #tpu.memory_space<vmem>>, %arg4: memref<128x8xf32, #tpu.memory_space<vmem>>, %arg5: memref<1x8xf32, #tpu.memory_space<vmem>>, %arg6: memref<128x8xf32, #tpu.memory_space<vmem>>) attributes {dimension_semantics = [#tpu.dimension_semantics<parallel>], iteration_bounds = array<i64: 1>, scalar_prefetch = 0 : i64, scratch_operands = 0 : i64, tpu.core_type = #tpu.core_type<tc>, window_params = [{transform_indices = @transform_0, window_bounds = array<i64: 128, 128>}, {transform_indices = @transform_1, window_bounds = array<i64: 128, 128>}, {pipeline_mode = #tpu.pipeline_mode<synchronous>, transform_indices = @transform_2, window_bounds = array<i64: 128, 8>}, {pipeline_mode = #tpu.pipeline_mode<synchronous>, transform_indices = @transform_3, window_bounds = array<i64: 128, 8>}, {pipeline_mode = #tpu.pipeline_mode<synchronous>, transform_indices = @transform_4, window_bounds = array<i64: 1, 8>}, {transform_indices = @transform_5, window_bounds = array<i64: 128, 8>}]} {
    %c0 = arith.constant 0 : index
    %c0_0 = arith.constant 0 : index
    %0 = vector.load %arg1[%c0, %c0_0] : memref<128x128xf32, #tpu.memory_space<vmem>>, vector<128x128xf32>
    %c0_1 = arith.constant 0 : index
    %c0_2 = arith.constant 0 : index
    %1 = vector.load %arg3[%c0_1, %c0_2] : memref<128x8xf32, #tpu.memory_space<vmem>>, vector<128x8xf32>
    %cst = arith.constant dense<0.000000e+00> : vector<128x8xf32>
    %2 = tpu.matmul %0, %1, %cst {dimension_numbers = #tpu.dot_dimension_numbers<[1], [0], [0], [1], [0, 0, 1, 1], [], []>} : vector<128x128xf32>, vector<128x8xf32>, vector<128x8xf32> -> vector<128x8xf32>
    %c0_3 = arith.constant 0 : index
    %c0_4 = arith.constant 0 : index
    %3 = vector.load %arg5[%c0_3, %c0_4] : memref<1x8xf32, #tpu.memory_space<vmem>>, vector<1x8xf32>
    %4 = vector.broadcast %3 : vector<1x8xf32> to vector<128x8xf32>
    %5 = arith.addf %2, %4 : vector<128x8xf32>
    %c0_5 = arith.constant 0 : index
    %c0_6 = arith.constant 0 : index
    %6 = vector.load %arg2[%c0_5, %c0_6] : memref<128x128xf32, #tpu.memory_space<vmem>>, vector<128x128xf32>
    %c0_7 = arith.constant 0 : index
    %c0_8 = arith.constant 0 : index
    %7 = vector.load %arg4[%c0_7, %c0_8] : memref<128x8xf32, #tpu.memory_space<vmem>>, vector<128x8xf32>
    %cst_9 = arith.constant dense<0.000000e+00> : vector<128x8xf32>
    %8 = tpu.matmul %6, %7, %cst_9 {dimension_numbers = #tpu.dot_dimension_numbers<[1], [0], [0], [1], [0, 0, 1, 1], [], []>} : vector<128x128xf32>, vector<128x8xf32>, vector<128x8xf32> -> vector<128x8xf32>
    %9 = arith.addf %5, %8 : vector<128x8xf32>
    %c0_10 = arith.constant 0 : index
    %c0_11 = arith.constant 0 : index
    %10 = vector.load %arg6[%c0_10, %c0_11] : memref<128x8xf32, #tpu.memory_space<vmem>>, vector<128x8xf32>
    tpu.vector_store %arg6[%c0_10, %c0_11], %9 {strides = array<i32>} : memref<128x8xf32, #tpu.memory_space<vmem>>, vector<128x8xf32>,
    return
  }
  func.func @transform_0(%arg0: i32) -> (i32, i32) {
    %c0_i32 = arith.constant 0 : i32
    %c0_i32_0 = arith.constant 0 : i32
    return %arg0, %c0_i32 : i32, i32
  }
  func.func @transform_1(%arg0: i32) -> (i32, i32) {
    %c0_i32 = arith.constant 0 : i32
    %c0_i32_0 = arith.constant 0 : i32
    return %arg0, %c0_i32 : i32, i32
  }
  func.func @transform_2(%arg0: i32) -> (i32, i32) {
    %c0_i32 = arith.constant 0 : i32
    %c0_i32_0 = arith.constant 0 : i32
    %c0_i32_1 = arith.constant 0 : i32
    return %c0_i32, %c0_i32_0 : i32, i32
  }
  func.func @transform_3(%arg0: i32) -> (i32, i32) {
    %c0_i32 = arith.constant 0 : i32
    %c0_i32_0 = arith.constant 0 : i32
    %c0_i32_1 = arith.constant 0 : i32
    return %c0_i32, %c0_i32_0 : i32, i32
  }
  func.func @transform_4(%arg0: i32) -> (i32, i32) {
    %c0_i32 = arith.constant 0 : i32
    %c0_i32_0 = arith.constant 0 : i32
    %c0_i32_1 = arith.constant 0 : i32
    return %c0_i32, %c0_i32_0 : i32, i32
  }
  func.func @transform_5(%arg0: i32) -> (i32, i32) {
    %c0_i32 = arith.constant 0 : i32
    %c0_i32_0 = arith.constant 0 : i32
    return %arg0, %c0_i32 : i32, i32
  }
}

</mosaic_0001>

<llo_original>
// kernel: bilstm_forward.8
$region0: #{bilstm_forward.8}
  #allocation0 [shape = 'u32[]', space=smem, size = 0x4, offset = 0x4, fixed_abs, tag = 'smem constant byte address 0x4 - core index']
  #allocation1 [shape = 'u32[144,128]{1,0:T(1,128)}', space=vmem, size = 0x12000, scoped, tag = 'internal scratch']
  %s0 = inlined_call_operand.vmem [shape: f32[128,64], index: 0, kind: input, shape index: {}]
  %s1 = inlined_call_operand.vmem [shape: f32[64,512], index: 1, kind: input, shape index: {}]
  %s2 = inlined_call_operand.vmem [shape: f32[1,512], index: 2, kind: input, shape index: {}]
  %s3 = inlined_call_operand.vmem [shape: f32[128,512], index: 3, kind: output, shape index: {}]
  %s4 = sld [smem:[#allocation0]]
  $region22: #{bilstm_forward.8} parent=0
    _
  %s6 = ssub.s32 1, %s4
  %s7 = scalar_select 0, %s6, %s4
  // Predicated region
  $region2: #{bilstm_forward.8} parent=0 // pred_check
    _
  $region3: #{bilstm_forward.8} parent=0 // pred_check_branch
    %9 = sbr.rel (0) target = $region5
  $region4: #{bilstm_forward.8} parent=0 // pred_region
    _
  $region5: #{bilstm_forward.8} parent=0 // pred_fallthru
    _
  // Predicated region
  $region6: #{bilstm_forward.8} parent=0 // pred_check
    _
  $region7: #{bilstm_forward.8} parent=0 // pred_check_branch
    %11 = sbr.rel (0) target = $region9
  $region8: #{bilstm_forward.8} parent=0 // pred_region
    _
  $region9: #{bilstm_forward.8} parent=0 // pred_fallthru
    _
  // Predicated region
  $region10: #{bilstm_forward.8} parent=0 // pred_check
    _
  $region11: #{bilstm_forward.8} parent=0 // pred_check_branch
    %13 = sbr.rel (0) target = $region13
  $region12: #{bilstm_forward.8} parent=0 // pred_region
    _
  $region13: #{bilstm_forward.8} parent=0 // pred_fallthru
    _
  %v14 = vld [vmem:[%s0] sm:$0xff]
  %v15 = vld [vmem:[%s0 + $0x8] sm:$0xff]
  %v16 = vld [vmem:[%s0 + $0x10] sm:$0xff]
  %v17 = vld [vmem:[%s0 + $0x18] sm:$0xff]
  %v18 = vld [vmem:[%s0 + $0x20] sm:$0xff]
  %v19 = vld [vmem:[%s0 + $0x28] sm:$0xff]
  %v20 = vld [vmem:[%s0 + $0x30] sm:$0xff]
  %v21 = vld [vmem:[%s0 + $0x38] sm:$0xff]
  %v22 = vld [vmem:[%s0 + $0x40] sm:$0xff]
  %v23 = vld [vmem:[%s0 + $0x48] sm:$0xff]
  %v24 = vld [vmem:[%s0 + $0x50] sm:$0xff]
  %v25 = vld [vmem:[%s0 + $0x58] sm:$0xff]
  %v26 = vld [vmem:[%s0 + $0x60] sm:$0xff]
  %v27 = vld [vmem:[%s0 + $0x68] sm:$0xff]
  %v28 = vld [vmem:[%s0 + $0x70] sm:$0xff]
  %v29 = vld [vmem:[%s0 + $0x78] sm:$0xff]
  %v30 = vld [vmem:[%s1] sm:$0xff]
  %v31 = vld [vmem:[%s1 + $0x8] sm:$0xff]
  %v32 = vld [vmem:[%s1 + $0x10] sm:$0xff]
  %v33 = vld [vmem:[%s1 + $0x18] sm:$0xff]
  %v34 = vld [vmem:[%s1 + $0x20] sm:$0xff]
  %v35 = vld [vmem:[%s1 + $0x28] sm:$0xff]
  %v36 = vld [vmem:[%s1 + $0x30] sm:$0xff]
  %v37 = vld [vmem:[%s1 + $0x38] sm:$0xff]
  %v38 = vld [vmem:[%s1 + $0x40] sm:$0xff]
  %v39 = vld [vmem:[%s1 + $0x48] sm:$0xff]
  %v40 = vld [vmem:[%s1 + $0x50] sm:$0xff]
  %v41 = vld [vmem:[%s1 + $0x58] sm:$0xff]
  %v42 = vld [vmem:[%s1 + $0x60] sm:$0xff]
  %v43 = vld [vmem:[%s1 + $0x68] sm:$0xff]
  %v44 = vld [vmem:[%s1 + $0x70] sm:$0xff]
  %v45 = vld [vmem:[%s1 + $0x78] sm:$0xff]
  %v46 = vld [vmem:[%s1 + $0x80] sm:$0xff]
  %v47 = vld [vmem:[%s1 + $0x88] sm:$0xff]
  %v48 = vld [vmem:[%s1 + $0x90] sm:$0xff]
  %v49 = vld [vmem:[%s1 + $0x98] sm:$0xff]
  %v50 = vld [vmem:[%s1 + $0xa0] sm:$0xff]
  %v51 = vld [vmem:[%s1 + $0xa8] sm:$0xff]
  %v52 = vld [vmem:[%s1 + $0xb0] sm:$0xff]
  %v53 = vld [vmem:[%s1 + $0xb8] sm:$0xff]
  %v54 = vld [vmem:[%s1 + $0xc0] sm:$0xff]
  %v55 = vld [vmem:[%s1 + $0xc8] sm:$0xff]
  %v56 = vld [vmem:[%s1 + $0xd0] sm:$0xff]
  %v57 = vld [vmem:[%s1 + $0xd8] sm:$0xff]
  %v58 = vld [vmem:[%s1 + $0xe0] sm:$0xff]
  %v59 = vld [vmem:[%s1 + $0xe8] sm:$0xff]
  %v60 = vld [vmem:[%s1 + $0xf0] sm:$0xff]
  %v61 = vld [vmem:[%s1 + $0xf8] sm:$0xff]
  %v62 = vld [vmem:[%s2] sm:$0xf]
  %v64 = vlaneseq
  %v65 = vshrl.u32 %v64, 7
  %v66 = vsub.s32 0, %v65
  %v67 = vrot.slane %v62, %v66
  %v68 = vlaneseq
  %v69 = vshrl.u32 %v68, 7
  %v70 = vsub.s32 1, %v69
  %v71 = vrot.slane %v62, %v70
  %v72 = vlaneseq
  %v73 = vshrl.u32 %v72, 7
  %v74 = vsub.s32 2, %v73
  %v75 = vrot.slane %v62, %v74
  %v76 = vlaneseq
  %v77 = vshrl.u32 %v76, 7
  %v78 = vsub.s32 3, %v77
  %v79 = vrot.slane %v62, %v78
  %vm84 = vcmask 523264
  %v86 = vsel %vm84, %v14, 0
  %v89 = vsel %vm84, %v15, 0
  %v92 = vsel %vm84, %v16, 0
  %v95 = vsel %vm84, %v17, 0
  %v98 = vsel %vm84, %v18, 0
  %v101 = vsel %vm84, %v19, 0
  %v104 = vsel %vm84, %v20, 0
  %v107 = vsel %vm84, %v21, 0
  %v110 = vsel %vm84, %v22, 0
  %v113 = vsel %vm84, %v23, 0
  %v116 = vsel %vm84, %v24, 0
  %v119 = vsel %vm84, %v25, 0
  %v122 = vsel %vm84, %v26, 0
  %v125 = vsel %vm84, %v27, 0
  %v128 = vsel %vm84, %v28, 0
  %v131 = vsel %vm84, %v29, 0
  %133 = vmatprep.subr.mxu0 %v31
  %134 = vmatpush1.msra.mxu0 %v30
  %135 = vmatprep.subr.mxu0 %v35
  %136 = vmatpush1.msra.mxu0 %v34
  %137 = vmatprep.subr.mxu0 %v39
  %138 = vmatpush1.msra.mxu0 %v38
  %139 = vmatprep.subr.mxu0 %v43
  %140 = vmatpush1.msra.mxu0 %v42
  %141 = vmatprep.subr.mxu0 %v47
  %142 = vmatpush1.msra.mxu0 %v46
  %143 = vmatprep.subr.mxu0 %v51
  %144 = vmatpush1.msra.mxu0 %v50
  %145 = vmatprep.subr.mxu0 %v55
  %146 = vmatpush1.msra.mxu0 %v54
  %147 = vmatprep.subr.mxu0 %v59
  %148 = vmatpush1.msra.mxu0 %v58
  %149 = vmatprep.subr.mxu0 0.0
  %150 = vmatpush1.msra.mxu0 0.0
  %151 = vmatprep.subr.mxu0 0.0
  %152 = vmatpush1.msra.mxu0 0.0
  %153 = vmatprep.subr.mxu0 0.0
  %154 = vmatpush1.msra.mxu0 0.0
  %155 = vmatprep.subr.mxu0 0.0
  %156 = vmatpush1.msra.mxu0 0.0
  %157 = vmatprep.subr.mxu0 0.0
  %158 = vmatpush1.msra.mxu0 0.0
  %159 = vmatprep.subr.mxu0 0.0
  %160 = vmatpush1.msra.mxu0 0.0
  %161 = vmatprep.subr.mxu0 0.0
  %162 = vmatpush1.msra.mxu0 0.0
  %163 = vmatprep.subr.mxu0 0.0
  %164 = vmatpush1.msra.mxu0 0.0
  %165 = vmatprep.subr.mxu0 0.0
  %166 = vmatpush1.msra.mxu0 0.0
  %167 = vmatprep.subr.mxu0 0.0
  %168 = vmatpush1.msra.mxu0 0.0
  %169 = vmatprep.subr.mxu0 0.0
  %170 = vmatpush1.msra.mxu0 0.0
  %171 = vmatprep.subr.mxu0 0.0
  %172 = vmatpush1.msra.mxu0 0.0
  %173 = vmatprep.subr.mxu0 0.0
  %174 = vmatpush1.msra.mxu0 0.0
  %175 = vmatprep.subr.mxu0 0.0
  %176 = vmatpush1.msra.mxu0 0.0
  %177 = vmatprep.subr.mxu0 0.0
  %178 = vmatpush1.msra.mxu0 0.0
  %179 = vmatprep.subr.mxu0 0.0
  %180 = vmatpush1.msra.mxu0 0.0
  %181 = vmatprep.subr.mxu0 0.0
  %182 = vmatpush1.msra.mxu0 0.0
  %183 = vmatprep.subr.mxu0 0.0
  %184 = vmatpush1.msra.mxu0 0.0
  %185 = vmatprep.subr.mxu0 0.0
  %186 = vmatpush1.msra.mxu0 0.0
  %187 = vmatprep.subr.mxu0 0.0
  %188 = vmatpush1.msra.mxu0 0.0
  %189 = vmatprep.subr.mxu0 0.0
  %190 = vmatpush1.msra.mxu0 0.0
  %191 = vmatprep.subr.mxu0 0.0
  %192 = vmatpush1.msra.mxu0 0.0
  %193 = vmatprep.subr.mxu0 0.0
  %194 = vmatpush1.msra.mxu0 0.0
  %195 = vmatprep.subr.mxu0 0.0
  %196 = vmatpush1.msra.mxu0 0.0
  %197 = vmatprep.mubr.f32.mxu0 0.0
  %198 = vmatmul.mubr.f32.gmra.mrb[0].mxu0 %v86
  %v199 = vpop.f32.mrb[0].mxu0
  %v200 = vadd.f32 %v67, %v199
  %v201 = vpop.f32.mrb[0].mxu0
  %v202 = vadd.f32 %v71, %v201
  %203 = vmatprep.mubr.f32.mxu0 0.0
  %204 = vmatmul.mubr.f32.gmra.mrb[0].mxu0 %v89
  %v205 = vpop.f32.mrb[0].mxu0
  %v206 = vadd.f32 %v67, %v205
  %v207 = vpop.f32.mrb[0].mxu0
  %v208 = vadd.f32 %v71, %v207
  %209 = vmatprep.mubr.f32.mxu0 0.0
  %210 = vmatmul.mubr.f32.gmra.mrb[0].mxu0 %v92
  %v211 = vpop.f32.mrb[0].mxu0
  %v212 = vadd.f32 %v67, %v211
  %v213 = vpop.f32.mrb[0].mxu0
  %v214 = vadd.f32 %v71, %v213
  %215 = vmatprep.mubr.f32.mxu0 0.0
  %216 = vmatmul.mubr.f32.gmra.mrb[0].mxu0 %v95
  %v217 = vpop.f32.mrb[0].mxu0
  %v218 = vadd.f32 %v67, %v217
  %v219 = vpop.f32.mrb[0].mxu0
  %v220 = vadd.f32 %v71, %v219
  %221 = vmatprep.mubr.f32.mxu0 0.0
  %222 = vmatmul.mubr.f32.gmra.mrb[0].mxu0 %v98
  %v223 = vpop.f32.mrb[0].mxu0
  %v224 = vadd.f32 %v67, %v223
  %v225 = vpop.f32.mrb[0].mxu0
  %v226 = vadd.f32 %v71, %v225
  %227 = vmatprep.mubr.f32.mxu0 0.0
  %228 = vmatmul.mubr.f32.gmra.mrb[0].mxu0 %v101
  %v229 = vpop.f32.mrb[0].mxu0
  %v230 = vadd.f32 %v67, %v229
  %v231 = vpop.f32.mrb[0].mxu0
  %v232 = vadd.f32 %v71, %v231
  %233 = vmatprep.mubr.f32.mxu0 0.0
  %234 = vmatmul.mubr.f32.gmra.mrb[0].mxu0 %v104
  %v235 = vpop.f32.mrb[0].mxu0
  %v236 = vadd.f32 %v67, %v235
  %v237 = vpop.f32.mrb[0].mxu0
  %v238 = vadd.f32 %v71, %v237
  %239 = vmatprep.mubr.f32.mxu0 0.0
  %240 = vmatmul.mubr.f32.gmra.mrb[0].mxu0 %v107
  %v241 = vpop.f32.mrb[0].mxu0
  %v242 = vadd.f32 %v67, %v241
  %v243 = vpop.f32.mrb[0].mxu0
  %v244 = vadd.f32 %v71, %v243
  %245 = vmatprep.mubr.f32.mxu0 0.0
  %246 = vmatmul.mubr.f32.gmra.mrb[0].mxu0 %v110
  %v247 = vpop.f32.mrb[0].mxu0
  %v248 = vadd.f32 %v67, %v247
  %v249 = vpop.f32.mrb[0].mxu0
  %v250 = vadd.f32 %v71, %v249
  %251 = vmatprep.mubr.f32.mxu0 0.0
  %252 = vmatmul.mubr.f32.gmra.mrb[0].mxu0 %v113
  %v253 = vpop.f32.mrb[0].mxu0
  %v254 = vadd.f32 %v67, %v253
  %v255 = vpop.f32.mrb[0].mxu0
  %v256 = vadd.f32 %v71, %v255
  %257 = vmatprep.mubr.f32.mxu0 0.0
  %258 = vmatmul.mubr.f32.gmra.mrb[0].mxu0 %v116
  %v259 = vpop.f32.mrb[0].mxu0
  %v260 = vadd.f32 %v67, %v259
  %v261 = vpop.f32.mrb[0].mxu0
  %v262 = vadd.f32 %v71, %v261
  %263 = vmatprep.mubr.f32.mxu0 0.0
  %264 = vmatmul.mubr.f32.gmra.mrb[0].mxu0 %v119
  %v265 = vpop.f32.mrb[0].mxu0
  %v266 = vadd.f32 %v67, %v265
  %v267 = vpop.f32.mrb[0].mxu0
  %v268 = vadd.f32 %v71, %v267
  %269 = vmatprep.mubr.f32.mxu0 0.0
  %270 = vmatmul.mubr.f32.gmra.mrb[0].mxu0 %v122
  %v271 = vpop.f32.mrb[0].mxu0
  %v272 = vadd.f32 %v67, %v271
  %v273 = vpop.f32.mrb[0].mxu0
  %v274 = vadd.f32 %v71, %v273
  %275 = vmatprep.mubr.f32.mxu0 0.0
  %276 = vmatmul.mubr.f32.gmra.mrb[0].mxu0 %v125
  %v277 = vpop.f32.mrb[0].mxu0
  %v278 = vadd.f32 %v67, %v277
  %v279 = vpop.f32.mrb[0].mxu0
  %v280 = vadd.f32 %v71, %v279
  %281 = vmatprep.mubr.f32.mxu0 0.0
  %282 = vmatmul.mubr.f32.gmra.mrb[0].mxu0 %v128
  %v283 = vpop.f32.mrb[0].mxu0
  %v284 = vadd.f32 %v67, %v283
  %v285 = vpop.f32.mrb[0].mxu0
  %v286 = vadd.f32 %v71, %v285
  %287 = vmatprep.mubr.f32.mxu0 0.0
  %288 = vmatmul.mubr.f32.gmra.mrb[0].mxu0 %v131
  %v289 = vpop.f32.mrb[0].mxu0
  %v290 = vadd.f32 %v67, %v289
  %v291 = vpop.f32.mrb[0].mxu0
  %v292 = vadd.f32 %v71, %v291
  %293 = vdwg.mxu0
  %294 = vmatprep.subr.mxu0 %v33
  %295 = vmatpush1.msra.mxu0 %v32
  %296 = vmatprep.subr.mxu0 %v37
  %297 = vmatpush1.msra.mxu0 %v36
  %298 = vmatprep.subr.mxu0 %v41
  %299 = vmatpush1.msra.mxu0 %v40
  %300 = vmatprep.subr.mxu0 %v45
  %301 = vmatpush1.msra.mxu0 %v44
  %302 = vmatprep.subr.mxu0 %v49
  %303 = vmatpush1.msra.mxu0 %v48
  %304 = vmatprep.subr.mxu0 %v53
  %305 = vmatpush1.msra.mxu0 %v52
  %306 = vmatprep.subr.mxu0 %v57
  %307 = vmatpush1.msra.mxu0 %v56
  %308 = vmatprep.subr.mxu0 %v61
  %309 = vmatpush1.msra.mxu0 %v60
  %310 = vmatprep.subr.mxu0 0.0
  %311 = vmatpush1.msra.mxu0 0.0
  %312 = vmatprep.subr.mxu0 0.0
  %313 = vmatpush1.msra.mxu0 0.0
  %314 = vmatprep.subr.mxu0 0.0
  %315 = vmatpush1.msra.mxu0 0.0
  %316 = vmatprep.subr.mxu0 0.0
  %317 = vmatpush1.msra.mxu0 0.0
  %318 = vmatprep.subr.mxu0 0.0
  %319 = vmatpush1.msra.mxu0 0.0
  %320 = vmatprep.subr.mxu0 0.0
  %321 = vmatpush1.msra.mxu0 0.0
  %322 = vmatprep.subr.mxu0 0.0
  %323 = vmatpush1.msra.mxu0 0.0
  %324 = vmatprep.subr.mxu0 0.0
  %325 = vmatpush1.msra.mxu0 0.0
  %326 = vmatprep.subr.mxu0 0.0
  %327 = vmatpush1.msra.mxu0 0.0
  %328 = vmatprep.subr.mxu0 0.0
  %329 = vmatpush1.msra.mxu0 0.0
  %330 = vmatprep.subr.mxu0 0.0
  %331 = vmatpush1.msra.mxu0 0.0
  %332 = vmatprep.subr.mxu0 0.0
  %333 = vmatpush1.msra.mxu0 0.0
  %334 = vmatprep.subr.mxu0 0.0
  %335 = vmatpush1.msra.mxu0 0.0
  %336 = vmatprep.subr.mxu0 0.0
  %337 = vmatpush1.msra.mxu0 0.0
  %338 = vmatprep.subr.mxu0 0.0
  %339 = vmatpush1.msra.mxu0 0.0
  %340 = vmatprep.subr.mxu0 0.0
  %341 = vmatpush1.msra.mxu0 0.0
  %342 = vmatprep.subr.mxu0 0.0
  %343 = vmatpush1.msra.mxu0 0.0
  %344 = vmatprep.subr.mxu0 0.0
  %345 = vmatpush1.msra.mxu0 0.0
  %346 = vmatprep.subr.mxu0 0.0
  %347 = vmatpush1.msra.mxu0 0.0
  %348 = vmatprep.subr.mxu0 0.0
  %349 = vmatpush1.msra.mxu0 0.0
  %350 = vmatprep.subr.mxu0 0.0
  %351 = vmatpush1.msra.mxu0 0.0
  %352 = vmatprep.subr.mxu0 0.0
  %353 = vmatpush1.msra.mxu0 0.0
  %354 = vmatprep.subr.mxu0 0.0
  %355 = vmatpush1.msra.mxu0 0.0
  %356 = vmatprep.subr.mxu0 0.0
  %357 = vmatpush1.msra.mxu0 0.0
  %358 = vmatprep.mubr.f32.mxu0 0.0
  %359 = vmatmul.mubr.f32.gmra.mrb[0].mxu0 %v86
  %v360 = vpop.f32.mrb[0].mxu0
  %v361 = vadd.f32 %v75, %v360
  %v362 = vpop.f32.mrb[0].mxu0
  %v363 = vadd.f32 %v79, %v362
  %364 = vmatprep.mubr.f32.mxu0 0.0
  %365 = vmatmul.mubr.f32.gmra.mrb[0].mxu0 %v89
  %v366 = vpop.f32.mrb[0].mxu0
  %v367 = vadd.f32 %v75, %v366
  %v368 = vpop.f32.mrb[0].mxu0
  %v369 = vadd.f32 %v79, %v368
  %370 = vmatprep.mubr.f32.mxu0 0.0
  %371 = vmatmul.mubr.f32.gmra.mrb[0].mxu0 %v92
  %v372 = vpop.f32.mrb[0].mxu0
  %v373 = vadd.f32 %v75, %v372
  %v374 = vpop.f32.mrb[0].mxu0
  %v375 = vadd.f32 %v79, %v374
  %376 = vmatprep.mubr.f32.mxu0 0.0
  %377 = vmatmul.mubr.f32.gmra.mrb[0].mxu0 %v95
  %v378 = vpop.f32.mrb[0].mxu0
  %v379 = vadd.f32 %v75, %v378
  %v380 = vpop.f32.mrb[0].mxu0
  %v381 = vadd.f32 %v79, %v380
  %382 = vmatprep.mubr.f32.mxu0 0.0
  %383 = vmatmul.mubr.f32.gmra.mrb[0].mxu0 %v98
  %v384 = vpop.f32.mrb[0].mxu0
  %v385 = vadd.f32 %v75, %v384
  %v386 = vpop.f32.mrb[0].mxu0
  %v387 = vadd.f32 %v79, %v386
  %388 = vmatprep.mubr.f32.mxu0 0.0
  %389 = vmatmul.mubr.f32.gmra.mrb[0].mxu0 %v101
  %v390 = vpop.f32.mrb[0].mxu0
  %v391 = vadd.f32 %v75, %v390
  %v392 = vpop.f32.mrb[0].mxu0
  %v393 = vadd.f32 %v79, %v392
  %394 = vmatprep.mubr.f32.mxu0 0.0
  %395 = vmatmul.mubr.f32.gmra.mrb[0].mxu0 %v104
  %v396 = vpop.f32.mrb[0].mxu0
  %v397 = vadd.f32 %v75, %v396
  %v398 = vpop.f32.mrb[0].mxu0
  %v399 = vadd.f32 %v79, %v398
  %400 = vmatprep.mubr.f32.mxu0 0.0
  %401 = vmatmul.mubr.f32.gmra.mrb[0].mxu0 %v107
  %v402 = vpop.f32.mrb[0].mxu0
  %v403 = vadd.f32 %v75, %v402
  %v404 = vpop.f32.mrb[0].mxu0
  %v405 = vadd.f32 %v79, %v404
  %406 = vmatprep.mubr.f32.mxu0 0.0
  %407 = vmatmul.mubr.f32.gmra.mrb[0].mxu0 %v110
  %v408 = vpop.f32.mrb[0].mxu0
  %v409 = vadd.f32 %v75, %v408
  %v410 = vpop.f32.mrb[0].mxu0
  %v411 = vadd.f32 %v79, %v410
  %412 = vmatprep.mubr.f32.mxu0 0.0
  %413 = vmatmul.mubr.f32.gmra.mrb[0].mxu0 %v113
  %v414 = vpop.f32.mrb[0].mxu0
  %v415 = vadd.f32 %v75, %v414
  %v416 = vpop.f32.mrb[0].mxu0
  %v417 = vadd.f32 %v79, %v416
  %418 = vmatprep.mubr.f32.mxu0 0.0
  %419 = vmatmul.mubr.f32.gmra.mrb[0].mxu0 %v116
  %v420 = vpop.f32.mrb[0].mxu0
  %v421 = vadd.f32 %v75, %v420
  %v422 = vpop.f32.mrb[0].mxu0
  %v423 = vadd.f32 %v79, %v422
  %424 = vmatprep.mubr.f32.mxu0 0.0
  %425 = vmatmul.mubr.f32.gmra.mrb[0].mxu0 %v119
  %v426 = vpop.f32.mrb[0].mxu0
  %v427 = vadd.f32 %v75, %v426
  %v428 = vpop.f32.mrb[0].mxu0
  %v429 = vadd.f32 %v79, %v428
  %430 = vmatprep.mubr.f32.mxu0 0.0
  %431 = vmatmul.mubr.f32.gmra.mrb[0].mxu0 %v122
  %v432 = vpop.f32.mrb[0].mxu0
  %v433 = vadd.f32 %v75, %v432
  %v434 = vpop.f32.mrb[0].mxu0
  %v435 = vadd.f32 %v79, %v434
  %436 = vmatprep.mubr.f32.mxu0 0.0
  %437 = vmatmul.mubr.f32.gmra.mrb[0].mxu0 %v125
  %v438 = vpop.f32.mrb[0].mxu0
  %v439 = vadd.f32 %v75, %v438
  %v440 = vpop.f32.mrb[0].mxu0
  %v441 = vadd.f32 %v79, %v440
  %442 = vmatprep.mubr.f32.mxu0 0.0
  %443 = vmatmul.mubr.f32.gmra.mrb[0].mxu0 %v128
  %v444 = vpop.f32.mrb[0].mxu0
  %v445 = vadd.f32 %v75, %v444
  %v446 = vpop.f32.mrb[0].mxu0
  %v447 = vadd.f32 %v79, %v446
  %448 = vmatprep.mubr.f32.mxu0 0.0
  %449 = vmatmul.mubr.f32.gmra.mrb[0].mxu0 %v131
  %v450 = vpop.f32.mrb[0].mxu0
  %v451 = vadd.f32 %v75, %v450
  %v452 = vpop.f32.mrb[0].mxu0
  %v453 = vadd.f32 %v79, %v452
  %454 = vdwg.mxu0
  %455 = vst [vmem:[%s3] sm:$0xff] %v200
  %456 = vst [vmem:[%s3 + $0x8] sm:$0xff] %v202
  %457 = vst [vmem:[%s3 + $0x10] sm:$0xff] %v361
  %458 = vst [vmem:[%s3 + $0x18] sm:$0xff] %v363
  %459 = vst [vmem:[%s3 + $0x20] sm:$0xff] %v206
  %460 = vst [vmem:[%s3 + $0x28] sm:$0xff] %v208
  %461 = vst [vmem:[%s3 + $0x30] sm:$0xff] %v367
  %462 = vst [vmem:[%s3 + $0x38] sm:$0xff] %v369
  %463 = vst [vmem:[%s3 + $0x40] sm:$0xff] %v212
  %464 = vst [vmem:[%s3 + $0x48] sm:$0xff] %v214
  %465 = vst [vmem:[%s3 + $0x50] sm:$0xff] %v373
  %466 = vst [vmem:[%s3 + $0x58] sm:$0xff] %v375
  %467 = vst [vmem:[%s3 + $0x60] sm:$0xff] %v218
  %468 = vst [vmem:[%s3 + $0x68] sm:$0xff] %v220
  %469 = vst [vmem:[%s3 + $0x70] sm:$0xff] %v379
  %470 = vst [vmem:[%s3 + $0x78] sm:$0xff] %v381
  %471 = vst [vmem:[%s3 + $0x80] sm:$0xff] %v224
  %472 = vst [vmem:[%s3 + $0x88] sm:$0xff] %v226
  %473 = vst [vmem:[%s3 + $0x90] sm:$0xff] %v385
  %474 = vst [vmem:[%s3 + $0x98] sm:$0xff] %v387
  %475 = vst [vmem:[%s3 + $0xa0] sm:$0xff] %v230
  %476 = vst [vmem:[%s3 + $0xa8] sm:$0xff] %v232
  %477 = vst [vmem:[%s3 + $0xb0] sm:$0xff] %v391
  %478 = vst [vmem:[%s3 + $0xb8] sm:$0xff] %v393
  %479 = vst [vmem:[%s3 + $0xc0] sm:$0xff] %v236
  %480 = vst [vmem:[%s3 + $0xc8] sm:$0xff] %v238
  %481 = vst [vmem:[%s3 + $0xd0] sm:$0xff] %v397
  %482 = vst [vmem:[%s3 + $0xd8] sm:$0xff] %v399
  %483 = vst [vmem:[%s3 + $0xe0] sm:$0xff] %v242
  %484 = vst [vmem:[%s3 + $0xe8] sm:$0xff] %v244
  %485 = vst [vmem:[%s3 + $0xf0] sm:$0xff] %v403
  %486 = vst [vmem:[%s3 + $0xf8] sm:$0xff] %v405
  %487 = vst [vmem:[%s3 + $0x100] sm:$0xff] %v248
  %488 = vst [vmem:[%s3 + $0x108] sm:$0xff] %v250
  %489 = vst [vmem:[%s3 + $0x110] sm:$0xff] %v409
  %490 = vst [vmem:[%s3 + $0x118] sm:$0xff] %v411
  %491 = vst [vmem:[%s3 + $0x120] sm:$0xff] %v254
  %492 = vst [vmem:[%s3 + $0x128] sm:$0xff] %v256
  %493 = vst [vmem:[%s3 + $0x130] sm:$0xff] %v415
  %494 = vst [vmem:[%s3 + $0x138] sm:$0xff] %v417
  %495 = vst [vmem:[%s3 + $0x140] sm:$0xff] %v260
  %496 = vst [vmem:[%s3 + $0x148] sm:$0xff] %v262
  %497 = vst [vmem:[%s3 + $0x150] sm:$0xff] %v421
  %498 = vst [vmem:[%s3 + $0x158] sm:$0xff] %v423
  %499 = vst [vmem:[%s3 + $0x160] sm:$0xff] %v266
  %500 = vst [vmem:[%s3 + $0x168] sm:$0xff] %v268
  %501 = vst [vmem:[%s3 + $0x170] sm:$0xff] %v427
  %502 = vst [vmem:[%s3 + $0x178] sm:$0xff] %v429
  %503 = vst [vmem:[%s3 + $0x180] sm:$0xff] %v272
  %504 = vst [vmem:[%s3 + $0x188] sm:$0xff] %v274
  %505 = vst [vmem:[%s3 + $0x190] sm:$0xff] %v433
  %506 = vst [vmem:[%s3 + $0x198] sm:$0xff] %v435
  %507 = vst [vmem:[%s3 + $0x1a0] sm:$0xff] %v278
  %508 = vst [vmem:[%s3 + $0x1a8] sm:$0xff] %v280
  %509 = vst [vmem:[%s3 + $0x1b0] sm:$0xff] %v439
  %510 = vst [vmem:[%s3 + $0x1b8] sm:$0xff] %v441
  %511 = vst [vmem:[%s3 + $0x1c0] sm:$0xff] %v284
  %512 = vst [vmem:[%s3 + $0x1c8] sm:$0xff] %v286
  %513 = vst [vmem:[%s3 + $0x1d0] sm:$0xff] %v445
  %514 = vst [vmem:[%s3 + $0x1d8] sm:$0xff] %v447
  %515 = vst [vmem:[%s3 + $0x1e0] sm:$0xff] %v290
  %516 = vst [vmem:[%s3 + $0x1e8] sm:$0xff] %v292
  %517 = vst [vmem:[%s3 + $0x1f0] sm:$0xff] %v451
  %518 = vst [vmem:[%s3 + $0x1f8] sm:$0xff] %v453
  // Predicated region
  $region14: #{bilstm_forward.8} parent=0 // pred_check
    _
  $region15: #{bilstm_forward.8} parent=0 // pred_check_branch
    %520 = sbr.rel (0) target = $region17
  $region16: #{bilstm_forward.8} parent=0 // pred_region
    _
  $region17: #{bilstm_forward.8} parent=0 // pred_fallthru
    _
  // Predicated region
  $region18: #{bilstm_forward.8} parent=0 // pred_check
    _
  $region19: #{bilstm_forward.8} parent=0 // pred_check_branch
    %522 = sbr.rel (0) target = $region21
  $region20: #{bilstm_forward.8} parent=0 // pred_region
    _
  $region21: #{bilstm_forward.8} parent=0 // pred_fallthru
    _

// kernel: bilstm_forward.13
$region0: #{bilstm_forward.13}
  #allocation0 [shape = 'u32[]', space=smem, size = 0x4, offset = 0x4, fixed_abs, tag = 'smem constant byte address 0x4 - core index']
  #allocation1 [shape = 'u32[144,128]{1,0:T(1,128)}', space=vmem, size = 0x12000, scoped, tag = 'internal scratch']
  %s0 = inlined_call_operand.vmem [shape: f32[128,128], index: 0, kind: input, shape index: {}]
  %s1 = inlined_call_operand.vmem [shape: f32[128,128], index: 1, kind: input, shape index: {}]
  %s2 = inlined_call_operand.vmem [shape: f32[128,8], index: 2, kind: input, shape index: {}]
  %s3 = inlined_call_operand.vmem [shape: f32[128,8], index: 3, kind: input, shape index: {}]
  %s4 = inlined_call_operand.vmem [shape: f32[1,8], index: 4, kind: input, shape index: {}]
  %s5 = inlined_call_operand.vmem [shape: f32[128,8], index: 5, kind: output, shape index: {}]
  %s6 = sld [smem:[#allocation0]]
  $region30: #{bilstm_forward.13} parent=0
    _
  %s8 = ssub.s32 1, %s6
  %s9 = scalar_select 0, %s8, %s6
  // Predicated region
  $region2: #{bilstm_forward.13} parent=0 // pred_check
    _
  $region3: #{bilstm_forward.13} parent=0 // pred_check_branch
    %11 = sbr.rel (0) target = $region5
  $region4: #{bilstm_forward.13} parent=0 // pred_region
    _
  $region5: #{bilstm_forward.13} parent=0 // pred_fallthru
    _
  // Predicated region
  $region6: #{bilstm_forward.13} parent=0 // pred_check
    _
  $region7: #{bilstm_forward.13} parent=0 // pred_check_branch
    %13 = sbr.rel (0) target = $region9
  $region8: #{bilstm_forward.13} parent=0 // pred_region
    _
  $region9: #{bilstm_forward.13} parent=0 // pred_fallthru
    _
  // Predicated region
  $region10: #{bilstm_forward.13} parent=0 // pred_check
    _
  $region11: #{bilstm_forward.13} parent=0 // pred_check_branch
    %15 = sbr.rel (0) target = $region13
  $region12: #{bilstm_forward.13} parent=0 // pred_region
    _
  $region13: #{bilstm_forward.13} parent=0 // pred_fallthru
    _
  // Predicated region
  $region14: #{bilstm_forward.13} parent=0 // pred_check
    _
  $region15: #{bilstm_forward.13} parent=0 // pred_check_branch
    %17 = sbr.rel (0) target = $region17
  $region16: #{bilstm_forward.13} parent=0 // pred_region
    _
  $region17: #{bilstm_forward.13} parent=0 // pred_fallthru
    _
  // Predicated region
  $region18: #{bilstm_forward.13} parent=0 // pred_check
    _
  $region19: #{bilstm_forward.13} parent=0 // pred_check_branch
    %19 = sbr.rel (0) target = $region21
  $region20: #{bilstm_forward.13} parent=0 // pred_region
    _
  $region21: #{bilstm_forward.13} parent=0 // pred_fallthru
    _
  %v20 = vld [vmem:[%s0] sm:$0xff]
  %v21 = vld [vmem:[%s0 + $0x8] sm:$0xff]
  %v22 = vld [vmem:[%s0 + $0x10] sm:$0xff]
  %v23 = vld [vmem:[%s0 + $0x18] sm:$0xff]
  %v24 = vld [vmem:[%s0 + $0x20] sm:$0xff]
  %v25 = vld [vmem:[%s0 + $0x28] sm:$0xff]
  %v26 = vld [vmem:[%s0 + $0x30] sm:$0xff]
  %v27 = vld [vmem:[%s0 + $0x38] sm:$0xff]
  %v28 = vld [vmem:[%s0 + $0x40] sm:$0xff]
  %v29 = vld [vmem:[%s0 + $0x48] sm:$0xff]
  %v30 = vld [vmem:[%s0 + $0x50] sm:$0xff]
  %v31 = vld [vmem:[%s0 + $0x58] sm:$0xff]
  %v32 = vld [vmem:[%s0 + $0x60] sm:$0xff]
  %v33 = vld [vmem:[%s0 + $0x68] sm:$0xff]
  %v34 = vld [vmem:[%s0 + $0x70] sm:$0xff]
  %v35 = vld [vmem:[%s0 + $0x78] sm:$0xff]
  %v36 = vld [vmem:[%s2] sm:$0xff]
  %v37 = vld [vmem:[%s2 + $0x8] sm:$0xff]
  %v38 = vld [vmem:[%s2 + $0x10] sm:$0xff]
  %v39 = vld [vmem:[%s2 + $0x18] sm:$0xff]
  %v40 = vld [vmem:[%s2 + $0x20] sm:$0xff]
  %v41 = vld [vmem:[%s2 + $0x28] sm:$0xff]
  %v42 = vld [vmem:[%s2 + $0x30] sm:$0xff]
  %v43 = vld [vmem:[%s2 + $0x38] sm:$0xff]
  %v44 = vld [vmem:[%s2 + $0x40] sm:$0xff]
  %v45 = vld [vmem:[%s2 + $0x48] sm:$0xff]
  %v46 = vld [vmem:[%s2 + $0x50] sm:$0xff]
  %v47 = vld [vmem:[%s2 + $0x58] sm:$0xff]
  %v48 = vld [vmem:[%s2 + $0x60] sm:$0xff]
  %v49 = vld [vmem:[%s2 + $0x68] sm:$0xff]
  %v50 = vld [vmem:[%s2 + $0x70] sm:$0xff]
  %v51 = vld [vmem:[%s2 + $0x78] sm:$0xff]
  %v52 = vld [vmem:[%s4] sm:$0x1]
  %v54 = vlaneseq
  %v55 = vshrl.u32 %v54, 7
  %v56 = vsub.s32 0, %v55
  %v57 = vrot.slane %v52, %v56
  %59 = vmatprep.subr.mxu0 0.0
  %60 = vmatpush1.msra.mxu0 %v36
  %61 = vmatprep.subr.mxu0 0.0
  %62 = vmatpush1.msra.mxu0 %v37
  %63 = vmatprep.subr.mxu0 0.0
  %64 = vmatpush1.msra.mxu0 %v38
  %65 = vmatprep.subr.mxu0 0.0
  %66 = vmatpush1.msra.mxu0 %v39
  %67 = vmatprep.subr.mxu0 0.0
  %68 = vmatpush1.msra.mxu0 %v40
  %69 = vmatprep.subr.mxu0 0.0
  %70 = vmatpush1.msra.mxu0 %v41
  %71 = vmatprep.subr.mxu0 0.0
  %72 = vmatpush1.msra.mxu0 %v42
  %73 = vmatprep.subr.mxu0 0.0
  %74 = vmatpush1.msra.mxu0 %v43
  %75 = vmatprep.subr.mxu0 0.0
  %76 = vmatpush1.msra.mxu0 %v44
  %77 = vmatprep.subr.mxu0 0.0
  %78 = vmatpush1.msra.mxu0 %v45
  %79 = vmatprep.subr.mxu0 0.0
  %80 = vmatpush1.msra.mxu0 %v46
  %81 = vmatprep.subr.mxu0 0.0
  %82 = vmatpush1.msra.mxu0 %v47
  %83 = vmatprep.subr.mxu0 0.0
  %84 = vmatpush1.msra.mxu0 %v48
  %85 = vmatprep.subr.mxu0 0.0
  %86 = vmatpush1.msra.mxu0 %v49
  %87 = vmatprep.subr.mxu0 0.0
  %88 = vmatpush1.msra.mxu0 %v50
  %89 = vmatprep.subr.mxu0 0.0
  %90 = vmatpush1.msra.mxu0 %v51
  %91 = vmatprep.subr.mxu0 0.0
  %92 = vmatpush1.msra.mxu0 0.0
  %93 = vmatprep.subr.mxu0 0.0
  %94 = vmatpush1.msra.mxu0 0.0
  %95 = vmatprep.subr.mxu0 0.0
  %96 = vmatpush1.msra.mxu0 0.0
  %97 = vmatprep.subr.mxu0 0.0
  %98 = vmatpush1.msra.mxu0 0.0
  %99 = vmatprep.subr.mxu0 0.0
  %100 = vmatpush1.msra.mxu0 0.0
  %101 = vmatprep.subr.mxu0 0.0
  %102 = vmatpush1.msra.mxu0 0.0
  %103 = vmatprep.subr.mxu0 0.0
  %104 = vmatpush1.msra.mxu0 0.0
  %105 = vmatprep.subr.mxu0 0.0
  %106 = vmatpush1.msra.mxu0 0.0
  %107 = vmatprep.subr.mxu0 0.0
  %108 = vmatpush1.msra.mxu0 0.0
  %109 = vmatprep.subr.mxu0 0.0
  %110 = vmatpush1.msra.mxu0 0.0
  %111 = vmatprep.subr.mxu0 0.0
  %112 = vmatpush1.msra.mxu0 0.0
  %113 = vmatprep.subr.mxu0 0.0
  %114 = vmatpush1.msra.mxu0 0.0
  %115 = vmatprep.subr.mxu0 0.0
  %116 = vmatpush1.msra.mxu0 0.0
  %117 = vmatprep.subr.mxu0 0.0
  %118 = vmatpush1.msra.mxu0 0.0
  %119 = vmatprep.subr.mxu0 0.0
  %120 = vmatpush1.msra.mxu0 0.0
  %121 = vmatprep.subr.mxu0 0.0
  %122 = vmatpush1.msra.mxu0 0.0
  %123 = vmatprep.mubr.f32.mxu0 0.0
  %124 = vmatmul.mubr.f32.gmra.mrb[0].mxu0 %v20
  %v125 = vpop.f32.mrb[0].mxu0
  %v126 = vadd.f32 %v57, %v125
  %v127 = vpop.f32.mrb[0].mxu0
  %128 = vmatprep.mubr.f32.mxu0 0.0
  %129 = vmatmul.mubr.f32.gmra.mrb[0].mxu0 %v21
  %v130 = vpop.f32.mrb[0].mxu0
  %v131 = vadd.f32 %v57, %v130
  %v132 = vpop.f32.mrb[0].mxu0
  %133 = vmatprep.mubr.f32.mxu0 0.0
  %134 = vmatmul.mubr.f32.gmra.mrb[0].mxu0 %v22
  %v135 = vpop.f32.mrb[0].mxu0
  %v136 = vadd.f32 %v57, %v135
  %v137 = vpop.f32.mrb[0].mxu0
  %138 = vmatprep.mubr.f32.mxu0 0.0
  %139 = vmatmul.mubr.f32.gmra.mrb[0].mxu0 %v23
  %v140 = vpop.f32.mrb[0].mxu0
  %v141 = vadd.f32 %v57, %v140
  %v142 = vpop.f32.mrb[0].mxu0
  %143 = vmatprep.mubr.f32.mxu0 0.0
  %144 = vmatmul.mubr.f32.gmra.mrb[0].mxu0 %v24
  %v145 = vpop.f32.mrb[0].mxu0
  %v146 = vadd.f32 %v57, %v145
  %v147 = vpop.f32.mrb[0].mxu0
  %148 = vmatprep.mubr.f32.mxu0 0.0
  %149 = vmatmul.mubr.f32.gmra.mrb[0].mxu0 %v25
  %v150 = vpop.f32.mrb[0].mxu0
  %v151 = vadd.f32 %v57, %v150
  %v152 = vpop.f32.mrb[0].mxu0
  %153 = vmatprep.mubr.f32.mxu0 0.0
  %154 = vmatmul.mubr.f32.gmra.mrb[0].mxu0 %v26
  %v155 = vpop.f32.mrb[0].mxu0
  %v156 = vadd.f32 %v57, %v155
  %v157 = vpop.f32.mrb[0].mxu0
  %158 = vmatprep.mubr.f32.mxu0 0.0
  %159 = vmatmul.mubr.f32.gmra.mrb[0].mxu0 %v27
  %v160 = vpop.f32.mrb[0].mxu0
  %v161 = vadd.f32 %v57, %v160
  %v162 = vpop.f32.mrb[0].mxu0
  %163 = vmatprep.mubr.f32.mxu0 0.0
  %164 = vmatmul.mubr.f32.gmra.mrb[0].mxu0 %v28
  %v165 = vpop.f32.mrb[0].mxu0
  %v166 = vadd.f32 %v57, %v165
  %v167 = vpop.f32.mrb[0].mxu0
  %168 = vmatprep.mubr.f32.mxu0 0.0
  %169 = vmatmul.mubr.f32.gmra.mrb[0].mxu0 %v29
  %v170 = vpop.f32.mrb[0].mxu0
  %v171 = vadd.f32 %v57, %v170
  %v172 = vpop.f32.mrb[0].mxu0
  %173 = vmatprep.mubr.f32.mxu0 0.0
  %174 = vmatmul.mubr.f32.gmra.mrb[0].mxu0 %v30
  %v175 = vpop.f32.mrb[0].mxu0
  %v176 = vadd.f32 %v57, %v175
  %v177 = vpop.f32.mrb[0].mxu0
  %178 = vmatprep.mubr.f32.mxu0 0.0
  %179 = vmatmul.mubr.f32.gmra.mrb[0].mxu0 %v31
  %v180 = vpop.f32.mrb[0].mxu0
  %v181 = vadd.f32 %v57, %v180
  %v182 = vpop.f32.mrb[0].mxu0
  %183 = vmatprep.mubr.f32.mxu0 0.0
  %184 = vmatmul.mubr.f32.gmra.mrb[0].mxu0 %v32
  %v185 = vpop.f32.mrb[0].mxu0
  %v186 = vadd.f32 %v57, %v185
  %v187 = vpop.f32.mrb[0].mxu0
  %188 = vmatprep.mubr.f32.mxu0 0.0
  %189 = vmatmul.mubr.f32.gmra.mrb[0].mxu0 %v33
  %v190 = vpop.f32.mrb[0].mxu0
  %v191 = vadd.f32 %v57, %v190
  %v192 = vpop.f32.mrb[0].mxu0
  %193 = vmatprep.mubr.f32.mxu0 0.0
  %194 = vmatmul.mubr.f32.gmra.mrb[0].mxu0 %v34
  %v195 = vpop.f32.mrb[0].mxu0
  %v196 = vadd.f32 %v57, %v195
  %v197 = vpop.f32.mrb[0].mxu0
  %198 = vmatprep.mubr.f32.mxu0 0.0
  %199 = vmatmul.mubr.f32.gmra.mrb[0].mxu0 %v35
  %v200 = vpop.f32.mrb[0].mxu0
  %v201 = vadd.f32 %v57, %v200
  %v202 = vpop.f32.mrb[0].mxu0
  %203 = vdwg.mxu0
  %v204 = vld [vmem:[%s1] sm:$0xff]
  %v205 = vld [vmem:[%s1 + $0x8] sm:$0xff]
  %v206 = vld [vmem:[%s1 + $0x10] sm:$0xff]
  %v207 = vld [vmem:[%s1 + $0x18] sm:$0xff]
  %v208 = vld [vmem:[%s1 + $0x20] sm:$0xff]
  %v209 = vld [vmem:[%s1 + $0x28] sm:$0xff]
  %v210 = vld [vmem:[%s1 + $0x30] sm:$0xff]
  %v211 = vld [vmem:[%s1 + $0x38] sm:$0xff]
  %v212 = vld [vmem:[%s1 + $0x40] sm:$0xff]
  %v213 = vld [vmem:[%s1 + $0x48] sm:$0xff]
  %v214 = vld [vmem:[%s1 + $0x50] sm:$0xff]
  %v215 = vld [vmem:[%s1 + $0x58] sm:$0xff]
  %v216 = vld [vmem:[%s1 + $0x60] sm:$0xff]
  %v217 = vld [vmem:[%s1 + $0x68] sm:$0xff]
  %v218 = vld [vmem:[%s1 + $0x70] sm:$0xff]
  %v219 = vld [vmem:[%s1 + $0x78] sm:$0xff]
  %v220 = vld [vmem:[%s3] sm:$0xff]
  %v221 = vld [vmem:[%s3 + $0x8] sm:$0xff]
  %v222 = vld [vmem:[%s3 + $0x10] sm:$0xff]
  %v223 = vld [vmem:[%s3 + $0x18] sm:$0xff]
  %v224 = vld [vmem:[%s3 + $0x20] sm:$0xff]
  %v225 = vld [vmem:[%s3 + $0x28] sm:$0xff]
  %v226 = vld [vmem:[%s3 + $0x30] sm:$0xff]
  %v227 = vld [vmem:[%s3 + $0x38] sm:$0xff]
  %v228 = vld [vmem:[%s3 + $0x40] sm:$0xff]
  %v229 = vld [vmem:[%s3 + $0x48] sm:$0xff]
  %v230 = vld [vmem:[%s3 + $0x50] sm:$0xff]
  %v231 = vld [vmem:[%s3 + $0x58] sm:$0xff]
  %v232 = vld [vmem:[%s3 + $0x60] sm:$0xff]
  %v233 = vld [vmem:[%s3 + $0x68] sm:$0xff]
  %v234 = vld [vmem:[%s3 + $0x70] sm:$0xff]
  %v235 = vld [vmem:[%s3 + $0x78] sm:$0xff]
  %236 = vmatprep.subr.mxu0 0.0
  %237 = vmatpush1.msra.mxu0 %v220
  %238 = vmatprep.subr.mxu0 0.0
  %239 = vmatpush1.msra.mxu0 %v221
  %240 = vmatprep.subr.mxu0 0.0
  %241 = vmatpush1.msra.mxu0 %v222
  %242 = vmatprep.subr.mxu0 0.0
  %243 = vmatpush1.msra.mxu0 %v223
  %244 = vmatprep.subr.mxu0 0.0
  %245 = vmatpush1.msra.mxu0 %v224
  %246 = vmatprep.subr.mxu0 0.0
  %247 = vmatpush1.msra.mxu0 %v225
  %248 = vmatprep.subr.mxu0 0.0
  %249 = vmatpush1.msra.mxu0 %v226
  %250 = vmatprep.subr.mxu0 0.0
  %251 = vmatpush1.msra.mxu0 %v227
  %252 = vmatprep.subr.mxu0 0.0
  %253 = vmatpush1.msra.mxu0 %v228
  %254 = vmatprep.subr.mxu0 0.0
  %255 = vmatpush1.msra.mxu0 %v229
  %256 = vmatprep.subr.mxu0 0.0
  %257 = vmatpush1.msra.mxu0 %v230
  %258 = vmatprep.subr.mxu0 0.0
  %259 = vmatpush1.msra.mxu0 %v231
  %260 = vmatprep.subr.mxu0 0.0
  %261 = vmatpush1.msra.mxu0 %v232
  %262 = vmatprep.subr.mxu0 0.0
  %263 = vmatpush1.msra.mxu0 %v233
  %264 = vmatprep.subr.mxu0 0.0
  %265 = vmatpush1.msra.mxu0 %v234
  %266 = vmatprep.subr.mxu0 0.0
  %267 = vmatpush1.msra.mxu0 %v235
  %268 = vmatprep.subr.mxu0 0.0
  %269 = vmatpush1.msra.mxu0 0.0
  %270 = vmatprep.subr.mxu0 0.0
  %271 = vmatpush1.msra.mxu0 0.0
  %272 = vmatprep.subr.mxu0 0.0
  %273 = vmatpush1.msra.mxu0 0.0
  %274 = vmatprep.subr.mxu0 0.0
  %275 = vmatpush1.msra.mxu0 0.0
  %276 = vmatprep.subr.mxu0 0.0
  %277 = vmatpush1.msra.mxu0 0.0
  %278 = vmatprep.subr.mxu0 0.0
  %279 = vmatpush1.msra.mxu0 0.0
  %280 = vmatprep.subr.mxu0 0.0
  %281 = vmatpush1.msra.mxu0 0.0
  %282 = vmatprep.subr.mxu0 0.0
  %283 = vmatpush1.msra.mxu0 0.0
  %284 = vmatprep.subr.mxu0 0.0
  %285 = vmatpush1.msra.mxu0 0.0
  %286 = vmatprep.subr.mxu0 0.0
  %287 = vmatpush1.msra.mxu0 0.0
  %288 = vmatprep.subr.mxu0 0.0
  %289 = vmatpush1.msra.mxu0 0.0
  %290 = vmatprep.subr.mxu0 0.0
  %291 = vmatpush1.msra.mxu0 0.0
  %292 = vmatprep.subr.mxu0 0.0
  %293 = vmatpush1.msra.mxu0 0.0
  %294 = vmatprep.subr.mxu0 0.0
  %295 = vmatpush1.msra.mxu0 0.0
  %296 = vmatprep.subr.mxu0 0.0
  %297 = vmatpush1.msra.mxu0 0.0
  %298 = vmatprep.subr.mxu0 0.0
  %299 = vmatpush1.msra.mxu0 0.0
  %300 = vmatprep.mubr.f32.mxu0 0.0
  %301 = vmatmul.mubr.f32.gmra.mrb[0].mxu0 %v204
  %v302 = vpop.f32.mrb[0].mxu0
  %v303 = vadd.f32 0.0, %v302
  %v304 = vpop.f32.mrb[0].mxu0
  %305 = vmatprep.mubr.f32.mxu0 0.0
  %306 = vmatmul.mubr.f32.gmra.mrb[0].mxu0 %v205
  %v307 = vpop.f32.mrb[0].mxu0
  %v308 = vadd.f32 0.0, %v307
  %v309 = vpop.f32.mrb[0].mxu0
  %310 = vmatprep.mubr.f32.mxu0 0.0
  %311 = vmatmul.mubr.f32.gmra.mrb[0].mxu0 %v206
  %v312 = vpop.f32.mrb[0].mxu0
  %v313 = vadd.f32 0.0, %v312
  %v314 = vpop.f32.mrb[0].mxu0
  %315 = vmatprep.mubr.f32.mxu0 0.0
  %316 = vmatmul.mubr.f32.gmra.mrb[0].mxu0 %v207
  %v317 = vpop.f32.mrb[0].mxu0
  %v318 = vadd.f32 0.0, %v317
  %v319 = vpop.f32.mrb[0].mxu0
  %320 = vmatprep.mubr.f32.mxu0 0.0
  %321 = vmatmul.mubr.f32.gmra.mrb[0].mxu0 %v208
  %v322 = vpop.f32.mrb[0].mxu0
  %v323 = vadd.f32 0.0, %v322
  %v324 = vpop.f32.mrb[0].mxu0
  %325 = vmatprep.mubr.f32.mxu0 0.0
  %326 = vmatmul.mubr.f32.gmra.mrb[0].mxu0 %v209
  %v327 = vpop.f32.mrb[0].mxu0
  %v328 = vadd.f32 0.0, %v327
  %v329 = vpop.f32.mrb[0].mxu0
  %330 = vmatprep.mubr.f32.mxu0 0.0
  %331 = vmatmul.mubr.f32.gmra.mrb[0].mxu0 %v210
  %v332 = vpop.f32.mrb[0].mxu0
  %v333 = vadd.f32 0.0, %v332
  %v334 = vpop.f32.mrb[0].mxu0
  %335 = vmatprep.mubr.f32.mxu0 0.0
  %336 = vmatmul.mubr.f32.gmra.mrb[0].mxu0 %v211
  %v337 = vpop.f32.mrb[0].mxu0
  %v338 = vadd.f32 0.0, %v337
  %v339 = vpop.f32.mrb[0].mxu0
  %340 = vmatprep.mubr.f32.mxu0 0.0
  %341 = vmatmul.mubr.f32.gmra.mrb[0].mxu0 %v212
  %v342 = vpop.f32.mrb[0].mxu0
  %v343 = vadd.f32 0.0, %v342
  %v344 = vpop.f32.mrb[0].mxu0
  %345 = vmatprep.mubr.f32.mxu0 0.0
  %346 = vmatmul.mubr.f32.gmra.mrb[0].mxu0 %v213
  %v347 = vpop.f32.mrb[0].mxu0
  %v348 = vadd.f32 0.0, %v347
  %v349 = vpop.f32.mrb[0].mxu0
  %350 = vmatprep.mubr.f32.mxu0 0.0
  %351 = vmatmul.mubr.f32.gmra.mrb[0].mxu0 %v214
  %v352 = vpop.f32.mrb[0].mxu0
  %v353 = vadd.f32 0.0, %v352
  %v354 = vpop.f32.mrb[0].mxu0
  %355 = vmatprep.mubr.f32.mxu0 0.0
  %356 = vmatmul.mubr.f32.gmra.mrb[0].mxu0 %v215
  %v357 = vpop.f32.mrb[0].mxu0
  %v358 = vadd.f32 0.0, %v357
  %v359 = vpop.f32.mrb[0].mxu0
  %360 = vmatprep.mubr.f32.mxu0 0.0
  %361 = vmatmul.mubr.f32.gmra.mrb[0].mxu0 %v216
  %v362 = vpop.f32.mrb[0].mxu0
  %v363 = vadd.f32 0.0, %v362
  %v364 = vpop.f32.mrb[0].mxu0
  %365 = vmatprep.mubr.f32.mxu0 0.0
  %366 = vmatmul.mubr.f32.gmra.mrb[0].mxu0 %v217
  %v367 = vpop.f32.mrb[0].mxu0
  %v368 = vadd.f32 0.0, %v367
  %v369 = vpop.f32.mrb[0].mxu0
  %370 = vmatprep.mubr.f32.mxu0 0.0
  %371 = vmatmul.mubr.f32.gmra.mrb[0].mxu0 %v218
  %v372 = vpop.f32.mrb[0].mxu0
  %v373 = vadd.f32 0.0, %v372
  %v374 = vpop.f32.mrb[0].mxu0
  %375 = vmatprep.mubr.f32.mxu0 0.0
  %376 = vmatmul.mubr.f32.gmra.mrb[0].mxu0 %v219
  %v377 = vpop.f32.mrb[0].mxu0
  %v378 = vadd.f32 0.0, %v377
  %v379 = vpop.f32.mrb[0].mxu0
  %380 = vdwg.mxu0
  %v381 = vadd.f32 %v126, %v303
  %v382 = vadd.f32 %v131, %v308
  %v383 = vadd.f32 %v136, %v313
  %v384 = vadd.f32 %v141, %v318
  %v385 = vadd.f32 %v146, %v323
  %v386 = vadd.f32 %v151, %v328
  %v387 = vadd.f32 %v156, %v333
  %v388 = vadd.f32 %v161, %v338
  %v389 = vadd.f32 %v166, %v343
  %v390 = vadd.f32 %v171, %v348
  %v391 = vadd.f32 %v176, %v353
  %v392 = vadd.f32 %v181, %v358
  %v393 = vadd.f32 %v186, %v363
  %v394 = vadd.f32 %v191, %v368
  %v395 = vadd.f32 %v196, %v373
  %v396 = vadd.f32 %v201, %v378
  %vm397 = vcmask 64512
  %398 = vst.msk [vmem:[%s5] sm:$0xff] %vm397, %v381
  %399 = vst.msk [vmem:[%s5 + $0x8] sm:$0xff] %vm397, %v382
  %400 = vst.msk [vmem:[%s5 + $0x10] sm:$0xff] %vm397, %v383
  %401 = vst.msk [vmem:[%s5 + $0x18] sm:$0xff] %vm397, %v384
  %402 = vst.msk [vmem:[%s5 + $0x20] sm:$0xff] %vm397, %v385
  %403 = vst.msk [vmem:[%s5 + $0x28] sm:$0xff] %vm397, %v386
  %404 = vst.msk [vmem:[%s5 + $0x30] sm:$0xff] %vm397, %v387
  %405 = vst.msk [vmem:[%s5 + $0x38] sm:$0xff] %vm397, %v388
  %406 = vst.msk [vmem:[%s5 + $0x40] sm:$0xff] %vm397, %v389
  %407 = vst.msk [vmem:[%s5 + $0x48] sm:$0xff] %vm397, %v390
  %408 = vst.msk [vmem:[%s5 + $0x50] sm:$0xff] %vm397, %v391
  %409 = vst.msk [vmem:[%s5 + $0x58] sm:$0xff] %vm397, %v392
  %410 = vst.msk [vmem:[%s5 + $0x60] sm:$0xff] %vm397, %v393
  %411 = vst.msk [vmem:[%s5 + $0x68] sm:$0xff] %vm397, %v394
  %412 = vst.msk [vmem:[%s5 + $0x70] sm:$0xff] %vm397, %v395
  %413 = vst.msk [vmem:[%s5 + $0x78] sm:$0xff] %vm397, %v396
  // Predicated region
  $region22: #{bilstm_forward.13} parent=0 // pred_check
    _
  $region23: #{bilstm_forward.13} parent=0 // pred_check_branch
    %415 = sbr.rel (0) target = $region25
  $region24: #{bilstm_forward.13} parent=0 // pred_region
    _
  $region25: #{bilstm_forward.13} parent=0 // pred_fallthru
    _
  // Predicated region
  $region26: #{bilstm_forward.13} parent=0 // pred_check
    _
  $region27: #{bilstm_forward.13} parent=0 // pred_check_branch
    %417 = sbr.rel (0) target = $region29
  $region28: #{bilstm_forward.13} parent=0 // pred_region
    _
  $region29: #{bilstm_forward.13} parent=0 // pred_fallthru
    _

// kernel: bilstm_forward.11
$region0: #{bilstm_forward.11}
  #allocation0 [shape = 'u32[]', space=smem, size = 0x4, offset = 0x4, fixed_abs, tag = 'smem constant byte address 0x4 - core index']
  #allocation1 [shape = 'u32[144,128]{1,0:T(1,128)}', space=vmem, size = 0x12000, scoped, tag = 'internal scratch']
  %s0 = inlined_call_operand.vmem [shape: f32[128,128], index: 0, kind: input, shape index: {}]
  %s1 = inlined_call_operand.vmem [shape: f32[128,128], index: 1, kind: input, shape index: {}]
  %s2 = inlined_call_operand.vmem [shape: f32[128,512], index: 2, kind: input, shape index: {}]
  %s3 = inlined_call_operand.vmem [shape: f32[128,512], index: 3, kind: input, shape index: {}]
  %s4 = inlined_call_operand.vmem [shape: f32[1,512], index: 4, kind: input, shape index: {}]
  %s5 = inlined_call_operand.vmem [shape: f32[128,512], index: 5, kind: output, shape index: {}]
  %s6 = sld [smem:[#allocation0]]
  $region30: #{bilstm_forward.11} parent=0
    _
  %s8 = ssub.s32 1, %s6
  %s9 = scalar_select 0, %s8, %s6
  // Predicated region
  $region2: #{bilstm_forward.11} parent=0 // pred_check
    _
  $region3: #{bilstm_forward.11} parent=0 // pred_check_branch
    %11 = sbr.rel (0) target = $region5
  $region4: #{bilstm_forward.11} parent=0 // pred_region
    _
  $region5: #{bilstm_forward.11} parent=0 // pred_fallthru
    _
  // Predicated region
  $region6: #{bilstm_forward.11} parent=0 // pred_check
    _
  $region7: #{bilstm_forward.11} parent=0 // pred_check_branch
    %13 = sbr.rel (0) target = $region9
  $region8: #{bilstm_forward.11} parent=0 // pred_region
    _
  $region9: #{bilstm_forward.11} parent=0 // pred_fallthru
    _
  // Predicated region
  $region10: #{bilstm_forward.11} parent=0 // pred_check
    _
  $region11: #{bilstm_forward.11} parent=0 // pred_check_branch
    %15 = sbr.rel (0) target = $region13
  $region12: #{bilstm_forward.11} parent=0 // pred_region
    _
  $region13: #{bilstm_forward.11} parent=0 // pred_fallthru
    _
  // Predicated region
  $region14: #{bilstm_forward.11} parent=0 // pred_check
    _
  $region15: #{bilstm_forward.11} parent=0 // pred_check_branch
    %17 = sbr.rel (0) target = $region17
  $region16: #{bilstm_forward.11} parent=0 // pred_region
    _
  $region17: #{bilstm_forward.11} parent=0 // pred_fallthru
    _
  // Predicated region
  $region18: #{bilstm_forward.11} parent=0 // pred_check
    _
  $region19: #{bilstm_forward.11} parent=0 // pred_check_branch
    %19 = sbr.rel (0) target = $region21
  $region20: #{bilstm_forward.11} parent=0 // pred_region
    _
  $region21: #{bilstm_forward.11} parent=0 // pred_fallthru
    _
  %v20 = vld [vmem:[%s0] sm:$0xff]
  %v21 = vld [vmem:[%s0 + $0x8] sm:$0xff]
  %v22 = vld [vmem:[%s0 + $0x10] sm:$0xff]
  %v23 = vld [vmem:[%s0 + $0x18] sm:$0xff]
  %v24 = vld [vmem:[%s0 + $0x20] sm:$0xff]
  %v25 = vld [vmem:[%s0 + $0x28] sm:$0xff]
  %v26 = vld [vmem:[%s0 + $0x30] sm:$0xff]
  %v27 = vld [vmem:[%s0 + $0x38] sm:$0xff]
  %v28 = vld [vmem:[%s0 + $0x40] sm:$0xff]
  %v29 = vld [vmem:[%s0 + $0x48] sm:$0xff]
  %v30 = vld [vmem:[%s0 + $0x50] sm:$0xff]
  %v31 = vld [vmem:[%s0 + $0x58] sm:$0xff]
  %v32 = vld [vmem:[%s0 + $0x60] sm:$0xff]
  %v33 = vld [vmem:[%s0 + $0x68] sm:$0xff]
  %v34 = vld [vmem:[%s0 + $0x70] sm:$0xff]
  %v35 = vld [vmem:[%s0 + $0x78] sm:$0xff]
  %v36 = vld [vmem:[%s2] sm:$0xff]
  %v37 = vld [vmem:[%s2 + $0x8] sm:$0xff]
  %v38 = vld [vmem:[%s2 + $0x10] sm:$0xff]
  %v39 = vld [vmem:[%s2 + $0x18] sm:$0xff]
  %v40 = vld [vmem:[%s2 + $0x20] sm:$0xff]
  %v41 = vld [vmem:[%s2 + $0x28] sm:$0xff]
  %v42 = vld [vmem:[%s2 + $0x30] sm:$0xff]
  %v43 = vld [vmem:[%s2 + $0x38] sm:$0xff]
  %v44 = vld [vmem:[%s2 + $0x40] sm:$0xff]
  %v45 = vld [vmem:[%s2 + $0x48] sm:$0xff]
  %v46 = vld [vmem:[%s2 + $0x50] sm:$0xff]
  %v47 = vld [vmem:[%s2 + $0x58] sm:$0xff]
  %v48 = vld [vmem:[%s2 + $0x60] sm:$0xff]
  %v49 = vld [vmem:[%s2 + $0x68] sm:$0xff]
  %v50 = vld [vmem:[%s2 + $0x70] sm:$0xff]
  %v51 = vld [vmem:[%s2 + $0x78] sm:$0xff]
  %v52 = vld [vmem:[%s2 + $0x80] sm:$0xff]
  %v53 = vld [vmem:[%s2 + $0x88] sm:$0xff]
  %v54 = vld [vmem:[%s2 + $0x90] sm:$0xff]
  %v55 = vld [vmem:[%s2 + $0x98] sm:$0xff]
  %v56 = vld [vmem:[%s2 + $0xa0] sm:$0xff]
  %v57 = vld [vmem:[%s2 + $0xa8] sm:$0xff]
  %v58 = vld [vmem:[%s2 + $0xb0] sm:$0xff]
  %v59 = vld [vmem:[%s2 + $0xb8] sm:$0xff]
  %v60 = vld [vmem:[%s2 + $0xc0] sm:$0xff]
  %v61 = vld [vmem:[%s2 + $0xc8] sm:$0xff]
  %v62 = vld [vmem:[%s2 + $0xd0] sm:$0xff]
  %v63 = vld [vmem:[%s2 + $0xd8] sm:$0xff]
  %v64 = vld [vmem:[%s2 + $0xe0] sm:$0xff]
  %v65 = vld [vmem:[%s2 + $0xe8] sm:$0xff]
  %v66 = vld [vmem:[%s2 + $0xf0] sm:$0xff]
  %v67 = vld [vmem:[%s2 + $0xf8] sm:$0xff]
  %v68 = vld [vmem:[%s2 + $0x100] sm:$0xff]
  %v69 = vld [vmem:[%s2 + $0x108] sm:$0xff]
  %v70 = vld [vmem:[%s2 + $0x110] sm:$0xff]
  %v71 = vld [vmem:[%s2 + $0x118] sm:$0xff]
  %v72 = vld [vmem:[%s2 + $0x120] sm:$0xff]
  %v73 = vld [vmem:[%s2 + $0x128] sm:$0xff]
  %v74 = vld [vmem:[%s2 + $0x130] sm:$0xff]
  %v75 = vld [vmem:[%s2 + $0x138] sm:$0xff]
  %v76 = vld [vmem:[%s2 + $0x140] sm:$0xff]
  %v77 = vld [vmem:[%s2 + $0x148] sm:$0xff]
  %v78 = vld [vmem:[%s2 + $0x150] sm:$0xff]
  %v79 = vld [vmem:[%s2 + $0x158] sm:$0xff]
  %v80 = vld [vmem:[%s2 + $0x160] sm:$0xff]
  %v81 = vld [vmem:[%s2 + $0x168] sm:$0xff]
  %v82 = vld [vmem:[%s2 + $0x170] sm:$0xff]
  %v83 = vld [vmem:[%s2 + $0x178] sm:$0xff]
  %v84 = vld [vmem:[%s2 + $0x180] sm:$0xff]
  %v85 = vld [vmem:[%s2 + $0x188] sm:$0xff]
  %v86 = vld [vmem:[%s2 + $0x190] sm:$0xff]
  %v87 = vld [vmem:[%s2 + $0x198] sm:$0xff]
  %v88 = vld [vmem:[%s2 + $0x1a0] sm:$0xff]
  %v89 = vld [vmem:[%s2 + $0x1a8] sm:$0xff]
  %v90 = vld [vmem:[%s2 + $0x1b0] sm:$0xff]
  %v91 = vld [vmem:[%s2 + $0x1b8] sm:$0xff]
  %v92 = vld [vmem:[%s2 + $0x1c0] sm:$0xff]
  %v93 = vld [vmem:[%s2 + $0x1c8] sm:$0xff]
  %v94 = vld [vmem:[%s2 + $0x1d0] sm:$0xff]
  %v95 = vld [vmem:[%s2 + $0x1d8] sm:$0xff]
  %v96 = vld [vmem:[%s2 + $0x1e0] sm:$0xff]
  %v97 = vld [vmem:[%s2 + $0x1e8] sm:$0xff]
  %v98 = vld [vmem:[%s2 + $0x1f0] sm:$0xff]
  %v99 = vld [vmem:[%s2 + $0x1f8] sm:$0xff]
  %v100 = vld [vmem:[%s4] sm:$0xf]
  %v102 = vlaneseq
  %v103 = vshrl.u32 %v102, 7
  %v104 = vsub.s32 0, %v103
  %v105 = vrot.slane %v100, %v104
  %v106 = vlaneseq
  %v107 = vshrl.u32 %v106, 7
  %v108 = vsub.s32 1, %v107
  %v109 = vrot.slane %v100, %v108
  %v110 = vlaneseq
  %v111 = vshrl.u32 %v110, 7
  %v112 = vsub.s32 2, %v111
  %v113 = vrot.slane %v100, %v112
  %v114 = vlaneseq
  %v115 = vshrl.u32 %v114, 7
  %v116 = vsub.s32 3, %v115
  %v117 = vrot.slane %v100, %v116
  %122 = vmatprep.subr.mxu0 %v37
  %123 = vmatpush1.msra.mxu0 %v36
  %124 = vmatprep.subr.mxu0 %v41
  %125 = vmatpush1.msra.mxu0 %v40
  %126 = vmatprep.subr.mxu0 %v45
  %127 = vmatpush1.msra.mxu0 %v44
  %128 = vmatprep.subr.mxu0 %v49
  %129 = vmatpush1.msra.mxu0 %v48
  %130 = vmatprep.subr.mxu0 %v53
  %131 = vmatpush1.msra.mxu0 %v52
  %132 = vmatprep.subr.mxu0 %v57
  %133 = vmatpush1.msra.mxu0 %v56
  %134 = vmatprep.subr.mxu0 %v61
  %135 = vmatpush1.msra.mxu0 %v60
  %136 = vmatprep.subr.mxu0 %v65
  %137 = vmatpush1.msra.mxu0 %v64
  %138 = vmatprep.subr.mxu0 %v69
  %139 = vmatpush1.msra.mxu0 %v68
  %140 = vmatprep.subr.mxu0 %v73
  %141 = vmatpush1.msra.mxu0 %v72
  %142 = vmatprep.subr.mxu0 %v77
  %143 = vmatpush1.msra.mxu0 %v76
  %144 = vmatprep.subr.mxu0 %v81
  %145 = vmatpush1.msra.mxu0 %v80
  %146 = vmatprep.subr.mxu0 %v85
  %147 = vmatpush1.msra.mxu0 %v84
  %148 = vmatprep.subr.mxu0 %v89
  %149 = vmatpush1.msra.mxu0 %v88
  %150 = vmatprep.subr.mxu0 %v93
  %151 = vmatpush1.msra.mxu0 %v92
  %152 = vmatprep.subr.mxu0 %v97
  %153 = vmatpush1.msra.mxu0 %v96
  %154 = vmatprep.subr.mxu0 0.0
  %155 = vmatpush1.msra.mxu0 0.0
  %156 = vmatprep.subr.mxu0 0.0
  %157 = vmatpush1.msra.mxu0 0.0
  %158 = vmatprep.subr.mxu0 0.0
  %159 = vmatpush1.msra.mxu0 0.0
  %160 = vmatprep.subr.mxu0 0.0
  %161 = vmatpush1.msra.mxu0 0.0
  %162 = vmatprep.subr.mxu0 0.0
  %163 = vmatpush1.msra.mxu0 0.0
  %164 = vmatprep.subr.mxu0 0.0
  %165 = vmatpush1.msra.mxu0 0.0
  %166 = vmatprep.subr.mxu0 0.0
  %167 = vmatpush1.msra.mxu0 0.0
  %168 = vmatprep.subr.mxu0 0.0
  %169 = vmatpush1.msra.mxu0 0.0
  %170 = vmatprep.subr.mxu0 0.0
  %171 = vmatpush1.msra.mxu0 0.0
  %172 = vmatprep.subr.mxu0 0.0
  %173 = vmatpush1.msra.mxu0 0.0
  %174 = vmatprep.subr.mxu0 0.0
  %175 = vmatpush1.msra.mxu0 0.0
  %176 = vmatprep.subr.mxu0 0.0
  %177 = vmatpush1.msra.mxu0 0.0
  %178 = vmatprep.subr.mxu0 0.0
  %179 = vmatpush1.msra.mxu0 0.0
  %180 = vmatprep.subr.mxu0 0.0
  %181 = vmatpush1.msra.mxu0 0.0
  %182 = vmatprep.subr.mxu0 0.0
  %183 = vmatpush1.msra.mxu0 0.0
  %184 = vmatprep.subr.mxu0 0.0
  %185 = vmatpush1.msra.mxu0 0.0
  %186 = vmatprep.mubr.f32.mxu0 0.0
  %187 = vmatmul.mubr.f32.gmra.mrb[0].mxu0 %v20
  %v188 = vpop.f32.mrb[0].mxu0
  %v189 = vadd.f32 %v105, %v188
  %v190 = vpop.f32.mrb[0].mxu0
  %v191 = vadd.f32 %v109, %v190
  %192 = vmatprep.mubr.f32.mxu0 0.0
  %193 = vmatmul.mubr.f32.gmra.mrb[0].mxu0 %v21
  %v194 = vpop.f32.mrb[0].mxu0
  %v195 = vadd.f32 %v105, %v194
  %v196 = vpop.f32.mrb[0].mxu0
  %v197 = vadd.f32 %v109, %v196
  %198 = vmatprep.mubr.f32.mxu0 0.0
  %199 = vmatmul.mubr.f32.gmra.mrb[0].mxu0 %v22
  %v200 = vpop.f32.mrb[0].mxu0
  %v201 = vadd.f32 %v105, %v200
  %v202 = vpop.f32.mrb[0].mxu0
  %v203 = vadd.f32 %v109, %v202
  %204 = vmatprep.mubr.f32.mxu0 0.0
  %205 = vmatmul.mubr.f32.gmra.mrb[0].mxu0 %v23
  %v206 = vpop.f32.mrb[0].mxu0
  %v207 = vadd.f32 %v105, %v206
  %v208 = vpop.f32.mrb[0].mxu0
  %v209 = vadd.f32 %v109, %v208
  %210 = vmatprep.mubr.f32.mxu0 0.0
  %211 = vmatmul.mubr.f32.gmra.mrb[0].mxu0 %v24
  %v212 = vpop.f32.mrb[0].mxu0
  %v213 = vadd.f32 %v105, %v212
  %v214 = vpop.f32.mrb[0].mxu0
  %v215 = vadd.f32 %v109, %v214
  %216 = vmatprep.mubr.f32.mxu0 0.0
  %217 = vmatmul.mubr.f32.gmra.mrb[0].mxu0 %v25
  %v218 = vpop.f32.mrb[0].mxu0
  %v219 = vadd.f32 %v105, %v218
  %v220 = vpop.f32.mrb[0].mxu0
  %v221 = vadd.f32 %v109, %v220
  %222 = vmatprep.mubr.f32.mxu0 0.0
  %223 = vmatmul.mubr.f32.gmra.mrb[0].mxu0 %v26
  %v224 = vpop.f32.mrb[0].mxu0
  %v225 = vadd.f32 %v105, %v224
  %v226 = vpop.f32.mrb[0].mxu0
  %v227 = vadd.f32 %v109, %v226
  %228 = vmatprep.mubr.f32.mxu0 0.0
  %229 = vmatmul.mubr.f32.gmra.mrb[0].mxu0 %v27
  %v230 = vpop.f32.mrb[0].mxu0
  %v231 = vadd.f32 %v105, %v230
  %v232 = vpop.f32.mrb[0].mxu0
  %v233 = vadd.f32 %v109, %v232
  %234 = vmatprep.mubr.f32.mxu0 0.0
  %235 = vmatmul.mubr.f32.gmra.mrb[0].mxu0 %v28
  %v236 = vpop.f32.mrb[0].mxu0
  %v237 = vadd.f32 %v105, %v236
  %v238 = vpop.f32.mrb[0].mxu0
  %v239 = vadd.f32 %v109, %v238
  %240 = vmatprep.mubr.f32.mxu0 0.0
  %241 = vmatmul.mubr.f32.gmra.mrb[0].mxu0 %v29
  %v242 = vpop.f32.mrb[0].mxu0
  %v243 = vadd.f32 %v105, %v242
  %v244 = vpop.f32.mrb[0].mxu0
  %v245 = vadd.f32 %v109, %v244
  %246 = vmatprep.mubr.f32.mxu0 0.0
  %247 = vmatmul.mubr.f32.gmra.mrb[0].mxu0 %v30
  %v248 = vpop.f32.mrb[0].mxu0
  %v249 = vadd.f32 %v105, %v248
  %v250 = vpop.f32.mrb[0].mxu0
  %v251 = vadd.f32 %v109, %v250
  %252 = vmatprep.mubr.f32.mxu0 0.0
  %253 = vmatmul.mubr.f32.gmra.mrb[0].mxu0 %v31
  %v254 = vpop.f32.mrb[0].mxu0
  %v255 = vadd.f32 %v105, %v254
  %v256 = vpop.f32.mrb[0].mxu0
  %v257 = vadd.f32 %v109, %v256
  %258 = vmatprep.mubr.f32.mxu0 0.0
  %259 = vmatmul.mubr.f32.gmra.mrb[0].mxu0 %v32
  %v260 = vpop.f32.mrb[0].mxu0
  %v261 = vadd.f32 %v105, %v260
  %v262 = vpop.f32.mrb[0].mxu0
  %v263 = vadd.f32 %v109, %v262
  %264 = vmatprep.mubr.f32.mxu0 0.0
  %265 = vmatmul.mubr.f32.gmra.mrb[0].mxu0 %v33
  %v266 = vpop.f32.mrb[0].mxu0
  %v267 = vadd.f32 %v105, %v266
  %v268 = vpop.f32.mrb[0].mxu0
  %v269 = vadd.f32 %v109, %v268
  %270 = vmatprep.mubr.f32.mxu0 0.0
  %271 = vmatmul.mubr.f32.gmra.mrb[0].mxu0 %v34
  %v272 = vpop.f32.mrb[0].mxu0
  %v273 = vadd.f32 %v105, %v272
  %v274 = vpop.f32.mrb[0].mxu0
  %v275 = vadd.f32 %v109, %v274
  %276 = vmatprep.mubr.f32.mxu0 0.0
  %277 = vmatmul.mubr.f32.gmra.mrb[0].mxu0 %v35
  %v278 = vpop.f32.mrb[0].mxu0
  %v279 = vadd.f32 %v105, %v278
  %v280 = vpop.f32.mrb[0].mxu0
  %v281 = vadd.f32 %v109, %v280
  %282 = vdwg.mxu0
  %283 = vmatprep.subr.mxu0 %v39
  %284 = vmatpush1.msra.mxu0 %v38
  %285 = vmatprep.subr.mxu0 %v43
  %286 = vmatpush1.msra.mxu0 %v42
  %287 = vmatprep.subr.mxu0 %v47
  %288 = vmatpush1.msra.mxu0 %v46
  %289 = vmatprep.subr.mxu0 %v51
  %290 = vmatpush1.msra.mxu0 %v50
  %291 = vmatprep.subr.mxu0 %v55
  %292 = vmatpush1.msra.mxu0 %v54
  %293 = vmatprep.subr.mxu0 %v59
  %294 = vmatpush1.msra.mxu0 %v58
  %295 = vmatprep.subr.mxu0 %v63
  %296 = vmatpush1.msra.mxu0 %v62
  %297 = vmatprep.subr.mxu0 %v67
  %298 = vmatpush1.msra.mxu0 %v66
  %299 = vmatprep.subr.mxu0 %v71
  %300 = vmatpush1.msra.mxu0 %v70
  %301 = vmatprep.subr.mxu0 %v75
  %302 = vmatpush1.msra.mxu0 %v74
  %303 = vmatprep.subr.mxu0 %v79
  %304 = vmatpush1.msra.mxu0 %v78
  %305 = vmatprep.subr.mxu0 %v83
  %306 = vmatpush1.msra.mxu0 %v82
  %307 = vmatprep.subr.mxu0 %v87
  %308 = vmatpush1.msra.mxu0 %v86
  %309 = vmatprep.subr.mxu0 %v91
  %310 = vmatpush1.msra.mxu0 %v90
  %311 = vmatprep.subr.mxu0 %v95
  %312 = vmatpush1.msra.mxu0 %v94
  %313 = vmatprep.subr.mxu0 %v99
  %314 = vmatpush1.msra.mxu0 %v98
  %315 = vmatprep.subr.mxu0 0.0
  %316 = vmatpush1.msra.mxu0 0.0
  %317 = vmatprep.subr.mxu0 0.0
  %318 = vmatpush1.msra.mxu0 0.0
  %319 = vmatprep.subr.mxu0 0.0
  %320 = vmatpush1.msra.mxu0 0.0
  %321 = vmatprep.subr.mxu0 0.0
  %322 = vmatpush1.msra.mxu0 0.0
  %323 = vmatprep.subr.mxu0 0.0
  %324 = vmatpush1.msra.mxu0 0.0
  %325 = vmatprep.subr.mxu0 0.0
  %326 = vmatpush1.msra.mxu0 0.0
  %327 = vmatprep.subr.mxu0 0.0
  %328 = vmatpush1.msra.mxu0 0.0
  %329 = vmatprep.subr.mxu0 0.0
  %330 = vmatpush1.msra.mxu0 0.0
  %331 = vmatprep.subr.mxu0 0.0
  %332 = vmatpush1.msra.mxu0 0.0
  %333 = vmatprep.subr.mxu0 0.0
  %334 = vmatpush1.msra.mxu0 0.0
  %335 = vmatprep.subr.mxu0 0.0
  %336 = vmatpush1.msra.mxu0 0.0
  %337 = vmatprep.subr.mxu0 0.0
  %338 = vmatpush1.msra.mxu0 0.0
  %339 = vmatprep.subr.mxu0 0.0
  %340 = vmatpush1.msra.mxu0 0.0
  %341 = vmatprep.subr.mxu0 0.0
  %342 = vmatpush1.msra.mxu0 0.0
  %343 = vmatprep.subr.mxu0 0.0
  %344 = vmatpush1.msra.mxu0 0.0
  %345 = vmatprep.subr.mxu0 0.0
  %346 = vmatpush1.msra.mxu0 0.0
  %347 = vmatprep.mubr.f32.mxu0 0.0
  %348 = vmatmul.mubr.f32.gmra.mrb[0].mxu0 %v20
  %v349 = vpop.f32.mrb[0].mxu0
  %v350 = vadd.f32 %v113, %v349
  %v351 = vpop.f32.mrb[0].mxu0
  %v352 = vadd.f32 %v117, %v351
  %353 = vmatprep.mubr.f32.mxu0 0.0
  %354 = vmatmul.mubr.f32.gmra.mrb[0].mxu0 %v21
  %v355 = vpop.f32.mrb[0].mxu0
  %v356 = vadd.f32 %v113, %v355
  %v357 = vpop.f32.mrb[0].mxu0
  %v358 = vadd.f32 %v117, %v357
  %359 = vmatprep.mubr.f32.mxu0 0.0
  %360 = vmatmul.mubr.f32.gmra.mrb[0].mxu0 %v22
  %v361 = vpop.f32.mrb[0].mxu0
  %v362 = vadd.f32 %v113, %v361
  %v363 = vpop.f32.mrb[0].mxu0
  %v364 = vadd.f32 %v117, %v363
  %365 = vmatprep.mubr.f32.mxu0 0.0
  %366 = vmatmul.mubr.f32.gmra.mrb[0].mxu0 %v23
  %v367 = vpop.f32.mrb[0].mxu0
  %v368 = vadd.f32 %v113, %v367
  %v369 = vpop.f32.mrb[0].mxu0
  %v370 = vadd.f32 %v117, %v369
  %371 = vmatprep.mubr.f32.mxu0 0.0
  %372 = vmatmul.mubr.f32.gmra.mrb[0].mxu0 %v24
  %v373 = vpop.f32.mrb[0].mxu0
  %v374 = vadd.f32 %v113, %v373
  %v375 = vpop.f32.mrb[0].mxu0
  %v376 = vadd.f32 %v117, %v375
  %377 = vmatprep.mubr.f32.mxu0 0.0
  %378 = vmatmul.mubr.f32.gmra.mrb[0].mxu0 %v25
  %v379 = vpop.f32.mrb[0].mxu0
  %v380 = vadd.f32 %v113, %v379
  %v381 = vpop.f32.mrb[0].mxu0
  %v382 = vadd.f32 %v117, %v381
  %383 = vmatprep.mubr.f32.mxu0 0.0
  %384 = vmatmul.mubr.f32.gmra.mrb[0].mxu0 %v26
  %v385 = vpop.f32.mrb[0].mxu0
  %v386 = vadd.f32 %v113, %v385
  %v387 = vpop.f32.mrb[0].mxu0
  %v388 = vadd.f32 %v117, %v387
  %389 = vmatprep.mubr.f32.mxu0 0.0
  %390 = vmatmul.mubr.f32.gmra.mrb[0].mxu0 %v27
  %v391 = vpop.f32.mrb[0].mxu0
  %v392 = vadd.f32 %v113, %v391
  %v393 = vpop.f32.mrb[0].mxu0
  %v394 = vadd.f32 %v117, %v393
  %395 = vmatprep.mubr.f32.mxu0 0.0
  %396 = vmatmul.mubr.f32.gmra.mrb[0].mxu0 %v28
  %v397 = vpop.f32.mrb[0].mxu0
  %v398 = vadd.f32 %v113, %v397
  %v399 = vpop.f32.mrb[0].mxu0
  %v400 = vadd.f32 %v117, %v399
  %401 = vmatprep.mubr.f32.mxu0 0.0
  %402 = vmatmul.mubr.f32.gmra.mrb[0].mxu0 %v29
  %v403 = vpop.f32.mrb[0].mxu0
  %v404 = vadd.f32 %v113, %v403
  %v405 = vpop.f32.mrb[0].mxu0
  %v406 = vadd.f32 %v117, %v405
  %407 = vmatprep.mubr.f32.mxu0 0.0
  %408 = vmatmul.mubr.f32.gmra.mrb[0].mxu0 %v30
  %v409 = vpop.f32.mrb[0].mxu0
  %v410 = vadd.f32 %v113, %v409
  %v411 = vpop.f32.mrb[0].mxu0
  %v412 = vadd.f32 %v117, %v411
  %413 = vmatprep.mubr.f32.mxu0 0.0
  %414 = vmatmul.mubr.f32.gmra.mrb[0].mxu0 %v31
  %v415 = vpop.f32.mrb[0].mxu0
  %v416 = vadd.f32 %v113, %v415
  %v417 = vpop.f32.mrb[0].mxu0
  %v418 = vadd.f32 %v117, %v417
  %419 = vmatprep.mubr.f32.mxu0 0.0
  %420 = vmatmul.mubr.f32.gmra.mrb[0].mxu0 %v32
  %v421 = vpop.f32.mrb[0].mxu0
  %v422 = vadd.f32 %v113, %v421
  %v423 = vpop.f32.mrb[0].mxu0
  %v424 = vadd.f32 %v117, %v423
  %425 = vmatprep.mubr.f32.mxu0 0.0
  %426 = vmatmul.mubr.f32.gmra.mrb[0].mxu0 %v33
  %v427 = vpop.f32.mrb[0].mxu0
  %v428 = vadd.f32 %v113, %v427
  %v429 = vpop.f32.mrb[0].mxu0
  %v430 = vadd.f32 %v117, %v429
  %431 = vmatprep.mubr.f32.mxu0 0.0
  %432 = vmatmul.mubr.f32.gmra.mrb[0].mxu0 %v34
  %v433 = vpop.f32.mrb[0].mxu0
  %v434 = vadd.f32 %v113, %v433
  %v435 = vpop.f32.mrb[0].mxu0
  %v436 = vadd.f32 %v117, %v435
  %437 = vmatprep.mubr.f32.mxu0 0.0
  %438 = vmatmul.mubr.f32.gmra.mrb[0].mxu0 %v35
  %v439 = vpop.f32.mrb[0].mxu0
  %v440 = vadd.f32 %v113, %v439
  %v441 = vpop.f32.mrb[0].mxu0
  %v442 = vadd.f32 %v117, %v441
  %443 = vdwg.mxu0
  %v444 = vld [vmem:[%s1] sm:$0xff]
  %v445 = vld [vmem:[%s1 + $0x8] sm:$0xff]
  %v446 = vld [vmem:[%s1 + $0x10] sm:$0xff]
  %v447 = vld [vmem:[%s1 + $0x18] sm:$0xff]
  %v448 = vld [vmem:[%s1 + $0x20] sm:$0xff]
  %v449 = vld [vmem:[%s1 + $0x28] sm:$0xff]
  %v450 = vld [vmem:[%s1 + $0x30] sm:$0xff]
  %v451 = vld [vmem:[%s1 + $0x38] sm:$0xff]
  %v452 = vld [vmem:[%s1 + $0x40] sm:$0xff]
  %v453 = vld [vmem:[%s1 + $0x48] sm:$0xff]
  %v454 = vld [vmem:[%s1 + $0x50] sm:$0xff]
  %v455 = vld [vmem:[%s1 + $0x58] sm:$0xff]
  %v456 = vld [vmem:[%s1 + $0x60] sm:$0xff]
  %v457 = vld [vmem:[%s1 + $0x68] sm:$0xff]
  %v458 = vld [vmem:[%s1 + $0x70] sm:$0xff]
  %v459 = vld [vmem:[%s1 + $0x78] sm:$0xff]
  %v460 = vld [vmem:[%s3] sm:$0xff]
  %v461 = vld [vmem:[%s3 + $0x8] sm:$0xff]
  %v462 = vld [vmem:[%s3 + $0x10] sm:$0xff]
  %v463 = vld [vmem:[%s3 + $0x18] sm:$0xff]
  %v464 = vld [vmem:[%s3 + $0x20] sm:$0xff]
  %v465 = vld [vmem:[%s3 + $0x28] sm:$0xff]
  %v466 = vld [vmem:[%s3 + $0x30] sm:$0xff]
  %v467 = vld [vmem:[%s3 + $0x38] sm:$0xff]
  %v468 = vld [vmem:[%s3 + $0x40] sm:$0xff]
  %v469 = vld [vmem:[%s3 + $0x48] sm:$0xff]
  %v470 = vld [vmem:[%s3 + $0x50] sm:$0xff]
  %v471 = vld [vmem:[%s3 + $0x58] sm:$0xff]
  %v472 = vld [vmem:[%s3 + $0x60] sm:$0xff]
  %v473 = vld [vmem:[%s3 + $0x68] sm:$0xff]
  %v474 = vld [vmem:[%s3 + $0x70] sm:$0xff]
  %v475 = vld [vmem:[%s3 + $0x78] sm:$0xff]
  %v476 = vld [vmem:[%s3 + $0x80] sm:$0xff]
  %v477 = vld [vmem:[%s3 + $0x88] sm:$0xff]
  %v478 = vld [vmem:[%s3 + $0x90] sm:$0xff]
  %v479 = vld [vmem:[%s3 + $0x98] sm:$0xff]
  %v480 = vld [vmem:[%s3 + $0xa0] sm:$0xff]
  %v481 = vld [vmem:[%s3 + $0xa8] sm:$0xff]
  %v482 = vld [vmem:[%s3 + $0xb0] sm:$0xff]
  %v483 = vld [vmem:[%s3 + $0xb8] sm:$0xff]
  %v484 = vld [vmem:[%s3 + $0xc0] sm:$0xff]
  %v485 = vld [vmem:[%s3 + $0xc8] sm:$0xff]
  %v486 = vld [vmem:[%s3 + $0xd0] sm:$0xff]
  %v487 = vld [vmem:[%s3 + $0xd8] sm:$0xff]
  %v488 = vld [vmem:[%s3 + $0xe0] sm:$0xff]
  %v489 = vld [vmem:[%s3 + $0xe8] sm:$0xff]
  %v490 = vld [vmem:[%s3 + $0xf0] sm:$0xff]
  %v491 = vld [vmem:[%s3 + $0xf8] sm:$0xff]
  %v492 = vld [vmem:[%s3 + $0x100] sm:$0xff]
  %v493 = vld [vmem:[%s3 + $0x108] sm:$0xff]
  %v494 = vld [vmem:[%s3 + $0x110] sm:$0xff]
  %v495 = vld [vmem:[%s3 + $0x118] sm:$0xff]
  %v496 = vld [vmem:[%s3 + $0x120] sm:$0xff]
  %v497 = vld [vmem:[%s3 + $0x128] sm:$0xff]
  %v498 = vld [vmem:[%s3 + $0x130] sm:$0xff]
  %v499 = vld [vmem:[%s3 + $0x138] sm:$0xff]
  %v500 = vld [vmem:[%s3 + $0x140] sm:$0xff]
  %v501 = vld [vmem:[%s3 + $0x148] sm:$0xff]
  %v502 = vld [vmem:[%s3 + $0x150] sm:$0xff]
  %v503 = vld [vmem:[%s3 + $0x158] sm:$0xff]
  %v504 = vld [vmem:[%s3 + $0x160] sm:$0xff]
  %v505 = vld [vmem:[%s3 + $0x168] sm:$0xff]
  %v506 = vld [vmem:[%s3 + $0x170] sm:$0xff]
  %v507 = vld [vmem:[%s3 + $0x178] sm:$0xff]
  %v508 = vld [vmem:[%s3 + $0x180] sm:$0xff]
  %v509 = vld [vmem:[%s3 + $0x188] sm:$0xff]
  %v510 = vld [vmem:[%s3 + $0x190] sm:$0xff]
  %v511 = vld [vmem:[%s3 + $0x198] sm:$0xff]
  %v512 = vld [vmem:[%s3 + $0x1a0] sm:$0xff]
  %v513 = vld [vmem:[%s3 + $0x1a8] sm:$0xff]
  %v514 = vld [vmem:[%s3 + $0x1b0] sm:$0xff]
  %v515 = vld [vmem:[%s3 + $0x1b8] sm:$0xff]
  %v516 = vld [vmem:[%s3 + $0x1c0] sm:$0xff]
  %v517 = vld [vmem:[%s3 + $0x1c8] sm:$0xff]
  %v518 = vld [vmem:[%s3 + $0x1d0] sm:$0xff]
  %v519 = vld [vmem:[%s3 + $0x1d8] sm:$0xff]
  %v520 = vld [vmem:[%s3 + $0x1e0] sm:$0xff]
  %v521 = vld [vmem:[%s3 + $0x1e8] sm:$0xff]
  %v522 = vld [vmem:[%s3 + $0x1f0] sm:$0xff]
  %v523 = vld [vmem:[%s3 + $0x1f8] sm:$0xff]
  %524 = vmatprep.subr.mxu0 %v461
  %525 = vmatpush1.msra.mxu0 %v460
  %526 = vmatprep.subr.mxu0 %v465
  %527 = vmatpush1.msra.mxu0 %v464
  %528 = vmatprep.subr.mxu0 %v469
  %529 = vmatpush1.msra.mxu0 %v468
  %530 = vmatprep.subr.mxu0 %v473
  %531 = vmatpush1.msra.mxu0 %v472
  %532 = vmatprep.subr.mxu0 %v477
  %533 = vmatpush1.msra.mxu0 %v476
  %534 = vmatprep.subr.mxu0 %v481
  %535 = vmatpush1.msra.mxu0 %v480
  %536 = vmatprep.subr.mxu0 %v485
  %537 = vmatpush1.msra.mxu0 %v484
  %538 = vmatprep.subr.mxu0 %v489
  %539 = vmatpush1.msra.mxu0 %v488
  %540 = vmatprep.subr.mxu0 %v493
  %541 = vmatpush1.msra.mxu0 %v492
  %542 = vmatprep.subr.mxu0 %v497
  %543 = vmatpush1.msra.mxu0 %v496
  %544 = vmatprep.subr.mxu0 %v501
  %545 = vmatpush1.msra.mxu0 %v500
  %546 = vmatprep.subr.mxu0 %v505
  %547 = vmatpush1.msra.mxu0 %v504
  %548 = vmatprep.subr.mxu0 %v509
  %549 = vmatpush1.msra.mxu0 %v508
  %550 = vmatprep.subr.mxu0 %v513
  %551 = vmatpush1.msra.mxu0 %v512
  %552 = vmatprep.subr.mxu0 %v517
  %553 = vmatpush1.msra.mxu0 %v516
  %554 = vmatprep.subr.mxu0 %v521
  %555 = vmatpush1.msra.mxu0 %v520
  %556 = vmatprep.subr.mxu0 0.0
  %557 = vmatpush1.msra.mxu0 0.0
  %558 = vmatprep.subr.mxu0 0.0
  %559 = vmatpush1.msra.mxu0 0.0
  %560 = vmatprep.subr.mxu0 0.0
  %561 = vmatpush1.msra.mxu0 0.0
  %562 = vmatprep.subr.mxu0 0.0
  %563 = vmatpush1.msra.mxu0 0.0
  %564 = vmatprep.subr.mxu0 0.0
  %565 = vmatpush1.msra.mxu0 0.0
  %566 = vmatprep.subr.mxu0 0.0
  %567 = vmatpush1.msra.mxu0 0.0
  %568 = vmatprep.subr.mxu0 0.0
  %569 = vmatpush1.msra.mxu0 0.0
  %570 = vmatprep.subr.mxu0 0.0
  %571 = vmatpush1.msra.mxu0 0.0
  %572 = vmatprep.subr.mxu0 0.0
  %573 = vmatpush1.msra.mxu0 0.0
  %574 = vmatprep.subr.mxu0 0.0
  %575 = vmatpush1.msra.mxu0 0.0
  %576 = vmatprep.subr.mxu0 0.0
  %577 = vmatpush1.msra.mxu0 0.0
  %578 = vmatprep.subr.mxu0 0.0
  %579 = vmatpush1.msra.mxu0 0.0
  %580 = vmatprep.subr.mxu0 0.0
  %581 = vmatpush1.msra.mxu0 0.0
  %582 = vmatprep.subr.mxu0 0.0
  %583 = vmatpush1.msra.mxu0 0.0
  %584 = vmatprep.subr.mxu0 0.0
  %585 = vmatpush1.msra.mxu0 0.0
  %586 = vmatprep.subr.mxu0 0.0
  %587 = vmatpush1.msra.mxu0 0.0
  %588 = vmatprep.mubr.f32.mxu0 0.0
  %589 = vmatmul.mubr.f32.gmra.mrb[0].mxu0 %v444
  %v590 = vpop.f32.mrb[0].mxu0
  %v591 = vadd.f32 0.0, %v590
  %v592 = vpop.f32.mrb[0].mxu0
  %v593 = vadd.f32 0.0, %v592
  %594 = vmatprep.mubr.f32.mxu0 0.0
  %595 = vmatmul.mubr.f32.gmra.mrb[0].mxu0 %v445
  %v596 = vpop.f32.mrb[0].mxu0
  %v597 = vadd.f32 0.0, %v596
  %v598 = vpop.f32.mrb[0].mxu0
  %v599 = vadd.f32 0.0, %v598
  %600 = vmatprep.mubr.f32.mxu0 0.0
  %601 = vmatmul.mubr.f32.gmra.mrb[0].mxu0 %v446
  %v602 = vpop.f32.mrb[0].mxu0
  %v603 = vadd.f32 0.0, %v602
  %v604 = vpop.f32.mrb[0].mxu0
  %v605 = vadd.f32 0.0, %v604
  %606 = vmatprep.mubr.f32.mxu0 0.0
  %607 = vmatmul.mubr.f32.gmra.mrb[0].mxu0 %v447
  %v608 = vpop.f32.mrb[0].mxu0
  %v609 = vadd.f32 0.0, %v608
  %v610 = vpop.f32.mrb[0].mxu0
  %v611 = vadd.f32 0.0, %v610
  %612 = vmatprep.mubr.f32.mxu0 0.0
  %613 = vmatmul.mubr.f32.gmra.mrb[0].mxu0 %v448
  %v614 = vpop.f32.mrb[0].mxu0
  %v615 = vadd.f32 0.0, %v614
  %v616 = vpop.f32.mrb[0].mxu0
  %v617 = vadd.f32 0.0, %v616
  %618 = vmatprep.mubr.f32.mxu0 0.0
  %619 = vmatmul.mubr.f32.gmra.mrb[0].mxu0 %v449
  %v620 = vpop.f32.mrb[0].mxu0
  %v621 = vadd.f32 0.0, %v620
  %v622 = vpop.f32.mrb[0].mxu0
  %v623 = vadd.f32 0.0, %v622
  %624 = vmatprep.mubr.f32.mxu0 0.0
  %625 = vmatmul.mubr.f32.gmra.mrb[0].mxu0 %v450
  %v626 = vpop.f32.mrb[0].mxu0
  %v627 = vadd.f32 0.0, %v626
  %v628 = vpop.f32.mrb[0].mxu0
  %v629 = vadd.f32 0.0, %v628
  %630 = vmatprep.mubr.f32.mxu0 0.0
  %631 = vmatmul.mubr.f32.gmra.mrb[0].mxu0 %v451
  %v632 = vpop.f32.mrb[0].mxu0
  %v633 = vadd.f32 0.0, %v632
  %v634 = vpop.f32.mrb[0].mxu0
  %v635 = vadd.f32 0.0, %v634
  %636 = vmatprep.mubr.f32.mxu0 0.0
  %637 = vmatmul.mubr.f32.gmra.mrb[0].mxu0 %v452
  %v638 = vpop.f32.mrb[0].mxu0
  %v639 = vadd.f32 0.0, %v638
  %v640 = vpop.f32.mrb[0].mxu0
  %v641 = vadd.f32 0.0, %v640
  %642 = vmatprep.mubr.f32.mxu0 0.0
  %643 = vmatmul.mubr.f32.gmra.mrb[0].mxu0 %v453
  %v644 = vpop.f32.mrb[0].mxu0
  %v645 = vadd.f32 0.0, %v644
  %v646 = vpop.f32.mrb[0].mxu0
  %v647 = vadd.f32 0.0, %v646
  %648 = vmatprep.mubr.f32.mxu0 0.0
  %649 = vmatmul.mubr.f32.gmra.mrb[0].mxu0 %v454
  %v650 = vpop.f32.mrb[0].mxu0
  %v651 = vadd.f32 0.0, %v650
  %v652 = vpop.f32.mrb[0].mxu0
  %v653 = vadd.f32 0.0, %v652
  %654 = vmatprep.mubr.f32.mxu0 0.0
  %655 = vmatmul.mubr.f32.gmra.mrb[0].mxu0 %v455
  %v656 = vpop.f32.mrb[0].mxu0
  %v657 = vadd.f32 0.0, %v656
  %v658 = vpop.f32.mrb[0].mxu0
  %v659 = vadd.f32 0.0, %v658
  %660 = vmatprep.mubr.f32.mxu0 0.0
  %661 = vmatmul.mubr.f32.gmra.mrb[0].mxu0 %v456
  %v662 = vpop.f32.mrb[0].mxu0
  %v663 = vadd.f32 0.0, %v662
  %v664 = vpop.f32.mrb[0].mxu0
  %v665 = vadd.f32 0.0, %v664
  %666 = vmatprep.mubr.f32.mxu0 0.0
  %667 = vmatmul.mubr.f32.gmra.mrb[0].mxu0 %v457
  %v668 = vpop.f32.mrb[0].mxu0
  %v669 = vadd.f32 0.0, %v668
  %v670 = vpop.f32.mrb[0].mxu0
  %v671 = vadd.f32 0.0, %v670
  %672 = vmatprep.mubr.f32.mxu0 0.0
  %673 = vmatmul.mubr.f32.gmra.mrb[0].mxu0 %v458
  %v674 = vpop.f32.mrb[0].mxu0
  %v675 = vadd.f32 0.0, %v674
  %v676 = vpop.f32.mrb[0].mxu0
  %v677 = vadd.f32 0.0, %v676
  %678 = vmatprep.mubr.f32.mxu0 0.0
  %679 = vmatmul.mubr.f32.gmra.mrb[0].mxu0 %v459
  %v680 = vpop.f32.mrb[0].mxu0
  %v681 = vadd.f32 0.0, %v680
  %v682 = vpop.f32.mrb[0].mxu0
  %v683 = vadd.f32 0.0, %v682
  %684 = vdwg.mxu0
  %685 = vmatprep.subr.mxu0 %v463
  %686 = vmatpush1.msra.mxu0 %v462
  %687 = vmatprep.subr.mxu0 %v467
  %688 = vmatpush1.msra.mxu0 %v466
  %689 = vmatprep.subr.mxu0 %v471
  %690 = vmatpush1.msra.mxu0 %v470
  %691 = vmatprep.subr.mxu0 %v475
  %692 = vmatpush1.msra.mxu0 %v474
  %693 = vmatprep.subr.mxu0 %v479
  %694 = vmatpush1.msra.mxu0 %v478
  %695 = vmatprep.subr.mxu0 %v483
  %696 = vmatpush1.msra.mxu0 %v482
  %697 = vmatprep.subr.mxu0 %v487
  %698 = vmatpush1.msra.mxu0 %v486
  %699 = vmatprep.subr.mxu0 %v491
  %700 = vmatpush1.msra.mxu0 %v490
  %701 = vmatprep.subr.mxu0 %v495
  %702 = vmatpush1.msra.mxu0 %v494
  %703 = vmatprep.subr.mxu0 %v499
  %704 = vmatpush1.msra.mxu0 %v498
  %705 = vmatprep.subr.mxu0 %v503
  %706 = vmatpush1.msra.mxu0 %v502
  %707 = vmatprep.subr.mxu0 %v507
  %708 = vmatpush1.msra.mxu0 %v506
  %709 = vmatprep.subr.mxu0 %v511
  %710 = vmatpush1.msra.mxu0 %v510
  %711 = vmatprep.subr.mxu0 %v515
  %712 = vmatpush1.msra.mxu0 %v514
  %713 = vmatprep.subr.mxu0 %v519
  %714 = vmatpush1.msra.mxu0 %v518
  %715 = vmatprep.subr.mxu0 %v523
  %716 = vmatpush1.msra.mxu0 %v522
  %717 = vmatprep.subr.mxu0 0.0
  %718 = vmatpush1.msra.mxu0 0.0
  %719 = vmatprep.subr.mxu0 0.0
  %720 = vmatpush1.msra.mxu0 0.0
  %721 = vmatprep.subr.mxu0 0.0
  %722 = vmatpush1.msra.mxu0 0.0
  %723 = vmatprep.subr.mxu0 0.0
  %724 = vmatpush1.msra.mxu0 0.0
  %725 = vmatprep.subr.mxu0 0.0
  %726 = vmatpush1.msra.mxu0 0.0
  %727 = vmatprep.subr.mxu0 0.0
  %728 = vmatpush1.msra.mxu0 0.0
  %729 = vmatprep.subr.mxu0 0.0
  %730 = vmatpush1.msra.mxu0 0.0
  %731 = vmatprep.subr.mxu0 0.0
  %732 = vmatpush1.msra.mxu0 0.0
  %733 = vmatprep.subr.mxu0 0.0
  %734 = vmatpush1.msra.mxu0 0.0
  %735 = vmatprep.subr.mxu0 0.0
  %736 = vmatpush1.msra.mxu0 0.0
  %737 = vmatprep.subr.mxu0 0.0
  %738 = vmatpush1.msra.mxu0 0.0
  %739 = vmatprep.subr.mxu0 0.0
  %740 = vmatpush1.msra.mxu0 0.0
  %741 = vmatprep.subr.mxu0 0.0
  %742 = vmatpush1.msra.mxu0 0.0
  %743 = vmatprep.subr.mxu0 0.0
  %744 = vmatpush1.msra.mxu0 0.0
  %745 = vmatprep.subr.mxu0 0.0
  %746 = vmatpush1.msra.mxu0 0.0
  %747 = vmatprep.subr.mxu0 0.0
  %748 = vmatpush1.msra.mxu0 0.0
  %749 = vmatprep.mubr.f32.mxu0 0.0
  %750 = vmatmul.mubr.f32.gmra.mrb[0].mxu0 %v444
  %v751 = vpop.f32.mrb[0].mxu0
  %v752 = vadd.f32 0.0, %v751
  %v753 = vpop.f32.mrb[0].mxu0
  %v754 = vadd.f32 0.0, %v753
  %755 = vmatprep.mubr.f32.mxu0 0.0
  %756 = vmatmul.mubr.f32.gmra.mrb[0].mxu0 %v445
  %v757 = vpop.f32.mrb[0].mxu0
  %v758 = vadd.f32 0.0, %v757
  %v759 = vpop.f32.mrb[0].mxu0
  %v760 = vadd.f32 0.0, %v759
  %761 = vmatprep.mubr.f32.mxu0 0.0
  %762 = vmatmul.mubr.f32.gmra.mrb[0].mxu0 %v446
  %v763 = vpop.f32.mrb[0].mxu0
  %v764 = vadd.f32 0.0, %v763
  %v765 = vpop.f32.mrb[0].mxu0
  %v766 = vadd.f32 0.0, %v765
  %767 = vmatprep.mubr.f32.mxu0 0.0
  %768 = vmatmul.mubr.f32.gmra.mrb[0].mxu0 %v447
  %v769 = vpop.f32.mrb[0].mxu0
  %v770 = vadd.f32 0.0, %v769
  %v771 = vpop.f32.mrb[0].mxu0
  %v772 = vadd.f32 0.0, %v771
  %773 = vmatprep.mubr.f32.mxu0 0.0
  %774 = vmatmul.mubr.f32.gmra.mrb[0].mxu0 %v448
  %v775 = vpop.f32.mrb[0].mxu0
  %v776 = vadd.f32 0.0, %v775
  %v777 = vpop.f32.mrb[0].mxu0
  %v778 = vadd.f32 0.0, %v777
  %779 = vmatprep.mubr.f32.mxu0 0.0
  %780 = vmatmul.mubr.f32.gmra.mrb[0].mxu0 %v449
  %v781 = vpop.f32.mrb[0].mxu0
  %v782 = vadd.f32 0.0, %v781
  %v783 = vpop.f32.mrb[0].mxu0
  %v784 = vadd.f32 0.0, %v783
  %785 = vmatprep.mubr.f32.mxu0 0.0
  %786 = vmatmul.mubr.f32.gmra.mrb[0].mxu0 %v450
  %v787 = vpop.f32.mrb[0].mxu0
  %v788 = vadd.f32 0.0, %v787
  %v789 = vpop.f32.mrb[0].mxu0
  %v790 = vadd.f32 0.0, %v789
  %791 = vmatprep.mubr.f32.mxu0 0.0
  %792 = vmatmul.mubr.f32.gmra.mrb[0].mxu0 %v451
  %v793 = vpop.f32.mrb[0].mxu0
  %v794 = vadd.f32 0.0, %v793
  %v795 = vpop.f32.mrb[0].mxu0
  %v796 = vadd.f32 0.0, %v795
  %797 = vmatprep.mubr.f32.mxu0 0.0
  %798 = vmatmul.mubr.f32.gmra.mrb[0].mxu0 %v452
  %v799 = vpop.f32.mrb[0].mxu0
  %v800 = vadd.f32 0.0, %v799
  %v801 = vpop.f32.mrb[0].mxu0
  %v802 = vadd.f32 0.0, %v801
  %803 = vmatprep.mubr.f32.mxu0 0.0
  %804 = vmatmul.mubr.f32.gmra.mrb[0].mxu0 %v453
  %v805 = vpop.f32.mrb[0].mxu0
  %v806 = vadd.f32 0.0, %v805
  %v807 = vpop.f32.mrb[0].mxu0
  %v808 = vadd.f32 0.0, %v807
  %809 = vmatprep.mubr.f32.mxu0 0.0
  %810 = vmatmul.mubr.f32.gmra.mrb[0].mxu0 %v454
  %v811 = vpop.f32.mrb[0].mxu0
  %v812 = vadd.f32 0.0, %v811
  %v813 = vpop.f32.mrb[0].mxu0
  %v814 = vadd.f32 0.0, %v813
  %815 = vmatprep.mubr.f32.mxu0 0.0
  %816 = vmatmul.mubr.f32.gmra.mrb[0].mxu0 %v455
  %v817 = vpop.f32.mrb[0].mxu0
  %v818 = vadd.f32 0.0, %v817
  %v819 = vpop.f32.mrb[0].mxu0
  %v820 = vadd.f32 0.0, %v819
  %821 = vmatprep.mubr.f32.mxu0 0.0
  %822 = vmatmul.mubr.f32.gmra.mrb[0].mxu0 %v456
  %v823 = vpop.f32.mrb[0].mxu0
  %v824 = vadd.f32 0.0, %v823
  %v825 = vpop.f32.mrb[0].mxu0
  %v826 = vadd.f32 0.0, %v825
  %827 = vmatprep.mubr.f32.mxu0 0.0
  %828 = vmatmul.mubr.f32.gmra.mrb[0].mxu0 %v457
  %v829 = vpop.f32.mrb[0].mxu0
  %v830 = vadd.f32 0.0, %v829
  %v831 = vpop.f32.mrb[0].mxu0
  %v832 = vadd.f32 0.0, %v831
  %833 = vmatprep.mubr.f32.mxu0 0.0
  %834 = vmatmul.mubr.f32.gmra.mrb[0].mxu0 %v458
  %v835 = vpop.f32.mrb[0].mxu0
  %v836 = vadd.f32 0.0, %v835
  %v837 = vpop.f32.mrb[0].mxu0
  %v838 = vadd.f32 0.0, %v837
  %839 = vmatprep.mubr.f32.mxu0 0.0
  %840 = vmatmul.mubr.f32.gmra.mrb[0].mxu0 %v459
  %v841 = vpop.f32.mrb[0].mxu0
  %v842 = vadd.f32 0.0, %v841
  %v843 = vpop.f32.mrb[0].mxu0
  %v844 = vadd.f32 0.0, %v843
  %845 = vdwg.mxu0
  %v846 = vadd.f32 %v189, %v591
  %v847 = vadd.f32 %v191, %v593
  %v848 = vadd.f32 %v350, %v752
  %v849 = vadd.f32 %v352, %v754
  %v850 = vadd.f32 %v195, %v597
  %v851 = vadd.f32 %v197, %v599
  %v852 = vadd.f32 %v356, %v758
  %v853 = vadd.f32 %v358, %v760
  %v854 = vadd.f32 %v201, %v603
  %v855 = vadd.f32 %v203, %v605
  %v856 = vadd.f32 %v362, %v764
  %v857 = vadd.f32 %v364, %v766
  %v858 = vadd.f32 %v207, %v609
  %v859 = vadd.f32 %v209, %v611
  %v860 = vadd.f32 %v368, %v770
  %v861 = vadd.f32 %v370, %v772
  %v862 = vadd.f32 %v213, %v615
  %v863 = vadd.f32 %v215, %v617
  %v864 = vadd.f32 %v374, %v776
  %v865 = vadd.f32 %v376, %v778
  %v866 = vadd.f32 %v219, %v621
  %v867 = vadd.f32 %v221, %v623
  %v868 = vadd.f32 %v380, %v782
  %v869 = vadd.f32 %v382, %v784
  %v870 = vadd.f32 %v225, %v627
  %v871 = vadd.f32 %v227, %v629
  %v872 = vadd.f32 %v386, %v788
  %v873 = vadd.f32 %v388, %v790
  %v874 = vadd.f32 %v231, %v633
  %v875 = vadd.f32 %v233, %v635
  %v876 = vadd.f32 %v392, %v794
  %v877 = vadd.f32 %v394, %v796
  %v878 = vadd.f32 %v237, %v639
  %v879 = vadd.f32 %v239, %v641
  %v880 = vadd.f32 %v398, %v800
  %v881 = vadd.f32 %v400, %v802
  %v882 = vadd.f32 %v243, %v645
  %v883 = vadd.f32 %v245, %v647
  %v884 = vadd.f32 %v404, %v806
  %v885 = vadd.f32 %v406, %v808
  %v886 = vadd.f32 %v249, %v651
  %v887 = vadd.f32 %v251, %v653
  %v888 = vadd.f32 %v410, %v812
  %v889 = vadd.f32 %v412, %v814
  %v890 = vadd.f32 %v255, %v657
  %v891 = vadd.f32 %v257, %v659
  %v892 = vadd.f32 %v416, %v818
  %v893 = vadd.f32 %v418, %v820
  %v894 = vadd.f32 %v261, %v663
  %v895 = vadd.f32 %v263, %v665
  %v896 = vadd.f32 %v422, %v824
  %v897 = vadd.f32 %v424, %v826
  %v898 = vadd.f32 %v267, %v669
  %v899 = vadd.f32 %v269, %v671
  %v900 = vadd.f32 %v428, %v830
  %v901 = vadd.f32 %v430, %v832
  %v902 = vadd.f32 %v273, %v675
  %v903 = vadd.f32 %v275, %v677
  %v904 = vadd.f32 %v434, %v836
  %v905 = vadd.f32 %v436, %v838
  %v906 = vadd.f32 %v279, %v681
  %v907 = vadd.f32 %v281, %v683
  %v908 = vadd.f32 %v440, %v842
  %v909 = vadd.f32 %v442, %v844
  %910 = vst [vmem:[%s5] sm:$0xff] %v846
  %911 = vst [vmem:[%s5 + $0x8] sm:$0xff] %v847
  %912 = vst [vmem:[%s5 + $0x10] sm:$0xff] %v848
  %913 = vst [vmem:[%s5 + $0x18] sm:$0xff] %v849
  %914 = vst [vmem:[%s5 + $0x20] sm:$0xff] %v850
  %915 = vst [vmem:[%s5 + $0x28] sm:$0xff] %v851
  %916 = vst [vmem:[%s5 + $0x30] sm:$0xff] %v852
  %917 = vst [vmem:[%s5 + $0x38] sm:$0xff] %v853
  %918 = vst [vmem:[%s5 + $0x40] sm:$0xff] %v854
  %919 = vst [vmem:[%s5 + $0x48] sm:$0xff] %v855
  %920 = vst [vmem:[%s5 + $0x50] sm:$0xff] %v856
  %921 = vst [vmem:[%s5 + $0x58] sm:$0xff] %v857
  %922 = vst [vmem:[%s5 + $0x60] sm:$0xff] %v858
  %923 = vst [vmem:[%s5 + $0x68] sm:$0xff] %v859
  %924 = vst [vmem:[%s5 + $0x70] sm:$0xff] %v860
  %925 = vst [vmem:[%s5 + $0x78] sm:$0xff] %v861
  %926 = vst [vmem:[%s5 + $0x80] sm:$0xff] %v862
  %927 = vst [vmem:[%s5 + $0x88] sm:$0xff] %v863
  %928 = vst [vmem:[%s5 + $0x90] sm:$0xff] %v864
  %929 = vst [vmem:[%s5 + $0x98] sm:$0xff] %v865
  %930 = vst [vmem:[%s5 + $0xa0] sm:$0xff] %v866
  %931 = vst [vmem:[%s5 + $0xa8] sm:$0xff] %v867
  %932 = vst [vmem:[%s5 + $0xb0] sm:$0xff] %v868
  %933 = vst [vmem:[%s5 + $0xb8] sm:$0xff] %v869
  %934 = vst [vmem:[%s5 + $0xc0] sm:$0xff] %v870
  %935 = vst [vmem:[%s5 + $0xc8] sm:$0xff] %v871
  %936 = vst [vmem:[%s5 + $0xd0] sm:$0xff] %v872
  %937 = vst [vmem:[%s5 + $0xd8] sm:$0xff] %v873
  %938 = vst [vmem:[%s5 + $0xe0] sm:$0xff] %v874
  %939 = vst [vmem:[%s5 + $0xe8] sm:$0xff] %v875
  %940 = vst [vmem:[%s5 + $0xf0] sm:$0xff] %v876
  %941 = vst [vmem:[%s5 + $0xf8] sm:$0xff] %v877
  %942 = vst [vmem:[%s5 + $0x100] sm:$0xff] %v878
  %943 = vst [vmem:[%s5 + $0x108] sm:$0xff] %v879
  %944 = vst [vmem:[%s5 + $0x110] sm:$0xff] %v880
  %945 = vst [vmem:[%s5 + $0x118] sm:$0xff] %v881
  %946 = vst [vmem:[%s5 + $0x120] sm:$0xff] %v882
  %947 = vst [vmem:[%s5 + $0x128] sm:$0xff] %v883
  %948 = vst [vmem:[%s5 + $0x130] sm:$0xff] %v884
  %949 = vst [vmem:[%s5 + $0x138] sm:$0xff] %v885
  %950 = vst [vmem:[%s5 + $0x140] sm:$0xff] %v886
  %951 = vst [vmem:[%s5 + $0x148] sm:$0xff] %v887
  %952 = vst [vmem:[%s5 + $0x150] sm:$0xff] %v888
  %953 = vst [vmem:[%s5 + $0x158] sm:$0xff] %v889
  %954 = vst [vmem:[%s5 + $0x160] sm:$0xff] %v890
  %955 = vst [vmem:[%s5 + $0x168] sm:$0xff] %v891
  %956 = vst [vmem:[%s5 + $0x170] sm:$0xff] %v892
  %957 = vst [vmem:[%s5 + $0x178] sm:$0xff] %v893
  %958 = vst [vmem:[%s5 + $0x180] sm:$0xff] %v894
  %959 = vst [vmem:[%s5 + $0x188] sm:$0xff] %v895
  %960 = vst [vmem:[%s5 + $0x190] sm:$0xff] %v896
  %961 = vst [vmem:[%s5 + $0x198] sm:$0xff] %v897
  %962 = vst [vmem:[%s5 + $0x1a0] sm:$0xff] %v898
  %963 = vst [vmem:[%s5 + $0x1a8] sm:$0xff] %v899
  %964 = vst [vmem:[%s5 + $0x1b0] sm:$0xff] %v900
  %965 = vst [vmem:[%s5 + $0x1b8] sm:$0xff] %v901
  %966 = vst [vmem:[%s5 + $0x1c0] sm:$0xff] %v902
  %967 = vst [vmem:[%s5 + $0x1c8] sm:$0xff] %v903
  %968 = vst [vmem:[%s5 + $0x1d0] sm:$0xff] %v904
  %969 = vst [vmem:[%s5 + $0x1d8] sm:$0xff] %v905
  %970 = vst [vmem:[%s5 + $0x1e0] sm:$0xff] %v906
  %971 = vst [vmem:[%s5 + $0x1e8] sm:$0xff] %v907
  %972 = vst [vmem:[%s5 + $0x1f0] sm:$0xff] %v908
  %973 = vst [vmem:[%s5 + $0x1f8] sm:$0xff] %v909
  // Predicated region
  $region22: #{bilstm_forward.11} parent=0 // pred_check
    _
  $region23: #{bilstm_forward.11} parent=0 // pred_check_branch
    %975 = sbr.rel (0) target = $region25
  $region24: #{bilstm_forward.11} parent=0 // pred_region
    _
  $region25: #{bilstm_forward.11} parent=0 // pred_fallthru
    _
  // Predicated region
  $region26: #{bilstm_forward.11} parent=0 // pred_check
    _
  $region27: #{bilstm_forward.11} parent=0 // pred_check_branch
    %977 = sbr.rel (0) target = $region29
  $region28: #{bilstm_forward.11} parent=0 // pred_region
    _
  $region29: #{bilstm_forward.11} parent=0 // pred_fallthru
    _

// kernel: bilstm_forward.9
$region0: #{bilstm_forward.9}
  #allocation0 [shape = 'u32[]', space=smem, size = 0x4, offset = 0x4, fixed_abs, tag = 'smem constant byte address 0x4 - core index']
  #allocation1 [shape = 'u32[144,128]{1,0:T(1,128)}', space=vmem, size = 0x12000, scoped, tag = 'internal scratch']
  #allocation2 [shape = 'f32[8,128]{1,0:T(8,128)}', space=vmem, size = 0x1000, scoped, tag = 'scratch operand']
  #allocation3 [shape = 'f32[8,128]{1,0:T(8,128)}', space=vmem, size = 0x1000, scoped, tag = 'scratch operand']
  #allocation4 [shape = 'f32[8,128]{1,0:T(8,128)}', space=vmem, size = 0x1000, scoped, tag = 'scratch operand']
  #allocation5 [shape = 'f32[8,128]{1,0:T(8,128)}', space=vmem, size = 0x1000, scoped, tag = 'scratch operand']
  %s0 = inlined_call_operand.vmem [shape: f32[16,8,512], index: 0, kind: input, shape index: {}]
  %s1 = inlined_call_operand.vmem [shape: f32[16,8,512], index: 1, kind: input, shape index: {}]
  %s2 = inlined_call_operand.vmem [shape: f32[16,8,1], index: 2, kind: input, shape index: {}, may-alias: {2,3}]
  %s3 = inlined_call_operand.vmem [shape: f32[16,8,1], index: 3, kind: input, shape index: {}, may-alias: {2,3}]
  %s4 = inlined_call_operand.vmem [shape: f32[128,512], index: 4, kind: input, shape index: {}]
  %s5 = inlined_call_operand.vmem [shape: f32[128,512], index: 5, kind: input, shape index: {}]
  %s6 = inlined_call_operand.vmem [shape: f32[16,8,128], index: 6, kind: output, shape index: {0}]
  %s7 = inlined_call_operand.vmem [shape: f32[16,8,128], index: 7, kind: output, shape index: {1}]
  %8 = xla_tuple %s6, %s7
  %s9 = sld [smem:[#allocation0]]
  $region69: #{bilstm_forward.9} parent=0
    _
  %s11 = ssub.s32 1, %s9
  %s12 = scalar_select 0, %s11, %s9
  loop: start=0, step=1, limit=4
  $region2: #{bilstm_forward.9} parent=0 // loop_pre_header
    _
  $region3: #{bilstm_forward.9} parent=0 // loop_header
    %s14 = sphi 0, %s18
    %p15 = scmp.ge.s32.totalorder %s14, 4
    %s24 = sphi 0, %s26
    %s27 = sphi 0, %s24
    %s28 = sphi 0, %s27
    %s44 = sphi 0, %s28
    %s52 = sphi 0, %s54
    %s55 = sphi 0, %s52
    %s56 = sphi 0, %s55
    %s72 = sphi 0, %s56
    %s78 = sphi 0, %s80
    %s81 = sphi 0, %s78
    %s82 = sphi 0, %s81
    %s98 = sphi 0, %s82
    %s106 = sphi 0, %s108
    %s109 = sphi 0, %s106
    %s110 = sphi 0, %s109
    %s126 = sphi 0, %s110
    %s130 = sphi 0, %s130
    %s132 = sphi 0, %s130
    %s133 = sphi 0, %s132
    %s147 = sphi 0, %s133
    %s151 = sphi 0, %s151
    %s153 = sphi 0, %s151
    %s154 = sphi 0, %s153
    %s168 = sphi 0, %s154
    %s174 = sphi 0, %s176
    %s177 = sphi 0, %s174
    %s178 = sphi 0, %s177
    %s194 = sphi 0, %s178
    %s202 = sphi 0, %s204
    %s205 = sphi 0, %s202
    %s206 = sphi 0, %s205
    %s222 = sphi 0, %s206
  $region4: #{bilstm_forward.9} parent=0 // loop_header_branch
    %17 = sbr.rel (%p15) target = $region8
  $region5: #{bilstm_forward.9} parent=0 // loop_body
    %s19 = ssub.s32 %s14, 1
    %s20 = ssub.s32 %s14, 2
    %s21 = sadd.s32 %s14, 1
    %s22 = ssub.s32 %s14, %s21
    %p23 = scmp.eq.s32.totalorder %s22, 0
    %s25 = sadd.s32 %s24, 1
    %s26 = scalar_select %p23, %s24, %s25
    %p29 = pneg %p23
    %p30 = scmp.eq.s32.totalorder %s14, 1
    %p31 = por %p29, %p30
    %p32 = scmp.ne.s32.totalorder %s24, %s27
    %p33 = scmp.eq.s32.totalorder %s14, 0
    %p34 = por %p32, %p33
    %p35 = scmp.ne.s32.totalorder %s24, %s27
    %p36 = scmp.eq.s32.totalorder %s19, 1
    %p37 = por %p35, %p36
    %p38 = scmp.ne.s32.totalorder %s27, %s28
    %p39 = scmp.eq.s32.totalorder %s19, 0
    %p40 = por %p38, %p39
    %p41 = scmp.ne.s32.totalorder %s27, %s28
    %p42 = scmp.eq.s32.totalorder %s20, 1
    %p43 = por %p41, %p42
    %p45 = scmp.ne.s32.totalorder %s28, %s44
    %p46 = scmp.eq.s32.totalorder %s20, 0
    %p47 = por %p45, %p46
    %s48 = ssub.s32 1, %s14
    %s49 = ssub.s32 1, %s21
    %s50 = ssub.s32 %s48, %s49
    %p51 = scmp.eq.s32.totalorder %s50, 0
    %s53 = sadd.s32 %s52, 1
    %s54 = scalar_select %p51, %s52, %s53
    %p57 = pneg %p51
    %p58 = scmp.eq.s32.totalorder %s14, 1
    %p59 = por %p57, %p58
    %p60 = scmp.ne.s32.totalorder %s52, %s55
    %p61 = scmp.eq.s32.totalorder %s14, 0
    %p62 = por %p60, %p61
    %p63 = scmp.ne.s32.totalorder %s52, %s55
    %p64 = scmp.eq.s32.totalorder %s19, 1
    %p65 = por %p63, %p64
    %p66 = scmp.ne.s32.totalorder %s55, %s56
    %p67 = scmp.eq.s32.totalorder %s19, 0
    %p68 = por %p66, %p67
    %p69 = scmp.ne.s32.totalorder %s55, %s56
    %p70 = scmp.eq.s32.totalorder %s20, 1
    %p71 = por %p69, %p70
    %p73 = scmp.ne.s32.totalorder %s56, %s72
    %p74 = scmp.eq.s32.totalorder %s20, 0
    %p75 = por %p73, %p74
    %s76 = ssub.s32 %s14, %s21
    %p77 = scmp.eq.s32.totalorder %s76, 0
    %s79 = sadd.s32 %s78, 1
    %s80 = scalar_select %p77, %s78, %s79
    %p83 = pneg %p77
    %p84 = scmp.eq.s32.totalorder %s14, 1
    %p85 = por %p83, %p84
    %p86 = scmp.ne.s32.totalorder %s78, %s81
    %p87 = scmp.eq.s32.totalorder %s14, 0
    %p88 = por %p86, %p87
    %p89 = scmp.ne.s32.totalorder %s78, %s81
    %p90 = scmp.eq.s32.totalorder %s19, 1
    %p91 = por %p89, %p90
    %p92 = scmp.ne.s32.totalorder %s81, %s82
    %p93 = scmp.eq.s32.totalorder %s19, 0
    %p94 = por %p92, %p93
    %p95 = scmp.ne.s32.totalorder %s81, %s82
    %p96 = scmp.eq.s32.totalorder %s20, 1
    %p97 = por %p95, %p96
    %p99 = scmp.ne.s32.totalorder %s82, %s98
    %p100 = scmp.eq.s32.totalorder %s20, 0
    %p101 = por %p99, %p100
    %s102 = ssub.s32 1, %s14
    %s103 = ssub.s32 1, %s21
    %s104 = ssub.s32 %s102, %s103
    %p105 = scmp.eq.s32.totalorder %s104, 0
    %s107 = sadd.s32 %s106, 1
    %s108 = scalar_select %p105, %s106, %s107
    %p111 = pneg %p105
    %p112 = scmp.eq.s32.totalorder %s14, 1
    %p113 = por %p111, %p112
    %p114 = scmp.ne.s32.totalorder %s106, %s109
    %p115 = scmp.eq.s32.totalorder %s14, 0
    %p116 = por %p114, %p115
    %p117 = scmp.ne.s32.totalorder %s106, %s109
    %p118 = scmp.eq.s32.totalorder %s19, 1
    %p119 = por %p117, %p118
    %p120 = scmp.ne.s32.totalorder %s109, %s110
    %p121 = scmp.eq.s32.totalorder %s19, 0
    %p122 = por %p120, %p121
    %p123 = scmp.ne.s32.totalorder %s109, %s110
    %p124 = scmp.eq.s32.totalorder %s20, 1
    %p125 = por %p123, %p124
    %p127 = scmp.ne.s32.totalorder %s110, %s126
    %p128 = scmp.eq.s32.totalorder %s20, 0
    %p129 = por %p127, %p128
    %s131 = sadd.s32 %s130, 1
    %p134 = scmp.eq.s32.totalorder %s14, 1
    %p135 = scmp.ne.s32.totalorder %s130, %s132
    %p136 = scmp.eq.s32.totalorder %s14, 0
    %p137 = por %p135, %p136
    %p138 = scmp.ne.s32.totalorder %s130, %s132
    %p139 = scmp.eq.s32.totalorder %s19, 1
    %p140 = por %p138, %p139
    %p141 = scmp.ne.s32.totalorder %s132, %s133
    %p142 = scmp.eq.s32.totalorder %s19, 0
    %p143 = por %p141, %p142
    %p144 = scmp.ne.s32.totalorder %s132, %s133
    %p145 = scmp.eq.s32.totalorder %s20, 1
    %p146 = por %p144, %p145
    %p148 = scmp.ne.s32.totalorder %s133, %s147
    %p149 = scmp.eq.s32.totalorder %s20, 0
    %p150 = por %p148, %p149
    %s152 = sadd.s32 %s151, 1
    %p155 = scmp.eq.s32.totalorder %s14, 1
    %p156 = scmp.ne.s32.totalorder %s151, %s153
    %p157 = scmp.eq.s32.totalorder %s14, 0
    %p158 = por %p156, %p157
    %p159 = scmp.ne.s32.totalorder %s151, %s153
    %p160 = scmp.eq.s32.totalorder %s19, 1
    %p161 = por %p159, %p160
    %p162 = scmp.ne.s32.totalorder %s153, %s154
    %p163 = scmp.eq.s32.totalorder %s19, 0
    %p164 = por %p162, %p163
    %p165 = scmp.ne.s32.totalorder %s153, %s154
    %p166 = scmp.eq.s32.totalorder %s20, 1
    %p167 = por %p165, %p166
    %p169 = scmp.ne.s32.totalorder %s154, %s168
    %p170 = scmp.eq.s32.totalorder %s20, 0
    %p171 = por %p169, %p170
    %s172 = ssub.s32 %s14, %s21
    %p173 = scmp.eq.s32.totalorder %s172, 0
    %s175 = sadd.s32 %s174, 1
    %s176 = scalar_select %p173, %s174, %s175
    %p179 = pneg %p173
    %p180 = scmp.eq.s32.totalorder %s14, 1
    %p181 = por %p179, %p180
    %p182 = scmp.ne.s32.totalorder %s174, %s177
    %p183 = scmp.eq.s32.totalorder %s14, 0
    %p184 = por %p182, %p183
    %p185 = scmp.ne.s32.totalorder %s174, %s177
    %p186 = scmp.eq.s32.totalorder %s19, 1
    %p187 = por %p185, %p186
    %p188 = scmp.ne.s32.totalorder %s177, %s178
    %p189 = scmp.eq.s32.totalorder %s19, 0
    %p190 = por %p188, %p189
    %p191 = scmp.ne.s32.totalorder %s177, %s178
    %p192 = scmp.eq.s32.totalorder %s20, 1
    %p193 = por %p191, %p192
    %p195 = scmp.ne.s32.totalorder %s178, %s194
    %p196 = scmp.eq.s32.totalorder %s20, 0
    %p197 = por %p195, %p196
    %s198 = ssub.s32 1, %s14
    %s199 = ssub.s32 1, %s21
    %s200 = ssub.s32 %s198, %s199
    %p201 = scmp.eq.s32.totalorder %s200, 0
    %s203 = sadd.s32 %s202, 1
    %s204 = scalar_select %p201, %s202, %s203
    %p207 = pneg %p201
    %p208 = scmp.eq.s32.totalorder %s14, 1
    %p209 = por %p207, %p208
    %p210 = scmp.ne.s32.totalorder %s202, %s205
    %p211 = scmp.eq.s32.totalorder %s14, 0
    %p212 = por %p210, %p211
    %p213 = scmp.ne.s32.totalorder %s202, %s205
    %p214 = scmp.eq.s32.totalorder %s19, 1
    %p215 = por %p213, %p214
    %p216 = scmp.ne.s32.totalorder %s205, %s206
    %p217 = scmp.eq.s32.totalorder %s19, 0
    %p218 = por %p216, %p217
    %p219 = scmp.ne.s32.totalorder %s205, %s206
    %p220 = scmp.eq.s32.totalorder %s20, 1
    %p221 = por %p219, %p220
    %p223 = scmp.ne.s32.totalorder %s206, %s222
    %p224 = scmp.eq.s32.totalorder %s20, 0
    %p225 = por %p223, %p224
    %p226 = scmp.le.s32.totalorder 1, %s14
    %p227 = scmp.lt.s32.totalorder %s14, 3
    %p228 = pnand %p226, %p227
    %p229 = pneg %p228
    // Predicated region
    $region9: #{bilstm_forward.9} parent=5 // pred_check
      _
    $region10: #{bilstm_forward.9} parent=5 // pred_check_branch
      %231 = sbr.rel (%p228) target = $region12
    $region11: #{bilstm_forward.9} parent=5 // pred_region
      %s232 = ssub.s32 %s14, 1
      // Predicated region
      $region13: #{bilstm_forward.9} parent=11 // pred_check
        %p233 = pneg %p143
      $region14: #{bilstm_forward.9} parent=11 // pred_check_branch
        %235 = sbr.rel (%p233) target = $region16
      $region15: #{bilstm_forward.9} parent=11 // pred_region
        _
      $region16: #{bilstm_forward.9} parent=11 // pred_fallthru
        _
      // Predicated region
      $region17: #{bilstm_forward.9} parent=11 // pred_check
        %p236 = pneg %p164
      $region18: #{bilstm_forward.9} parent=11 // pred_check_branch
        %238 = sbr.rel (%p236) target = $region20
      $region19: #{bilstm_forward.9} parent=11 // pred_region
        _
      $region20: #{bilstm_forward.9} parent=11 // pred_fallthru
        _
    $region12: #{bilstm_forward.9} parent=5 // pred_fallthru
      _
    %p239 = scmp.lt.s32.totalorder %s14, 2
    // Predicated region
    $region21: #{bilstm_forward.9} parent=5 // pred_check
      %p240 = pneg %p239
    $region22: #{bilstm_forward.9} parent=5 // pred_check_branch
      %242 = sbr.rel (%p240) target = $region24
    $region23: #{bilstm_forward.9} parent=5 // pred_region
      // Predicated region
      $region25: #{bilstm_forward.9} parent=23 // pred_check
        %p243 = pneg %p34
      $region26: #{bilstm_forward.9} parent=23 // pred_check_branch
        %245 = sbr.rel (%p243) target = $region28
      $region27: #{bilstm_forward.9} parent=23 // pred_region
        %s246 = smul.u32 8, %s14
        %p247 = scmp.lt.s32.totalorder %s246, 15
        %s248 = scalar_select %p247, %s246, 15
        %s249 = smul.addr %s248, 4
        %s250 = smul.addr %s249, 8
        %s251 = scalar_lea.vmem %s0, %s250
        %s252 = smul.u32 8, %s14
      $region28: #{bilstm_forward.9} parent=23 // pred_fallthru
        _
      // Predicated region
      $region29: #{bilstm_forward.9} parent=23 // pred_check
        %p253 = pneg %p62
      $region30: #{bilstm_forward.9} parent=23 // pred_check_branch
        %255 = sbr.rel (%p253) target = $region32
      $region31: #{bilstm_forward.9} parent=23 // pred_region
        %s256 = ssub.s32 1, %s14
        %s257 = smul.u32 8, %s256
        %p258 = scmp.lt.s32.totalorder %s257, 15
        %s259 = scalar_select %p258, %s257, 15
        %s260 = smul.addr %s259, 4
        %s261 = smul.addr %s260, 8
        %s262 = scalar_lea.vmem %s1, %s261
        %s263 = ssub.s32 1, %s14
        %s264 = smul.u32 8, %s263
      $region32: #{bilstm_forward.9} parent=23 // pred_fallthru
        _
      // Predicated region
      $region33: #{bilstm_forward.9} parent=23 // pred_check
        %p265 = pneg %p88
      $region34: #{bilstm_forward.9} parent=23 // pred_check_branch
        %267 = sbr.rel (%p265) target = $region36
      $region35: #{bilstm_forward.9} parent=23 // pred_region
        %s268 = smul.u32 8, %s14
        %p269 = scmp.lt.s32.totalorder %s268, 15
        %s270 = scalar_select %p269, %s268, 15
        %s271 = smul.addr %s270, 8
        %s272 = scalar_lea.vmem %s2, %s271
        %s273 = smul.u32 8, %s14
      $region36: #{bilstm_forward.9} parent=23 // pred_fallthru
        _
      // Predicated region
      $region37: #{bilstm_forward.9} parent=23 // pred_check
        %p274 = pneg %p116
      $region38: #{bilstm_forward.9} parent=23 // pred_check_branch
        %276 = sbr.rel (%p274) target = $region40
      $region39: #{bilstm_forward.9} parent=23 // pred_region
        %s277 = ssub.s32 1, %s14
        %s278 = smul.u32 8, %s277
        %p279 = scmp.lt.s32.totalorder %s278, 15
        %s280 = scalar_select %p279, %s278, 15
        %s281 = smul.addr %s280, 8
        %s282 = scalar_lea.vmem %s3, %s281
        %s283 = ssub.s32 1, %s14
        %s284 = smul.u32 8, %s283
      $region40: #{bilstm_forward.9} parent=23 // pred_fallthru
        _
    $region24: #{bilstm_forward.9} parent=5 // pred_fallthru
      _
    %p285 = scmp.le.s32.totalorder 1, %s14
    %p286 = scmp.lt.s32.totalorder %s14, 3
    %p287 = pnand %p285, %p286
    %p288 = pneg %p287
    // Predicated region
    $region41: #{bilstm_forward.9} parent=5 // pred_check
      _
    $region42: #{bilstm_forward.9} parent=5 // pred_check_branch
      %290 = sbr.rel (%p287) target = $region44
    $region43: #{bilstm_forward.9} parent=5 // pred_region
      %s291 = ssub.s32 %s14, 1
      %s292 = smul.u32 8, %s19
      %p293 = scmp.lt.s32.totalorder %s292, 15
      %s294 = scalar_select %p293, %s292, 15
      %s295 = smul.addr %s294, 4
      %s296 = smul.addr %s295, 8
      %s297 = scalar_lea.vmem %s0, %s296
      %p298 = pneg %p40
      %p299 = pneg %p37
      %s300 = ssub.s32 1, %s19
      %s301 = smul.u32 8, %s300
      %p302 = scmp.lt.s32.totalorder %s301, 15
      %s303 = scalar_select %p302, %s301, 15
      %s304 = smul.addr %s303, 4
      %s305 = smul.addr %s304, 8
      %s306 = scalar_lea.vmem %s1, %s305
      %p307 = pneg %p68
      %p308 = pneg %p65
      %s309 = smul.u32 8, %s19
      %p310 = scmp.lt.s32.totalorder %s309, 15
      %s311 = scalar_select %p310, %s309, 15
      %s312 = smul.addr %s311, 8
      %s313 = scalar_lea.vmem %s2, %s312
      %p314 = pneg %p94
      %p315 = pneg %p91
      %s316 = ssub.s32 1, %s19
      %s317 = smul.u32 8, %s316
      %p318 = scmp.lt.s32.totalorder %s317, 15
      %s319 = scalar_select %p318, %s317, 15
      %s320 = smul.addr %s319, 8
      %s321 = scalar_lea.vmem %s3, %s320
      %p322 = pneg %p122
      %p323 = pneg %p119
      %p324 = pneg %p143
      %p325 = pneg %p140
      %p326 = pneg %p164
      %p327 = pneg %p161
      %p328 = pneg %p190
      %p329 = pneg %p187
      %s330 = smul.u32 8, %s19
      %p331 = scmp.lt.s32.totalorder %s330, 15
      %s332 = scalar_select %p331, %s330, 15
      %s333 = smul.addr %s332, 8
      %s334 = scalar_lea.vmem %s6, %s333
      %p335 = pneg %p218
      %p336 = pneg %p215
      %s337 = ssub.s32 1, %s19
      %s338 = smul.u32 8, %s337
      %p339 = scmp.lt.s32.totalorder %s338, 15
      %s340 = scalar_select %p339, %s338, 15
      %s341 = smul.addr %s340, 8
      %s342 = scalar_lea.vmem %s7, %s341
      %s343 = smul.u32 8, %s19
      %p344 = scmp.lt.s32.totalorder %s343, 15
      %s345 = scalar_select %p344, %s343, 15
      %s346 = smul.addr %s345, 4
      %s347 = smul.addr %s346, 8
      %s348 = scalar_lea.vmem %s0, %s347
      %s349 = smul.u32 8, %s19
      %s350 = ssub.s32 1, %s19
      %s351 = smul.u32 8, %s350
      %p352 = scmp.lt.s32.totalorder %s351, 15
      %s353 = scalar_select %p352, %s351, 15
      %s354 = smul.addr %s353, 4
      %s355 = smul.addr %s354, 8
      %s356 = scalar_lea.vmem %s1, %s355
      %s357 = ssub.s32 1, %s19
      %s358 = smul.u32 8, %s357
      %s359 = smul.u32 8, %s19
      %p360 = scmp.lt.s32.totalorder %s359, 15
      %s361 = scalar_select %p360, %s359, 15
      %s362 = smul.addr %s361, 8
      %s363 = scalar_lea.vmem %s2, %s362
      %s364 = smul.u32 8, %s19
      %s365 = ssub.s32 1, %s19
      %s366 = smul.u32 8, %s365
      %p367 = scmp.lt.s32.totalorder %s366, 15
      %s368 = scalar_select %p367, %s366, 15
      %s369 = smul.addr %s368, 8
      %s370 = scalar_lea.vmem %s3, %s369
      %s371 = ssub.s32 1, %s19
      %s372 = smul.u32 8, %s371
      %s373 = smul.u32 8, %s19
      %p374 = scmp.lt.s32.totalorder %s373, 15
      %s375 = scalar_select %p374, %s373, 15
      %s376 = smul.addr %s375, 8
      %s377 = scalar_lea.vmem %s6, %s376
      %s378 = smul.u32 8, %s19
      %s379 = ssub.s32 1, %s19
      %s380 = smul.u32 8, %s379
      %p381 = scmp.lt.s32.totalorder %s380, 15
      %s382 = scalar_select %p381, %s380, 15
      %s383 = smul.addr %s382, 8
      %s384 = scalar_lea.vmem %s7, %s383
      %s385 = ssub.s32 1, %s19
      %s386 = smul.u32 8, %s385
      %p387 = scmp.eq.s32.totalorder %s19, 0
      // Predicated region
      $region45: #{bilstm_forward.9} parent=43 // pred_check
        %p388 = pneg %p387
      $region46: #{bilstm_forward.9} parent=43 // pred_check_branch
        %390 = sbr.rel (%p388) target = $region48
      $region47: #{bilstm_forward.9} parent=43 // pred_region
        %391 = vst [vmem:[#allocation2] sm:$0xff] 0.0
        %392 = vst [vmem:[#allocation3] sm:$0xff] 0.0
        %393 = vst [vmem:[#allocation4] sm:$0xff] 0.0
        %394 = vst [vmem:[#allocation5] sm:$0xff] 0.0
      $region48: #{bilstm_forward.9} parent=43 // pred_fallthru
        _
      %v395 = vld [vmem:[%s348] sm:$0xff]
      %v396 = vld [vmem:[%s348 + $0x8] sm:$0xff]
      %v397 = vld [vmem:[%s348 + $0x10] sm:$0xff]
      %v398 = vld [vmem:[%s348 + $0x18] sm:$0xff]
      %v399 = vld [vmem:[#allocation2] sm:$0xff]
      %v400 = vld [vmem:[#allocation3] sm:$0xff]
      %v401 = vld [vmem:[%s4] sm:$0xff]
      %v402 = vld [vmem:[%s4 + $0x8] sm:$0xff]
      %v403 = vld [vmem:[%s4 + $0x10] sm:$0xff]
      %v404 = vld [vmem:[%s4 + $0x18] sm:$0xff]
      %v405 = vld [vmem:[%s4 + $0x20] sm:$0xff]
      %v406 = vld [vmem:[%s4 + $0x28] sm:$0xff]
      %v407 = vld [vmem:[%s4 + $0x30] sm:$0xff]
      %v408 = vld [vmem:[%s4 + $0x38] sm:$0xff]
      %v409 = vld [vmem:[%s4 + $0x40] sm:$0xff]
      %v410 = vld [vmem:[%s4 + $0x48] sm:$0xff]
      %v411 = vld [vmem:[%s4 + $0x50] sm:$0xff]
      %v412 = vld [vmem:[%s4 + $0x58] sm:$0xff]
      %v413 = vld [vmem:[%s4 + $0x60] sm:$0xff]
      %v414 = vld [vmem:[%s4 + $0x68] sm:$0xff]
      %v415 = vld [vmem:[%s4 + $0x70] sm:$0xff]
      %v416 = vld [vmem:[%s4 + $0x78] sm:$0xff]
      %v417 = vld [vmem:[%s4 + $0x80] sm:$0xff]
      %v418 = vld [vmem:[%s4 + $0x88] sm:$0xff]
      %v419 = vld [vmem:[%s4 + $0x90] sm:$0xff]
      %v420 = vld [vmem:[%s4 + $0x98] sm:$0xff]
      %v421 = vld [vmem:[%s4 + $0xa0] sm:$0xff]
      %v422 = vld [vmem:[%s4 + $0xa8] sm:$0xff]
      %v423 = vld [vmem:[%s4 + $0xb0] sm:$0xff]
      %v424 = vld [vmem:[%s4 + $0xb8] sm:$0xff]
      %v425 = vld [vmem:[%s4 + $0xc0] sm:$0xff]
      %v426 = vld [vmem:[%s4 + $0xc8] sm:$0xff]
      %v427 = vld [vmem:[%s4 + $0xd0] sm:$0xff]
      %v428 = vld [vmem:[%s4 + $0xd8] sm:$0xff]
      %v429 = vld [vmem:[%s4 + $0xe0] sm:$0xff]
      %v430 = vld [vmem:[%s4 + $0xe8] sm:$0xff]
      %v431 = vld [vmem:[%s4 + $0xf0] sm:$0xff]
      %v432 = vld [vmem:[%s4 + $0xf8] sm:$0xff]
      %v433 = vld [vmem:[%s4 + $0x100] sm:$0xff]
      %v434 = vld [vmem:[%s4 + $0x108] sm:$0xff]
      %v435 = vld [vmem:[%s4 + $0x110] sm:$0xff]
      %v436 = vld [vmem:[%s4 + $0x118] sm:$0xff]
      %v437 = vld [vmem:[%s4 + $0x120] sm:$0xff]
      %v438 = vld [vmem:[%s4 + $0x128] sm:$0xff]
      %v439 = vld [vmem:[%s4 + $0x130] sm:$0xff]
      %v440 = vld [vmem:[%s4 + $0x138] sm:$0xff]
      %v441 = vld [vmem:[%s4 + $0x140] sm:$0xff]
      %v442 = vld [vmem:[%s4 + $0x148] sm:$0xff]
      %v443 = vld [vmem:[%s4 + $0x150] sm:$0xff]
      %v444 = vld [vmem:[%s4 + $0x158] sm:$0xff]
      %v445 = vld [vmem:[%s4 + $0x160] sm:$0xff]
      %v446 = vld [vmem:[%s4 + $0x168] sm:$0xff]
      %v447 = vld [vmem:[%s4 + $0x170] sm:$0xff]
      %v448 = vld [vmem:[%s4 + $0x178] sm:$0xff]
      %v449 = vld [vmem:[%s4 + $0x180] sm:$0xff]
      %v450 = vld [vmem:[%s4 + $0x188] sm:$0xff]
      %v451 = vld [vmem:[%s4 + $0x190] sm:$0xff]
      %v452 = vld [vmem:[%s4 + $0x198] sm:$0xff]
      %v453 = vld [vmem:[%s4 + $0x1a0] sm:$0xff]
      %v454 = vld [vmem:[%s4 + $0x1a8] sm:$0xff]
      %v455 = vld [vmem:[%s4 + $0x1b0] sm:$0xff]
      %v456 = vld [vmem:[%s4 + $0x1b8] sm:$0xff]
      %v457 = vld [vmem:[%s4 + $0x1c0] sm:$0xff]
      %v458 = vld [vmem:[%s4 + $0x1c8] sm:$0xff]
      %v459 = vld [vmem:[%s4 + $0x1d0] sm:$0xff]
      %v460 = vld [vmem:[%s4 + $0x1d8] sm:$0xff]
      %v461 = vld [vmem:[%s4 + $0x1e0] sm:$0xff]
      %v462 = vld [vmem:[%s4 + $0x1e8] sm:$0xff]
      %v463 = vld [vmem:[%s4 + $0x1f0] sm:$0xff]
      %v464 = vld [vmem:[%s4 + $0x1f8] sm:$0xff]
      %465 = vmatprep.subr.mxu0 %v402
      %466 = vmatpush1.msra.mxu0 %v401
      %467 = vmatprep.subr.mxu0 %v406
      %468 = vmatpush1.msra.mxu0 %v405
      %469 = vmatprep.subr.mxu0 %v410
      %470 = vmatpush1.msra.mxu0 %v409
      %471 = vmatprep.subr.mxu0 %v414
      %472 = vmatpush1.msra.mxu0 %v413
      %473 = vmatprep.subr.mxu0 %v418
      %474 = vmatpush1.msra.mxu0 %v417
      %475 = vmatprep.subr.mxu0 %v422
      %476 = vmatpush1.msra.mxu0 %v421
      %477 = vmatprep.subr.mxu0 %v426
      %478 = vmatpush1.msra.mxu0 %v425
      %479 = vmatprep.subr.mxu0 %v430
      %480 = vmatpush1.msra.mxu0 %v429
      %481 = vmatprep.subr.mxu0 %v434
      %482 = vmatpush1.msra.mxu0 %v433
      %483 = vmatprep.subr.mxu0 %v438
      %484 = vmatpush1.msra.mxu0 %v437
      %485 = vmatprep.subr.mxu0 %v442
      %486 = vmatpush1.msra.mxu0 %v441
      %487 = vmatprep.subr.mxu0 %v446
      %488 = vmatpush1.msra.mxu0 %v445
      %489 = vmatprep.subr.mxu0 %v450
      %490 = vmatpush1.msra.mxu0 %v449
      %491 = vmatprep.subr.mxu0 %v454
      %492 = vmatpush1.msra.mxu0 %v453
      %493 = vmatprep.subr.mxu0 %v458
      %494 = vmatpush1.msra.mxu0 %v457
      %495 = vmatprep.subr.mxu0 %v462
      %496 = vmatpush1.msra.mxu0 %v461
      %497 = vmatprep.subr.mxu0 0.0
      %498 = vmatpush1.msra.mxu0 0.0
      %499 = vmatprep.subr.mxu0 0.0
      %500 = vmatpush1.msra.mxu0 0.0
      %501 = vmatprep.subr.mxu0 0.0
      %502 = vmatpush1.msra.mxu0 0.0
      %503 = vmatprep.subr.mxu0 0.0
      %504 = vmatpush1.msra.mxu0 0.0
      %505 = vmatprep.subr.mxu0 0.0
      %506 = vmatpush1.msra.mxu0 0.0
      %507 = vmatprep.subr.mxu0 0.0
      %508 = vmatpush1.msra.mxu0 0.0
      %509 = vmatprep.subr.mxu0 0.0
      %510 = vmatpush1.msra.mxu0 0.0
      %511 = vmatprep.subr.mxu0 0.0
      %512 = vmatpush1.msra.mxu0 0.0
      %513 = vmatprep.subr.mxu0 0.0
      %514 = vmatpush1.msra.mxu0 0.0
      %515 = vmatprep.subr.mxu0 0.0
      %516 = vmatpush1.msra.mxu0 0.0
      %517 = vmatprep.subr.mxu0 0.0
      %518 = vmatpush1.msra.mxu0 0.0
      %519 = vmatprep.subr.mxu0 0.0
      %520 = vmatpush1.msra.mxu0 0.0
      %521 = vmatprep.subr.mxu0 0.0
      %522 = vmatpush1.msra.mxu0 0.0
      %523 = vmatprep.subr.mxu0 0.0
      %524 = vmatpush1.msra.mxu0 0.0
      %525 = vmatprep.subr.mxu0 0.0
      %526 = vmatpush1.msra.mxu0 0.0
      %527 = vmatprep.subr.mxu0 0.0
      %528 = vmatpush1.msra.mxu0 0.0
      %529 = vmatprep.mubr.f32.mxu0 0.0
      %530 = vmatmul.mubr.f32.gmra.mrb[0].mxu0 %v399
      %v531 = vpop.f32.mrb[0].mxu0
      %v532 = vadd.f32 0.0, %v531
      %v533 = vpop.f32.mrb[0].mxu0
      %v534 = vadd.f32 0.0, %v533
      %535 = vdwg.mxu0
      %536 = vmatprep.subr.mxu0 %v404
      %537 = vmatpush1.msra.mxu0 %v403
      %538 = vmatprep.subr.mxu0 %v408
      %539 = vmatpush1.msra.mxu0 %v407
      %540 = vmatprep.subr.mxu0 %v412
      %541 = vmatpush1.msra.mxu0 %v411
      %542 = vmatprep.subr.mxu0 %v416
      %543 = vmatpush1.msra.mxu0 %v415
      %544 = vmatprep.subr.mxu0 %v420
      %545 = vmatpush1.msra.mxu0 %v419
      %546 = vmatprep.subr.mxu0 %v424
      %547 = vmatpush1.msra.mxu0 %v423
      %548 = vmatprep.subr.mxu0 %v428
      %549 = vmatpush1.msra.mxu0 %v427
      %550 = vmatprep.subr.mxu0 %v432
      %551 = vmatpush1.msra.mxu0 %v431
      %552 = vmatprep.subr.mxu0 %v436
      %553 = vmatpush1.msra.mxu0 %v435
      %554 = vmatprep.subr.mxu0 %v440
      %555 = vmatpush1.msra.mxu0 %v439
      %556 = vmatprep.subr.mxu0 %v444
      %557 = vmatpush1.msra.mxu0 %v443
      %558 = vmatprep.subr.mxu0 %v448
      %559 = vmatpush1.msra.mxu0 %v447
      %560 = vmatprep.subr.mxu0 %v452
      %561 = vmatpush1.msra.mxu0 %v451
      %562 = vmatprep.subr.mxu0 %v456
      %563 = vmatpush1.msra.mxu0 %v455
      %564 = vmatprep.subr.mxu0 %v460
      %565 = vmatpush1.msra.mxu0 %v459
      %566 = vmatprep.subr.mxu0 %v464
      %567 = vmatpush1.msra.mxu0 %v463
      %568 = vmatprep.subr.mxu0 0.0
      %569 = vmatpush1.msra.mxu0 0.0
      %570 = vmatprep.subr.mxu0 0.0
      %571 = vmatpush1.msra.mxu0 0.0
      %572 = vmatprep.subr.mxu0 0.0
      %573 = vmatpush1.msra.mxu0 0.0
      %574 = vmatprep.subr.mxu0 0.0
      %575 = vmatpush1.msra.mxu0 0.0
      %576 = vmatprep.subr.mxu0 0.0
      %577 = vmatpush1.msra.mxu0 0.0
      %578 = vmatprep.subr.mxu0 0.0
      %579 = vmatpush1.msra.mxu0 0.0
      %580 = vmatprep.subr.mxu0 0.0
      %581 = vmatpush1.msra.mxu0 0.0
      %582 = vmatprep.subr.mxu0 0.0
      %583 = vmatpush1.msra.mxu0 0.0
      %584 = vmatprep.subr.mxu0 0.0
      %585 = vmatpush1.msra.mxu0 0.0
      %586 = vmatprep.subr.mxu0 0.0
      %587 = vmatpush1.msra.mxu0 0.0
      %588 = vmatprep.subr.mxu0 0.0
      %589 = vmatpush1.msra.mxu0 0.0
      %590 = vmatprep.subr.mxu0 0.0
      %591 = vmatpush1.msra.mxu0 0.0
      %592 = vmatprep.subr.mxu0 0.0
      %593 = vmatpush1.msra.mxu0 0.0
      %594 = vmatprep.subr.mxu0 0.0
      %595 = vmatpush1.msra.mxu0 0.0
      %596 = vmatprep.subr.mxu0 0.0
      %597 = vmatpush1.msra.mxu0 0.0
      %598 = vmatprep.subr.mxu0 0.0
      %599 = vmatpush1.msra.mxu0 0.0
      %600 = vmatprep.mubr.f32.mxu0 0.0
      %601 = vmatmul.mubr.f32.gmra.mrb[0].mxu0 %v399
      %v602 = vpop.f32.mrb[0].mxu0
      %v603 = vadd.f32 0.0, %v602
      %v604 = vpop.f32.mrb[0].mxu0
      %v605 = vadd.f32 0.0, %v604
      %606 = vdwg.mxu0
      %v607 = vadd.f32 %v395, %v532
      %v608 = vadd.f32 %v396, %v534
      %v609 = vadd.f32 %v397, %v603
      %v610 = vadd.f32 %v398, %v605
      %v611 = vxor.u32 %v607, 2147483648
      %v612 = vmul.f32 %v611, 1.442695
      %v613 = vpow.pop %v612
      %v614 = vadd.f32 %v613, 1.0
      %v615 = vrcp.pop %v614
      %v616 = vmul.f32 1.0, %v615
      %v617 = vxor.u32 %v608, 2147483648
      %v618 = vmul.f32 %v617, 1.442695
      %v619 = vpow.pop %v618
      %v620 = vadd.f32 %v619, 1.0
      %v621 = vrcp.pop %v620
      %v622 = vmul.f32 1.0, %v621
      %v623 = vtanh.pop %v609
      %v624 = vxor.u32 %v610, 2147483648
      %v625 = vmul.f32 %v624, 1.442695
      %v626 = vpow.pop %v625
      %v627 = vadd.f32 %v626, 1.0
      %v628 = vrcp.pop %v627
      %v629 = vmul.f32 1.0, %v628
      %v630 = vmul.f32 %v622, %v400
      %v631 = vmul.f32 %v616, %v623
      %v632 = vadd.f32 %v630, %v631
      %v633 = vtanh.pop %v632
      %v634 = vmul.f32 %v629, %v633
      %635 = vst [vmem:[#allocation2] sm:$0xff] %v634
      %636 = vst [vmem:[#allocation3] sm:$0xff] %v632
      %v637 = vld [vmem:[%s363] sm:$0xff]
      %639 = vset.pattern.permute.xlu0 0
      %640 = vperm.xlu0 %639, %v637
      %v641 = vpop.permute.xlu0 %640
      %v643 = vmul.f32 %v634, %v641
      %644 = vst [vmem:[%s377] sm:$0xff] %v643
      %s645 = scalar_lea.vmem %s356, 224
      %v646 = vld [vmem:[%s645] sm:$0xff]
      %v647 = vld [vmem:[%s645 + $0x8] sm:$0xff]
      %v648 = vld [vmem:[%s645 + $0x10] sm:$0xff]
      %v649 = vld [vmem:[%s645 + $0x18] sm:$0xff]
      %v650 = vld [vmem:[#allocation4] sm:$0xff]
      %v651 = vld [vmem:[#allocation5] sm:$0xff]
      %v652 = vld [vmem:[%s5] sm:$0xff]
      %v653 = vld [vmem:[%s5 + $0x8] sm:$0xff]
      %v654 = vld [vmem:[%s5 + $0x10] sm:$0xff]
      %v655 = vld [vmem:[%s5 + $0x18] sm:$0xff]
      %v656 = vld [vmem:[%s5 + $0x20] sm:$0xff]
      %v657 = vld [vmem:[%s5 + $0x28] sm:$0xff]
      %v658 = vld [vmem:[%s5 + $0x30] sm:$0xff]
      %v659 = vld [vmem:[%s5 + $0x38] sm:$0xff]
      %v660 = vld [vmem:[%s5 + $0x40] sm:$0xff]
      %v661 = vld [vmem:[%s5 + $0x48] sm:$0xff]
      %v662 = vld [vmem:[%s5 + $0x50] sm:$0xff]
      %v663 = vld [vmem:[%s5 + $0x58] sm:$0xff]
      %v664 = vld [vmem:[%s5 + $0x60] sm:$0xff]
      %v665 = vld [vmem:[%s5 + $0x68] sm:$0xff]
      %v666 = vld [vmem:[%s5 + $0x70] sm:$0xff]
      %v667 = vld [vmem:[%s5 + $0x78] sm:$0xff]
      %v668 = vld [vmem:[%s5 + $0x80] sm:$0xff]
      %v669 = vld [vmem:[%s5 + $0x88] sm:$0xff]
      %v670 = vld [vmem:[%s5 + $0x90] sm:$0xff]
      %v671 = vld [vmem:[%s5 + $0x98] sm:$0xff]
      %v672 = vld [vmem:[%s5 + $0xa0] sm:$0xff]
      %v673 = vld [vmem:[%s5 + $0xa8] sm:$0xff]
      %v674 = vld [vmem:[%s5 + $0xb0] sm:$0xff]
      %v675 = vld [vmem:[%s5 + $0xb8] sm:$0xff]
      %v676 = vld [vmem:[%s5 + $0xc0] sm:$0xff]
      %v677 = vld [vmem:[%s5 + $0xc8] sm:$0xff]
      %v678 = vld [vmem:[%s5 + $0xd0] sm:$0xff]
      %v679 = vld [vmem:[%s5 + $0xd8] sm:$0xff]
      %v680 = vld [vmem:[%s5 + $0xe0] sm:$0xff]
      %v681 = vld [vmem:[%s5 + $0xe8] sm:$0xff]
      %v682 = vld [vmem:[%s5 + $0xf0] sm:$0xff]
      %v683 = vld [vmem:[%s5 + $0xf8] sm:$0xff]
      %v684 = vld [vmem:[%s5 + $0x100] sm:$0xff]
      %v685 = vld [vmem:[%s5 + $0x108] sm:$0xff]
      %v686 = vld [vmem:[%s5 + $0x110] sm:$0xff]
      %v687 = vld [vmem:[%s5 + $0x118] sm:$0xff]
      %v688 = vld [vmem:[%s5 + $0x120] sm:$0xff]
      %v689 = vld [vmem:[%s5 + $0x128] sm:$0xff]
      %v690 = vld [vmem:[%s5 + $0x130] sm:$0xff]
      %v691 = vld [vmem:[%s5 + $0x138] sm:$0xff]
      %v692 = vld [vmem:[%s5 + $0x140] sm:$0xff]
      %v693 = vld [vmem:[%s5 + $0x148] sm:$0xff]
      %v694 = vld [vmem:[%s5 + $0x150] sm:$0xff]
      %v695 = vld [vmem:[%s5 + $0x158] sm:$0xff]
      %v696 = vld [vmem:[%s5 + $0x160] sm:$0xff]
      %v697 = vld [vmem:[%s5 + $0x168] sm:$0xff]
      %v698 = vld [vmem:[%s5 + $0x170] sm:$0xff]
      %v699 = vld [vmem:[%s5 + $0x178] sm:$0xff]
      %v700 = vld [vmem:[%s5 + $0x180] sm:$0xff]
      %v701 = vld [vmem:[%s5 + $0x188] sm:$0xff]
      %v702 = vld [vmem:[%s5 + $0x190] sm:$0xff]
      %v703 = vld [vmem:[%s5 + $0x198] sm:$0xff]
      %v704 = vld [vmem:[%s5 + $0x1a0] sm:$0xff]
      %v705 = vld [vmem:[%s5 + $0x1a8] sm:$0xff]
      %v706 = vld [vmem:[%s5 + $0x1b0] sm:$0xff]
      %v707 = vld [vmem:[%s5 + $0x1b8] sm:$0xff]
      %v708 = vld [vmem:[%s5 + $0x1c0] sm:$0xff]
      %v709 = vld [vmem:[%s5 + $0x1c8] sm:$0xff]
      %v710 = vld [vmem:[%s5 + $0x1d0] sm:$0xff]
      %v711 = vld [vmem:[%s5 + $0x1d8] sm:$0xff]
      %v712 = vld [vmem:[%s5 + $0x1e0] sm:$0xff]
      %v713 = vld [vmem:[%s5 + $0x1e8] sm:$0xff]
      %v714 = vld [vmem:[%s5 + $0x1f0] sm:$0xff]
      %v715 = vld [vmem:[%s5 + $0x1f8] sm:$0xff]
      %716 = vmatprep.subr.mxu0 %v653
      %717 = vmatpush1.msra.mxu0 %v652
      %718 = vmatprep.subr.mxu0 %v657
      %719 = vmatpush1.msra.mxu0 %v656
      %720 = vmatprep.subr.mxu0 %v661
      %721 = vmatpush1.msra.mxu0 %v660
      %722 = vmatprep.subr.mxu0 %v665
      %723 = vmatpush1.msra.mxu0 %v664
      %724 = vmatprep.subr.mxu0 %v669
      %725 = vmatpush1.msra.mxu0 %v668
      %726 = vmatprep.subr.mxu0 %v673
      %727 = vmatpush1.msra.mxu0 %v672
      %728 = vmatprep.subr.mxu0 %v677
      %729 = vmatpush1.msra.mxu0 %v676
      %730 = vmatprep.subr.mxu0 %v681
      %731 = vmatpush1.msra.mxu0 %v680
      %732 = vmatprep.subr.mxu0 %v685
      %733 = vmatpush1.msra.mxu0 %v684
      %734 = vmatprep.subr.mxu0 %v689
      %735 = vmatpush1.msra.mxu0 %v688
      %736 = vmatprep.subr.mxu0 %v693
      %737 = vmatpush1.msra.mxu0 %v692
      %738 = vmatprep.subr.mxu0 %v697
      %739 = vmatpush1.msra.mxu0 %v696
      %740 = vmatprep.subr.mxu0 %v701
      %741 = vmatpush1.msra.mxu0 %v700
      %742 = vmatprep.subr.mxu0 %v705
      %743 = vmatpush1.msra.mxu0 %v704
      %744 = vmatprep.subr.mxu0 %v709
      %745 = vmatpush1.msra.mxu0 %v708
      %746 = vmatprep.subr.mxu0 %v713
      %747 = vmatpush1.msra.mxu0 %v712
      %748 = vmatprep.subr.mxu0 0.0
      %749 = vmatpush1.msra.mxu0 0.0
      %750 = vmatprep.subr.mxu0 0.0
      %751 = vmatpush1.msra.mxu0 0.0
      %752 = vmatprep.subr.mxu0 0.0
      %753 = vmatpush1.msra.mxu0 0.0
      %754 = vmatprep.subr.mxu0 0.0
      %755 = vmatpush1.msra.mxu0 0.0
      %756 = vmatprep.subr.mxu0 0.0
      %757 = vmatpush1.msra.mxu0 0.0
      %758 = vmatprep.subr.mxu0 0.0
      %759 = vmatpush1.msra.mxu0 0.0
      %760 = vmatprep.subr.mxu0 0.0
      %761 = vmatpush1.msra.mxu0 0.0
      %762 = vmatprep.subr.mxu0 0.0
      %763 = vmatpush1.msra.mxu0 0.0
      %764 = vmatprep.subr.mxu0 0.0
      %765 = vmatpush1.msra.mxu0 0.0
      %766 = vmatprep.subr.mxu0 0.0
      %767 = vmatpush1.msra.mxu0 0.0
      %768 = vmatprep.subr.mxu0 0.0
      %769 = vmatpush1.msra.mxu0 0.0
      %770 = vmatprep.subr.mxu0 0.0
      %771 = vmatpush1.msra.mxu0 0.0
      %772 = vmatprep.subr.mxu0 0.0
      %773 = vmatpush1.msra.mxu0 0.0
      %774 = vmatprep.subr.mxu0 0.0
      %775 = vmatpush1.msra.mxu0 0.0
      %776 = vmatprep.subr.mxu0 0.0
      %777 = vmatpush1.msra.mxu0 0.0
      %778 = vmatprep.subr.mxu0 0.0
      %779 = vmatpush1.msra.mxu0 0.0
      %780 = vmatprep.mubr.f32.mxu0 0.0
      %781 = vmatmul.mubr.f32.gmra.mrb[0].mxu0 %v650
      %v782 = vpop.f32.mrb[0].mxu0
      %v783 = vadd.f32 0.0, %v782
      %v784 = vpop.f32.mrb[0].mxu0
      %v785 = vadd.f32 0.0, %v784
      %786 = vdwg.mxu0
      %787 = vmatprep.subr.mxu0 %v655
      %788 = vmatpush1.msra.mxu0 %v654
      %789 = vmatprep.subr.mxu0 %v659
      %790 = vmatpush1.msra.mxu0 %v658
      %791 = vmatprep.subr.mxu0 %v663
      %792 = vmatpush1.msra.mxu0 %v662
      %793 = vmatprep.subr.mxu0 %v667
      %794 = vmatpush1.msra.mxu0 %v666
      %795 = vmatprep.subr.mxu0 %v671
      %796 = vmatpush1.msra.mxu0 %v670
      %797 = vmatprep.subr.mxu0 %v675
      %798 = vmatpush1.msra.mxu0 %v674
      %799 = vmatprep.subr.mxu0 %v679
      %800 = vmatpush1.msra.mxu0 %v678
      %801 = vmatprep.subr.mxu0 %v683
      %802 = vmatpush1.msra.mxu0 %v682
      %803 = vmatprep.subr.mxu0 %v687
      %804 = vmatpush1.msra.mxu0 %v686
      %805 = vmatprep.subr.mxu0 %v691
      %806 = vmatpush1.msra.mxu0 %v690
      %807 = vmatprep.subr.mxu0 %v695
      %808 = vmatpush1.msra.mxu0 %v694
      %809 = vmatprep.subr.mxu0 %v699
      %810 = vmatpush1.msra.mxu0 %v698
      %811 = vmatprep.subr.mxu0 %v703
      %812 = vmatpush1.msra.mxu0 %v702
      %813 = vmatprep.subr.mxu0 %v707
      %814 = vmatpush1.msra.mxu0 %v706
      %815 = vmatprep.subr.mxu0 %v711
      %816 = vmatpush1.msra.mxu0 %v710
      %817 = vmatprep.subr.mxu0 %v715
      %818 = vmatpush1.msra.mxu0 %v714
      %819 = vmatprep.subr.mxu0 0.0
      %820 = vmatpush1.msra.mxu0 0.0
      %821 = vmatprep.subr.mxu0 0.0
      %822 = vmatpush1.msra.mxu0 0.0
      %823 = vmatprep.subr.mxu0 0.0
      %824 = vmatpush1.msra.mxu0 0.0
      %825 = vmatprep.subr.mxu0 0.0
      %826 = vmatpush1.msra.mxu0 0.0
      %827 = vmatprep.subr.mxu0 0.0
      %828 = vmatpush1.msra.mxu0 0.0
      %829 = vmatprep.subr.mxu0 0.0
      %830 = vmatpush1.msra.mxu0 0.0
      %831 = vmatprep.subr.mxu0 0.0
      %832 = vmatpush1.msra.mxu0 0.0
      %833 = vmatprep.subr.mxu0 0.0
      %834 = vmatpush1.msra.mxu0 0.0
      %835 = vmatprep.subr.mxu0 0.0
      %836 = vmatpush1.msra.mxu0 0.0
      %837 = vmatprep.subr.mxu0 0.0
      %838 = vmatpush1.msra.mxu0 0.0
      %839 = vmatprep.subr.mxu0 0.0
      %840 = vmatpush1.msra.mxu0 0.0
      %841 = vmatprep.subr.mxu0 0.0
      %842 = vmatpush1.msra.mxu0 0.0
      %843 = vmatprep.subr.mxu0 0.0
      %844 = vmatpush1.msra.mxu0 0.0
      %845 = vmatprep.subr.mxu0 0.0
      %846 = vmatpush1.msra.mxu0 0.0
      %847 = vmatprep.subr.mxu0 0.0
      %848 = vmatpush1.msra.mxu0 0.0
      %849 = vmatprep.subr.mxu0 0.0
      %850 = vmatpush1.msra.mxu0 0.0
      %851 = vmatprep.mubr.f32.mxu0 0.0
      %852 = vmatmul.mubr.f32.gmra.mrb[0].mxu0 %v650
      %v853 = vpop.f32.mrb[0].mxu0
      %v854 = vadd.f32 0.0, %v853
      %v855 = vpop.f32.mrb[0].mxu0
      %v856 = vadd.f32 0.0, %v855
      %857 = vdwg.mxu0
      %v858 = vadd.f32 %v646, %v783
      %v859 = vadd.f32 %v647, %v785
      %v860 = vadd.f32 %v648, %v854
      %v861 = vadd.f32 %v649, %v856
      %v862 = vxor.u32 %v858, 2147483648
      %v863 = vmul.f32 %v862, 1.442695
      %v864 = vpow.pop %v863
      %v865 = vadd.f32 %v864, 1.0
      %v866 = vrcp.pop %v865
      %v867 = vmul.f32 1.0, %v866
      %v868 = vxor.u32 %v859, 2147483648
      %v869 = vmul.f32 %v868, 1.442695
      %v870 = vpow.pop %v869
      %v871 = vadd.f32 %v870, 1.0
      %v872 = vrcp.pop %v871
      %v873 = vmul.f32 1.0, %v872
      %v874 = vtanh.pop %v860
      %v875 = vxor.u32 %v861, 2147483648
      %v876 = vmul.f32 %v875, 1.442695
      %v877 = vpow.pop %v876
      %v878 = vadd.f32 %v877, 1.0
      %v879 = vrcp.pop %v878
      %v880 = vmul.f32 1.0, %v879
      %v881 = vmul.f32 %v873, %v651
      %v882 = vmul.f32 %v867, %v874
      %v883 = vadd.f32 %v881, %v882
      %v884 = vtanh.pop %v883
      %v885 = vmul.f32 %v880, %v884
      %s886 = scalar_lea.vmem %s370, 56
      %v887 = vld [vmem:[%s886] sm:$0xff]
      %vm888 = vcmp.gt.f32.partialorder %v887, 0.0
      %v889 = vsel %vm888, 1, 0
      %890 = vset.pattern.permute.xlu0 0
      %891 = vperm.xlu0 %890, %v889
      %v892 = vpop.permute.xlu0 %891
      %vm893 = vcmp.eq.s32.totalorder %v892, 1
      %v894 = vsel %vm893, %v885, %v650
      %895 = vst [vmem:[#allocation4] sm:$0xff] %v894
      %v896 = vld [vmem:[#allocation5] sm:$0xff]
      %v897 = vsel %vm893, %v883, %v896
      %898 = vst [vmem:[#allocation5] sm:$0xff] %v897
      %v899 = vld [vmem:[#allocation4] sm:$0xff]
      %s900 = scalar_lea.vmem %s384, 56
      %901 = vst [vmem:[%s900] sm:$0xff] %v899
      %s902 = scalar_lea.vmem %s348, 32
      %v903 = vld [vmem:[%s902] sm:$0xff]
      %v904 = vld [vmem:[%s902 + $0x8] sm:$0xff]
      %v905 = vld [vmem:[%s902 + $0x10] sm:$0xff]
      %v906 = vld [vmem:[%s902 + $0x18] sm:$0xff]
      %v907 = vld [vmem:[#allocation2] sm:$0xff]
      %v908 = vld [vmem:[#allocation3] sm:$0xff]
      %v909 = vld [vmem:[%s4] sm:$0xff]
      %v910 = vld [vmem:[%s4 + $0x8] sm:$0xff]
      %v911 = vld [vmem:[%s4 + $0x10] sm:$0xff]
      %v912 = vld [vmem:[%s4 + $0x18] sm:$0xff]
      %v913 = vld [vmem:[%s4 + $0x20] sm:$0xff]
      %v914 = vld [vmem:[%s4 + $0x28] sm:$0xff]
      %v915 = vld [vmem:[%s4 + $0x30] sm:$0xff]
      %v916 = vld [vmem:[%s4 + $0x38] sm:$0xff]
      %v917 = vld [vmem:[%s4 + $0x40] sm:$0xff]
      %v918 = vld [vmem:[%s4 + $0x48] sm:$0xff]
      %v919 = vld [vmem:[%s4 + $0x50] sm:$0xff]
      %v920 = vld [vmem:[%s4 + $0x58] sm:$0xff]
      %v921 = vld [vmem:[%s4 + $0x60] sm:$0xff]
      %v922 = vld [vmem:[%s4 + $0x68] sm:$0xff]
      %v923 = vld [vmem:[%s4 + $0x70] sm:$0xff]
      %v924 = vld [vmem:[%s4 + $0x78] sm:$0xff]
      %v925 = vld [vmem:[%s4 + $0x80] sm:$0xff]
      %v926 = vld [vmem:[%s4 + $0x88] sm:$0xff]
      %v927 = vld [vmem:[%s4 + $0x90] sm:$0xff]
      %v928 = vld [vmem:[%s4 + $0x98] sm:$0xff]
      %v929 = vld [vmem:[%s4 + $0xa0] sm:$0xff]
      %v930 = vld [vmem:[%s4 + $0xa8] sm:$0xff]
      %v931 = vld [vmem:[%s4 + $0xb0] sm:$0xff]
      %v932 = vld [vmem:[%s4 + $0xb8] sm:$0xff]
      %v933 = vld [vmem:[%s4 + $0xc0] sm:$0xff]
      %v934 = vld [vmem:[%s4 + $0xc8] sm:$0xff]
      %v935 = vld [vmem:[%s4 + $0xd0] sm:$0xff]
      %v936 = vld [vmem:[%s4 + $0xd8] sm:$0xff]
      %v937 = vld [vmem:[%s4 + $0xe0] sm:$0xff]
      %v938 = vld [vmem:[%s4 + $0xe8] sm:$0xff]
      %v939 = vld [vmem:[%s4 + $0xf0] sm:$0xff]
      %v940 = vld [vmem:[%s4 + $0xf8] sm:$0xff]
      %v941 = vld [vmem:[%s4 + $0x100] sm:$0xff]
      %v942 = vld [vmem:[%s4 + $0x108] sm:$0xff]
      %v943 = vld [vmem:[%s4 + $0x110] sm:$0xff]
      %v944 = vld [vmem:[%s4 + $0x118] sm:$0xff]
      %v945 = vld [vmem:[%s4 + $0x120] sm:$0xff]
      %v946 = vld [vmem:[%s4 + $0x128] sm:$0xff]
      %v947 = vld [vmem:[%s4 + $0x130] sm:$0xff]
      %v948 = vld [vmem:[%s4 + $0x138] sm:$0xff]
      %v949 = vld [vmem:[%s4 + $0x140] sm:$0xff]
      %v950 = vld [vmem:[%s4 + $0x148] sm:$0xff]
      %v951 = vld [vmem:[%s4 + $0x150] sm:$0xff]
      %v952 = vld [vmem:[%s4 + $0x158] sm:$0xff]
      %v953 = vld [vmem:[%s4 + $0x160] sm:$0xff]
      %v954 = vld [vmem:[%s4 + $0x168] sm:$0xff]
      %v955 = vld [vmem:[%s4 + $0x170] sm:$0xff]
      %v956 = vld [vmem:[%s4 + $0x178] sm:$0xff]
      %v957 = vld [vmem:[%s4 + $0x180] sm:$0xff]
      %v958 = vld [vmem:[%s4 + $0x188] sm:$0xff]
      %v959 = vld [vmem:[%s4 + $0x190] sm:$0xff]
      %v960 = vld [vmem:[%s4 + $0x198] sm:$0xff]
      %v961 = vld [vmem:[%s4 + $0x1a0] sm:$0xff]
      %v962 = vld [vmem:[%s4 + $0x1a8] sm:$0xff]
      %v963 = vld [vmem:[%s4 + $0x1b0] sm:$0xff]
      %v964 = vld [vmem:[%s4 + $0x1b8] sm:$0xff]
      %v965 = vld [vmem:[%s4 + $0x1c0] sm:$0xff]
      %v966 = vld [vmem:[%s4 + $0x1c8] sm:$0xff]
      %v967 = vld [vmem:[%s4 + $0x1d0] sm:$0xff]
      %v968 = vld [vmem:[%s4 + $0x1d8] sm:$0xff]
      %v969 = vld [vmem:[%s4 + $0x1e0] sm:$0xff]
      %v970 = vld [vmem:[%s4 + $0x1e8] sm:$0xff]
      %v971 = vld [vmem:[%s4 + $0x1f0] sm:$0xff]
      %v972 = vld [vmem:[%s4 + $0x1f8] sm:$0xff]
      %973 = vmatprep.subr.mxu0 %v910
      %974 = vmatpush1.msra.mxu0 %v909
      %975 = vmatprep.subr.mxu0 %v914
      %976 = vmatpush1.msra.mxu0 %v913
      %977 = vmatprep.subr.mxu0 %v918
      %978 = vmatpush1.msra.mxu0 %v917
      %979 = vmatprep.subr.mxu0 %v922
      %980 = vmatpush1.msra.mxu0 %v921
      %981 = vmatprep.subr.mxu0 %v926
      %982 = vmatpush1.msra.mxu0 %v925
      %983 = vmatprep.subr.mxu0 %v930
      %984 = vmatpush1.msra.mxu0 %v929
      %985 = vmatprep.subr.mxu0 %v934
      %986 = vmatpush1.msra.mxu0 %v933
      %987 = vmatprep.subr.mxu0 %v938
      %988 = vmatpush1.msra.mxu0 %v937
      %989 = vmatprep.subr.mxu0 %v942
      %990 = vmatpush1.msra.mxu0 %v941
      %991 = vmatprep.subr.mxu0 %v946
      %992 = vmatpush1.msra.mxu0 %v945
      %993 = vmatprep.subr.mxu0 %v950
      %994 = vmatpush1.msra.mxu0 %v949
      %995 = vmatprep.subr.mxu0 %v954
      %996 = vmatpush1.msra.mxu0 %v953
      %997 = vmatprep.subr.mxu0 %v958
      %998 = vmatpush1.msra.mxu0 %v957
      %999 = vmatprep.subr.mxu0 %v962
      %1000 = vmatpush1.msra.mxu0 %v961
      %1001 = vmatprep.subr.mxu0 %v966
      %1002 = vmatpush1.msra.mxu0 %v965
      %1003 = vmatprep.subr.mxu0 %v970
      %1004 = vmatpush1.msra.mxu0 %v969
      %1005 = vmatprep.subr.mxu0 0.0
      %1006 = vmatpush1.msra.mxu0 0.0
      %1007 = vmatprep.subr.mxu0 0.0
      %1008 = vmatpush1.msra.mxu0 0.0
      %1009 = vmatprep.subr.mxu0 0.0
      %1010 = vmatpush1.msra.mxu0 0.0
      %1011 = vmatprep.subr.mxu0 0.0
      %1012 = vmatpush1.msra.mxu0 0.0
      %1013 = vmatprep.subr.mxu0 0.0
      %1014 = vmatpush1.msra.mxu0 0.0
      %1015 = vmatprep.subr.mxu0 0.0
      %1016 = vmatpush1.msra.mxu0 0.0
      %1017 = vmatprep.subr.mxu0 0.0
      %1018 = vmatpush1.msra.mxu0 0.0
      %1019 = vmatprep.subr.mxu0 0.0
      %1020 = vmatpush1.msra.mxu0 0.0
      %1021 = vmatprep.subr.mxu0 0.0
      %1022 = vmatpush1.msra.mxu0 0.0
      %1023 = vmatprep.subr.mxu0 0.0
      %1024 = vmatpush1.msra.mxu0 0.0
      %1025 = vmatprep.subr.mxu0 0.0
      %1026 = vmatpush1.msra.mxu0 0.0
      %1027 = vmatprep.subr.mxu0 0.0
      %1028 = vmatpush1.msra.mxu0 0.0
      %1029 = vmatprep.subr.mxu0 0.0
      %1030 = vmatpush1.msra.mxu0 0.0
      %1031 = vmatprep.subr.mxu0 0.0
      %1032 = vmatpush1.msra.mxu0 0.0
      %1033 = vmatprep.subr.mxu0 0.0
      %1034 = vmatpush1.msra.mxu0 0.0
      %1035 = vmatprep.subr.mxu0 0.0
      %1036 = vmatpush1.msra.mxu0 0.0
      %1037 = vmatprep.mubr.f32.mxu0 0.0
      %1038 = vmatmul.mubr.f32.gmra.mrb[0].mxu0 %v907
      %v1039 = vpop.f32.mrb[0].mxu0
      %v1040 = vadd.f32 0.0, %v1039
      %v1041 = vpop.f32.mrb[0].mxu0
      %v1042 = vadd.f32 0.0, %v1041
      %1043 = vdwg.mxu0
      %1044 = vmatprep.subr.mxu0 %v912
      %1045 = vmatpush1.msra.mxu0 %v911
      %1046 = vmatprep.subr.mxu0 %v916
      %1047 = vmatpush1.msra.mxu0 %v915
      %1048 = vmatprep.subr.mxu0 %v920
      %1049 = vmatpush1.msra.mxu0 %v919
      %1050 = vmatprep.subr.mxu0 %v924
      %1051 = vmatpush1.msra.mxu0 %v923
      %1052 = vmatprep.subr.mxu0 %v928
      %1053 = vmatpush1.msra.mxu0 %v927
      %1054 = vmatprep.subr.mxu0 %v932
      %1055 = vmatpush1.msra.mxu0 %v931
      %1056 = vmatprep.subr.mxu0 %v936
      %1057 = vmatpush1.msra.mxu0 %v935
      %1058 = vmatprep.subr.mxu0 %v940
      %1059 = vmatpush1.msra.mxu0 %v939
      %1060 = vmatprep.subr.mxu0 %v944
      %1061 = vmatpush1.msra.mxu0 %v943
      %1062 = vmatprep.subr.mxu0 %v948
      %1063 = vmatpush1.msra.mxu0 %v947
      %1064 = vmatprep.subr.mxu0 %v952
      %1065 = vmatpush1.msra.mxu0 %v951
      %1066 = vmatprep.subr.mxu0 %v956
      %1067 = vmatpush1.msra.mxu0 %v955
      %1068 = vmatprep.subr.mxu0 %v960
      %1069 = vmatpush1.msra.mxu0 %v959
      %1070 = vmatprep.subr.mxu0 %v964
      %1071 = vmatpush1.msra.mxu0 %v963
      %1072 = vmatprep.subr.mxu0 %v968
      %1073 = vmatpush1.msra.mxu0 %v967
      %1074 = vmatprep.subr.mxu0 %v972
      %1075 = vmatpush1.msra.mxu0 %v971
      %1076 = vmatprep.subr.mxu0 0.0
      %1077 = vmatpush1.msra.mxu0 0.0
      %1078 = vmatprep.subr.mxu0 0.0
      %1079 = vmatpush1.msra.mxu0 0.0
      %1080 = vmatprep.subr.mxu0 0.0
      %1081 = vmatpush1.msra.mxu0 0.0
      %1082 = vmatprep.subr.mxu0 0.0
      %1083 = vmatpush1.msra.mxu0 0.0
      %1084 = vmatprep.subr.mxu0 0.0
      %1085 = vmatpush1.msra.mxu0 0.0
      %1086 = vmatprep.subr.mxu0 0.0
      %1087 = vmatpush1.msra.mxu0 0.0
      %1088 = vmatprep.subr.mxu0 0.0
      %1089 = vmatpush1.msra.mxu0 0.0
      %1090 = vmatprep.subr.mxu0 0.0
      %1091 = vmatpush1.msra.mxu0 0.0
      %1092 = vmatprep.subr.mxu0 0.0
      %1093 = vmatpush1.msra.mxu0 0.0
      %1094 = vmatprep.subr.mxu0 0.0
      %1095 = vmatpush1.msra.mxu0 0.0
      %1096 = vmatprep.subr.mxu0 0.0
      %1097 = vmatpush1.msra.mxu0 0.0
      %1098 = vmatprep.subr.mxu0 0.0
      %1099 = vmatpush1.msra.mxu0 0.0
      %1100 = vmatprep.subr.mxu0 0.0
      %1101 = vmatpush1.msra.mxu0 0.0
      %1102 = vmatprep.subr.mxu0 0.0
      %1103 = vmatpush1.msra.mxu0 0.0
      %1104 = vmatprep.subr.mxu0 0.0
      %1105 = vmatpush1.msra.mxu0 0.0
      %1106 = vmatprep.subr.mxu0 0.0
      %1107 = vmatpush1.msra.mxu0 0.0
      %1108 = vmatprep.mubr.f32.mxu0 0.0
      %1109 = vmatmul.mubr.f32.gmra.mrb[0].mxu0 %v907
      %v1110 = vpop.f32.mrb[0].mxu0
      %v1111 = vadd.f32 0.0, %v1110
      %v1112 = vpop.f32.mrb[0].mxu0
      %v1113 = vadd.f32 0.0, %v1112
      %1114 = vdwg.mxu0
      %v1115 = vadd.f32 %v903, %v1040
      %v1116 = vadd.f32 %v904, %v1042
      %v1117 = vadd.f32 %v905, %v1111
      %v1118 = vadd.f32 %v906, %v1113
      %v1119 = vxor.u32 %v1115, 2147483648
      %v1120 = vmul.f32 %v1119, 1.442695
      %v1121 = vpow.pop %v1120
      %v1122 = vadd.f32 %v1121, 1.0
      %v1123 = vrcp.pop %v1122
      %v1124 = vmul.f32 1.0, %v1123
      %v1125 = vxor.u32 %v1116, 2147483648
      %v1126 = vmul.f32 %v1125, 1.442695
      %v1127 = vpow.pop %v1126
      %v1128 = vadd.f32 %v1127, 1.0
      %v1129 = vrcp.pop %v1128
      %v1130 = vmul.f32 1.0, %v1129
      %v1131 = vtanh.pop %v1117
      %v1132 = vxor.u32 %v1118, 2147483648
      %v1133 = vmul.f32 %v1132, 1.442695
      %v1134 = vpow.pop %v1133
      %v1135 = vadd.f32 %v1134, 1.0
      %v1136 = vrcp.pop %v1135
      %v1137 = vmul.f32 1.0, %v1136
      %v1138 = vmul.f32 %v1130, %v908
      %v1139 = vmul.f32 %v1124, %v1131
      %v1140 = vadd.f32 %v1138, %v1139
      %v1141 = vtanh.pop %v1140
      %v1142 = vmul.f32 %v1137, %v1141
      %1143 = vst [vmem:[#allocation2] sm:$0xff] %v1142
      %1144 = vst [vmem:[#allocation3] sm:$0xff] %v1140
      %s1145 = scalar_lea.vmem %s363, 8
      %v1146 = vld [vmem:[%s1145] sm:$0xff]
      %1148 = vset.pattern.permute.xlu0 0
      %1149 = vperm.xlu0 %1148, %v1146
      %v1150 = vpop.permute.xlu0 %1149
      %v1152 = vmul.f32 %v1142, %v1150
      %s1153 = scalar_lea.vmem %s377, 8
      %1154 = vst [vmem:[%s1153] sm:$0xff] %v1152
      %s1155 = scalar_lea.vmem %s356, 192
      %v1156 = vld [vmem:[%s1155] sm:$0xff]
      %v1157 = vld [vmem:[%s1155 + $0x8] sm:$0xff]
      %v1158 = vld [vmem:[%s1155 + $0x10] sm:$0xff]
      %v1159 = vld [vmem:[%s1155 + $0x18] sm:$0xff]
      %v1160 = vld [vmem:[#allocation4] sm:$0xff]
      %v1161 = vld [vmem:[#allocation5] sm:$0xff]
      %v1162 = vld [vmem:[%s5] sm:$0xff]
      %v1163 = vld [vmem:[%s5 + $0x8] sm:$0xff]
      %v1164 = vld [vmem:[%s5 + $0x10] sm:$0xff]
      %v1165 = vld [vmem:[%s5 + $0x18] sm:$0xff]
      %v1166 = vld [vmem:[%s5 + $0x20] sm:$0xff]
      %v1167 = vld [vmem:[%s5 + $0x28] sm:$0xff]
      %v1168 = vld [vmem:[%s5 + $0x30] sm:$0xff]
      %v1169 = vld [vmem:[%s5 + $0x38] sm:$0xff]
      %v1170 = vld [vmem:[%s5 + $0x40] sm:$0xff]
      %v1171 = vld [vmem:[%s5 + $0x48] sm:$0xff]
      %v1172 = vld [vmem:[%s5 + $0x50] sm:$0xff]
      %v1173 = vld [vmem:[%s5 + $0x58] sm:$0xff]
      %v1174 = vld [vmem:[%s5 + $0x60] sm:$0xff]
      %v1175 = vld [vmem:[%s5 + $0x68] sm:$0xff]
      %v1176 = vld [vmem:[%s5 + $0x70] sm:$0xff]
      %v1177 = vld [vmem:[%s5 + $0x78] sm:$0xff]
      %v1178 = vld [vmem:[%s5 + $0x80] sm:$0xff]
      %v1179 = vld [vmem:[%s5 + $0x88] sm:$0xff]
      %v1180 = vld [vmem:[%s5 + $0x90] sm:$0xff]
      %v1181 = vld [vmem:[%s5 + $0x98] sm:$0xff]
      %v1182 = vld [vmem:[%s5 + $0xa0] sm:$0xff]
      %v1183 = vld [vmem:[%s5 + $0xa8] sm:$0xff]
      %v1184 = vld [vmem:[%s5 + $0xb0] sm:$0xff]
      %v1185 = vld [vmem:[%s5 + $0xb8] sm:$0xff]
      %v1186 = vld [vmem:[%s5 + $0xc0] sm:$0xff]
      %v1187 = vld [vmem:[%s5 + $0xc8] sm:$0xff]
      %v1188 = vld [vmem:[%s5 + $0xd0] sm:$0xff]
      %v1189 = vld [vmem:[%s5 + $0xd8] sm:$0xff]
      %v1190 = vld [vmem:[%s5 + $0xe0] sm:$0xff]
      %v1191 = vld [vmem:[%s5 + $0xe8] sm:$0xff]
      %v1192 = vld [vmem:[%s5 + $0xf0] sm:$0xff]
      %v1193 = vld [vmem:[%s5 + $0xf8] sm:$0xff]
      %v1194 = vld [vmem:[%s5 + $0x100] sm:$0xff]
      %v1195 = vld [vmem:[%s5 + $0x108] sm:$0xff]
      %v1196 = vld [vmem:[%s5 + $0x110] sm:$0xff]
      %v1197 = vld [vmem:[%s5 + $0x118] sm:$0xff]
      %v1198 = vld [vmem:[%s5 + $0x120] sm:$0xff]
      %v1199 = vld [vmem:[%s5 + $0x128] sm:$0xff]
      %v1200 = vld [vmem:[%s5 + $0x130] sm:$0xff]
      %v1201 = vld [vmem:[%s5 + $0x138] sm:$0xff]
      %v1202 = vld [vmem:[%s5 + $0x140] sm:$0xff]
      %v1203 = vld [vmem:[%s5 + $0x148] sm:$0xff]
      %v1204 = vld [vmem:[%s5 + $0x150] sm:$0xff]
      %v1205 = vld [vmem:[%s5 + $0x158] sm:$0xff]
      %v1206 = vld [vmem:[%s5 + $0x160] sm:$0xff]
      %v1207 = vld [vmem:[%s5 + $0x168] sm:$0xff]
      %v1208 = vld [vmem:[%s5 + $0x170] sm:$0xff]
      %v1209 = vld [vmem:[%s5 + $0x178] sm:$0xff]
      %v1210 = vld [vmem:[%s5 + $0x180] sm:$0xff]
      %v1211 = vld [vmem:[%s5 + $0x188] sm:$0xff]
      %v1212 = vld [vmem:[%s5 + $0x190] sm:$0xff]
      %v1213 = vld [vmem:[%s5 + $0x198] sm:$0xff]
      %v1214 = vld [vmem:[%s5 + $0x1a0] sm:$0xff]
      %v1215 = vld [vmem:[%s5 + $0x1a8] sm:$0xff]
      %v1216 = vld [vmem:[%s5 + $0x1b0] sm:$0xff]
      %v1217 = vld [vmem:[%s5 + $0x1b8] sm:$0xff]
      %v1218 = vld [vmem:[%s5 + $0x1c0] sm:$0xff]
      %v1219 = vld [vmem:[%s5 + $0x1c8] sm:$0xff]
      %v1220 = vld [vmem:[%s5 + $0x1d0] sm:$0xff]
      %v1221 = vld [vmem:[%s5 + $0x1d8] sm:$0xff]
      %v1222 = vld [vmem:[%s5 + $0x1e0] sm:$0xff]
      %v1223 = vld [vmem:[%s5 + $0x1e8] sm:$0xff]
      %v1224 = vld [vmem:[%s5 + $0x1f0] sm:$0xff]
      %v1225 = vld [vmem:[%s5 + $0x1f8] sm:$0xff]
      %1226 = vmatprep.subr.mxu0 %v1163
      %1227 = vmatpush1.msra.mxu0 %v1162
      %1228 = vmatprep.subr.mxu0 %v1167
      %1229 = vmatpush1.msra.mxu0 %v1166
      %1230 = vmatprep.subr.mxu0 %v1171
      %1231 = vmatpush1.msra.mxu0 %v1170
      %1232 = vmatprep.subr.mxu0 %v1175
      %1233 = vmatpush1.msra.mxu0 %v1174
      %1234 = vmatprep.subr.mxu0 %v1179
      %1235 = vmatpush1.msra.mxu0 %v1178
      %1236 = vmatprep.subr.mxu0 %v1183
      %1237 = vmatpush1.msra.mxu0 %v1182
      %1238 = vmatprep.subr.mxu0 %v1187
      %1239 = vmatpush1.msra.mxu0 %v1186
      %1240 = vmatprep.subr.mxu0 %v1191
      %1241 = vmatpush1.msra.mxu0 %v1190
      %1242 = vmatprep.subr.mxu0 %v1195
      %1243 = vmatpush1.msra.mxu0 %v1194
      %1244 = vmatprep.subr.mxu0 %v1199
      %1245 = vmatpush1.msra.mxu0 %v1198
      %1246 = vmatprep.subr.mxu0 %v1203
      %1247 = vmatpush1.msra.mxu0 %v1202
      %1248 = vmatprep.subr.mxu0 %v1207
      %1249 = vmatpush1.msra.mxu0 %v1206
      %1250 = vmatprep.subr.mxu0 %v1211
      %1251 = vmatpush1.msra.mxu0 %v1210
      %1252 = vmatprep.subr.mxu0 %v1215
      %1253 = vmatpush1.msra.mxu0 %v1214
      %1254 = vmatprep.subr.mxu0 %v1219
      %1255 = vmatpush1.msra.mxu0 %v1218
      %1256 = vmatprep.subr.mxu0 %v1223
      %1257 = vmatpush1.msra.mxu0 %v1222
      %1258 = vmatprep.subr.mxu0 0.0
      %1259 = vmatpush1.msra.mxu0 0.0
      %1260 = vmatprep.subr.mxu0 0.0
      %1261 = vmatpush1.msra.mxu0 0.0
      %1262 = vmatprep.subr.mxu0 0.0
      %1263 = vmatpush1.msra.mxu0 0.0
      %1264 = vmatprep.subr.mxu0 0.0
      %1265 = vmatpush1.msra.mxu0 0.0
      %1266 = vmatprep.subr.mxu0 0.0
      %1267 = vmatpush1.msra.mxu0 0.0
      %1268 = vmatprep.subr.mxu0 0.0
      %1269 = vmatpush1.msra.mxu0 0.0
      %1270 = vmatprep.subr.mxu0 0.0
      %1271 = vmatpush1.msra.mxu0 0.0
      %1272 = vmatprep.subr.mxu0 0.0
      %1273 = vmatpush1.msra.mxu0 0.0
      %1274 = vmatprep.subr.mxu0 0.0
      %1275 = vmatpush1.msra.mxu0 0.0
      %1276 = vmatprep.subr.mxu0 0.0
      %1277 = vmatpush1.msra.mxu0 0.0
      %1278 = vmatprep.subr.mxu0 0.0
      %1279 = vmatpush1.msra.mxu0 0.0
      %1280 = vmatprep.subr.mxu0 0.0
      %1281 = vmatpush1.msra.mxu0 0.0
      %1282 = vmatprep.subr.mxu0 0.0
      %1283 = vmatpush1.msra.mxu0 0.0
      %1284 = vmatprep.subr.mxu0 0.0
      %1285 = vmatpush1.msra.mxu0 0.0
      %1286 = vmatprep.subr.mxu0 0.0
      %1287 = vmatpush1.msra.mxu0 0.0
      %1288 = vmatprep.subr.mxu0 0.0
      %1289 = vmatpush1.msra.mxu0 0.0
      %1290 = vmatprep.mubr.f32.mxu0 0.0
      %1291 = vmatmul.mubr.f32.gmra.mrb[0].mxu0 %v1160
      %v1292 = vpop.f32.mrb[0].mxu0
      %v1293 = vadd.f32 0.0, %v1292
      %v1294 = vpop.f32.mrb[0].mxu0
      %v1295 = vadd.f32 0.0, %v1294
      %1296 = vdwg.mxu0
      %1297 = vmatprep.subr.mxu0 %v1165
      %1298 = vmatpush1.msra.mxu0 %v1164
      %1299 = vmatprep.subr.mxu0 %v1169
      %1300 = vmatpush1.msra.mxu0 %v1168
      %1301 = vmatprep.subr.mxu0 %v1173
      %1302 = vmatpush1.msra.mxu0 %v1172
      %1303 = vmatprep.subr.mxu0 %v1177
      %1304 = vmatpush1.msra.mxu0 %v1176
      %1305 = vmatprep.subr.mxu0 %v1181
      %1306 = vmatpush1.msra.mxu0 %v1180
      %1307 = vmatprep.subr.mxu0 %v1185
      %1308 = vmatpush1.msra.mxu0 %v1184
      %1309 = vmatprep.subr.mxu0 %v1189
      %1310 = vmatpush1.msra.mxu0 %v1188
      %1311 = vmatprep.subr.mxu0 %v1193
      %1312 = vmatpush1.msra.mxu0 %v1192
      %1313 = vmatprep.subr.mxu0 %v1197
      %1314 = vmatpush1.msra.mxu0 %v1196
      %1315 = vmatprep.subr.mxu0 %v1201
      %1316 = vmatpush1.msra.mxu0 %v1200
      %1317 = vmatprep.subr.mxu0 %v1205
      %1318 = vmatpush1.msra.mxu0 %v1204
      %1319 = vmatprep.subr.mxu0 %v1209
      %1320 = vmatpush1.msra.mxu0 %v1208
      %1321 = vmatprep.subr.mxu0 %v1213
      %1322 = vmatpush1.msra.mxu0 %v1212
      %1323 = vmatprep.subr.mxu0 %v1217
      %1324 = vmatpush1.msra.mxu0 %v1216
      %1325 = vmatprep.subr.mxu0 %v1221
      %1326 = vmatpush1.msra.mxu0 %v1220
      %1327 = vmatprep.subr.mxu0 %v1225
      %1328 = vmatpush1.msra.mxu0 %v1224
      %1329 = vmatprep.subr.mxu0 0.0
      %1330 = vmatpush1.msra.mxu0 0.0
      %1331 = vmatprep.subr.mxu0 0.0
      %1332 = vmatpush1.msra.mxu0 0.0
      %1333 = vmatprep.subr.mxu0 0.0
      %1334 = vmatpush1.msra.mxu0 0.0
      %1335 = vmatprep.subr.mxu0 0.0
      %1336 = vmatpush1.msra.mxu0 0.0
      %1337 = vmatprep.subr.mxu0 0.0
      %1338 = vmatpush1.msra.mxu0 0.0
      %1339 = vmatprep.subr.mxu0 0.0
      %1340 = vmatpush1.msra.mxu0 0.0
      %1341 = vmatprep.subr.mxu0 0.0
      %1342 = vmatpush1.msra.mxu0 0.0
      %1343 = vmatprep.subr.mxu0 0.0
      %1344 = vmatpush1.msra.mxu0 0.0
      %1345 = vmatprep.subr.mxu0 0.0
      %1346 = vmatpush1.msra.mxu0 0.0
      %1347 = vmatprep.subr.mxu0 0.0
      %1348 = vmatpush1.msra.mxu0 0.0
      %1349 = vmatprep.subr.mxu0 0.0
      %1350 = vmatpush1.msra.mxu0 0.0
      %1351 = vmatprep.subr.mxu0 0.0
      %1352 = vmatpush1.msra.mxu0 0.0
      %1353 = vmatprep.subr.mxu0 0.0
      %1354 = vmatpush1.msra.mxu0 0.0
      %1355 = vmatprep.subr.mxu0 0.0
      %1356 = vmatpush1.msra.mxu0 0.0
      %1357 = vmatprep.subr.mxu0 0.0
      %1358 = vmatpush1.msra.mxu0 0.0
      %1359 = vmatprep.subr.mxu0 0.0
      %1360 = vmatpush1.msra.mxu0 0.0
      %1361 = vmatprep.mubr.f32.mxu0 0.0
      %1362 = vmatmul.mubr.f32.gmra.mrb[0].mxu0 %v1160
      %v1363 = vpop.f32.mrb[0].mxu0
      %v1364 = vadd.f32 0.0, %v1363
      %v1365 = vpop.f32.mrb[0].mxu0
      %v1366 = vadd.f32 0.0, %v1365
      %1367 = vdwg.mxu0
      %v1368 = vadd.f32 %v1156, %v1293
      %v1369 = vadd.f32 %v1157, %v1295
      %v1370 = vadd.f32 %v1158, %v1364
      %v1371 = vadd.f32 %v1159, %v1366
      %v1372 = vxor.u32 %v1368, 2147483648
      %v1373 = vmul.f32 %v1372, 1.442695
      %v1374 = vpow.pop %v1373
      %v1375 = vadd.f32 %v1374, 1.0
      %v1376 = vrcp.pop %v1375
      %v1377 = vmul.f32 1.0, %v1376
      %v1378 = vxor.u32 %v1369, 2147483648
      %v1379 = vmul.f32 %v1378, 1.442695
      %v1380 = vpow.pop %v1379
      %v1381 = vadd.f32 %v1380, 1.0
      %v1382 = vrcp.pop %v1381
      %v1383 = vmul.f32 1.0, %v1382
      %v1384 = vtanh.pop %v1370
      %v1385 = vxor.u32 %v1371, 2147483648
      %v1386 = vmul.f32 %v1385, 1.442695
      %v1387 = vpow.pop %v1386
      %v1388 = vadd.f32 %v1387, 1.0
      %v1389 = vrcp.pop %v1388
      %v1390 = vmul.f32 1.0, %v1389
      %v1391 = vmul.f32 %v1383, %v1161
      %v1392 = vmul.f32 %v1377, %v1384
      %v1393 = vadd.f32 %v1391, %v1392
      %v1394 = vtanh.pop %v1393
      %v1395 = vmul.f32 %v1390, %v1394
      %s1396 = scalar_lea.vmem %s370, 48
      %v1397 = vld [vmem:[%s1396] sm:$0xff]
      %vm1398 = vcmp.gt.f32.partialorder %v1397, 0.0
      %v1399 = vsel %vm1398, 1, 0
      %1400 = vset.pattern.permute.xlu0 0
      %1401 = vperm.xlu0 %1400, %v1399
      %v1402 = vpop.permute.xlu0 %1401
      %vm1403 = vcmp.eq.s32.totalorder %v1402, 1
      %v1404 = vsel %vm1403, %v1395, %v1160
      %1405 = vst [vmem:[#allocation4] sm:$0xff] %v1404
      %v1406 = vld [vmem:[#allocation5] sm:$0xff]
      %v1407 = vsel %vm1403, %v1393, %v1406
      %1408 = vst [vmem:[#allocation5] sm:$0xff] %v1407
      %v1409 = vld [vmem:[#allocation4] sm:$0xff]
      %s1410 = scalar_lea.vmem %s384, 48
      %1411 = vst [vmem:[%s1410] sm:$0xff] %v1409
      %s1412 = scalar_lea.vmem %s348, 64
      %v1413 = vld [vmem:[%s1412] sm:$0xff]
      %v1414 = vld [vmem:[%s1412 + $0x8] sm:$0xff]
      %v1415 = vld [vmem:[%s1412 + $0x10] sm:$0xff]
      %v1416 = vld [vmem:[%s1412 + $0x18] sm:$0xff]
      %v1417 = vld [vmem:[#allocation2] sm:$0xff]
      %v1418 = vld [vmem:[#allocation3] sm:$0xff]
      %v1419 = vld [vmem:[%s4] sm:$0xff]
      %v1420 = vld [vmem:[%s4 + $0x8] sm:$0xff]
      %v1421 = vld [vmem:[%s4 + $0x10] sm:$0xff]
      %v1422 = vld [vmem:[%s4 + $0x18] sm:$0xff]
      %v1423 = vld [vmem:[%s4 + $0x20] sm:$0xff]
      %v1424 = vld [vmem:[%s4 + $0x28] sm:$0xff]
      %v1425 = vld [vmem:[%s4 + $0x30] sm:$0xff]
      %v1426 = vld [vmem:[%s4 + $0x38] sm:$0xff]
      %v1427 = vld [vmem:[%s4 + $0x40] sm:$0xff]
      %v1428 = vld [vmem:[%s4 + $0x48] sm:$0xff]
      %v1429 = vld [vmem:[%s4 + $0x50] sm:$0xff]
      %v1430 = vld [vmem:[%s4 + $0x58] sm:$0xff]
      %v1431 = vld [vmem:[%s4 + $0x60] sm:$0xff]
      %v1432 = vld [vmem:[%s4 + $0x68] sm:$0xff]
      %v1433 = vld [vmem:[%s4 + $0x70] sm:$0xff]
      %v1434 = vld [vmem:[%s4 + $0x78] sm:$0xff]
      %v1435 = vld [vmem:[%s4 + $0x80] sm:$0xff]
      %v1436 = vld [vmem:[%s4 + $0x88] sm:$0xff]
      %v1437 = vld [vmem:[%s4 + $0x90] sm:$0xff]
      %v1438 = vld [vmem:[%s4 + $0x98] sm:$0xff]
      %v1439 = vld [vmem:[%s4 + $0xa0] sm:$0xff]
      %v1440 = vld [vmem:[%s4 + $0xa8] sm:$0xff]
      %v1441 = vld [vmem:[%s4 + $0xb0] sm:$0xff]
      %v1442 = vld [vmem:[%s4 + $0xb8] sm:$0xff]
      %v1443 = vld [vmem:[%s4 + $0xc0] sm:$0xff]
      %v1444 = vld [vmem:[%s4 + $0xc8] sm:$0xff]
      %v1445 = vld [vmem:[%s4 + $0xd0] sm:$0xff]
      %v1446 = vld [vmem:[%s4 + $0xd8] sm:$0xff]
      %v1447 = vld [vmem:[%s4 + $0xe0] sm:$0xff]
      %v1448 = vld [vmem:[%s4 + $0xe8] sm:$0xff]
      %v1449 = vld [vmem:[%s4 + $0xf0] sm:$0xff]
      %v1450 = vld [vmem:[%s4 + $0xf8] sm:$0xff]
      %v1451 = vld [vmem:[%s4 + $0x100] sm:$0xff]
      %v1452 = vld [vmem:[%s4 + $0x108] sm:$0xff]
      %v1453 = vld [vmem:[%s4 + $0x110] sm:$0xff]
      %v1454 = vld [vmem:[%s4 + $0x118] sm:$0xff]
      %v1455 = vld [vmem:[%s4 + $0x120] sm:$0xff]
      %v1456 = vld [vmem:[%s4 + $0x128] sm:$0xff]
      %v1457 = vld [vmem:[%s4 + $0x130] sm:$0xff]
      %v1458 = vld [vmem:[%s4 + $0x138] sm:$0xff]
      %v1459 = vld [vmem:[%s4 + $0x140] sm:$0xff]
      %v1460 = vld [vmem:[%s4 + $0x148] sm:$0xff]
      %v1461 = vld [vmem:[%s4 + $0x150] sm:$0xff]
      %v1462 = vld [vmem:[%s4 + $0x158] sm:$0xff]
      %v1463 = vld [vmem:[%s4 + $0x160] sm:$0xff]
      %v1464 = vld [vmem:[%s4 + $0x168] sm:$0xff]
      %v1465 = vld [vmem:[%s4 + $0x170] sm:$0xff]
      %v1466 = vld [vmem:[%s4 + $0x178] sm:$0xff]
      %v1467 = vld [vmem:[%s4 + $0x180] sm:$0xff]
      %v1468 = vld [vmem:[%s4 + $0x188] sm:$0xff]
      %v1469 = vld [vmem:[%s4 + $0x190] sm:$0xff]
      %v1470 = vld [vmem:[%s4 + $0x198] sm:$0xff]
      %v1471 = vld [vmem:[%s4 + $0x1a0] sm:$0xff]
      %v1472 = vld [vmem:[%s4 + $0x1a8] sm:$0xff]
      %v1473 = vld [vmem:[%s4 + $0x1b0] sm:$0xff]
      %v1474 = vld [vmem:[%s4 + $0x1b8] sm:$0xff]
      %v1475 = vld [vmem:[%s4 + $0x1c0] sm:$0xff]
      %v1476 = vld [vmem:[%s4 + $0x1c8] sm:$0xff]
      %v1477 = vld [vmem:[%s4 + $0x1d0] sm:$0xff]
      %v1478 = vld [vmem:[%s4 + $0x1d8] sm:$0xff]
      %v1479 = vld [vmem:[%s4 + $0x1e0] sm:$0xff]
      %v1480 = vld [vmem:[%s4 + $0x1e8] sm:$0xff]
      %v1481 = vld [vmem:[%s4 + $0x1f0] sm:$0xff]
      %v1482 = vld [vmem:[%s4 + $0x1f8] sm:$0xff]
      %1483 = vmatprep.subr.mxu0 %v1420
      %1484 = vmatpush1.msra.mxu0 %v1419
      %1485 = vmatprep.subr.mxu0 %v1424
      %1486 = vmatpush1.msra.mxu0 %v1423
      %1487 = vmatprep.subr.mxu0 %v1428
      %1488 = vmatpush1.msra.mxu0 %v1427
      %1489 = vmatprep.subr.mxu0 %v1432
      %1490 = vmatpush1.msra.mxu0 %v1431
      %1491 = vmatprep.subr.mxu0 %v1436
      %1492 = vmatpush1.msra.mxu0 %v1435
      %1493 = vmatprep.subr.mxu0 %v1440
      %1494 = vmatpush1.msra.mxu0 %v1439
      %1495 = vmatprep.subr.mxu0 %v1444
      %1496 = vmatpush1.msra.mxu0 %v1443
      %1497 = vmatprep.subr.mxu0 %v1448
      %1498 = vmatpush1.msra.mxu0 %v1447
      %1499 = vmatprep.subr.mxu0 %v1452
      %1500 = vmatpush1.msra.mxu0 %v1451
      %1501 = vmatprep.subr.mxu0 %v1456
      %1502 = vmatpush1.msra.mxu0 %v1455
      %1503 = vmatprep.subr.mxu0 %v1460
      %1504 = vmatpush1.msra.mxu0 %v1459
      %1505 = vmatprep.subr.mxu0 %v1464
      %1506 = vmatpush1.msra.mxu0 %v1463
      %1507 = vmatprep.subr.mxu0 %v1468
      %1508 = vmatpush1.msra.mxu0 %v1467
      %1509 = vmatprep.subr.mxu0 %v1472
      %1510 = vmatpush1.msra.mxu0 %v1471
      %1511 = vmatprep.subr.mxu0 %v1476
      %1512 = vmatpush1.msra.mxu0 %v1475
      %1513 = vmatprep.subr.mxu0 %v1480
      %1514 = vmatpush1.msra.mxu0 %v1479
      %1515 = vmatprep.subr.mxu0 0.0
      %1516 = vmatpush1.msra.mxu0 0.0
      %1517 = vmatprep.subr.mxu0 0.0
      %1518 = vmatpush1.msra.mxu0 0.0
      %1519 = vmatprep.subr.mxu0 0.0
      %1520 = vmatpush1.msra.mxu0 0.0
      %1521 = vmatprep.subr.mxu0 0.0
      %1522 = vmatpush1.msra.mxu0 0.0
      %1523 = vmatprep.subr.mxu0 0.0
      %1524 = vmatpush1.msra.mxu0 0.0
      %1525 = vmatprep.subr.mxu0 0.0
      %1526 = vmatpush1.msra.mxu0 0.0
      %1527 = vmatprep.subr.mxu0 0.0
      %1528 = vmatpush1.msra.mxu0 0.0
      %1529 = vmatprep.subr.mxu0 0.0
      %1530 = vmatpush1.msra.mxu0 0.0
      %1531 = vmatprep.subr.mxu0 0.0
      %1532 = vmatpush1.msra.mxu0 0.0
      %1533 = vmatprep.subr.mxu0 0.0
      %1534 = vmatpush1.msra.mxu0 0.0
      %1535 = vmatprep.subr.mxu0 0.0
      %1536 = vmatpush1.msra.mxu0 0.0
      %1537 = vmatprep.subr.mxu0 0.0
      %1538 = vmatpush1.msra.mxu0 0.0
      %1539 = vmatprep.subr.mxu0 0.0
      %1540 = vmatpush1.msra.mxu0 0.0
      %1541 = vmatprep.subr.mxu0 0.0
      %1542 = vmatpush1.msra.mxu0 0.0
      %1543 = vmatprep.subr.mxu0 0.0
      %1544 = vmatpush1.msra.mxu0 0.0
      %1545 = vmatprep.subr.mxu0 0.0
      %1546 = vmatpush1.msra.mxu0 0.0
      %1547 = vmatprep.mubr.f32.mxu0 0.0
      %1548 = vmatmul.mubr.f32.gmra.mrb[0].mxu0 %v1417
      %v1549 = vpop.f32.mrb[0].mxu0
      %v1550 = vadd.f32 0.0, %v1549
      %v1551 = vpop.f32.mrb[0].mxu0
      %v1552 = vadd.f32 0.0, %v1551
      %1553 = vdwg.mxu0
      %1554 = vmatprep.subr.mxu0 %v1422
      %1555 = vmatpush1.msra.mxu0 %v1421
      %1556 = vmatprep.subr.mxu0 %v1426
      %1557 = vmatpush1.msra.mxu0 %v1425
      %1558 = vmatprep.subr.mxu0 %v1430
      %1559 = vmatpush1.msra.mxu0 %v1429
      %1560 = vmatprep.subr.mxu0 %v1434
      %1561 = vmatpush1.msra.mxu0 %v1433
      %1562 = vmatprep.subr.mxu0 %v1438
      %1563 = vmatpush1.msra.mxu0 %v1437
      %1564 = vmatprep.subr.mxu0 %v1442
      %1565 = vmatpush1.msra.mxu0 %v1441
      %1566 = vmatprep.subr.mxu0 %v1446
      %1567 = vmatpush1.msra.mxu0 %v1445
      %1568 = vmatprep.subr.mxu0 %v1450
      %1569 = vmatpush1.msra.mxu0 %v1449
      %1570 = vmatprep.subr.mxu0 %v1454
      %1571 = vmatpush1.msra.mxu0 %v1453
      %1572 = vmatprep.subr.mxu0 %v1458
      %1573 = vmatpush1.msra.mxu0 %v1457
      %1574 = vmatprep.subr.mxu0 %v1462
      %1575 = vmatpush1.msra.mxu0 %v1461
      %1576 = vmatprep.subr.mxu0 %v1466
      %1577 = vmatpush1.msra.mxu0 %v1465
      %1578 = vmatprep.subr.mxu0 %v1470
      %1579 = vmatpush1.msra.mxu0 %v1469
      %1580 = vmatprep.subr.mxu0 %v1474
      %1581 = vmatpush1.msra.mxu0 %v1473
      %1582 = vmatprep.subr.mxu0 %v1478
      %1583 = vmatpush1.msra.mxu0 %v1477
      %1584 = vmatprep.subr.mxu0 %v1482
      %1585 = vmatpush1.msra.mxu0 %v1481
      %1586 = vmatprep.subr.mxu0 0.0
      %1587 = vmatpush1.msra.mxu0 0.0
      %1588 = vmatprep.subr.mxu0 0.0
      %1589 = vmatpush1.msra.mxu0 0.0
      %1590 = vmatprep.subr.mxu0 0.0
      %1591 = vmatpush1.msra.mxu0 0.0
      %1592 = vmatprep.subr.mxu0 0.0
      %1593 = vmatpush1.msra.mxu0 0.0
      %1594 = vmatprep.subr.mxu0 0.0
      %1595 = vmatpush1.msra.mxu0 0.0
      %1596 = vmatprep.subr.mxu0 0.0
      %1597 = vmatpush1.msra.mxu0 0.0
      %1598 = vmatprep.subr.mxu0 0.0
      %1599 = vmatpush1.msra.mxu0 0.0
      %1600 = vmatprep.subr.mxu0 0.0
      %1601 = vmatpush1.msra.mxu0 0.0
      %1602 = vmatprep.subr.mxu0 0.0
      %1603 = vmatpush1.msra.mxu0 0.0
      %1604 = vmatprep.subr.mxu0 0.0
      %1605 = vmatpush1.msra.mxu0 0.0
      %1606 = vmatprep.subr.mxu0 0.0
      %1607 = vmatpush1.msra.mxu0 0.0
      %1608 = vmatprep.subr.mxu0 0.0
      %1609 = vmatpush1.msra.mxu0 0.0
      %1610 = vmatprep.subr.mxu0 0.0
      %1611 = vmatpush1.msra.mxu0 0.0
      %1612 = vmatprep.subr.mxu0 0.0
      %1613 = vmatpush1.msra.mxu0 0.0
      %1614 = vmatprep.subr.mxu0 0.0
      %1615 = vmatpush1.msra.mxu0 0.0
      %1616 = vmatprep.subr.mxu0 0.0
      %1617 = vmatpush1.msra.mxu0 0.0
      %1618 = vmatprep.mubr.f32.mxu0 0.0
      %1619 = vmatmul.mubr.f32.gmra.mrb[0].mxu0 %v1417
      %v1620 = vpop.f32.mrb[0].mxu0
      %v1621 = vadd.f32 0.0, %v1620
      %v1622 = vpop.f32.mrb[0].mxu0
      %v1623 = vadd.f32 0.0, %v1622
      %1624 = vdwg.mxu0
      %v1625 = vadd.f32 %v1413, %v1550
      %v1626 = vadd.f32 %v1414, %v1552
      %v1627 = vadd.f32 %v1415, %v1621
      %v1628 = vadd.f32 %v1416, %v1623
      %v1629 = vxor.u32 %v1625, 2147483648
      %v1630 = vmul.f32 %v1629, 1.442695
      %v1631 = vpow.pop %v1630
      %v1632 = vadd.f32 %v1631, 1.0
      %v1633 = vrcp.pop %v1632
      %v1634 = vmul.f32 1.0, %v1633
      %v1635 = vxor.u32 %v1626, 2147483648
      %v1636 = vmul.f32 %v1635, 1.442695
      %v1637 = vpow.pop %v1636
      %v1638 = vadd.f32 %v1637, 1.0
      %v1639 = vrcp.pop %v1638
      %v1640 = vmul.f32 1.0, %v1639
      %v1641 = vtanh.pop %v1627
      %v1642 = vxor.u32 %v1628, 2147483648
      %v1643 = vmul.f32 %v1642, 1.442695
      %v1644 = vpow.pop %v1643
      %v1645 = vadd.f32 %v1644, 1.0
      %v1646 = vrcp.pop %v1645
      %v1647 = vmul.f32 1.0, %v1646
      %v1648 = vmul.f32 %v1640, %v1418
      %v1649 = vmul.f32 %v1634, %v1641
      %v1650 = vadd.f32 %v1648, %v1649
      %v1651 = vtanh.pop %v1650
      %v1652 = vmul.f32 %v1647, %v1651
      %1653 = vst [vmem:[#allocation2] sm:$0xff] %v1652
      %1654 = vst [vmem:[#allocation3] sm:$0xff] %v1650
      %s1655 = scalar_lea.vmem %s363, 16
      %v1656 = vld [vmem:[%s1655] sm:$0xff]
      %1658 = vset.pattern.permute.xlu0 0
      %1659 = vperm.xlu0 %1658, %v1656
      %v1660 = vpop.permute.xlu0 %1659
      %v1662 = vmul.f32 %v1652, %v1660
      %s1663 = scalar_lea.vmem %s377, 16
      %1664 = vst [vmem:[%s1663] sm:$0xff] %v1662
      %s1665 = scalar_lea.vmem %s356, 160
      %v1666 = vld [vmem:[%s1665] sm:$0xff]
      %v1667 = vld [vmem:[%s1665 + $0x8] sm:$0xff]
      %v1668 = vld [vmem:[%s1665 + $0x10] sm:$0xff]
      %v1669 = vld [vmem:[%s1665 + $0x18] sm:$0xff]
      %v1670 = vld [vmem:[#allocation4] sm:$0xff]
      %v1671 = vld [vmem:[#allocation5] sm:$0xff]
      %v1672 = vld [vmem:[%s5] sm:$0xff]
      %v1673 = vld [vmem:[%s5 + $0x8] sm:$0xff]
      %v1674 = vld [vmem:[%s5 + $0x10] sm:$0xff]
      %v1675 = vld [vmem:[%s5 + $0x18] sm:$0xff]
      %v1676 = vld [vmem:[%s5 + $0x20] sm:$0xff]
      %v1677 = vld [vmem:[%s5 + $0x28] sm:$0xff]
      %v1678 = vld [vmem:[%s5 + $0x30] sm:$0xff]
      %v1679 = vld [vmem:[%s5 + $0x38] sm:$0xff]
      %v1680 = vld [vmem:[%s5 + $0x40] sm:$0xff]
      %v1681 = vld [vmem:[%s5 + $0x48] sm:$0xff]
      %v1682 = vld [vmem:[%s5 + $0x50] sm:$0xff]
      %v1683 = vld [vmem:[%s5 + $0x58] sm:$0xff]
      %v1684 = vld [vmem:[%s5 + $0x60] sm:$0xff]
      %v1685 = vld [vmem:[%s5 + $0x68] sm:$0xff]
      %v1686 = vld [vmem:[%s5 + $0x70] sm:$0xff]
      %v1687 = vld [vmem:[%s5 + $0x78] sm:$0xff]
      %v1688 = vld [vmem:[%s5 + $0x80] sm:$0xff]
      %v1689 = vld [vmem:[%s5 + $0x88] sm:$0xff]
      %v1690 = vld [vmem:[%s5 + $0x90] sm:$0xff]
      %v1691 = vld [vmem:[%s5 + $0x98] sm:$0xff]
      %v1692 = vld [vmem:[%s5 + $0xa0] sm:$0xff]
      %v1693 = vld [vmem:[%s5 + $0xa8] sm:$0xff]
      %v1694 = vld [vmem:[%s5 + $0xb0] sm:$0xff]
      %v1695 = vld [vmem:[%s5 + $0xb8] sm:$0xff]
      %v1696 = vld [vmem:[%s5 + $0xc0] sm:$0xff]
      %v1697 = vld [vmem:[%s5 + $0xc8] sm:$0xff]
      %v1698 = vld [vmem:[%s5 + $0xd0] sm:$0xff]
      %v1699 = vld [vmem:[%s5 + $0xd8] sm:$0xff]
      %v1700 = vld [vmem:[%s5 + $0xe0] sm:$0xff]
      %v1701 = vld [vmem:[%s5 + $0xe8] sm:$0xff]
      %v1702 = vld [vmem:[%s5 + $0xf0] sm:$0xff]
      %v1703 = vld [vmem:[%s5 + $0xf8] sm:$0xff]
      %v1704 = vld [vmem:[%s5 + $0x100] sm:$0xff]
      %v1705 = vld [vmem:[%s5 + $0x108] sm:$0xff]
      %v1706 = vld [vmem:[%s5 + $0x110] sm:$0xff]
      %v1707 = vld [vmem:[%s5 + $0x118] sm:$0xff]
      %v1708 = vld [vmem:[%s5 + $0x120] sm:$0xff]
      %v1709 = vld [vmem:[%s5 + $0x128] sm:$0xff]
      %v1710 = vld [vmem:[%s5 + $0x130] sm:$0xff]
      %v1711 = vld [vmem:[%s5 + $0x138] sm:$0xff]
      %v1712 = vld [vmem:[%s5 + $0x140] sm:$0xff]
      %v1713 = vld [vmem:[%s5 + $0x148] sm:$0xff]
      %v1714 = vld [vmem:[%s5 + $0x150] sm:$0xff]
      %v1715 = vld [vmem:[%s5 + $0x158] sm:$0xff]
      %v1716 = vld [vmem:[%s5 + $0x160] sm:$0xff]
      %v1717 = vld [vmem:[%s5 + $0x168] sm:$0xff]
      %v1718 = vld [vmem:[%s5 + $0x170] sm:$0xff]
      %v1719 = vld [vmem:[%s5 + $0x178] sm:$0xff]
      %v1720 = vld [vmem:[%s5 + $0x180] sm:$0xff]
      %v1721 = vld [vmem:[%s5 + $0x188] sm:$0xff]
      %v1722 = vld [vmem:[%s5 + $0x190] sm:$0xff]
      %v1723 = vld [vmem:[%s5 + $0x198] sm:$0xff]
      %v1724 = vld [vmem:[%s5 + $0x1a0] sm:$0xff]
      %v1725 = vld [vmem:[%s5 + $0x1a8] sm:$0xff]
      %v1726 = vld [vmem:[%s5 + $0x1b0] sm:$0xff]
      %v1727 = vld [vmem:[%s5 + $0x1b8] sm:$0xff]
      %v1728 = vld [vmem:[%s5 + $0x1c0] sm:$0xff]
      %v1729 = vld [vmem:[%s5 + $0x1c8] sm:$0xff]
      %v1730 = vld [vmem:[%s5 + $0x1d0] sm:$0xff]
      %v1731 = vld [vmem:[%s5 + $0x1d8] sm:$0xff]
      %v1732 = vld [vmem:[%s5 + $0x1e0] sm:$0xff]
      %v1733 = vld [vmem:[%s5 + $0x1e8] sm:$0xff]
      %v1734 = vld [vmem:[%s5 + $0x1f0] sm:$0xff]
      %v1735 = vld [vmem:[%s5 + $0x1f8] sm:$0xff]
      %1736 = vmatprep.subr.mxu0 %v1673
      %1737 = vmatpush1.msra.mxu0 %v1672
      %1738 = vmatprep.subr.mxu0 %v1677
      %1739 = vmatpush1.msra.mxu0 %v1676
      %1740 = vmatprep.subr.mxu0 %v1681
      %1741 = vmatpush1.msra.mxu0 %v1680
      %1742 = vmatprep.subr.mxu0 %v1685
      %1743 = vmatpush1.msra.mxu0 %v1684
      %1744 = vmatprep.subr.mxu0 %v1689
      %1745 = vmatpush1.msra.mxu0 %v1688
      %1746 = vmatprep.subr.mxu0 %v1693
      %1747 = vmatpush1.msra.mxu0 %v1692
      %1748 = vmatprep.subr.mxu0 %v1697
      %1749 = vmatpush1.msra.mxu0 %v1696
      %1750 = vmatprep.subr.mxu0 %v1701
      %1751 = vmatpush1.msra.mxu0 %v1700
      %1752 = vmatprep.subr.mxu0 %v1705
      %1753 = vmatpush1.msra.mxu0 %v1704
      %1754 = vmatprep.subr.mxu0 %v1709
      %1755 = vmatpush1.msra.mxu0 %v1708
      %1756 = vmatprep.subr.mxu0 %v1713
      %1757 = vmatpush1.msra.mxu0 %v1712
      %1758 = vmatprep.subr.mxu0 %v1717
      %1759 = vmatpush1.msra.mxu0 %v1716
      %1760 = vmatprep.subr.mxu0 %v1721
      %1761 = vmatpush1.msra.mxu0 %v1720
      %1762 = vmatprep.subr.mxu0 %v1725
      %1763 = vmatpush1.msra.mxu0 %v1724
      %1764 = vmatprep.subr.mxu0 %v1729
      %1765 = vmatpush1.msra.mxu0 %v1728
      %1766 = vmatprep.subr.mxu0 %v1733
      %1767 = vmatpush1.msra.mxu0 %v1732
      %1768 = vmatprep.subr.mxu0 0.0
      %1769 = vmatpush1.msra.mxu0 0.0
      %1770 = vmatprep.subr.mxu0 0.0
      %1771 = vmatpush1.msra.mxu0 0.0
      %1772 = vmatprep.subr.mxu0 0.0
      %1773 = vmatpush1.msra.mxu0 0.0
      %1774 = vmatprep.subr.mxu0 0.0
      %1775 = vmatpush1.msra.mxu0 0.0
      %1776 = vmatprep.subr.mxu0 0.0
      %1777 = vmatpush1.msra.mxu0 0.0
      %1778 = vmatprep.subr.mxu0 0.0
      %1779 = vmatpush1.msra.mxu0 0.0
      %1780 = vmatprep.subr.mxu0 0.0
      %1781 = vmatpush1.msra.mxu0 0.0
      %1782 = vmatprep.subr.mxu0 0.0
      %1783 = vmatpush1.msra.mxu0 0.0
      %1784 = vmatprep.subr.mxu0 0.0
      %1785 = vmatpush1.msra.mxu0 0.0
      %1786 = vmatprep.subr.mxu0 0.0
      %1787 = vmatpush1.msra.mxu0 0.0
      %1788 = vmatprep.subr.mxu0 0.0
      %1789 = vmatpush1.msra.mxu0 0.0
      %1790 = vmatprep.subr.mxu0 0.0
      %1791 = vmatpush1.msra.mxu0 0.0
      %1792 = vmatprep.subr.mxu0 0.0
      %1793 = vmatpush1.msra.mxu0 0.0
      %1794 = vmatprep.subr.mxu0 0.0
      %1795 = vmatpush1.msra.mxu0 0.0
      %1796 = vmatprep.subr.mxu0 0.0
      %1797 = vmatpush1.msra.mxu0 0.0
      %1798 = vmatprep.subr.mxu0 0.0
      %1799 = vmatpush1.msra.mxu0 0.0
      %1800 = vmatprep.mubr.f32.mxu0 0.0
      %1801 = vmatmul.mubr.f32.gmra.mrb[0].mxu0 %v1670
      %v1802 = vpop.f32.mrb[0].mxu0
      %v1803 = vadd.f32 0.0, %v1802
      %v1804 = vpop.f32.mrb[0].mxu0
      %v1805 = vadd.f32 0.0, %v1804
      %1806 = vdwg.mxu0
      %1807 = vmatprep.subr.mxu0 %v1675
      %1808 = vmatpush1.msra.mxu0 %v1674
      %1809 = vmatprep.subr.mxu0 %v1679
      %1810 = vmatpush1.msra.mxu0 %v1678
      %1811 = vmatprep.subr.mxu0 %v1683
      %1812 = vmatpush1.msra.mxu0 %v1682
      %1813 = vmatprep.subr.mxu0 %v1687
      %1814 = vmatpush1.msra.mxu0 %v1686
      %1815 = vmatprep.subr.mxu0 %v1691
      %1816 = vmatpush1.msra.mxu0 %v1690
      %1817 = vmatprep.subr.mxu0 %v1695
      %1818 = vmatpush1.msra.mxu0 %v1694
      %1819 = vmatprep.subr.mxu0 %v1699
      %1820 = vmatpush1.msra.mxu0 %v1698
      %1821 = vmatprep.subr.mxu0 %v1703
      %1822 = vmatpush1.msra.mxu0 %v1702
      %1823 = vmatprep.subr.mxu0 %v1707
      %1824 = vmatpush1.msra.mxu0 %v1706
      %1825 = vmatprep.subr.mxu0 %v1711
      %1826 = vmatpush1.msra.mxu0 %v1710
      %1827 = vmatprep.subr.mxu0 %v1715
      %1828 = vmatpush1.msra.mxu0 %v1714
      %1829 = vmatprep.subr.mxu0 %v1719
      %1830 = vmatpush1.msra.mxu0 %v1718
      %1831 = vmatprep.subr.mxu0 %v1723
      %1832 = vmatpush1.msra.mxu0 %v1722
      %1833 = vmatprep.subr.mxu0 %v1727
      %1834 = vmatpush1.msra.mxu0 %v1726
      %1835 = vmatprep.subr.mxu0 %v1731
      %1836 = vmatpush1.msra.mxu0 %v1730
      %1837 = vmatprep.subr.mxu0 %v1735
      %1838 = vmatpush1.msra.mxu0 %v1734
      %1839 = vmatprep.subr.mxu0 0.0
      %1840 = vmatpush1.msra.mxu0 0.0
      %1841 = vmatprep.subr.mxu0 0.0
      %1842 = vmatpush1.msra.mxu0 0.0
      %1843 = vmatprep.subr.mxu0 0.0
      %1844 = vmatpush1.msra.mxu0 0.0
      %1845 = vmatprep.subr.mxu0 0.0
      %1846 = vmatpush1.msra.mxu0 0.0
      %1847 = vmatprep.subr.mxu0 0.0
      %1848 = vmatpush1.msra.mxu0 0.0
      %1849 = vmatprep.subr.mxu0 0.0
      %1850 = vmatpush1.msra.mxu0 0.0
      %1851 = vmatprep.subr.mxu0 0.0
      %1852 = vmatpush1.msra.mxu0 0.0
      %1853 = vmatprep.subr.mxu0 0.0
      %1854 = vmatpush1.msra.mxu0 0.0
      %1855 = vmatprep.subr.mxu0 0.0
      %1856 = vmatpush1.msra.mxu0 0.0
      %1857 = vmatprep.subr.mxu0 0.0
      %1858 = vmatpush1.msra.mxu0 0.0
      %1859 = vmatprep.subr.mxu0 0.0
      %1860 = vmatpush1.msra.mxu0 0.0
      %1861 = vmatprep.subr.mxu0 0.0
      %1862 = vmatpush1.msra.mxu0 0.0
      %1863 = vmatprep.subr.mxu0 0.0
      %1864 = vmatpush1.msra.mxu0 0.0
      %1865 = vmatprep.subr.mxu0 0.0
      %1866 = vmatpush1.msra.mxu0 0.0
      %1867 = vmatprep.subr.mxu0 0.0
      %1868 = vmatpush1.msra.mxu0 0.0
      %1869 = vmatprep.subr.mxu0 0.0
      %1870 = vmatpush1.msra.mxu0 0.0
      %1871 = vmatprep.mubr.f32.mxu0 0.0
      %1872 = vmatmul.mubr.f32.gmra.mrb[0].mxu0 %v1670
      %v1873 = vpop.f32.mrb[0].mxu0
      %v1874 = vadd.f32 0.0, %v1873
      %v1875 = vpop.f32.mrb[0].mxu0
      %v1876 = vadd.f32 0.0, %v1875
      %1877 = vdwg.mxu0
      %v1878 = vadd.f32 %v1666, %v1803
      %v1879 = vadd.f32 %v1667, %v1805
      %v1880 = vadd.f32 %v1668, %v1874
      %v1881 = vadd.f32 %v1669, %v1876
      %v1882 = vxor.u32 %v1878, 2147483648
      %v1883 = vmul.f32 %v1882, 1.442695
      %v1884 = vpow.pop %v1883
      %v1885 = vadd.f32 %v1884, 1.0
      %v1886 = vrcp.pop %v1885
      %v1887 = vmul.f32 1.0, %v1886
      %v1888 = vxor.u32 %v1879, 2147483648
      %v1889 = vmul.f32 %v1888, 1.442695
      %v1890 = vpow.pop %v1889
      %v1891 = vadd.f32 %v1890, 1.0
      %v1892 = vrcp.pop %v1891
      %v1893 = vmul.f32 1.0, %v1892
      %v1894 = vtanh.pop %v1880
      %v1895 = vxor.u32 %v1881, 2147483648
      %v1896 = vmul.f32 %v1895, 1.442695
      %v1897 = vpow.pop %v1896
      %v1898 = vadd.f32 %v1897, 1.0
      %v1899 = vrcp.pop %v1898
      %v1900 = vmul.f32 1.0, %v1899
      %v1901 = vmul.f32 %v1893, %v1671
      %v1902 = vmul.f32 %v1887, %v1894
      %v1903 = vadd.f32 %v1901, %v1902
      %v1904 = vtanh.pop %v1903
      %v1905 = vmul.f32 %v1900, %v1904
      %s1906 = scalar_lea.vmem %s370, 40
      %v1907 = vld [vmem:[%s1906] sm:$0xff]
      %vm1908 = vcmp.gt.f32.partialorder %v1907, 0.0
      %v1909 = vsel %vm1908, 1, 0
      %1910 = vset.pattern.permute.xlu0 0
      %1911 = vperm.xlu0 %1910, %v1909
      %v1912 = vpop.permute.xlu0 %1911
      %vm1913 = vcmp.eq.s32.totalorder %v1912, 1
      %v1914 = vsel %vm1913, %v1905, %v1670
      %1915 = vst [vmem:[#allocation4] sm:$0xff] %v1914
      %v1916 = vld [vmem:[#allocation5] sm:$0xff]
      %v1917 = vsel %vm1913, %v1903, %v1916
      %1918 = vst [vmem:[#allocation5] sm:$0xff] %v1917
      %v1919 = vld [vmem:[#allocation4] sm:$0xff]
      %s1920 = scalar_lea.vmem %s384, 40
      %1921 = vst [vmem:[%s1920] sm:$0xff] %v1919
      %s1922 = scalar_lea.vmem %s348, 96
      %v1923 = vld [vmem:[%s1922] sm:$0xff]
      %v1924 = vld [vmem:[%s1922 + $0x8] sm:$0xff]
      %v1925 = vld [vmem:[%s1922 + $0x10] sm:$0xff]
      %v1926 = vld [vmem:[%s1922 + $0x18] sm:$0xff]
      %v1927 = vld [vmem:[#allocation2] sm:$0xff]
      %v1928 = vld [vmem:[#allocation3] sm:$0xff]
      %v1929 = vld [vmem:[%s4] sm:$0xff]
      %v1930 = vld [vmem:[%s4 + $0x8] sm:$0xff]
      %v1931 = vld [vmem:[%s4 + $0x10] sm:$0xff]
      %v1932 = vld [vmem:[%s4 + $0x18] sm:$0xff]
      %v1933 = vld [vmem:[%s4 + $0x20] sm:$0xff]
      %v1934 = vld [vmem:[%s4 + $0x28] sm:$0xff]
      %v1935 = vld [vmem:[%s4 + $0x30] sm:$0xff]
      %v1936 = vld [vmem:[%s4 + $0x38] sm:$0xff]
      %v1937 = vld [vmem:[%s4 + $0x40] sm:$0xff]
      %v1938 = vld [vmem:[%s4 + $0x48] sm:$0xff]
      %v1939 = vld [vmem:[%s4 + $0x50] sm:$0xff]
      %v1940 = vld [vmem:[%s4 + $0x58] sm:$0xff]
      %v1941 = vld [vmem:[%s4 + $0x60] sm:$0xff]
      %v1942 = vld [vmem:[%s4 + $0x68] sm:$0xff]
      %v1943 = vld [vmem:[%s4 + $0x70] sm:$0xff]
      %v1944 = vld [vmem:[%s4 + $0x78] sm:$0xff]
      %v1945 = vld [vmem:[%s4 + $0x80] sm:$0xff]
      %v1946 = vld [vmem:[%s4 + $0x88] sm:$0xff]
      %v1947 = vld [vmem:[%s4 + $0x90] sm:$0xff]
      %v1948 = vld [vmem:[%s4 + $0x98] sm:$0xff]
      %v1949 = vld [vmem:[%s4 + $0xa0] sm:$0xff]
      %v1950 = vld [vmem:[%s4 + $0xa8] sm:$0xff]
      %v1951 = vld [vmem:[%s4 + $0xb0] sm:$0xff]
      %v1952 = vld [vmem:[%s4 + $0xb8] sm:$0xff]
      %v1953 = vld [vmem:[%s4 + $0xc0] sm:$0xff]
      %v1954 = vld [vmem:[%s4 + $0xc8] sm:$0xff]
      %v1955 = vld [vmem:[%s4 + $0xd0] sm:$0xff]
      %v1956 = vld [vmem:[%s4 + $0xd8] sm:$0xff]
      %v1957 = vld [vmem:[%s4 + $0xe0] sm:$0xff]
      %v1958 = vld [vmem:[%s4 + $0xe8] sm:$0xff]
      %v1959 = vld [vmem:[%s4 + $0xf0] sm:$0xff]
      %v1960 = vld [vmem:[%s4 + $0xf8] sm:$0xff]
      %v1961 = vld [vmem:[%s4 + $0x100] sm:$0xff]
      %v1962 = vld [vmem:[%s4 + $0x108] sm:$0xff]
      %v1963 = vld [vmem:[%s4 + $0x110] sm:$0xff]
      %v1964 = vld [vmem:[%s4 + $0x118] sm:$0xff]
      %v1965 = vld [vmem:[%s4 + $0x120] sm:$0xff]
      %v1966 = vld [vmem:[%s4 + $0x128] sm:$0xff]
      %v1967 = vld [vmem:[%s4 + $0x130] sm:$0xff]
      %v1968 = vld [vmem:[%s4 + $0x138] sm:$0xff]
      %v1969 = vld [vmem:[%s4 + $0x140] sm:$0xff]
      %v1970 = vld [vmem:[%s4 + $0x148] sm:$0xff]
      %v1971 = vld [vmem:[%s4 + $0x150] sm:$0xff]
      %v1972 = vld [vmem:[%s4 + $0x158] sm:$0xff]
      %v1973 = vld [vmem:[%s4 + $0x160] sm:$0xff]
      %v1974 = vld [vmem:[%s4 + $0x168] sm:$0xff]
      %v1975 = vld [vmem:[%s4 + $0x170] sm:$0xff]
      %v1976 = vld [vmem:[%s4 + $0x178] sm:$0xff]
      %v1977 = vld [vmem:[%s4 + $0x180] sm:$0xff]
      %v1978 = vld [vmem:[%s4 + $0x188] sm:$0xff]
      %v1979 = vld [vmem:[%s4 + $0x190] sm:$0xff]
      %v1980 = vld [vmem:[%s4 + $0x198] sm:$0xff]
      %v1981 = vld [vmem:[%s4 + $0x1a0] sm:$0xff]
      %v1982 = vld [vmem:[%s4 + $0x1a8] sm:$0xff]
      %v1983 = vld [vmem:[%s4 + $0x1b0] sm:$0xff]
      %v1984 = vld [vmem:[%s4 + $0x1b8] sm:$0xff]
      %v1985 = vld [vmem:[%s4 + $0x1c0] sm:$0xff]
      %v1986 = vld [vmem:[%s4 + $0x1c8] sm:$0xff]
      %v1987 = vld [vmem:[%s4 + $0x1d0] sm:$0xff]
      %v1988 = vld [vmem:[%s4 + $0x1d8] sm:$0xff]
      %v1989 = vld [vmem:[%s4 + $0x1e0] sm:$0xff]
      %v1990 = vld [vmem:[%s4 + $0x1e8] sm:$0xff]
      %v1991 = vld [vmem:[%s4 + $0x1f0] sm:$0xff]
      %v1992 = vld [vmem:[%s4 + $0x1f8] sm:$0xff]
      %1993 = vmatprep.subr.mxu0 %v1930
      %1994 = vmatpush1.msra.mxu0 %v1929
      %1995 = vmatprep.subr.mxu0 %v1934
      %1996 = vmatpush1.msra.mxu0 %v1933
      %1997 = vmatprep.subr.mxu0 %v1938
      %1998 = vmatpush1.msra.mxu0 %v1937
      %1999 = vmatprep.subr.mxu0 %v1942
      %2000 = vmatpush1.msra.mxu0 %v1941
      %2001 = vmatprep.subr.mxu0 %v1946
      %2002 = vmatpush1.msra.mxu0 %v1945
      %2003 = vmatprep.subr.mxu0 %v1950
      %2004 = vmatpush1.msra.mxu0 %v1949
      %2005 = vmatprep.subr.mxu0 %v1954
      %2006 = vmatpush1.msra.mxu0 %v1953
      %2007 = vmatprep.subr.mxu0 %v1958
      %2008 = vmatpush1.msra.mxu0 %v1957
      %2009 = vmatprep.subr.mxu0 %v1962
      %2010 = vmatpush1.msra.mxu0 %v1961
      %2011 = vmatprep.subr.mxu0 %v1966
      %2012 = vmatpush1.msra.mxu0 %v1965
      %2013 = vmatprep.subr.mxu0 %v1970
      %2014 = vmatpush1.msra.mxu0 %v1969
      %2015 = vmatprep.subr.mxu0 %v1974
      %2016 = vmatpush1.msra.mxu0 %v1973
      %2017 = vmatprep.subr.mxu0 %v1978
      %2018 = vmatpush1.msra.mxu0 %v1977
      %2019 = vmatprep.subr.mxu0 %v1982
      %2020 = vmatpush1.msra.mxu0 %v1981
      %2021 = vmatprep.subr.mxu0 %v1986
      %2022 = vmatpush1.msra.mxu0 %v1985
      %2023 = vmatprep.subr.mxu0 %v1990
      %2024 = vmatpush1.msra.mxu0 %v1989
      %2025 = vmatprep.subr.mxu0 0.0
      %2026 = vmatpush1.msra.mxu0 0.0
      %2027 = vmatprep.subr.mxu0 0.0
      %2028 = vmatpush1.msra.mxu0 0.0
      %2029 = vmatprep.subr.mxu0 0.0
      %2030 = vmatpush1.msra.mxu0 0.0
      %2031 = vmatprep.subr.mxu0 0.0
      %2032 = vmatpush1.msra.mxu0 0.0
      %2033 = vmatprep.subr.mxu0 0.0
      %2034 = vmatpush1.msra.mxu0 0.0
      %2035 = vmatprep.subr.mxu0 0.0
      %2036 = vmatpush1.msra.mxu0 0.0
      %2037 = vmatprep.subr.mxu0 0.0
      %2038 = vmatpush1.msra.mxu0 0.0
      %2039 = vmatprep.subr.mxu0 0.0
      %2040 = vmatpush1.msra.mxu0 0.0
      %2041 = vmatprep.subr.mxu0 0.0
      %2042 = vmatpush1.msra.mxu0 0.0
      %2043 = vmatprep.subr.mxu0 0.0
      %2044 = vmatpush1.msra.mxu0 0.0
      %2045 = vmatprep.subr.mxu0 0.0
      %2046 = vmatpush1.msra.mxu0 0.0
      %2047 = vmatprep.subr.mxu0 0.0
      %2048 = vmatpush1.msra.mxu0 0.0
      %2049 = vmatprep.subr.mxu0 0.0
      %2050 = vmatpush1.msra.mxu0 0.0
      %2051 = vmatprep.subr.mxu0 0.0
      %2052 = vmatpush1.msra.mxu0 0.0
      %2053 = vmatprep.subr.mxu0 0.0
      %2054 = vmatpush1.msra.mxu0 0.0
      %2055 = vmatprep.subr.mxu0 0.0
      %2056 = vmatpush1.msra.mxu0 0.0
      %2057 = vmatprep.mubr.f32.mxu0 0.0
      %2058 = vmatmul.mubr.f32.gmra.mrb[0].mxu0 %v1927
      %v2059 = vpop.f32.mrb[0].mxu0
      %v2060 = vadd.f32 0.0, %v2059
      %v2061 = vpop.f32.mrb[0].mxu0
      %v2062 = vadd.f32 0.0, %v2061
      %2063 = vdwg.mxu0
      %2064 = vmatprep.subr.mxu0 %v1932
      %2065 = vmatpush1.msra.mxu0 %v1931
      %2066 = vmatprep.subr.mxu0 %v1936
      %2067 = vmatpush1.msra.mxu0 %v1935
      %2068 = vmatprep.subr.mxu0 %v1940
      %2069 = vmatpush1.msra.mxu0 %v1939
      %2070 = vmatprep.subr.mxu0 %v1944
      %2071 = vmatpush1.msra.mxu0 %v1943
      %2072 = vmatprep.subr.mxu0 %v1948
      %2073 = vmatpush1.msra.mxu0 %v1947
      %2074 = vmatprep.subr.mxu0 %v1952
      %2075 = vmatpush1.msra.mxu0 %v1951
      %2076 = vmatprep.subr.mxu0 %v1956
      %2077 = vmatpush1.msra.mxu0 %v1955
      %2078 = vmatprep.subr.mxu0 %v1960
      %2079 = vmatpush1.msra.mxu0 %v1959
      %2080 = vmatprep.subr.mxu0 %v1964
      %2081 = vmatpush1.msra.mxu0 %v1963
      %2082 = vmatprep.subr.mxu0 %v1968
      %2083 = vmatpush1.msra.mxu0 %v1967
      %2084 = vmatprep.subr.mxu0 %v1972
      %2085 = vmatpush1.msra.mxu0 %v1971
      %2086 = vmatprep.subr.mxu0 %v1976
      %2087 = vmatpush1.msra.mxu0 %v1975
      %2088 = vmatprep.subr.mxu0 %v1980
      %2089 = vmatpush1.msra.mxu0 %v1979
      %2090 = vmatprep.subr.mxu0 %v1984
      %2091 = vmatpush1.msra.mxu0 %v1983
      %2092 = vmatprep.subr.mxu0 %v1988
      %2093 = vmatpush1.msra.mxu0 %v1987
      %2094 = vmatprep.subr.mxu0 %v1992
      %2095 = vmatpush1.msra.mxu0 %v1991
      %2096 = vmatprep.subr.mxu0 0.0
      %2097 = vmatpush1.msra.mxu0 0.0
      %2098 = vmatprep.subr.mxu0 0.0
      %2099 = vmatpush1.msra.mxu0 0.0
      %2100 = vmatprep.subr.mxu0 0.0
      %2101 = vmatpush1.msra.mxu0 0.0
      %2102 = vmatprep.subr.mxu0 0.0
      %2103 = vmatpush1.msra.mxu0 0.0
      %2104 = vmatprep.subr.mxu0 0.0
      %2105 = vmatpush1.msra.mxu0 0.0
      %2106 = vmatprep.subr.mxu0 0.0
      %2107 = vmatpush1.msra.mxu0 0.0
      %2108 = vmatprep.subr.mxu0 0.0
      %2109 = vmatpush1.msra.mxu0 0.0
      %2110 = vmatprep.subr.mxu0 0.0
      %2111 = vmatpush1.msra.mxu0 0.0
      %2112 = vmatprep.subr.mxu0 0.0
      %2113 = vmatpush1.msra.mxu0 0.0
      %2114 = vmatprep.subr.mxu0 0.0
      %2115 = vmatpush1.msra.mxu0 0.0
      %2116 = vmatprep.subr.mxu0 0.0
      %2117 = vmatpush1.msra.mxu0 0.0
      %2118 = vmatprep.subr.mxu0 0.0
      %2119 = vmatpush1.msra.mxu0 0.0
      %2120 = vmatprep.subr.mxu0 0.0
      %2121 = vmatpush1.msra.mxu0 0.0
      %2122 = vmatprep.subr.mxu0 0.0
      %2123 = vmatpush1.msra.mxu0 0.0
      %2124 = vmatprep.subr.mxu0 0.0
      %2125 = vmatpush1.msra.mxu0 0.0
      %2126 = vmatprep.subr.mxu0 0.0
      %2127 = vmatpush1.msra.mxu0 0.0
      %2128 = vmatprep.mubr.f32.mxu0 0.0
      %2129 = vmatmul.mubr.f32.gmra.mrb[0].mxu0 %v1927
      %v2130 = vpop.f32.mrb[0].mxu0
      %v2131 = vadd.f32 0.0, %v2130
      %v2132 = vpop.f32.mrb[0].mxu0
      %v2133 = vadd.f32 0.0, %v2132
      %2134 = vdwg.mxu0
      %v2135 = vadd.f32 %v1923, %v2060
      %v2136 = vadd.f32 %v1924, %v2062
      %v2137 = vadd.f32 %v1925, %v2131
      %v2138 = vadd.f32 %v1926, %v2133
      %v2139 = vxor.u32 %v2135, 2147483648
      %v2140 = vmul.f32 %v2139, 1.442695
      %v2141 = vpow.pop %v2140
      %v2142 = vadd.f32 %v2141, 1.0
      %v2143 = vrcp.pop %v2142
      %v2144 = vmul.f32 1.0, %v2143
      %v2145 = vxor.u32 %v2136, 2147483648
      %v2146 = vmul.f32 %v2145, 1.442695
      %v2147 = vpow.pop %v2146
      %v2148 = vadd.f32 %v2147, 1.0
      %v2149 = vrcp.pop %v2148
      %v2150 = vmul.f32 1.0, %v2149
      %v2151 = vtanh.pop %v2137
      %v2152 = vxor.u32 %v2138, 2147483648
      %v2153 = vmul.f32 %v2152, 1.442695
      %v2154 = vpow.pop %v2153
      %v2155 = vadd.f32 %v2154, 1.0
      %v2156 = vrcp.pop %v2155
      %v2157 = vmul.f32 1.0, %v2156
      %v2158 = vmul.f32 %v2150, %v1928
      %v2159 = vmul.f32 %v2144, %v2151
      %v2160 = vadd.f32 %v2158, %v2159
      %v2161 = vtanh.pop %v2160
      %v2162 = vmul.f32 %v2157, %v2161
      %2163 = vst [vmem:[#allocation2] sm:$0xff] %v2162
      %2164 = vst [vmem:[#allocation3] sm:$0xff] %v2160
      %s2165 = scalar_lea.vmem %s363, 24
      %v2166 = vld [vmem:[%s2165] sm:$0xff]
      %2168 = vset.pattern.permute.xlu0 0
      %2169 = vperm.xlu0 %2168, %v2166
      %v2170 = vpop.permute.xlu0 %2169
      %v2172 = vmul.f32 %v2162, %v2170
      %s2173 = scalar_lea.vmem %s377, 24
      %2174 = vst [vmem:[%s2173] sm:$0xff] %v2172
      %s2175 = scalar_lea.vmem %s356, 128
      %v2176 = vld [vmem:[%s2175] sm:$0xff]
      %v2177 = vld [vmem:[%s2175 + $0x8] sm:$0xff]
      %v2178 = vld [vmem:[%s2175 + $0x10] sm:$0xff]
      %v2179 = vld [vmem:[%s2175 + $0x18] sm:$0xff]
      %v2180 = vld [vmem:[#allocation4] sm:$0xff]
      %v2181 = vld [vmem:[#allocation5] sm:$0xff]
      %v2182 = vld [vmem:[%s5] sm:$0xff]
      %v2183 = vld [vmem:[%s5 + $0x8] sm:$0xff]
      %v2184 = vld [vmem:[%s5 + $0x10] sm:$0xff]
      %v2185 = vld [vmem:[%s5 + $0x18] sm:$0xff]
      %v2186 = vld [vmem:[%s5 + $0x20] sm:$0xff]
      %v2187 = vld [vmem:[%s5 + $0x28] sm:$0xff]
      %v2188 = vld [vmem:[%s5 + $0x30] sm:$0xff]
      %v2189 = vld [vmem:[%s5 + $0x38] sm:$0xff]
      %v2190 = vld [vmem:[%s5 + $0x40] sm:$0xff]
      %v2191 = vld [vmem:[%s5 + $0x48] sm:$0xff]
      %v2192 = vld [vmem:[%s5 + $0x50] sm:$0xff]
      %v2193 = vld [vmem:[%s5 + $0x58] sm:$0xff]
      %v2194 = vld [vmem:[%s5 + $0x60] sm:$0xff]
      %v2195 = vld [vmem:[%s5 + $0x68] sm:$0xff]
      %v2196 = vld [vmem:[%s5 + $0x70] sm:$0xff]
      %v2197 = vld [vmem:[%s5 + $0x78] sm:$0xff]
      %v2198 = vld [vmem:[%s5 + $0x80] sm:$0xff]
      %v2199 = vld [vmem:[%s5 + $0x88] sm:$0xff]
      %v2200 = vld [vmem:[%s5 + $0x90] sm:$0xff]
      %v2201 = vld [vmem:[%s5 + $0x98] sm:$0xff]
      %v2202 = vld [vmem:[%s5 + $0xa0] sm:$0xff]
      %v2203 = vld [vmem:[%s5 + $0xa8] sm:$0xff]
      %v2204 = vld [vmem:[%s5 + $0xb0] sm:$0xff]
      %v2205 = vld [vmem:[%s5 + $0xb8] sm:$0xff]
      %v2206 = vld [vmem:[%s5 + $0xc0] sm:$0xff]
      %v2207 = vld [vmem:[%s5 + $0xc8] sm:$0xff]
      %v2208 = vld [vmem:[%s5 + $0xd0] sm:$0xff]
      %v2209 = vld [vmem:[%s5 + $0xd8] sm:$0xff]
      %v2210 = vld [vmem:[%s5 + $0xe0] sm:$0xff]
      %v2211 = vld [vmem:[%s5 + $0xe8] sm:$0xff]
      %v2212 = vld [vmem:[%s5 + $0xf0] sm:$0xff]
      %v2213 = vld [vmem:[%s5 + $0xf8] sm:$0xff]
      %v2214 = vld [vmem:[%s5 + $0x100] sm:$0xff]
      %v2215 = vld [vmem:[%s5 + $0x108] sm:$0xff]
      %v2216 = vld [vmem:[%s5 + $0x110] sm:$0xff]
      %v2217 = vld [vmem:[%s5 + $0x118] sm:$0xff]
      %v2218 = vld [vmem:[%s5 + $0x120] sm:$0xff]
      %v2219 = vld [vmem:[%s5 + $0x128] sm:$0xff]
      %v2220 = vld [vmem:[%s5 + $0x130] sm:$0xff]
      %v2221 = vld [vmem:[%s5 + $0x138] sm:$0xff]
      %v2222 = vld [vmem:[%s5 + $0x140] sm:$0xff]
      %v2223 = vld [vmem:[%s5 + $0x148] sm:$0xff]
      %v2224 = vld [vmem:[%s5 + $0x150] sm:$0xff]
      %v2225 = vld [vmem:[%s5 + $0x158] sm:$0xff]
      %v2226 = vld [vmem:[%s5 + $0x160] sm:$0xff]
      %v2227 = vld [vmem:[%s5 + $0x168] sm:$0xff]
      %v2228 = vld [vmem:[%s5 + $0x170] sm:$0xff]
      %v2229 = vld [vmem:[%s5 + $0x178] sm:$0xff]
      %v2230 = vld [vmem:[%s5 + $0x180] sm:$0xff]
      %v2231 = vld [vmem:[%s5 + $0x188] sm:$0xff]
      %v2232 = vld [vmem:[%s5 + $0x190] sm:$0xff]
      %v2233 = vld [vmem:[%s5 + $0x198] sm:$0xff]
      %v2234 = vld [vmem:[%s5 + $0x1a0] sm:$0xff]
      %v2235 = vld [vmem:[%s5 + $0x1a8] sm:$0xff]
      %v2236 = vld [vmem:[%s5 + $0x1b0] sm:$0xff]
      %v2237 = vld [vmem:[%s5 + $0x1b8] sm:$0xff]
      %v2238 = vld [vmem:[%s5 + $0x1c0] sm:$0xff]
      %v2239 = vld [vmem:[%s5 + $0x1c8] sm:$0xff]
      %v2240 = vld [vmem:[%s5 + $0x1d0] sm:$0xff]
      %v2241 = vld [vmem:[%s5 + $0x1d8] sm:$0xff]
      %v2242 = vld [vmem:[%s5 + $0x1e0] sm:$0xff]
      %v2243 = vld [vmem:[%s5 + $0x1e8] sm:$0xff]
      %v2244 = vld [vmem:[%s5 + $0x1f0] sm:$0xff]
      %v2245 = vld [vmem:[%s5 + $0x1f8] sm:$0xff]
      %2246 = vmatprep.subr.mxu0 %v2183
      %2247 = vmatpush1.msra.mxu0 %v2182
      %2248 = vmatprep.subr.mxu0 %v2187
      %2249 = vmatpush1.msra.mxu0 %v2186
      %2250 = vmatprep.subr.mxu0 %v2191
      %2251 = vmatpush1.msra.mxu0 %v2190
      %2252 = vmatprep.subr.mxu0 %v2195
      %2253 = vmatpush1.msra.mxu0 %v2194
      %2254 = vmatprep.subr.mxu0 %v2199
      %2255 = vmatpush1.msra.mxu0 %v2198
      %2256 = vmatprep.subr.mxu0 %v2203
      %2257 = vmatpush1.msra.mxu0 %v2202
      %2258 = vmatprep.subr.mxu0 %v2207
      %2259 = vmatpush1.msra.mxu0 %v2206
      %2260 = vmatprep.subr.mxu0 %v2211
      %2261 = vmatpush1.msra.mxu0 %v2210
      %2262 = vmatprep.subr.mxu0 %v2215
      %2263 = vmatpush1.msra.mxu0 %v2214
      %2264 = vmatprep.subr.mxu0 %v2219
      %2265 = vmatpush1.msra.mxu0 %v2218
      %2266 = vmatprep.subr.mxu0 %v2223
      %2267 = vmatpush1.msra.mxu0 %v2222
      %2268 = vmatprep.subr.mxu0 %v2227
      %2269 = vmatpush1.msra.mxu0 %v2226
      %2270 = vmatprep.subr.mxu0 %v2231
      %2271 = vmatpush1.msra.mxu0 %v2230
      %2272 = vmatprep.subr.mxu0 %v2235
      %2273 = vmatpush1.msra.mxu0 %v2234
      %2274 = vmatprep.subr.mxu0 %v2239
      %2275 = vmatpush1.msra.mxu0 %v2238
      %2276 = vmatprep.subr.mxu0 %v2243
      %2277 = vmatpush1.msra.mxu0 %v2242
      %2278 = vmatprep.subr.mxu0 0.0
      %2279 = vmatpush1.msra.mxu0 0.0
      %2280 = vmatprep.subr.mxu0 0.0
      %2281 = vmatpush1.msra.mxu0 0.0
      %2282 = vmatprep.subr.mxu0 0.0
      %2283 = vmatpush1.msra.mxu0 0.0
      %2284 = vmatprep.subr.mxu0 0.0
      %2285 = vmatpush1.msra.mxu0 0.0
      %2286 = vmatprep.subr.mxu0 0.0
      %2287 = vmatpush1.msra.mxu0 0.0
      %2288 = vmatprep.subr.mxu0 0.0
      %2289 = vmatpush1.msra.mxu0 0.0
      %2290 = vmatprep.subr.mxu0 0.0
      %2291 = vmatpush1.msra.mxu0 0.0
      %2292 = vmatprep.subr.mxu0 0.0
      %2293 = vmatpush1.msra.mxu0 0.0
      %2294 = vmatprep.subr.mxu0 0.0
      %2295 = vmatpush1.msra.mxu0 0.0
      %2296 = vmatprep.subr.mxu0 0.0
      %2297 = vmatpush1.msra.mxu0 0.0
      %2298 = vmatprep.subr.mxu0 0.0
      %2299 = vmatpush1.msra.mxu0 0.0
      %2300 = vmatprep.subr.mxu0 0.0
      %2301 = vmatpush1.msra.mxu0 0.0
      %2302 = vmatprep.subr.mxu0 0.0
      %2303 = vmatpush1.msra.mxu0 0.0
      %2304 = vmatprep.subr.mxu0 0.0
      %2305 = vmatpush1.msra.mxu0 0.0
      %2306 = vmatprep.subr.mxu0 0.0
      %2307 = vmatpush1.msra.mxu0 0.0
      %2308 = vmatprep.subr.mxu0 0.0
      %2309 = vmatpush1.msra.mxu0 0.0
      %2310 = vmatprep.mubr.f32.mxu0 0.0
      %2311 = vmatmul.mubr.f32.gmra.mrb[0].mxu0 %v2180
      %v2312 = vpop.f32.mrb[0].mxu0
      %v2313 = vadd.f32 0.0, %v2312
      %v2314 = vpop.f32.mrb[0].mxu0
      %v2315 = vadd.f32 0.0, %v2314
      %2316 = vdwg.mxu0
      %2317 = vmatprep.subr.mxu0 %v2185
      %2318 = vmatpush1.msra.mxu0 %v2184
      %2319 = vmatprep.subr.mxu0 %v2189
      %2320 = vmatpush1.msra.mxu0 %v2188
      %2321 = vmatprep.subr.mxu0 %v2193
      %2322 = vmatpush1.msra.mxu0 %v2192
      %2323 = vmatprep.subr.mxu0 %v2197
      %2324 = vmatpush1.msra.mxu0 %v2196
      %2325 = vmatprep.subr.mxu0 %v2201
      %2326 = vmatpush1.msra.mxu0 %v2200
      %2327 = vmatprep.subr.mxu0 %v2205
      %2328 = vmatpush1.msra.mxu0 %v2204
      %2329 = vmatprep.subr.mxu0 %v2209
      %2330 = vmatpush1.msra.mxu0 %v2208
      %2331 = vmatprep.subr.mxu0 %v2213
      %2332 = vmatpush1.msra.mxu0 %v2212
      %2333 = vmatprep.subr.mxu0 %v2217
      %2334 = vmatpush1.msra.mxu0 %v2216
      %2335 = vmatprep.subr.mxu0 %v2221
      %2336 = vmatpush1.msra.mxu0 %v2220
      %2337 = vmatprep.subr.mxu0 %v2225
      %2338 = vmatpush1.msra.mxu0 %v2224
      %2339 = vmatprep.subr.mxu0 %v2229
      %2340 = vmatpush1.msra.mxu0 %v2228
      %2341 = vmatprep.subr.mxu0 %v2233
      %2342 = vmatpush1.msra.mxu0 %v2232
      %2343 = vmatprep.subr.mxu0 %v2237
      %2344 = vmatpush1.msra.mxu0 %v2236
      %2345 = vmatprep.subr.mxu0 %v2241
      %2346 = vmatpush1.msra.mxu0 %v2240
      %2347 = vmatprep.subr.mxu0 %v2245
      %2348 = vmatpush1.msra.mxu0 %v2244
      %2349 = vmatprep.subr.mxu0 0.0
      %2350 = vmatpush1.msra.mxu0 0.0
      %2351 = vmatprep.subr.mxu0 0.0
      %2352 = vmatpush1.msra.mxu0 0.0
      %2353 = vmatprep.subr.mxu0 0.0
      %2354 = vmatpush1.msra.mxu0 0.0
      %2355 = vmatprep.subr.mxu0 0.0
      %2356 = vmatpush1.msra.mxu0 0.0
      %2357 = vmatprep.subr.mxu0 0.0
      %2358 = vmatpush1.msra.mxu0 0.0
      %2359 = vmatprep.subr.mxu0 0.0
      %2360 = vmatpush1.msra.mxu0 0.0
      %2361 = vmatprep.subr.mxu0 0.0
      %2362 = vmatpush1.msra.mxu0 0.0
      %2363 = vmatprep.subr.mxu0 0.0
      %2364 = vmatpush1.msra.mxu0 0.0
      %2365 = vmatprep.subr.mxu0 0.0
      %2366 = vmatpush1.msra.mxu0 0.0
      %2367 = vmatprep.subr.mxu0 0.0
      %2368 = vmatpush1.msra.mxu0 0.0
      %2369 = vmatprep.subr.mxu0 0.0
      %2370 = vmatpush1.msra.mxu0 0.0
      %2371 = vmatprep.subr.mxu0 0.0
      %2372 = vmatpush1.msra.mxu0 0.0
      %2373 = vmatprep.subr.mxu0 0.0
      %2374 = vmatpush1.msra.mxu0 0.0
      %2375 = vmatprep.subr.mxu0 0.0
      %2376 = vmatpush1.msra.mxu0 0.0
      %2377 = vmatprep.subr.mxu0 0.0
      %2378 = vmatpush1.msra.mxu0 0.0
      %2379 = vmatprep.subr.mxu0 0.0
      %2380 = vmatpush1.msra.mxu0 0.0
      %2381 = vmatprep.mubr.f32.mxu0 0.0
      %2382 = vmatmul.mubr.f32.gmra.mrb[0].mxu0 %v2180
      %v2383 = vpop.f32.mrb[0].mxu0
      %v2384 = vadd.f32 0.0, %v2383
      %v2385 = vpop.f32.mrb[0].mxu0
      %v2386 = vadd.f32 0.0, %v2385
      %2387 = vdwg.mxu0
      %v2388 = vadd.f32 %v2176, %v2313
      %v2389 = vadd.f32 %v2177, %v2315
      %v2390 = vadd.f32 %v2178, %v2384
      %v2391 = vadd.f32 %v2179, %v2386
      %v2392 = vxor.u32 %v2388, 2147483648
      %v2393 = vmul.f32 %v2392, 1.442695
      %v2394 = vpow.pop %v2393
      %v2395 = vadd.f32 %v2394, 1.0
      %v2396 = vrcp.pop %v2395
      %v2397 = vmul.f32 1.0, %v2396
      %v2398 = vxor.u32 %v2389, 2147483648
      %v2399 = vmul.f32 %v2398, 1.442695
      %v2400 = vpow.pop %v2399
      %v2401 = vadd.f32 %v2400, 1.0
      %v2402 = vrcp.pop %v2401
      %v2403 = vmul.f32 1.0, %v2402
      %v2404 = vtanh.pop %v2390
      %v2405 = vxor.u32 %v2391, 2147483648
      %v2406 = vmul.f32 %v2405, 1.442695
      %v2407 = vpow.pop %v2406
      %v2408 = vadd.f32 %v2407, 1.0
      %v2409 = vrcp.pop %v2408
      %v2410 = vmul.f32 1.0, %v2409
      %v2411 = vmul.f32 %v2403, %v2181
      %v2412 = vmul.f32 %v2397, %v2404
      %v2413 = vadd.f32 %v2411, %v2412
      %v2414 = vtanh.pop %v2413
      %v2415 = vmul.f32 %v2410, %v2414
      %s2416 = scalar_lea.vmem %s370, 32
      %v2417 = vld [vmem:[%s2416] sm:$0xff]
      %vm2418 = vcmp.gt.f32.partialorder %v2417, 0.0
      %v2419 = vsel %vm2418, 1, 0
      %2420 = vset.pattern.permute.xlu0 0
      %2421 = vperm.xlu0 %2420, %v2419
      %v2422 = vpop.permute.xlu0 %2421
      %vm2423 = vcmp.eq.s32.totalorder %v2422, 1
      %v2424 = vsel %vm2423, %v2415, %v2180
      %2425 = vst [vmem:[#allocation4] sm:$0xff] %v2424
      %v2426 = vld [vmem:[#allocation5] sm:$0xff]
      %v2427 = vsel %vm2423, %v2413, %v2426
      %2428 = vst [vmem:[#allocation5] sm:$0xff] %v2427
      %v2429 = vld [vmem:[#allocation4] sm:$0xff]
      %s2430 = scalar_lea.vmem %s384, 32
      %2431 = vst [vmem:[%s2430] sm:$0xff] %v2429
      %s2432 = scalar_lea.vmem %s348, 128
      %v2433 = vld [vmem:[%s2432] sm:$0xff]
      %v2434 = vld [vmem:[%s2432 + $0x8] sm:$0xff]
      %v2435 = vld [vmem:[%s2432 + $0x10] sm:$0xff]
      %v2436 = vld [vmem:[%s2432 + $0x18] sm:$0xff]
      %v2437 = vld [vmem:[#allocation2] sm:$0xff]
      %v2438 = vld [vmem:[#allocation3] sm:$0xff]
      %v2439 = vld [vmem:[%s4] sm:$0xff]
      %v2440 = vld [vmem:[%s4 + $0x8] sm:$0xff]
      %v2441 = vld [vmem:[%s4 + $0x10] sm:$0xff]
      %v2442 = vld [vmem:[%s4 + $0x18] sm:$0xff]
      %v2443 = vld [vmem:[%s4 + $0x20] sm:$0xff]
      %v2444 = vld [vmem:[%s4 + $0x28] sm:$0xff]
      %v2445 = vld [vmem:[%s4 + $0x30] sm:$0xff]
      %v2446 = vld [vmem:[%s4 + $0x38] sm:$0xff]
      %v2447 = vld [vmem:[%s4 + $0x40] sm:$0xff]
      %v2448 = vld [vmem:[%s4 + $0x48] sm:$0xff]
      %v2449 = vld [vmem:[%s4 + $0x50] sm:$0xff]
      %v2450 = vld [vmem:[%s4 + $0x58] sm:$0xff]
      %v2451 = vld [vmem:[%s4 + $0x60] sm:$0xff]
      %v2452 = vld [vmem:[%s4 + $0x68] sm:$0xff]
      %v2453 = vld [vmem:[%s4 + $0x70] sm:$0xff]
      %v2454 = vld [vmem:[%s4 + $0x78] sm:$0xff]
      %v2455 = vld [vmem:[%s4 + $0x80] sm:$0xff]
      %v2456 = vld [vmem:[%s4 + $0x88] sm:$0xff]
      %v2457 = vld [vmem:[%s4 + $0x90] sm:$0xff]
      %v2458 = vld [vmem:[%s4 + $0x98] sm:$0xff]
      %v2459 = vld [vmem:[%s4 + $0xa0] sm:$0xff]
      %v2460 = vld [vmem:[%s4 + $0xa8] sm:$0xff]
      %v2461 = vld [vmem:[%s4 + $0xb0] sm:$0xff]
      %v2462 = vld [vmem:[%s4 + $0xb8] sm:$0xff]
      %v2463 = vld [vmem:[%s4 + $0xc0] sm:$0xff]
      %v2464 = vld [vmem:[%s4 + $0xc8] sm:$0xff]
      %v2465 = vld [vmem:[%s4 + $0xd0] sm:$0xff]
      %v2466 = vld [vmem:[%s4 + $0xd8] sm:$0xff]
      %v2467 = vld [vmem:[%s4 + $0xe0] sm:$0xff]
      %v2468 = vld [vmem:[%s4 + $0xe8] sm:$0xff]
      %v2469 = vld [vmem:[%s4 + $0xf0] sm:$0xff]
      %v2470 = vld [vmem:[%s4 + $0xf8] sm:$0xff]
      %v2471 = vld [vmem:[%s4 + $0x100] sm:$0xff]
      %v2472 = vld [vmem:[%s4 + $0x108] sm:$0xff]
      %v2473 = vld [vmem:[%s4 + $0x110] sm:$0xff]
      %v2474 = vld [vmem:[%s4 + $0x118] sm:$0xff]
      %v2475 = vld [vmem:[%s4 + $0x120] sm:$0xff]
      %v2476 = vld [vmem:[%s4 + $0x128] sm:$0xff]
      %v2477 = vld [vmem:[%s4 + $0x130] sm:$0xff]
      %v2478 = vld [vmem:[%s4 + $0x138] sm:$0xff]
      %v2479 = vld [vmem:[%s4 + $0x140] sm:$0xff]
      %v2480 = vld [vmem:[%s4 + $0x148] sm:$0xff]
      %v2481 = vld [vmem:[%s4 + $0x150] sm:$0xff]
      %v2482 = vld [vmem:[%s4 + $0x158] sm:$0xff]
      %v2483 = vld [vmem:[%s4 + $0x160] sm:$0xff]
      %v2484 = vld [vmem:[%s4 + $0x168] sm:$0xff]
      %v2485 = vld [vmem:[%s4 + $0x170] sm:$0xff]
      %v2486 = vld [vmem:[%s4 + $0x178] sm:$0xff]
      %v2487 = vld [vmem:[%s4 + $0x180] sm:$0xff]
      %v2488 = vld [vmem:[%s4 + $0x188] sm:$0xff]
      %v2489 = vld [vmem:[%s4 + $0x190] sm:$0xff]
      %v2490 = vld [vmem:[%s4 + $0x198] sm:$0xff]
      %v2491 = vld [vmem:[%s4 + $0x1a0] sm:$0xff]
      %v2492 = vld [vmem:[%s4 + $0x1a8] sm:$0xff]
      %v2493 = vld [vmem:[%s4 + $0x1b0] sm:$0xff]
      %v2494 = vld [vmem:[%s4 + $0x1b8] sm:$0xff]
      %v2495 = vld [vmem:[%s4 + $0x1c0] sm:$0xff]
      %v2496 = vld [vmem:[%s4 + $0x1c8] sm:$0xff]
      %v2497 = vld [vmem:[%s4 + $0x1d0] sm:$0xff]
      %v2498 = vld [vmem:[%s4 + $0x1d8] sm:$0xff]
      %v2499 = vld [vmem:[%s4 + $0x1e0] sm:$0xff]
      %v2500 = vld [vmem:[%s4 + $0x1e8] sm:$0xff]
      %v2501 = vld [vmem:[%s4 + $0x1f0] sm:$0xff]
      %v2502 = vld [vmem:[%s4 + $0x1f8] sm:$0xff]
      %2503 = vmatprep.subr.mxu0 %v2440
      %2504 = vmatpush1.msra.mxu0 %v2439
      %2505 = vmatprep.subr.mxu0 %v2444
      %2506 = vmatpush1.msra.mxu0 %v2443
      %2507 = vmatprep.subr.mxu0 %v2448
      %2508 = vmatpush1.msra.mxu0 %v2447
      %2509 = vmatprep.subr.mxu0 %v2452
      %2510 = vmatpush1.msra.mxu0 %v2451
      %2511 = vmatprep.subr.mxu0 %v2456
      %2512 = vmatpush1.msra.mxu0 %v2455
      %2513 = vmatprep.subr.mxu0 %v2460
      %2514 = vmatpush1.msra.mxu0 %v2459
      %2515 = vmatprep.subr.mxu0 %v2464
      %2516 = vmatpush1.msra.mxu0 %v2463
      %2517 = vmatprep.subr.mxu0 %v2468
      %2518 = vmatpush1.msra.mxu0 %v2467
      %2519 = vmatprep.subr.mxu0 %v2472
      %2520 = vmatpush1.msra.mxu0 %v2471
      %2521 = vmatprep.subr.mxu0 %v2476
      %2522 = vmatpush1.msra.mxu0 %v2475
      %2523 = vmatprep.subr.mxu0 %v2480
      %2524 = vmatpush1.msra.mxu0 %v2479
      %2525 = vmatprep.subr.mxu0 %v2484
      %2526 = vmatpush1.msra.mxu0 %v2483
      %2527 = vmatprep.subr.mxu0 %v2488
      %2528 = vmatpush1.msra.mxu0 %v2487
      %2529 = vmatprep.subr.mxu0 %v2492
      %2530 = vmatpush1.msra.mxu0 %v2491
      %2531 = vmatprep.subr.mxu0 %v2496
      %2532 = vmatpush1.msra.mxu0 %v2495
      %2533 = vmatprep.subr.mxu0 %v2500
      %2534 = vmatpush1.msra.mxu0 %v2499
      %2535 = vmatprep.subr.mxu0 0.0
      %2536 = vmatpush1.msra.mxu0 0.0
      %2537 = vmatprep.subr.mxu0 0.0
      %2538 = vmatpush1.msra.mxu0 0.0
      %2539 = vmatprep.subr.mxu0 0.0
      %2540 = vmatpush1.msra.mxu0 0.0
      %2541 = vmatprep.subr.mxu0 0.0
      %2542 = vmatpush1.msra.mxu0 0.0
      %2543 = vmatprep.subr.mxu0 0.0
      %2544 = vmatpush1.msra.mxu0 0.0
      %2545 = vmatprep.subr.mxu0 0.0
      %2546 = vmatpush1.msra.mxu0 0.0
      %2547 = vmatprep.subr.mxu0 0.0
      %2548 = vmatpush1.msra.mxu0 0.0
      %2549 = vmatprep.subr.mxu0 0.0
      %2550 = vmatpush1.msra.mxu0 0.0
      %2551 = vmatprep.subr.mxu0 0.0
      %2552 = vmatpush1.msra.mxu0 0.0
      %2553 = vmatprep.subr.mxu0 0.0
      %2554 = vmatpush1.msra.mxu0 0.0
      %2555 = vmatprep.subr.mxu0 0.0
      %2556 = vmatpush1.msra.mxu0 0.0
      %2557 = vmatprep.subr.mxu0 0.0
      %2558 = vmatpush1.msra.mxu0 0.0
      %2559 = vmatprep.subr.mxu0 0.0
      %2560 = vmatpush1.msra.mxu0 0.0
      %2561 = vmatprep.subr.mxu0 0.0
      %2562 = vmatpush1.msra.mxu0 0.0
      %2563 = vmatprep.subr.mxu0 0.0
      %2564 = vmatpush1.msra.mxu0 0.0
      %2565 = vmatprep.subr.mxu0 0.0
      %2566 = vmatpush1.msra.mxu0 0.0
      %2567 = vmatprep.mubr.f32.mxu0 0.0
      %2568 = vmatmul.mubr.f32.gmra.mrb[0].mxu0 %v2437
      %v2569 = vpop.f32.mrb[0].mxu0
      %v2570 = vadd.f32 0.0, %v2569
      %v2571 = vpop.f32.mrb[0].mxu0
      %v2572 = vadd.f32 0.0, %v2571
      %2573 = vdwg.mxu0
      %2574 = vmatprep.subr.mxu0 %v2442
      %2575 = vmatpush1.msra.mxu0 %v2441
      %2576 = vmatprep.subr.mxu0 %v2446
      %2577 = vmatpush1.msra.mxu0 %v2445
      %2578 = vmatprep.subr.mxu0 %v2450
      %2579 = vmatpush1.msra.mxu0 %v2449
      %2580 = vmatprep.subr.mxu0 %v2454
      %2581 = vmatpush1.msra.mxu0 %v2453
      %2582 = vmatprep.subr.mxu0 %v2458
      %2583 = vmatpush1.msra.mxu0 %v2457
      %2584 = vmatprep.subr.mxu0 %v2462
      %2585 = vmatpush1.msra.mxu0 %v2461
      %2586 = vmatprep.subr.mxu0 %v2466
      %2587 = vmatpush1.msra.mxu0 %v2465
      %2588 = vmatprep.subr.mxu0 %v2470
      %2589 = vmatpush1.msra.mxu0 %v2469
      %2590 = vmatprep.subr.mxu0 %v2474
      %2591 = vmatpush1.msra.mxu0 %v2473
      %2592 = vmatprep.subr.mxu0 %v2478
      %2593 = vmatpush1.msra.mxu0 %v2477
      %2594 = vmatprep.subr.mxu0 %v2482
      %2595 = vmatpush1.msra.mxu0 %v2481
      %2596 = vmatprep.subr.mxu0 %v2486
      %2597 = vmatpush1.msra.mxu0 %v2485
      %2598 = vmatprep.subr.mxu0 %v2490
      %2599 = vmatpush1.msra.mxu0 %v2489
      %2600 = vmatprep.subr.mxu0 %v2494
      %2601 = vmatpush1.msra.mxu0 %v2493
      %2602 = vmatprep.subr.mxu0 %v2498
      %2603 = vmatpush1.msra.mxu0 %v2497
      %2604 = vmatprep.subr.mxu0 %v2502
      %2605 = vmatpush1.msra.mxu0 %v2501
      %2606 = vmatprep.subr.mxu0 0.0
      %2607 = vmatpush1.msra.mxu0 0.0
      %2608 = vmatprep.subr.mxu0 0.0
      %2609 = vmatpush1.msra.mxu0 0.0
      %2610 = vmatprep.subr.mxu0 0.0
      %2611 = vmatpush1.msra.mxu0 0.0
      %2612 = vmatprep.subr.mxu0 0.0
      %2613 = vmatpush1.msra.mxu0 0.0
      %2614 = vmatprep.subr.mxu0 0.0
      %2615 = vmatpush1.msra.mxu0 0.0
      %2616 = vmatprep.subr.mxu0 0.0
      %2617 = vmatpush1.msra.mxu0 0.0
      %2618 = vmatprep.subr.mxu0 0.0
      %2619 = vmatpush1.msra.mxu0 0.0
      %2620 = vmatprep.subr.mxu0 0.0
      %2621 = vmatpush1.msra.mxu0 0.0
      %2622 = vmatprep.subr.mxu0 0.0
      %2623 = vmatpush1.msra.mxu0 0.0
      %2624 = vmatprep.subr.mxu0 0.0
      %2625 = vmatpush1.msra.mxu0 0.0
      %2626 = vmatprep.subr.mxu0 0.0
      %2627 = vmatpush1.msra.mxu0 0.0
      %2628 = vmatprep.subr.mxu0 0.0
      %2629 = vmatpush1.msra.mxu0 0.0
      %2630 = vmatprep.subr.mxu0 0.0
      %2631 = vmatpush1.msra.mxu0 0.0
      %2632 = vmatprep.subr.mxu0 0.0
      %2633 = vmatpush1.msra.mxu0 0.0
      %2634 = vmatprep.subr.mxu0 0.0
      %2635 = vmatpush1.msra.mxu0 0.0
      %2636 = vmatprep.subr.mxu0 0.0
      %2637 = vmatpush1.msra.mxu0 0.0
      %2638 = vmatprep.mubr.f32.mxu0 0.0
      %2639 = vmatmul.mubr.f32.gmra.mrb[0].mxu0 %v2437
      %v2640 = vpop.f32.mrb[0].mxu0
      %v2641 = vadd.f32 0.0, %v2640
      %v2642 = vpop.f32.mrb[0].mxu0
      %v2643 = vadd.f32 0.0, %v2642
      %2644 = vdwg.mxu0
      %v2645 = vadd.f32 %v2433, %v2570
      %v2646 = vadd.f32 %v2434, %v2572
      %v2647 = vadd.f32 %v2435, %v2641
      %v2648 = vadd.f32 %v2436, %v2643
      %v2649 = vxor.u32 %v2645, 2147483648
      %v2650 = vmul.f32 %v2649, 1.442695
      %v2651 = vpow.pop %v2650
      %v2652 = vadd.f32 %v2651, 1.0
      %v2653 = vrcp.pop %v2652
      %v2654 = vmul.f32 1.0, %v2653
      %v2655 = vxor.u32 %v2646, 2147483648
      %v2656 = vmul.f32 %v2655, 1.442695
      %v2657 = vpow.pop %v2656
      %v2658 = vadd.f32 %v2657, 1.0
      %v2659 = vrcp.pop %v2658
      %v2660 = vmul.f32 1.0, %v2659
      %v2661 = vtanh.pop %v2647
      %v2662 = vxor.u32 %v2648, 2147483648
      %v2663 = vmul.f32 %v2662, 1.442695
      %v2664 = vpow.pop %v2663
      %v2665 = vadd.f32 %v2664, 1.0
      %v2666 = vrcp.pop %v2665
      %v2667 = vmul.f32 1.0, %v2666
      %v2668 = vmul.f32 %v2660, %v2438
      %v2669 = vmul.f32 %v2654, %v2661
      %v2670 = vadd.f32 %v2668, %v2669
      %v2671 = vtanh.pop %v2670
      %v2672 = vmul.f32 %v2667, %v2671
      %2673 = vst [vmem:[#allocation2] sm:$0xff] %v2672
      %2674 = vst [vmem:[#allocation3] sm:$0xff] %v2670
      %s2675 = scalar_lea.vmem %s363, 32
      %v2676 = vld [vmem:[%s2675] sm:$0xff]
      %2678 = vset.pattern.permute.xlu0 0
      %2679 = vperm.xlu0 %2678, %v2676
      %v2680 = vpop.permute.xlu0 %2679
      %v2682 = vmul.f32 %v2672, %v2680
      %s2683 = scalar_lea.vmem %s377, 32
      %2684 = vst [vmem:[%s2683] sm:$0xff] %v2682
      %s2685 = scalar_lea.vmem %s356, 96
      %v2686 = vld [vmem:[%s2685] sm:$0xff]
      %v2687 = vld [vmem:[%s2685 + $0x8] sm:$0xff]
      %v2688 = vld [vmem:[%s2685 + $0x10] sm:$0xff]
      %v2689 = vld [vmem:[%s2685 + $0x18] sm:$0xff]
      %v2690 = vld [vmem:[#allocation4] sm:$0xff]
      %v2691 = vld [vmem:[#allocation5] sm:$0xff]
      %v2692 = vld [vmem:[%s5] sm:$0xff]
      %v2693 = vld [vmem:[%s5 + $0x8] sm:$0xff]
      %v2694 = vld [vmem:[%s5 + $0x10] sm:$0xff]
      %v2695 = vld [vmem:[%s5 + $0x18] sm:$0xff]
      %v2696 = vld [vmem:[%s5 + $0x20] sm:$0xff]
      %v2697 = vld [vmem:[%s5 + $0x28] sm:$0xff]
      %v2698 = vld [vmem:[%s5 + $0x30] sm:$0xff]
      %v2699 = vld [vmem:[%s5 + $0x38] sm:$0xff]
      %v2700 = vld [vmem:[%s5 + $0x40] sm:$0xff]
      %v2701 = vld [vmem:[%s5 + $0x48] sm:$0xff]
      %v2702 = vld [vmem:[%s5 + $0x50] sm:$0xff]
      %v2703 = vld [vmem:[%s5 + $0x58] sm:$0xff]
      %v2704 = vld [vmem:[%s5 + $0x60] sm:$0xff]
      %v2705 = vld [vmem:[%s5 + $0x68] sm:$0xff]
      %v2706 = vld [vmem:[%s5 + $0x70] sm:$0xff]
      %v2707 = vld [vmem:[%s5 + $0x78] sm:$0xff]
      %v2708 = vld [vmem:[%s5 + $0x80] sm:$0xff]
      %v2709 = vld [vmem:[%s5 + $0x88] sm:$0xff]
      %v2710 = vld [vmem:[%s5 + $0x90] sm:$0xff]
      %v2711 = vld [vmem:[%s5 + $0x98] sm:$0xff]
      %v2712 = vld [vmem:[%s5 + $0xa0] sm:$0xff]
      %v2713 = vld [vmem:[%s5 + $0xa8] sm:$0xff]
      %v2714 = vld [vmem:[%s5 + $0xb0] sm:$0xff]
      %v2715 = vld [vmem:[%s5 + $0xb8] sm:$0xff]
      %v2716 = vld [vmem:[%s5 + $0xc0] sm:$0xff]
      %v2717 = vld [vmem:[%s5 + $0xc8] sm:$0xff]
      %v2718 = vld [vmem:[%s5 + $0xd0] sm:$0xff]
      %v2719 = vld [vmem:[%s5 + $0xd8] sm:$0xff]
      %v2720 = vld [vmem:[%s5 + $0xe0] sm:$0xff]
      %v2721 = vld [vmem:[%s5 + $0xe8] sm:$0xff]
      %v2722 = vld [vmem:[%s5 + $0xf0] sm:$0xff]
      %v2723 = vld [vmem:[%s5 + $0xf8] sm:$0xff]
      %v2724 = vld [vmem:[%s5 + $0x100] sm:$0xff]
      %v2725 = vld [vmem:[%s5 + $0x108] sm:$0xff]
      %v2726 = vld [vmem:[%s5 + $0x110] sm:$0xff]
      %v2727 = vld [vmem:[%s5 + $0x118] sm:$0xff]
      %v2728 = vld [vmem:[%s5 + $0x120] sm:$0xff]
      %v2729 = vld [vmem:[%s5 + $0x128] sm:$0xff]
      %v2730 = vld [vmem:[%s5 + $0x130] sm:$0xff]
      %v2731 = vld [vmem:[%s5 + $0x138] sm:$0xff]
      %v2732 = vld [vmem:[%s5 + $0x140] sm:$0xff]
      %v2733 = vld [vmem:[%s5 + $0x148] sm:$0xff]
      %v2734 = vld [vmem:[%s5 + $0x150] sm:$0xff]
      %v2735 = vld [vmem:[%s5 + $0x158] sm:$0xff]
      %v2736 = vld [vmem:[%s5 + $0x160] sm:$0xff]
      %v2737 = vld [vmem:[%s5 + $0x168] sm:$0xff]
      %v2738 = vld [vmem:[%s5 + $0x170] sm:$0xff]
      %v2739 = vld [vmem:[%s5 + $0x178] sm:$0xff]
      %v2740 = vld [vmem:[%s5 + $0x180] sm:$0xff]
      %v2741 = vld [vmem:[%s5 + $0x188] sm:$0xff]
      %v2742 = vld [vmem:[%s5 + $0x190] sm:$0xff]
      %v2743 = vld [vmem:[%s5 + $0x198] sm:$0xff]
      %v2744 = vld [vmem:[%s5 + $0x1a0] sm:$0xff]
      %v2745 = vld [vmem:[%s5 + $0x1a8] sm:$0xff]
      %v2746 = vld [vmem:[%s5 + $0x1b0] sm:$0xff]
      %v2747 = vld [vmem:[%s5 + $0x1b8] sm:$0xff]
      %v2748 = vld [vmem:[%s5 + $0x1c0] sm:$0xff]
      %v2749 = vld [vmem:[%s5 + $0x1c8] sm:$0xff]
      %v2750 = vld [vmem:[%s5 + $0x1d0] sm:$0xff]
      %v2751 = vld [vmem:[%s5 + $0x1d8] sm:$0xff]
      %v2752 = vld [vmem:[%s5 + $0x1e0] sm:$0xff]
      %v2753 = vld [vmem:[%s5 + $0x1e8] sm:$0xff]
      %v2754 = vld [vmem:[%s5 + $0x1f0] sm:$0xff]
      %v2755 = vld [vmem:[%s5 + $0x1f8] sm:$0xff]
      %2756 = vmatprep.subr.mxu0 %v2693
      %2757 = vmatpush1.msra.mxu0 %v2692
      %2758 = vmatprep.subr.mxu0 %v2697
      %2759 = vmatpush1.msra.mxu0 %v2696
      %2760 = vmatprep.subr.mxu0 %v2701
      %2761 = vmatpush1.msra.mxu0 %v2700
      %2762 = vmatprep.subr.mxu0 %v2705
      %2763 = vmatpush1.msra.mxu0 %v2704
      %2764 = vmatprep.subr.mxu0 %v2709
      %2765 = vmatpush1.msra.mxu0 %v2708
      %2766 = vmatprep.subr.mxu0 %v2713
      %2767 = vmatpush1.msra.mxu0 %v2712
      %2768 = vmatprep.subr.mxu0 %v2717
      %2769 = vmatpush1.msra.mxu0 %v2716
      %2770 = vmatprep.subr.mxu0 %v2721
      %2771 = vmatpush1.msra.mxu0 %v2720
      %2772 = vmatprep.subr.mxu0 %v2725
      %2773 = vmatpush1.msra.mxu0 %v2724
      %2774 = vmatprep.subr.mxu0 %v2729
      %2775 = vmatpush1.msra.mxu0 %v2728
      %2776 = vmatprep.subr.mxu0 %v2733
      %2777 = vmatpush1.msra.mxu0 %v2732
      %2778 = vmatprep.subr.mxu0 %v2737
      %2779 = vmatpush1.msra.mxu0 %v2736
      %2780 = vmatprep.subr.mxu0 %v2741
      %2781 = vmatpush1.msra.mxu0 %v2740
      %2782 = vmatprep.subr.mxu0 %v2745
      %2783 = vmatpush1.msra.mxu0 %v2744
      %2784 = vmatprep.subr.mxu0 %v2749
      %2785 = vmatpush1.msra.mxu0 %v2748
      %2786 = vmatprep.subr.mxu0 %v2753
      %2787 = vmatpush1.msra.mxu0 %v2752
      %2788 = vmatprep.subr.mxu0 0.0
      %2789 = vmatpush1.msra.mxu0 0.0
      %2790 = vmatprep.subr.mxu0 0.0
      %2791 = vmatpush1.msra.mxu0 0.0
      %2792 = vmatprep.subr.mxu0 0.0
      %2793 = vmatpush1.msra.mxu0 0.0
      %2794 = vmatprep.subr.mxu0 0.0
      %2795 = vmatpush1.msra.mxu0 0.0
      %2796 = vmatprep.subr.mxu0 0.0
      %2797 = vmatpush1.msra.mxu0 0.0
      %2798 = vmatprep.subr.mxu0 0.0
      %2799 = vmatpush1.msra.mxu0 0.0
      %2800 = vmatprep.subr.mxu0 0.0
      %2801 = vmatpush1.msra.mxu0 0.0
      %2802 = vmatprep.subr.mxu0 0.0
      %2803 = vmatpush1.msra.mxu0 0.0
      %2804 = vmatprep.subr.mxu0 0.0
      %2805 = vmatpush1.msra.mxu0 0.0
      %2806 = vmatprep.subr.mxu0 0.0
      %2807 = vmatpush1.msra.mxu0 0.0
      %2808 = vmatprep.subr.mxu0 0.0
      %2809 = vmatpush1.msra.mxu0 0.0
      %2810 = vmatprep.subr.mxu0 0.0
      %2811 = vmatpush1.msra.mxu0 0.0
      %2812 = vmatprep.subr.mxu0 0.0
      %2813 = vmatpush1.msra.mxu0 0.0
      %2814 = vmatprep.subr.mxu0 0.0
      %2815 = vmatpush1.msra.mxu0 0.0
      %2816 = vmatprep.subr.mxu0 0.0
      %2817 = vmatpush1.msra.mxu0 0.0
      %2818 = vmatprep.subr.mxu0 0.0
      %2819 = vmatpush1.msra.mxu0 0.0
      %2820 = vmatprep.mubr.f32.mxu0 0.0
      %2821 = vmatmul.mubr.f32.gmra.mrb[0].mxu0 %v2690
      %v2822 = vpop.f32.mrb[0].mxu0
      %v2823 = vadd.f32 0.0, %v2822
      %v2824 = vpop.f32.mrb[0].mxu0
      %v2825 = vadd.f32 0.0, %v2824
      %2826 = vdwg.mxu0
      %2827 = vmatprep.subr.mxu0 %v2695
      %2828 = vmatpush1.msra.mxu0 %v2694
      %2829 = vmatprep.subr.mxu0 %v2699
      %2830 = vmatpush1.msra.mxu0 %v2698
      %2831 = vmatprep.subr.mxu0 %v2703
      %2832 = vmatpush1.msra.mxu0 %v2702
      %2833 = vmatprep.subr.mxu0 %v2707
      %2834 = vmatpush1.msra.mxu0 %v2706
      %2835 = vmatprep.subr.mxu0 %v2711
      %2836 = vmatpush1.msra.mxu0 %v2710
      %2837 = vmatprep.subr.mxu0 %v2715
      %2838 = vmatpush1.msra.mxu0 %v2714
      %2839 = vmatprep.subr.mxu0 %v2719
      %2840 = vmatpush1.msra.mxu0 %v2718
      %2841 = vmatprep.subr.mxu0 %v2723
      %2842 = vmatpush1.msra.mxu0 %v2722
      %2843 = vmatprep.subr.mxu0 %v2727
      %2844 = vmatpush1.msra.mxu0 %v2726
      %2845 = vmatprep.subr.mxu0 %v2731
      %2846 = vmatpush1.msra.mxu0 %v2730
      %2847 = vmatprep.subr.mxu0 %v2735
      %2848 = vmatpush1.msra.mxu0 %v2734
      %2849 = vmatprep.subr.mxu0 %v2739
      %2850 = vmatpush1.msra.mxu0 %v2738
      %2851 = vmatprep.subr.mxu0 %v2743
      %2852 = vmatpush1.msra.mxu0 %v2742
      %2853 = vmatprep.subr.mxu0 %v2747
      %2854 = vmatpush1.msra.mxu0 %v2746
      %2855 = vmatprep.subr.mxu0 %v2751
      %2856 = vmatpush1.msra.mxu0 %v2750
      %2857 = vmatprep.subr.mxu0 %v2755
      %2858 = vmatpush1.msra.mxu0 %v2754
      %2859 = vmatprep.subr.mxu0 0.0
      %2860 = vmatpush1.msra.mxu0 0.0
      %2861 = vmatprep.subr.mxu0 0.0
      %2862 = vmatpush1.msra.mxu0 0.0
      %2863 = vmatprep.subr.mxu0 0.0
      %2864 = vmatpush1.msra.mxu0 0.0
      %2865 = vmatprep.subr.mxu0 0.0
      %2866 = vmatpush1.msra.mxu0 0.0
      %2867 = vmatprep.subr.mxu0 0.0
      %2868 = vmatpush1.msra.mxu0 0.0
      %2869 = vmatprep.subr.mxu0 0.0
      %2870 = vmatpush1.msra.mxu0 0.0
      %2871 = vmatprep.subr.mxu0 0.0
      %2872 = vmatpush1.msra.mxu0 0.0
      %2873 = vmatprep.subr.mxu0 0.0
      %2874 = vmatpush1.msra.mxu0 0.0
      %2875 = vmatprep.subr.mxu0 0.0
      %2876 = vmatpush1.msra.mxu0 0.0
      %2877 = vmatprep.subr.mxu0 0.0
      %2878 = vmatpush1.msra.mxu0 0.0
      %2879 = vmatprep.subr.mxu0 0.0
      %2880 = vmatpush1.msra.mxu0 0.0
      %2881 = vmatprep.subr.mxu0 0.0
      %2882 = vmatpush1.msra.mxu0 0.0
      %2883 = vmatprep.subr.mxu0 0.0
      %2884 = vmatpush1.msra.mxu0 0.0
      %2885 = vmatprep.subr.mxu0 0.0
      %2886 = vmatpush1.msra.mxu0 0.0
      %2887 = vmatprep.subr.mxu0 0.0
      %2888 = vmatpush1.msra.mxu0 0.0
      %2889 = vmatprep.subr.mxu0 0.0
      %2890 = vmatpush1.msra.mxu0 0.0
      %2891 = vmatprep.mubr.f32.mxu0 0.0
      %2892 = vmatmul.mubr.f32.gmra.mrb[0].mxu0 %v2690
      %v2893 = vpop.f32.mrb[0].mxu0
      %v2894 = vadd.f32 0.0, %v2893
      %v2895 = vpop.f32.mrb[0].mxu0
      %v2896 = vadd.f32 0.0, %v2895
      %2897 = vdwg.mxu0
      %v2898 = vadd.f32 %v2686, %v2823
      %v2899 = vadd.f32 %v2687, %v2825
      %v2900 = vadd.f32 %v2688, %v2894
      %v2901 = vadd.f32 %v2689, %v2896
      %v2902 = vxor.u32 %v2898, 2147483648
      %v2903 = vmul.f32 %v2902, 1.442695
      %v2904 = vpow.pop %v2903
      %v2905 = vadd.f32 %v2904, 1.0
      %v2906 = vrcp.pop %v2905
      %v2907 = vmul.f32 1.0, %v2906
      %v2908 = vxor.u32 %v2899, 2147483648
      %v2909 = vmul.f32 %v2908, 1.442695
      %v2910 = vpow.pop %v2909
      %v2911 = vadd.f32 %v2910, 1.0
      %v2912 = vrcp.pop %v2911
      %v2913 = vmul.f32 1.0, %v2912
      %v2914 = vtanh.pop %v2900
      %v2915 = vxor.u32 %v2901, 2147483648
      %v2916 = vmul.f32 %v2915, 1.442695
      %v2917 = vpow.pop %v2916
      %v2918 = vadd.f32 %v2917, 1.0
      %v2919 = vrcp.pop %v2918
      %v2920 = vmul.f32 1.0, %v2919
      %v2921 = vmul.f32 %v2913, %v2691
      %v2922 = vmul.f32 %v2907, %v2914
      %v2923 = vadd.f32 %v2921, %v2922
      %v2924 = vtanh.pop %v2923
      %v2925 = vmul.f32 %v2920, %v2924
      %s2926 = scalar_lea.vmem %s370, 24
      %v2927 = vld [vmem:[%s2926] sm:$0xff]
      %vm2928 = vcmp.gt.f32.partialorder %v2927, 0.0
      %v2929 = vsel %vm2928, 1, 0
      %2930 = vset.pattern.permute.xlu0 0
      %2931 = vperm.xlu0 %2930, %v2929
      %v2932 = vpop.permute.xlu0 %2931
      %vm2933 = vcmp.eq.s32.totalorder %v2932, 1
      %v2934 = vsel %vm2933, %v2925, %v2690
      %2935 = vst [vmem:[#allocation4] sm:$0xff] %v2934
      %v2936 = vld [vmem:[#allocation5] sm:$0xff]
      %v2937 = vsel %vm2933, %v2923, %v2936
      %2938 = vst [vmem:[#allocation5] sm:$0xff] %v2937
      %v2939 = vld [vmem:[#allocation4] sm:$0xff]
      %s2940 = scalar_lea.vmem %s384, 24
      %2941 = vst [vmem:[%s2940] sm:$0xff] %v2939
      %s2942 = scalar_lea.vmem %s348, 160
      %v2943 = vld [vmem:[%s2942] sm:$0xff]
      %v2944 = vld [vmem:[%s2942 + $0x8] sm:$0xff]
      %v2945 = vld [vmem:[%s2942 + $0x10] sm:$0xff]
      %v2946 = vld [vmem:[%s2942 + $0x18] sm:$0xff]
      %v2947 = vld [vmem:[#allocation2] sm:$0xff]
      %v2948 = vld [vmem:[#allocation3] sm:$0xff]
      %v2949 = vld [vmem:[%s4] sm:$0xff]
      %v2950 = vld [vmem:[%s4 + $0x8] sm:$0xff]
      %v2951 = vld [vmem:[%s4 + $0x10] sm:$0xff]
      %v2952 = vld [vmem:[%s4 + $0x18] sm:$0xff]
      %v2953 = vld [vmem:[%s4 + $0x20] sm:$0xff]
      %v2954 = vld [vmem:[%s4 + $0x28] sm:$0xff]
      %v2955 = vld [vmem:[%s4 + $0x30] sm:$0xff]
      %v2956 = vld [vmem:[%s4 + $0x38] sm:$0xff]
      %v2957 = vld [vmem:[%s4 + $0x40] sm:$0xff]
      %v2958 = vld [vmem:[%s4 + $0x48] sm:$0xff]
      %v2959 = vld [vmem:[%s4 + $0x50] sm:$0xff]
      %v2960 = vld [vmem:[%s4 + $0x58] sm:$0xff]
      %v2961 = vld [vmem:[%s4 + $0x60] sm:$0xff]
      %v2962 = vld [vmem:[%s4 + $0x68] sm:$0xff]
      %v2963 = vld [vmem:[%s4 + $0x70] sm:$0xff]
      %v2964 = vld [vmem:[%s4 + $0x78] sm:$0xff]
      %v2965 = vld [vmem:[%s4 + $0x80] sm:$0xff]
      %v2966 = vld [vmem:[%s4 + $0x88] sm:$0xff]
      %v2967 = vld [vmem:[%s4 + $0x90] sm:$0xff]
      %v2968 = vld [vmem:[%s4 + $0x98] sm:$0xff]
      %v2969 = vld [vmem:[%s4 + $0xa0] sm:$0xff]
      %v2970 = vld [vmem:[%s4 + $0xa8] sm:$0xff]
      %v2971 = vld [vmem:[%s4 + $0xb0] sm:$0xff]
      %v2972 = vld [vmem:[%s4 + $0xb8] sm:$0xff]
      %v2973 = vld [vmem:[%s4 + $0xc0] sm:$0xff]
      %v2974 = vld [vmem:[%s4 + $0xc8] sm:$0xff]
      %v2975 = vld [vmem:[%s4 + $0xd0] sm:$0xff]
      %v2976 = vld [vmem:[%s4 + $0xd8] sm:$0xff]
      %v2977 = vld [vmem:[%s4 + $0xe0] sm:$0xff]
      %v2978 = vld [vmem:[%s4 + $0xe8] sm:$0xff]
      %v2979 = vld [vmem:[%s4 + $0xf0] sm:$0xff]
      %v2980 = vld [vmem:[%s4 + $0xf8] sm:$0xff]
      %v2981 = vld [vmem:[%s4 + $0x100] sm:$0xff]
      %v2982 = vld [vmem:[%s4 + $0x108] sm:$0xff]
      %v2983 = vld [vmem:[%s4 + $0x110] sm:$0xff]
      %v2984 = vld [vmem:[%s4 + $0x118] sm:$0xff]
      %v2985 = vld [vmem:[%s4 + $0x120] sm:$0xff]
      %v2986 = vld [vmem:[%s4 + $0x128] sm:$0xff]
      %v2987 = vld [vmem:[%s4 + $0x130] sm:$0xff]
      %v2988 = vld [vmem:[%s4 + $0x138] sm:$0xff]
      %v2989 = vld [vmem:[%s4 + $0x140] sm:$0xff]
      %v2990 = vld [vmem:[%s4 + $0x148] sm:$0xff]
      %v2991 = vld [vmem:[%s4 + $0x150] sm:$0xff]
      %v2992 = vld [vmem:[%s4 + $0x158] sm:$0xff]
      %v2993 = vld [vmem:[%s4 + $0x160] sm:$0xff]
      %v2994 = vld [vmem:[%s4 + $0x168] sm:$0xff]
      %v2995 = vld [vmem:[%s4 + $0x170] sm:$0xff]
      %v2996 = vld [vmem:[%s4 + $0x178] sm:$0xff]
      %v2997 = vld [vmem:[%s4 + $0x180] sm:$0xff]
      %v2998 = vld [vmem:[%s4 + $0x188] sm:$0xff]
      %v2999 = vld [vmem:[%s4 + $0x190] sm:$0xff]
      %v3000 = vld [vmem:[%s4 + $0x198] sm:$0xff]
      %v3001 = vld [vmem:[%s4 + $0x1a0] sm:$0xff]
      %v3002 = vld [vmem:[%s4 + $0x1a8] sm:$0xff]
      %v3003 = vld [vmem:[%s4 + $0x1b0] sm:$0xff]
      %v3004 = vld [vmem:[%s4 + $0x1b8] sm:$0xff]
      %v3005 = vld [vmem:[%s4 + $0x1c0] sm:$0xff]
      %v3006 = vld [vmem:[%s4 + $0x1c8] sm:$0xff]
      %v3007 = vld [vmem:[%s4 + $0x1d0] sm:$0xff]
      %v3008 = vld [vmem:[%s4 + $0x1d8] sm:$0xff]
      %v3009 = vld [vmem:[%s4 + $0x1e0] sm:$0xff]
      %v3010 = vld [vmem:[%s4 + $0x1e8] sm:$0xff]
      %v3011 = vld [vmem:[%s4 + $0x1f0] sm:$0xff]
      %v3012 = vld [vmem:[%s4 + $0x1f8] sm:$0xff]
      %3013 = vmatprep.subr.mxu0 %v2950
      %3014 = vmatpush1.msra.mxu0 %v2949
      %3015 = vmatprep.subr.mxu0 %v2954
      %3016 = vmatpush1.msra.mxu0 %v2953
      %3017 = vmatprep.subr.mxu0 %v2958
      %3018 = vmatpush1.msra.mxu0 %v2957
      %3019 = vmatprep.subr.mxu0 %v2962
      %3020 = vmatpush1.msra.mxu0 %v2961
      %3021 = vmatprep.subr.mxu0 %v2966
      %3022 = vmatpush1.msra.mxu0 %v2965
      %3023 = vmatprep.subr.mxu0 %v2970
      %3024 = vmatpush1.msra.mxu0 %v2969
      %3025 = vmatprep.subr.mxu0 %v2974
      %3026 = vmatpush1.msra.mxu0 %v2973
      %3027 = vmatprep.subr.mxu0 %v2978
      %3028 = vmatpush1.msra.mxu0 %v2977
      %3029 = vmatprep.subr.mxu0 %v2982
      %3030 = vmatpush1.msra.mxu0 %v2981
      %3031 = vmatprep.subr.mxu0 %v2986
      %3032 = vmatpush1.msra.mxu0 %v2985
      %3033 = vmatprep.subr.mxu0 %v2990
      %3034 = vmatpush1.msra.mxu0 %v2989
      %3035 = vmatprep.subr.mxu0 %v2994
      %3036 = vmatpush1.msra.mxu0 %v2993
      %3037 = vmatprep.subr.mxu0 %v2998
      %3038 = vmatpush1.msra.mxu0 %v2997
      %3039 = vmatprep.subr.mxu0 %v3002
      %3040 = vmatpush1.msra.mxu0 %v3001
      %3041 = vmatprep.subr.mxu0 %v3006
      %3042 = vmatpush1.msra.mxu0 %v3005
      %3043 = vmatprep.subr.mxu0 %v3010
      %3044 = vmatpush1.msra.mxu0 %v3009
      %3045 = vmatprep.subr.mxu0 0.0
      %3046 = vmatpush1.msra.mxu0 0.0
      %3047 = vmatprep.subr.mxu0 0.0
      %3048 = vmatpush1.msra.mxu0 0.0
      %3049 = vmatprep.subr.mxu0 0.0
      %3050 = vmatpush1.msra.mxu0 0.0
      %3051 = vmatprep.subr.mxu0 0.0
      %3052 = vmatpush1.msra.mxu0 0.0
      %3053 = vmatprep.subr.mxu0 0.0
      %3054 = vmatpush1.msra.mxu0 0.0
      %3055 = vmatprep.subr.mxu0 0.0
      %3056 = vmatpush1.msra.mxu0 0.0
      %3057 = vmatprep.subr.mxu0 0.0
      %3058 = vmatpush1.msra.mxu0 0.0
      %3059 = vmatprep.subr.mxu0 0.0
      %3060 = vmatpush1.msra.mxu0 0.0
      %3061 = vmatprep.subr.mxu0 0.0
      %3062 = vmatpush1.msra.mxu0 0.0
      %3063 = vmatprep.subr.mxu0 0.0
      %3064 = vmatpush1.msra.mxu0 0.0
      %3065 = vmatprep.subr.mxu0 0.0
      %3066 = vmatpush1.msra.mxu0 0.0
      %3067 = vmatprep.subr.mxu0 0.0
      %3068 = vmatpush1.msra.mxu0 0.0
      %3069 = vmatprep.subr.mxu0 0.0
      %3070 = vmatpush1.msra.mxu0 0.0
      %3071 = vmatprep.subr.mxu0 0.0
      %3072 = vmatpush1.msra.mxu0 0.0
      %3073 = vmatprep.subr.mxu0 0.0
      %3074 = vmatpush1.msra.mxu0 0.0
      %3075 = vmatprep.subr.mxu0 0.0
      %3076 = vmatpush1.msra.mxu0 0.0
      %3077 = vmatprep.mubr.f32.mxu0 0.0
      %3078 = vmatmul.mubr.f32.gmra.mrb[0].mxu0 %v2947
      %v3079 = vpop.f32.mrb[0].mxu0
      %v3080 = vadd.f32 0.0, %v3079
      %v3081 = vpop.f32.mrb[0].mxu0
      %v3082 = vadd.f32 0.0, %v3081
      %3083 = vdwg.mxu0
      %3084 = vmatprep.subr.mxu0 %v2952
      %3085 = vmatpush1.msra.mxu0 %v2951
      %3086 = vmatprep.subr.mxu0 %v2956
      %3087 = vmatpush1.msra.mxu0 %v2955
      %3088 = vmatprep.subr.mxu0 %v2960
      %3089 = vmatpush1.msra.mxu0 %v2959
      %3090 = vmatprep.subr.mxu0 %v2964
      %3091 = vmatpush1.msra.mxu0 %v2963
      %3092 = vmatprep.subr.mxu0 %v2968
      %3093 = vmatpush1.msra.mxu0 %v2967
      %3094 = vmatprep.subr.mxu0 %v2972
      %3095 = vmatpush1.msra.mxu0 %v2971
      %3096 = vmatprep.subr.mxu0 %v2976
      %3097 = vmatpush1.msra.mxu0 %v2975
      %3098 = vmatprep.subr.mxu0 %v2980
      %3099 = vmatpush1.msra.mxu0 %v2979
      %3100 = vmatprep.subr.mxu0 %v2984
      %3101 = vmatpush1.msra.mxu0 %v2983
      %3102 = vmatprep.subr.mxu0 %v2988
      %3103 = vmatpush1.msra.mxu0 %v2987
      %3104 = vmatprep.subr.mxu0 %v2992
      %3105 = vmatpush1.msra.mxu0 %v2991
      %3106 = vmatprep.subr.mxu0 %v2996
      %3107 = vmatpush1.msra.mxu0 %v2995
      %3108 = vmatprep.subr.mxu0 %v3000
      %3109 = vmatpush1.msra.mxu0 %v2999
      %3110 = vmatprep.subr.mxu0 %v3004
      %3111 = vmatpush1.msra.mxu0 %v3003
      %3112 = vmatprep.subr.mxu0 %v3008
      %3113 = vmatpush1.msra.mxu0 %v3007
      %3114 = vmatprep.subr.mxu0 %v3012
      %3115 = vmatpush1.msra.mxu0 %v3011
      %3116 = vmatprep.subr.mxu0 0.0
      %3117 = vmatpush1.msra.mxu0 0.0
      %3118 = vmatprep.subr.mxu0 0.0
      %3119 = vmatpush1.msra.mxu0 0.0
      %3120 = vmatprep.subr.mxu0 0.0
      %3121 = vmatpush1.msra.mxu0 0.0
      %3122 = vmatprep.subr.mxu0 0.0
      %3123 = vmatpush1.msra.mxu0 0.0
      %3124 = vmatprep.subr.mxu0 0.0
      %3125 = vmatpush1.msra.mxu0 0.0
      %3126 = vmatprep.subr.mxu0 0.0
      %3127 = vmatpush1.msra.mxu0 0.0
      %3128 = vmatprep.subr.mxu0 0.0
      %3129 = vmatpush1.msra.mxu0 0.0
      %3130 = vmatprep.subr.mxu0 0.0
      %3131 = vmatpush1.msra.mxu0 0.0
      %3132 = vmatprep.subr.mxu0 0.0
      %3133 = vmatpush1.msra.mxu0 0.0
      %3134 = vmatprep.subr.mxu0 0.0
      %3135 = vmatpush1.msra.mxu0 0.0
      %3136 = vmatprep.subr.mxu0 0.0
      %3137 = vmatpush1.msra.mxu0 0.0
      %3138 = vmatprep.subr.mxu0 0.0
      %3139 = vmatpush1.msra.mxu0 0.0
      %3140 = vmatprep.subr.mxu0 0.0
      %3141 = vmatpush1.msra.mxu0 0.0
      %3142 = vmatprep.subr.mxu0 0.0
      %3143 = vmatpush1.msra.mxu0 0.0
      %3144 = vmatprep.subr.mxu0 0.0
      %3145 = vmatpush1.msra.mxu0 0.0
      %3146 = vmatprep.subr.mxu0 0.0
      %3147 = vmatpush1.msra.mxu0 0.0
      %3148 = vmatprep.mubr.f32.mxu0 0.0
      %3149 = vmatmul.mubr.f32.gmra.mrb[0].mxu0 %v2947
      %v3150 = vpop.f32.mrb[0].mxu0
      %v3151 = vadd.f32 0.0, %v3150
      %v3152 = vpop.f32.mrb[0].mxu0
      %v3153 = vadd.f32 0.0, %v3152
      %3154 = vdwg.mxu0
      %v3155 = vadd.f32 %v2943, %v3080
      %v3156 = vadd.f32 %v2944, %v3082
      %v3157 = vadd.f32 %v2945, %v3151
      %v3158 = vadd.f32 %v2946, %v3153
      %v3159 = vxor.u32 %v3155, 2147483648
      %v3160 = vmul.f32 %v3159, 1.442695
      %v3161 = vpow.pop %v3160
      %v3162 = vadd.f32 %v3161, 1.0
      %v3163 = vrcp.pop %v3162
      %v3164 = vmul.f32 1.0, %v3163
      %v3165 = vxor.u32 %v3156, 2147483648
      %v3166 = vmul.f32 %v3165, 1.442695
      %v3167 = vpow.pop %v3166
      %v3168 = vadd.f32 %v3167, 1.0
      %v3169 = vrcp.pop %v3168
      %v3170 = vmul.f32 1.0, %v3169
      %v3171 = vtanh.pop %v3157
      %v3172 = vxor.u32 %v3158, 2147483648
      %v3173 = vmul.f32 %v3172, 1.442695
      %v3174 = vpow.pop %v3173
      %v3175 = vadd.f32 %v3174, 1.0
      %v3176 = vrcp.pop %v3175
      %v3177 = vmul.f32 1.0, %v3176
      %v3178 = vmul.f32 %v3170, %v2948
      %v3179 = vmul.f32 %v3164, %v3171
      %v3180 = vadd.f32 %v3178, %v3179
      %v3181 = vtanh.pop %v3180
      %v3182 = vmul.f32 %v3177, %v3181
      %3183 = vst [vmem:[#allocation2] sm:$0xff] %v3182
      %3184 = vst [vmem:[#allocation3] sm:$0xff] %v3180
      %s3185 = scalar_lea.vmem %s363, 40
      %v3186 = vld [vmem:[%s3185] sm:$0xff]
      %3188 = vset.pattern.permute.xlu0 0
      %3189 = vperm.xlu0 %3188, %v3186
      %v3190 = vpop.permute.xlu0 %3189
      %v3192 = vmul.f32 %v3182, %v3190
      %s3193 = scalar_lea.vmem %s377, 40
      %3194 = vst [vmem:[%s3193] sm:$0xff] %v3192
      %s3195 = scalar_lea.vmem %s356, 64
      %v3196 = vld [vmem:[%s3195] sm:$0xff]
      %v3197 = vld [vmem:[%s3195 + $0x8] sm:$0xff]
      %v3198 = vld [vmem:[%s3195 + $0x10] sm:$0xff]
      %v3199 = vld [vmem:[%s3195 + $0x18] sm:$0xff]
      %v3200 = vld [vmem:[#allocation4] sm:$0xff]
      %v3201 = vld [vmem:[#allocation5] sm:$0xff]
      %v3202 = vld [vmem:[%s5] sm:$0xff]
      %v3203 = vld [vmem:[%s5 + $0x8] sm:$0xff]
      %v3204 = vld [vmem:[%s5 + $0x10] sm:$0xff]
      %v3205 = vld [vmem:[%s5 + $0x18] sm:$0xff]
      %v3206 = vld [vmem:[%s5 + $0x20] sm:$0xff]
      %v3207 = vld [vmem:[%s5 + $0x28] sm:$0xff]
      %v3208 = vld [vmem:[%s5 + $0x30] sm:$0xff]
      %v3209 = vld [vmem:[%s5 + $0x38] sm:$0xff]
      %v3210 = vld [vmem:[%s5 + $0x40] sm:$0xff]
      %v3211 = vld [vmem:[%s5 + $0x48] sm:$0xff]
      %v3212 = vld [vmem:[%s5 + $0x50] sm:$0xff]
      %v3213 = vld [vmem:[%s5 + $0x58] sm:$0xff]
      %v3214 = vld [vmem:[%s5 + $0x60] sm:$0xff]
      %v3215 = vld [vmem:[%s5 + $0x68] sm:$0xff]
      %v3216 = vld [vmem:[%s5 + $0x70] sm:$0xff]
      %v3217 = vld [vmem:[%s5 + $0x78] sm:$0xff]
      %v3218 = vld [vmem:[%s5 + $0x80] sm:$0xff]
      %v3219 = vld [vmem:[%s5 + $0x88] sm:$0xff]
      %v3220 = vld [vmem:[%s5 + $0x90] sm:$0xff]
      %v3221 = vld [vmem:[%s5 + $0x98] sm:$0xff]
      %v3222 = vld [vmem:[%s5 + $0xa0] sm:$0xff]
      %v3223 = vld [vmem:[%s5 + $0xa8] sm:$0xff]
      %v3224 = vld [vmem:[%s5 + $0xb0] sm:$0xff]
      %v3225 = vld [vmem:[%s5 + $0xb8] sm:$0xff]
      %v3226 = vld [vmem:[%s5 + $0xc0] sm:$0xff]
      %v3227 = vld [vmem:[%s5 + $0xc8] sm:$0xff]
      %v3228 = vld [vmem:[%s5 + $0xd0] sm:$0xff]
      %v3229 = vld [vmem:[%s5 + $0xd8] sm:$0xff]
      %v3230 = vld [vmem:[%s5 + $0xe0] sm:$0xff]
      %v3231 = vld [vmem:[%s5 + $0xe8] sm:$0xff]
      %v3232 = vld [vmem:[%s5 + $0xf0] sm:$0xff]
      %v3233 = vld [vmem:[%s5 + $0xf8] sm:$0xff]
      %v3234 = vld [vmem:[%s5 + $0x100] sm:$0xff]
      %v3235 = vld [vmem:[%s5 + $0x108] sm:$0xff]
      %v3236 = vld [vmem:[%s5 + $0x110] sm:$0xff]
      %v3237 = vld [vmem:[%s5 + $0x118] sm:$0xff]
      %v3238 = vld [vmem:[%s5 + $0x120] sm:$0xff]
      %v3239 = vld [vmem:[%s5 + $0x128] sm:$0xff]
      %v3240 = vld [vmem:[%s5 + $0x130] sm:$0xff]
      %v3241 = vld [vmem:[%s5 + $0x138] sm:$0xff]
      %v3242 = vld [vmem:[%s5 + $0x140] sm:$0xff]
      %v3243 = vld [vmem:[%s5 + $0x148] sm:$0xff]
      %v3244 = vld [vmem:[%s5 + $0x150] sm:$0xff]
      %v3245 = vld [vmem:[%s5 + $0x158] sm:$0xff]
      %v3246 = vld [vmem:[%s5 + $0x160] sm:$0xff]
      %v3247 = vld [vmem:[%s5 + $0x168] sm:$0xff]
      %v3248 = vld [vmem:[%s5 + $0x170] sm:$0xff]
      %v3249 = vld [vmem:[%s5 + $0x178] sm:$0xff]
      %v3250 = vld [vmem:[%s5 + $0x180] sm:$0xff]
      %v3251 = vld [vmem:[%s5 + $0x188] sm:$0xff]
      %v3252 = vld [vmem:[%s5 + $0x190] sm:$0xff]
      %v3253 = vld [vmem:[%s5 + $0x198] sm:$0xff]
      %v3254 = vld [vmem:[%s5 + $0x1a0] sm:$0xff]
      %v3255 = vld [vmem:[%s5 + $0x1a8] sm:$0xff]
      %v3256 = vld [vmem:[%s5 + $0x1b0] sm:$0xff]
      %v3257 = vld [vmem:[%s5 + $0x1b8] sm:$0xff]
      %v3258 = vld [vmem:[%s5 + $0x1c0] sm:$0xff]
      %v3259 = vld [vmem:[%s5 + $0x1c8] sm:$0xff]
      %v3260 = vld [vmem:[%s5 + $0x1d0] sm:$0xff]
      %v3261 = vld [vmem:[%s5 + $0x1d8] sm:$0xff]
      %v3262 = vld [vmem:[%s5 + $0x1e0] sm:$0xff]
      %v3263 = vld [vmem:[%s5 + $0x1e8] sm:$0xff]
      %v3264 = vld [vmem:[%s5 + $0x1f0] sm:$0xff]
      %v3265 = vld [vmem:[%s5 + $0x1f8] sm:$0xff]
      %3266 = vmatprep.subr.mxu0 %v3203
      %3267 = vmatpush1.msra.mxu0 %v3202
      %3268 = vmatprep.subr.mxu0 %v3207
      %3269 = vmatpush1.msra.mxu0 %v3206
      %3270 = vmatprep.subr.mxu0 %v3211
      %3271 = vmatpush1.msra.mxu0 %v3210
      %3272 = vmatprep.subr.mxu0 %v3215
      %3273 = vmatpush1.msra.mxu0 %v3214
      %3274 = vmatprep.subr.mxu0 %v3219
      %3275 = vmatpush1.msra.mxu0 %v3218
      %3276 = vmatprep.subr.mxu0 %v3223
      %3277 = vmatpush1.msra.mxu0 %v3222
      %3278 = vmatprep.subr.mxu0 %v3227
      %3279 = vmatpush1.msra.mxu0 %v3226
      %3280 = vmatprep.subr.mxu0 %v3231
      %3281 = vmatpush1.msra.mxu0 %v3230
      %3282 = vmatprep.subr.mxu0 %v3235
      %3283 = vmatpush1.msra.mxu0 %v3234
      %3284 = vmatprep.subr.mxu0 %v3239
      %3285 = vmatpush1.msra.mxu0 %v3238
      %3286 = vmatprep.subr.mxu0 %v3243
      %3287 = vmatpush1.msra.mxu0 %v3242
      %3288 = vmatprep.subr.mxu0 %v3247
      %3289 = vmatpush1.msra.mxu0 %v3246
      %3290 = vmatprep.subr.mxu0 %v3251
      %3291 = vmatpush1.msra.mxu0 %v3250
      %3292 = vmatprep.subr.mxu0 %v3255
      %3293 = vmatpush1.msra.mxu0 %v3254
      %3294 = vmatprep.subr.mxu0 %v3259
      %3295 = vmatpush1.msra.mxu0 %v3258
      %3296 = vmatprep.subr.mxu0 %v3263
      %3297 = vmatpush1.msra.mxu0 %v3262
      %3298 = vmatprep.subr.mxu0 0.0
      %3299 = vmatpush1.msra.mxu0 0.0
      %3300 = vmatprep.subr.mxu0 0.0
      %3301 = vmatpush1.msra.mxu0 0.0
      %3302 = vmatprep.subr.mxu0 0.0
      %3303 = vmatpush1.msra.mxu0 0.0
      %3304 = vmatprep.subr.mxu0 0.0
      %3305 = vmatpush1.msra.mxu0 0.0
      %3306 = vmatprep.subr.mxu0 0.0
      %3307 = vmatpush1.msra.mxu0 0.0
      %3308 = vmatprep.subr.mxu0 0.0
      %3309 = vmatpush1.msra.mxu0 0.0
      %3310 = vmatprep.subr.mxu0 0.0
      %3311 = vmatpush1.msra.mxu0 0.0
      %3312 = vmatprep.subr.mxu0 0.0
      %3313 = vmatpush1.msra.mxu0 0.0
      %3314 = vmatprep.subr.mxu0 0.0
      %3315 = vmatpush1.msra.mxu0 0.0
      %3316 = vmatprep.subr.mxu0 0.0
      %3317 = vmatpush1.msra.mxu0 0.0
      %3318 = vmatprep.subr.mxu0 0.0
      %3319 = vmatpush1.msra.mxu0 0.0
      %3320 = vmatprep.subr.mxu0 0.0
      %3321 = vmatpush1.msra.mxu0 0.0
      %3322 = vmatprep.subr.mxu0 0.0
      %3323 = vmatpush1.msra.mxu0 0.0
      %3324 = vmatprep.subr.mxu0 0.0
      %3325 = vmatpush1.msra.mxu0 0.0
      %3326 = vmatprep.subr.mxu0 0.0
      %3327 = vmatpush1.msra.mxu0 0.0
      %3328 = vmatprep.subr.mxu0 0.0
      %3329 = vmatpush1.msra.mxu0 0.0
      %3330 = vmatprep.mubr.f32.mxu0 0.0
      %3331 = vmatmul.mubr.f32.gmra.mrb[0].mxu0 %v3200
      %v3332 = vpop.f32.mrb[0].mxu0
      %v3333 = vadd.f32 0.0, %v3332
      %v3334 = vpop.f32.mrb[0].mxu0
      %v3335 = vadd.f32 0.0, %v3334
      %3336 = vdwg.mxu0
      %3337 = vmatprep.subr.mxu0 %v3205
      %3338 = vmatpush1.msra.mxu0 %v3204
      %3339 = vmatprep.subr.mxu0 %v3209
      %3340 = vmatpush1.msra.mxu0 %v3208
      %3341 = vmatprep.subr.mxu0 %v3213
      %3342 = vmatpush1.msra.mxu0 %v3212
      %3343 = vmatprep.subr.mxu0 %v3217
      %3344 = vmatpush1.msra.mxu0 %v3216
      %3345 = vmatprep.subr.mxu0 %v3221
      %3346 = vmatpush1.msra.mxu0 %v3220
      %3347 = vmatprep.subr.mxu0 %v3225
      %3348 = vmatpush1.msra.mxu0 %v3224
      %3349 = vmatprep.subr.mxu0 %v3229
      %3350 = vmatpush1.msra.mxu0 %v3228
      %3351 = vmatprep.subr.mxu0 %v3233
      %3352 = vmatpush1.msra.mxu0 %v3232
      %3353 = vmatprep.subr.mxu0 %v3237
      %3354 = vmatpush1.msra.mxu0 %v3236
      %3355 = vmatprep.subr.mxu0 %v3241
      %3356 = vmatpush1.msra.mxu0 %v3240
      %3357 = vmatprep.subr.mxu0 %v3245
      %3358 = vmatpush1.msra.mxu0 %v3244
      %3359 = vmatprep.subr.mxu0 %v3249
      %3360 = vmatpush1.msra.mxu0 %v3248
      %3361 = vmatprep.subr.mxu0 %v3253
      %3362 = vmatpush1.msra.mxu0 %v3252
      %3363 = vmatprep.subr.mxu0 %v3257
      %3364 = vmatpush1.msra.mxu0 %v3256
      %3365 = vmatprep.subr.mxu0 %v3261
      %3366 = vmatpush1.msra.mxu0 %v3260
      %3367 = vmatprep.subr.mxu0 %v3265
      %3368 = vmatpush1.msra.mxu0 %v3264
      %3369 = vmatprep.subr.mxu0 0.0
      %3370 = vmatpush1.msra.mxu0 0.0
      %3371 = vmatprep.subr.mxu0 0.0
      %3372 = vmatpush1.msra.mxu0 0.0
      %3373 = vmatprep.subr.mxu0 0.0
      %3374 = vmatpush1.msra.mxu0 0.0
      %3375 = vmatprep.subr.mxu0 0.0
      %3376 = vmatpush1.msra.mxu0 0.0
      %3377 = vmatprep.subr.mxu0 0.0
      %3378 = vmatpush1.msra.mxu0 0.0
      %3379 = vmatprep.subr.mxu0 0.0
      %3380 = vmatpush1.msra.mxu0 0.0
      %3381 = vmatprep.subr.mxu0 0.0
      %3382 = vmatpush1.msra.mxu0 0.0
      %3383 = vmatprep.subr.mxu0 0.0
      %3384 = vmatpush1.msra.mxu0 0.0
      %3385 = vmatprep.subr.mxu0 0.0
      %3386 = vmatpush1.msra.mxu0 0.0
      %3387 = vmatprep.subr.mxu0 0.0
      %3388 = vmatpush1.msra.mxu0 0.0
      %3389 = vmatprep.subr.mxu0 0.0
      %3390 = vmatpush1.msra.mxu0 0.0
      %3391 = vmatprep.subr.mxu0 0.0
      %3392 = vmatpush1.msra.mxu0 0.0
      %3393 = vmatprep.subr.mxu0 0.0
      %3394 = vmatpush1.msra.mxu0 0.0
      %3395 = vmatprep.subr.mxu0 0.0
      %3396 = vmatpush1.msra.mxu0 0.0
      %3397 = vmatprep.subr.mxu0 0.0
      %3398 = vmatpush1.msra.mxu0 0.0
      %3399 = vmatprep.subr.mxu0 0.0
      %3400 = vmatpush1.msra.mxu0 0.0
      %3401 = vmatprep.mubr.f32.mxu0 0.0
      %3402 = vmatmul.mubr.f32.gmra.mrb[0].mxu0 %v3200
      %v3403 = vpop.f32.mrb[0].mxu0
      %v3404 = vadd.f32 0.0, %v3403
      %v3405 = vpop.f32.mrb[0].mxu0
      %v3406 = vadd.f32 0.0, %v3405
      %3407 = vdwg.mxu0
      %v3408 = vadd.f32 %v3196, %v3333
      %v3409 = vadd.f32 %v3197, %v3335
      %v3410 = vadd.f32 %v3198, %v3404
      %v3411 = vadd.f32 %v3199, %v3406
      %v3412 = vxor.u32 %v3408, 2147483648
      %v3413 = vmul.f32 %v3412, 1.442695
      %v3414 = vpow.pop %v3413
      %v3415 = vadd.f32 %v3414, 1.0
      %v3416 = vrcp.pop %v3415
      %v3417 = vmul.f32 1.0, %v3416
      %v3418 = vxor.u32 %v3409, 2147483648
      %v3419 = vmul.f32 %v3418, 1.442695
      %v3420 = vpow.pop %v3419
      %v3421 = vadd.f32 %v3420, 1.0
      %v3422 = vrcp.pop %v3421
      %v3423 = vmul.f32 1.0, %v3422
      %v3424 = vtanh.pop %v3410
      %v3425 = vxor.u32 %v3411, 2147483648
      %v3426 = vmul.f32 %v3425, 1.442695
      %v3427 = vpow.pop %v3426
      %v3428 = vadd.f32 %v3427, 1.0
      %v3429 = vrcp.pop %v3428
      %v3430 = vmul.f32 1.0, %v3429
      %v3431 = vmul.f32 %v3423, %v3201
      %v3432 = vmul.f32 %v3417, %v3424
      %v3433 = vadd.f32 %v3431, %v3432
      %v3434 = vtanh.pop %v3433
      %v3435 = vmul.f32 %v3430, %v3434
      %s3436 = scalar_lea.vmem %s370, 16
      %v3437 = vld [vmem:[%s3436] sm:$0xff]
      %vm3438 = vcmp.gt.f32.partialorder %v3437, 0.0
      %v3439 = vsel %vm3438, 1, 0
      %3440 = vset.pattern.permute.xlu0 0
      %3441 = vperm.xlu0 %3440, %v3439
      %v3442 = vpop.permute.xlu0 %3441
      %vm3443 = vcmp.eq.s32.totalorder %v3442, 1
      %v3444 = vsel %vm3443, %v3435, %v3200
      %3445 = vst [vmem:[#allocation4] sm:$0xff] %v3444
      %v3446 = vld [vmem:[#allocation5] sm:$0xff]
      %v3447 = vsel %vm3443, %v3433, %v3446
      %3448 = vst [vmem:[#allocation5] sm:$0xff] %v3447
      %v3449 = vld [vmem:[#allocation4] sm:$0xff]
      %s3450 = scalar_lea.vmem %s384, 16
      %3451 = vst [vmem:[%s3450] sm:$0xff] %v3449
      %s3452 = scalar_lea.vmem %s348, 192
      %v3453 = vld [vmem:[%s3452] sm:$0xff]
      %v3454 = vld [vmem:[%s3452 + $0x8] sm:$0xff]
      %v3455 = vld [vmem:[%s3452 + $0x10] sm:$0xff]
      %v3456 = vld [vmem:[%s3452 + $0x18] sm:$0xff]
      %v3457 = vld [vmem:[#allocation2] sm:$0xff]
      %v3458 = vld [vmem:[#allocation3] sm:$0xff]
      %v3459 = vld [vmem:[%s4] sm:$0xff]
      %v3460 = vld [vmem:[%s4 + $0x8] sm:$0xff]
      %v3461 = vld [vmem:[%s4 + $0x10] sm:$0xff]
      %v3462 = vld [vmem:[%s4 + $0x18] sm:$0xff]
      %v3463 = vld [vmem:[%s4 + $0x20] sm:$0xff]
      %v3464 = vld [vmem:[%s4 + $0x28] sm:$0xff]
      %v3465 = vld [vmem:[%s4 + $0x30] sm:$0xff]
      %v3466 = vld [vmem:[%s4 + $0x38] sm:$0xff]
      %v3467 = vld [vmem:[%s4 + $0x40] sm:$0xff]
      %v3468 = vld [vmem:[%s4 + $0x48] sm:$0xff]
      %v3469 = vld [vmem:[%s4 + $0x50] sm:$0xff]
      %v3470 = vld [vmem:[%s4 + $0x58] sm:$0xff]
      %v3471 = vld [vmem:[%s4 + $0x60] sm:$0xff]
      %v3472 = vld [vmem:[%s4 + $0x68] sm:$0xff]
      %v3473 = vld [vmem:[%s4 + $0x70] sm:$0xff]
      %v3474 = vld [vmem:[%s4 + $0x78] sm:$0xff]
      %v3475 = vld [vmem:[%s4 + $0x80] sm:$0xff]
      %v3476 = vld [vmem:[%s4 + $0x88] sm:$0xff]
      %v3477 = vld [vmem:[%s4 + $0x90] sm:$0xff]
      %v3478 = vld [vmem:[%s4 + $0x98] sm:$0xff]
      %v3479 = vld [vmem:[%s4 + $0xa0] sm:$0xff]
      %v3480 = vld [vmem:[%s4 + $0xa8] sm:$0xff]
      %v3481 = vld [vmem:[%s4 + $0xb0] sm:$0xff]
      %v3482 = vld [vmem:[%s4 + $0xb8] sm:$0xff]
      %v3483 = vld [vmem:[%s4 + $0xc0] sm:$0xff]
      %v3484 = vld [vmem:[%s4 + $0xc8] sm:$0xff]
      %v3485 = vld [vmem:[%s4 + $0xd0] sm:$0xff]
      %v3486 = vld [vmem:[%s4 + $0xd8] sm:$0xff]
      %v3487 = vld [vmem:[%s4 + $0xe0] sm:$0xff]
      %v3488 = vld [vmem:[%s4 + $0xe8] sm:$0xff]
      %v3489 = vld [vmem:[%s4 + $0xf0] sm:$0xff]
      %v3490 = vld [vmem:[%s4 + $0xf8] sm:$0xff]
      %v3491 = vld [vmem:[%s4 + $0x100] sm:$0xff]
      %v3492 = vld [vmem:[%s4 + $0x108] sm:$0xff]
      %v3493 = vld [vmem:[%s4 + $0x110] sm:$0xff]
      %v3494 = vld [vmem:[%s4 + $0x118] sm:$0xff]
      %v3495 = vld [vmem:[%s4 + $0x120] sm:$0xff]
      %v3496 = vld [vmem:[%s4 + $0x128] sm:$0xff]
      %v3497 = vld [vmem:[%s4 + $0x130] sm:$0xff]
      %v3498 = vld [vmem:[%s4 + $0x138] sm:$0xff]
      %v3499 = vld [vmem:[%s4 + $0x140] sm:$0xff]
      %v3500 = vld [vmem:[%s4 + $0x148] sm:$0xff]
      %v3501 = vld [vmem:[%s4 + $0x150] sm:$0xff]
      %v3502 = vld [vmem:[%s4 + $0x158] sm:$0xff]
      %v3503 = vld [vmem:[%s4 + $0x160] sm:$0xff]
      %v3504 = vld [vmem:[%s4 + $0x168] sm:$0xff]
      %v3505 = vld [vmem:[%s4 + $0x170] sm:$0xff]
      %v3506 = vld [vmem:[%s4 + $0x178] sm:$0xff]
      %v3507 = vld [vmem:[%s4 + $0x180] sm:$0xff]
      %v3508 = vld [vmem:[%s4 + $0x188] sm:$0xff]
      %v3509 = vld [vmem:[%s4 + $0x190] sm:$0xff]
      %v3510 = vld [vmem:[%s4 + $0x198] sm:$0xff]
      %v3511 = vld [vmem:[%s4 + $0x1a0] sm:$0xff]
      %v3512 = vld [vmem:[%s4 + $0x1a8] sm:$0xff]
      %v3513 = vld [vmem:[%s4 + $0x1b0] sm:$0xff]
      %v3514 = vld [vmem:[%s4 + $0x1b8] sm:$0xff]
      %v3515 = vld [vmem:[%s4 + $0x1c0] sm:$0xff]
      %v3516 = vld [vmem:[%s4 + $0x1c8] sm:$0xff]
      %v3517 = vld [vmem:[%s4 + $0x1d0] sm:$0xff]
      %v3518 = vld [vmem:[%s4 + $0x1d8] sm:$0xff]
      %v3519 = vld [vmem:[%s4 + $0x1e0] sm:$0xff]
      %v3520 = vld [vmem:[%s4 + $0x1e8] sm:$0xff]
      %v3521 = vld [vmem:[%s4 + $0x1f0] sm:$0xff]
      %v3522 = vld [vmem:[%s4 + $0x1f8] sm:$0xff]
      %3523 = vmatprep.subr.mxu0 %v3460
      %3524 = vmatpush1.msra.mxu0 %v3459
      %3525 = vmatprep.subr.mxu0 %v3464
      %3526 = vmatpush1.msra.mxu0 %v3463
      %3527 = vmatprep.subr.mxu0 %v3468
      %3528 = vmatpush1.msra.mxu0 %v3467
      %3529 = vmatprep.subr.mxu0 %v3472
      %3530 = vmatpush1.msra.mxu0 %v3471
      %3531 = vmatprep.subr.mxu0 %v3476
      %3532 = vmatpush1.msra.mxu0 %v3475
      %3533 = vmatprep.subr.mxu0 %v3480
      %3534 = vmatpush1.msra.mxu0 %v3479
      %3535 = vmatprep.subr.mxu0 %v3484
      %3536 = vmatpush1.msra.mxu0 %v3483
      %3537 = vmatprep.subr.mxu0 %v3488
      %3538 = vmatpush1.msra.mxu0 %v3487
      %3539 = vmatprep.subr.mxu0 %v3492
      %3540 = vmatpush1.msra.mxu0 %v3491
      %3541 = vmatprep.subr.mxu0 %v3496
      %3542 = vmatpush1.msra.mxu0 %v3495
      %3543 = vmatprep.subr.mxu0 %v3500
      %3544 = vmatpush1.msra.mxu0 %v3499
      %3545 = vmatprep.subr.mxu0 %v3504
      %3546 = vmatpush1.msra.mxu0 %v3503
      %3547 = vmatprep.subr.mxu0 %v3508
      %3548 = vmatpush1.msra.mxu0 %v3507
      %3549 = vmatprep.subr.mxu0 %v3512
      %3550 = vmatpush1.msra.mxu0 %v3511
      %3551 = vmatprep.subr.mxu0 %v3516
      %3552 = vmatpush1.msra.mxu0 %v3515
      %3553 = vmatprep.subr.mxu0 %v3520
      %3554 = vmatpush1.msra.mxu0 %v3519
      %3555 = vmatprep.subr.mxu0 0.0
      %3556 = vmatpush1.msra.mxu0 0.0
      %3557 = vmatprep.subr.mxu0 0.0
      %3558 = vmatpush1.msra.mxu0 0.0
      %3559 = vmatprep.subr.mxu0 0.0
      %3560 = vmatpush1.msra.mxu0 0.0
      %3561 = vmatprep.subr.mxu0 0.0
      %3562 = vmatpush1.msra.mxu0 0.0
      %3563 = vmatprep.subr.mxu0 0.0
      %3564 = vmatpush1.msra.mxu0 0.0
      %3565 = vmatprep.subr.mxu0 0.0
      %3566 = vmatpush1.msra.mxu0 0.0
      %3567 = vmatprep.subr.mxu0 0.0
      %3568 = vmatpush1.msra.mxu0 0.0
      %3569 = vmatprep.subr.mxu0 0.0
      %3570 = vmatpush1.msra.mxu0 0.0
      %3571 = vmatprep.subr.mxu0 0.0
      %3572 = vmatpush1.msra.mxu0 0.0
      %3573 = vmatprep.subr.mxu0 0.0
      %3574 = vmatpush1.msra.mxu0 0.0
      %3575 = vmatprep.subr.mxu0 0.0
      %3576 = vmatpush1.msra.mxu0 0.0
      %3577 = vmatprep.subr.mxu0 0.0
      %3578 = vmatpush1.msra.mxu0 0.0
      %3579 = vmatprep.subr.mxu0 0.0
      %3580 = vmatpush1.msra.mxu0 0.0
      %3581 = vmatprep.subr.mxu0 0.0
      %3582 = vmatpush1.msra.mxu0 0.0
      %3583 = vmatprep.subr.mxu0 0.0
      %3584 = vmatpush1.msra.mxu0 0.0
      %3585 = vmatprep.subr.mxu0 0.0
      %3586 = vmatpush1.msra.mxu0 0.0
      %3587 = vmatprep.mubr.f32.mxu0 0.0
      %3588 = vmatmul.mubr.f32.gmra.mrb[0].mxu0 %v3457
      %v3589 = vpop.f32.mrb[0].mxu0
      %v3590 = vadd.f32 0.0, %v3589
      %v3591 = vpop.f32.mrb[0].mxu0
      %v3592 = vadd.f32 0.0, %v3591
      %3593 = vdwg.mxu0
      %3594 = vmatprep.subr.mxu0 %v3462
      %3595 = vmatpush1.msra.mxu0 %v3461
      %3596 = vmatprep.subr.mxu0 %v3466
      %3597 = vmatpush1.msra.mxu0 %v3465
      %3598 = vmatprep.subr.mxu0 %v3470
      %3599 = vmatpush1.msra.mxu0 %v3469
      %3600 = vmatprep.subr.mxu0 %v3474
      %3601 = vmatpush1.msra.mxu0 %v3473
      %3602 = vmatprep.subr.mxu0 %v3478
      %3603 = vmatpush1.msra.mxu0 %v3477
      %3604 = vmatprep.subr.mxu0 %v3482
      %3605 = vmatpush1.msra.mxu0 %v3481
      %3606 = vmatprep.subr.mxu0 %v3486
      %3607 = vmatpush1.msra.mxu0 %v3485
      %3608 = vmatprep.subr.mxu0 %v3490
      %3609 = vmatpush1.msra.mxu0 %v3489
      %3610 = vmatprep.subr.mxu0 %v3494
      %3611 = vmatpush1.msra.mxu0 %v3493
      %3612 = vmatprep.subr.mxu0 %v3498
      %3613 = vmatpush1.msra.mxu0 %v3497
      %3614 = vmatprep.subr.mxu0 %v3502
      %3615 = vmatpush1.msra.mxu0 %v3501
      %3616 = vmatprep.subr.mxu0 %v3506
      %3617 = vmatpush1.msra.mxu0 %v3505
      %3618 = vmatprep.subr.mxu0 %v3510
      %3619 = vmatpush1.msra.mxu0 %v3509
      %3620 = vmatprep.subr.mxu0 %v3514
      %3621 = vmatpush1.msra.mxu0 %v3513
      %3622 = vmatprep.subr.mxu0 %v3518
      %3623 = vmatpush1.msra.mxu0 %v3517
      %3624 = vmatprep.subr.mxu0 %v3522
      %3625 = vmatpush1.msra.mxu0 %v3521
      %3626 = vmatprep.subr.mxu0 0.0
      %3627 = vmatpush1.msra.mxu0 0.0
      %3628 = vmatprep.subr.mxu0 0.0
      %3629 = vmatpush1.msra.mxu0 0.0
      %3630 = vmatprep.subr.mxu0 0.0
      %3631 = vmatpush1.msra.mxu0 0.0
      %3632 = vmatprep.subr.mxu0 0.0
      %3633 = vmatpush1.msra.mxu0 0.0
      %3634 = vmatprep.subr.mxu0 0.0
      %3635 = vmatpush1.msra.mxu0 0.0
      %3636 = vmatprep.subr.mxu0 0.0
      %3637 = vmatpush1.msra.mxu0 0.0
      %3638 = vmatprep.subr.mxu0 0.0
      %3639 = vmatpush1.msra.mxu0 0.0
      %3640 = vmatprep.subr.mxu0 0.0
      %3641 = vmatpush1.msra.mxu0 0.0
      %3642 = vmatprep.subr.mxu0 0.0
      %3643 = vmatpush1.msra.mxu0 0.0
      %3644 = vmatprep.subr.mxu0 0.0
      %3645 = vmatpush1.msra.mxu0 0.0
      %3646 = vmatprep.subr.mxu0 0.0
      %3647 = vmatpush1.msra.mxu0 0.0
      %3648 = vmatprep.subr.mxu0 0.0
      %3649 = vmatpush1.msra.mxu0 0.0
      %3650 = vmatprep.subr.mxu0 0.0
      %3651 = vmatpush1.msra.mxu0 0.0
      %3652 = vmatprep.subr.mxu0 0.0
      %3653 = vmatpush1.msra.mxu0 0.0
      %3654 = vmatprep.subr.mxu0 0.0
      %3655 = vmatpush1.msra.mxu0 0.0
      %3656 = vmatprep.subr.mxu0 0.0
      %3657 = vmatpush1.msra.mxu0 0.0
      %3658 = vmatprep.mubr.f32.mxu0 0.0
      %3659 = vmatmul.mubr.f32.gmra.mrb[0].mxu0 %v3457
      %v3660 = vpop.f32.mrb[0].mxu0
      %v3661 = vadd.f32 0.0, %v3660
      %v3662 = vpop.f32.mrb[0].mxu0
      %v3663 = vadd.f32 0.0, %v3662
      %3664 = vdwg.mxu0
      %v3665 = vadd.f32 %v3453, %v3590
      %v3666 = vadd.f32 %v3454, %v3592
      %v3667 = vadd.f32 %v3455, %v3661
      %v3668 = vadd.f32 %v3456, %v3663
      %v3669 = vxor.u32 %v3665, 2147483648
      %v3670 = vmul.f32 %v3669, 1.442695
      %v3671 = vpow.pop %v3670
      %v3672 = vadd.f32 %v3671, 1.0
      %v3673 = vrcp.pop %v3672
      %v3674 = vmul.f32 1.0, %v3673
      %v3675 = vxor.u32 %v3666, 2147483648
      %v3676 = vmul.f32 %v3675, 1.442695
      %v3677 = vpow.pop %v3676
      %v3678 = vadd.f32 %v3677, 1.0
      %v3679 = vrcp.pop %v3678
      %v3680 = vmul.f32 1.0, %v3679
      %v3681 = vtanh.pop %v3667
      %v3682 = vxor.u32 %v3668, 2147483648
      %v3683 = vmul.f32 %v3682, 1.442695
      %v3684 = vpow.pop %v3683
      %v3685 = vadd.f32 %v3684, 1.0
      %v3686 = vrcp.pop %v3685
      %v3687 = vmul.f32 1.0, %v3686
      %v3688 = vmul.f32 %v3680, %v3458
      %v3689 = vmul.f32 %v3674, %v3681
      %v3690 = vadd.f32 %v3688, %v3689
      %v3691 = vtanh.pop %v3690
      %v3692 = vmul.f32 %v3687, %v3691
      %3693 = vst [vmem:[#allocation2] sm:$0xff] %v3692
      %3694 = vst [vmem:[#allocation3] sm:$0xff] %v3690
      %s3695 = scalar_lea.vmem %s363, 48
      %v3696 = vld [vmem:[%s3695] sm:$0xff]
      %3698 = vset.pattern.permute.xlu0 0
      %3699 = vperm.xlu0 %3698, %v3696
      %v3700 = vpop.permute.xlu0 %3699
      %v3702 = vmul.f32 %v3692, %v3700
      %s3703 = scalar_lea.vmem %s377, 48
      %3704 = vst [vmem:[%s3703] sm:$0xff] %v3702
      %s3705 = scalar_lea.vmem %s356, 32
      %v3706 = vld [vmem:[%s3705] sm:$0xff]
      %v3707 = vld [vmem:[%s3705 + $0x8] sm:$0xff]
      %v3708 = vld [vmem:[%s3705 + $0x10] sm:$0xff]
      %v3709 = vld [vmem:[%s3705 + $0x18] sm:$0xff]
      %v3710 = vld [vmem:[#allocation4] sm:$0xff]
      %v3711 = vld [vmem:[#allocation5] sm:$0xff]
      %v3712 = vld [vmem:[%s5] sm:$0xff]
      %v3713 = vld [vmem:[%s5 + $0x8] sm:$0xff]
      %v3714 = vld [vmem:[%s5 + $0x10] sm:$0xff]
      %v3715 = vld [vmem:[%s5 + $0x18] sm:$0xff]
      %v3716 = vld [vmem:[%s5 + $0x20] sm:$0xff]
      %v3717 = vld [vmem:[%s5 + $0x28] sm:$0xff]
      %v3718 = vld [vmem:[%s5 + $0x30] sm:$0xff]
      %v3719 = vld [vmem:[%s5 + $0x38] sm:$0xff]
      %v3720 = vld [vmem:[%s5 + $0x40] sm:$0xff]
      %v3721 = vld [vmem:[%s5 + $0x48] sm:$0xff]
      %v3722 = vld [vmem:[%s5 + $0x50] sm:$0xff]
      %v3723 = vld [vmem:[%s5 + $0x58] sm:$0xff]
      %v3724 = vld [vmem:[%s5 + $0x60] sm:$0xff]
      %v3725 = vld [vmem:[%s5 + $0x68] sm:$0xff]
      %v3726 = vld [vmem:[%s5 + $0x70] sm:$0xff]
      %v3727 = vld [vmem:[%s5 + $0x78] sm:$0xff]
      %v3728 = vld [vmem:[%s5 + $0x80] sm:$0xff]
      %v3729 = vld [vmem:[%s5 + $0x88] sm:$0xff]
      %v3730 = vld [vmem:[%s5 + $0x90] sm:$0xff]
      %v3731 = vld [vmem:[%s5 + $0x98] sm:$0xff]
      %v3732 = vld [vmem:[%s5 + $0xa0] sm:$0xff]
      %v3733 = vld [vmem:[%s5 + $0xa8] sm:$0xff]
      %v3734 = vld [vmem:[%s5 + $0xb0] sm:$0xff]
      %v3735 = vld [vmem:[%s5 + $0xb8] sm:$0xff]
      %v3736 = vld [vmem:[%s5 + $0xc0] sm:$0xff]
      %v3737 = vld [vmem:[%s5 + $0xc8] sm:$0xff]
      %v3738 = vld [vmem:[%s5 + $0xd0] sm:$0xff]
      %v3739 = vld [vmem:[%s5 + $0xd8] sm:$0xff]
      %v3740 = vld [vmem:[%s5 + $0xe0] sm:$0xff]
      %v3741 = vld [vmem:[%s5 + $0xe8] sm:$0xff]
      %v3742 = vld [vmem:[%s5 + $0xf0] sm:$0xff]
      %v3743 = vld [vmem:[%s5 + $0xf8] sm:$0xff]
      %v3744 = vld [vmem:[%s5 + $0x100] sm:$0xff]
      %v3745 = vld [vmem:[%s5 + $0x108] sm:$0xff]
      %v3746 = vld [vmem:[%s5 + $0x110] sm:$0xff]
      %v3747 = vld [vmem:[%s5 + $0x118] sm:$0xff]
      %v3748 = vld [vmem:[%s5 + $0x120] sm:$0xff]
      %v3749 = vld [vmem:[%s5 + $0x128] sm:$0xff]
      %v3750 = vld [vmem:[%s5 + $0x130] sm:$0xff]
      %v3751 = vld [vmem:[%s5 + $0x138] sm:$0xff]
      %v3752 = vld [vmem:[%s5 + $0x140] sm:$0xff]
      %v3753 = vld [vmem:[%s5 + $0x148] sm:$0xff]
      %v3754 = vld [vmem:[%s5 + $0x150] sm:$0xff]
      %v3755 = vld [vmem:[%s5 + $0x158] sm:$0xff]
      %v3756 = vld [vmem:[%s5 + $0x160] sm:$0xff]
      %v3757 = vld [vmem:[%s5 + $0x168] sm:$0xff]
      %v3758 = vld [vmem:[%s5 + $0x170] sm:$0xff]
      %v3759 = vld [vmem:[%s5 + $0x178] sm:$0xff]
      %v3760 = vld [vmem:[%s5 + $0x180] sm:$0xff]
      %v3761 = vld [vmem:[%s5 + $0x188] sm:$0xff]
      %v3762 = vld [vmem:[%s5 + $0x190] sm:$0xff]
      %v3763 = vld [vmem:[%s5 + $0x198] sm:$0xff]
      %v3764 = vld [vmem:[%s5 + $0x1a0] sm:$0xff]
      %v3765 = vld [vmem:[%s5 + $0x1a8] sm:$0xff]
      %v3766 = vld [vmem:[%s5 + $0x1b0] sm:$0xff]
      %v3767 = vld [vmem:[%s5 + $0x1b8] sm:$0xff]
      %v3768 = vld [vmem:[%s5 + $0x1c0] sm:$0xff]
      %v3769 = vld [vmem:[%s5 + $0x1c8] sm:$0xff]
      %v3770 = vld [vmem:[%s5 + $0x1d0] sm:$0xff]
      %v3771 = vld [vmem:[%s5 + $0x1d8] sm:$0xff]
      %v3772 = vld [vmem:[%s5 + $0x1e0] sm:$0xff]
      %v3773 = vld [vmem:[%s5 + $0x1e8] sm:$0xff]
      %v3774 = vld [vmem:[%s5 + $0x1f0] sm:$0xff]
      %v3775 = vld [vmem:[%s5 + $0x1f8] sm:$0xff]
      %3776 = vmatprep.subr.mxu0 %v3713
      %3777 = vmatpush1.msra.mxu0 %v3712
      %3778 = vmatprep.subr.mxu0 %v3717
      %3779 = vmatpush1.msra.mxu0 %v3716
      %3780 = vmatprep.subr.mxu0 %v3721
      %3781 = vmatpush1.msra.mxu0 %v3720
      %3782 = vmatprep.subr.mxu0 %v3725
      %3783 = vmatpush1.msra.mxu0 %v3724
      %3784 = vmatprep.subr.mxu0 %v3729
      %3785 = vmatpush1.msra.mxu0 %v3728
      %3786 = vmatprep.subr.mxu0 %v3733
      %3787 = vmatpush1.msra.mxu0 %v3732
      %3788 = vmatprep.subr.mxu0 %v3737
      %3789 = vmatpush1.msra.mxu0 %v3736
      %3790 = vmatprep.subr.mxu0 %v3741
      %3791 = vmatpush1.msra.mxu0 %v3740
      %3792 = vmatprep.subr.mxu0 %v3745
      %3793 = vmatpush1.msra.mxu0 %v3744
      %3794 = vmatprep.subr.mxu0 %v3749
      %3795 = vmatpush1.msra.mxu0 %v3748
      %3796 = vmatprep.subr.mxu0 %v3753
      %3797 = vmatpush1.msra.mxu0 %v3752
      %3798 = vmatprep.subr.mxu0 %v3757
      %3799 = vmatpush1.msra.mxu0 %v3756
      %3800 = vmatprep.subr.mxu0 %v3761
      %3801 = vmatpush1.msra.mxu0 %v3760
      %3802 = vmatprep.subr.mxu0 %v3765
      %3803 = vmatpush1.msra.mxu0 %v3764
      %3804 = vmatprep.subr.mxu0 %v3769
      %3805 = vmatpush1.msra.mxu0 %v3768
      %3806 = vmatprep.subr.mxu0 %v3773
      %3807 = vmatpush1.msra.mxu0 %v3772
      %3808 = vmatprep.subr.mxu0 0.0
      %3809 = vmatpush1.msra.mxu0 0.0
      %3810 = vmatprep.subr.mxu0 0.0
      %3811 = vmatpush1.msra.mxu0 0.0
      %3812 = vmatprep.subr.mxu0 0.0
      %3813 = vmatpush1.msra.mxu0 0.0
      %3814 = vmatprep.subr.mxu0 0.0
      %3815 = vmatpush1.msra.mxu0 0.0
      %3816 = vmatprep.subr.mxu0 0.0
      %3817 = vmatpush1.msra.mxu0 0.0
      %3818 = vmatprep.subr.mxu0 0.0
      %3819 = vmatpush1.msra.mxu0 0.0
      %3820 = vmatprep.subr.mxu0 0.0
      %3821 = vmatpush1.msra.mxu0 0.0
      %3822 = vmatprep.subr.mxu0 0.0
      %3823 = vmatpush1.msra.mxu0 0.0
      %3824 = vmatprep.subr.mxu0 0.0
      %3825 = vmatpush1.msra.mxu0 0.0
      %3826 = vmatprep.subr.mxu0 0.0
      %3827 = vmatpush1.msra.mxu0 0.0
      %3828 = vmatprep.subr.mxu0 0.0
      %3829 = vmatpush1.msra.mxu0 0.0
      %3830 = vmatprep.subr.mxu0 0.0
      %3831 = vmatpush1.msra.mxu0 0.0
      %3832 = vmatprep.subr.mxu0 0.0
      %3833 = vmatpush1.msra.mxu0 0.0
      %3834 = vmatprep.subr.mxu0 0.0
      %3835 = vmatpush1.msra.mxu0 0.0
      %3836 = vmatprep.subr.mxu0 0.0
      %3837 = vmatpush1.msra.mxu0 0.0
      %3838 = vmatprep.subr.mxu0 0.0
      %3839 = vmatpush1.msra.mxu0 0.0
      %3840 = vmatprep.mubr.f32.mxu0 0.0
      %3841 = vmatmul.mubr.f32.gmra.mrb[0].mxu0 %v3710
      %v3842 = vpop.f32.mrb[0].mxu0
      %v3843 = vadd.f32 0.0, %v3842
      %v3844 = vpop.f32.mrb[0].mxu0
      %v3845 = vadd.f32 0.0, %v3844
      %3846 = vdwg.mxu0
      %3847 = vmatprep.subr.mxu0 %v3715
      %3848 = vmatpush1.msra.mxu0 %v3714
      %3849 = vmatprep.subr.mxu0 %v3719
      %3850 = vmatpush1.msra.mxu0 %v3718
      %3851 = vmatprep.subr.mxu0 %v3723
      %3852 = vmatpush1.msra.mxu0 %v3722
      %3853 = vmatprep.subr.mxu0 %v3727
      %3854 = vmatpush1.msra.mxu0 %v3726
      %3855 = vmatprep.subr.mxu0 %v3731
      %3856 = vmatpush1.msra.mxu0 %v3730
      %3857 = vmatprep.subr.mxu0 %v3735
      %3858 = vmatpush1.msra.mxu0 %v3734
      %3859 = vmatprep.subr.mxu0 %v3739
      %3860 = vmatpush1.msra.mxu0 %v3738
      %3861 = vmatprep.subr.mxu0 %v3743
      %3862 = vmatpush1.msra.mxu0 %v3742
      %3863 = vmatprep.subr.mxu0 %v3747
      %3864 = vmatpush1.msra.mxu0 %v3746
      %3865 = vmatprep.subr.mxu0 %v3751
      %3866 = vmatpush1.msra.mxu0 %v3750
      %3867 = vmatprep.subr.mxu0 %v3755
      %3868 = vmatpush1.msra.mxu0 %v3754
      %3869 = vmatprep.subr.mxu0 %v3759
      %3870 = vmatpush1.msra.mxu0 %v3758
      %3871 = vmatprep.subr.mxu0 %v3763
      %3872 = vmatpush1.msra.mxu0 %v3762
      %3873 = vmatprep.subr.mxu0 %v3767
      %3874 = vmatpush1.msra.mxu0 %v3766
      %3875 = vmatprep.subr.mxu0 %v3771
      %3876 = vmatpush1.msra.mxu0 %v3770
      %3877 = vmatprep.subr.mxu0 %v3775
      %3878 = vmatpush1.msra.mxu0 %v3774
      %3879 = vmatprep.subr.mxu0 0.0
      %3880 = vmatpush1.msra.mxu0 0.0
      %3881 = vmatprep.subr.mxu0 0.0
      %3882 = vmatpush1.msra.mxu0 0.0
      %3883 = vmatprep.subr.mxu0 0.0
      %3884 = vmatpush1.msra.mxu0 0.0
      %3885 = vmatprep.subr.mxu0 0.0
      %3886 = vmatpush1.msra.mxu0 0.0
      %3887 = vmatprep.subr.mxu0 0.0
      %3888 = vmatpush1.msra.mxu0 0.0
      %3889 = vmatprep.subr.mxu0 0.0
      %3890 = vmatpush1.msra.mxu0 0.0
      %3891 = vmatprep.subr.mxu0 0.0
      %3892 = vmatpush1.msra.mxu0 0.0
      %3893 = vmatprep.subr.mxu0 0.0
      %3894 = vmatpush1.msra.mxu0 0.0
      %3895 = vmatprep.subr.mxu0 0.0
      %3896 = vmatpush1.msra.mxu0 0.0
      %3897 = vmatprep.subr.mxu0 0.0
      %3898 = vmatpush1.msra.mxu0 0.0
      %3899 = vmatprep.subr.mxu0 0.0
      %3900 = vmatpush1.msra.mxu0 0.0
      %3901 = vmatprep.subr.mxu0 0.0
      %3902 = vmatpush1.msra.mxu0 0.0
      %3903 = vmatprep.subr.mxu0 0.0
      %3904 = vmatpush1.msra.mxu0 0.0
      %3905 = vmatprep.subr.mxu0 0.0
      %3906 = vmatpush1.msra.mxu0 0.0
      %3907 = vmatprep.subr.mxu0 0.0
      %3908 = vmatpush1.msra.mxu0 0.0
      %3909 = vmatprep.subr.mxu0 0.0
      %3910 = vmatpush1.msra.mxu0 0.0
      %3911 = vmatprep.mubr.f32.mxu0 0.0
      %3912 = vmatmul.mubr.f32.gmra.mrb[0].mxu0 %v3710
      %v3913 = vpop.f32.mrb[0].mxu0
      %v3914 = vadd.f32 0.0, %v3913
      %v3915 = vpop.f32.mrb[0].mxu0
      %v3916 = vadd.f32 0.0, %v3915
      %3917 = vdwg.mxu0
      %v3918 = vadd.f32 %v3706, %v3843
      %v3919 = vadd.f32 %v3707, %v3845
      %v3920 = vadd.f32 %v3708, %v3914
      %v3921 = vadd.f32 %v3709, %v3916
      %v3922 = vxor.u32 %v3918, 2147483648
      %v3923 = vmul.f32 %v3922, 1.442695
      %v3924 = vpow.pop %v3923
      %v3925 = vadd.f32 %v3924, 1.0
      %v3926 = vrcp.pop %v3925
      %v3927 = vmul.f32 1.0, %v3926
      %v3928 = vxor.u32 %v3919, 2147483648
      %v3929 = vmul.f32 %v3928, 1.442695
      %v3930 = vpow.pop %v3929
      %v3931 = vadd.f32 %v3930, 1.0
      %v3932 = vrcp.pop %v3931
      %v3933 = vmul.f32 1.0, %v3932
      %v3934 = vtanh.pop %v3920
      %v3935 = vxor.u32 %v3921, 2147483648
      %v3936 = vmul.f32 %v3935, 1.442695
      %v3937 = vpow.pop %v3936
      %v3938 = vadd.f32 %v3937, 1.0
      %v3939 = vrcp.pop %v3938
      %v3940 = vmul.f32 1.0, %v3939
      %v3941 = vmul.f32 %v3933, %v3711
      %v3942 = vmul.f32 %v3927, %v3934
      %v3943 = vadd.f32 %v3941, %v3942
      %v3944 = vtanh.pop %v3943
      %v3945 = vmul.f32 %v3940, %v3944
      %s3946 = scalar_lea.vmem %s370, 8
      %v3947 = vld [vmem:[%s3946] sm:$0xff]
      %vm3948 = vcmp.gt.f32.partialorder %v3947, 0.0
      %v3949 = vsel %vm3948, 1, 0
      %3950 = vset.pattern.permute.xlu0 0
      %3951 = vperm.xlu0 %3950, %v3949
      %v3952 = vpop.permute.xlu0 %3951
      %vm3953 = vcmp.eq.s32.totalorder %v3952, 1
      %v3954 = vsel %vm3953, %v3945, %v3710
      %3955 = vst [vmem:[#allocation4] sm:$0xff] %v3954
      %v3956 = vld [vmem:[#allocation5] sm:$0xff]
      %v3957 = vsel %vm3953, %v3943, %v3956
      %3958 = vst [vmem:[#allocation5] sm:$0xff] %v3957
      %v3959 = vld [vmem:[#allocation4] sm:$0xff]
      %s3960 = scalar_lea.vmem %s384, 8
      %3961 = vst [vmem:[%s3960] sm:$0xff] %v3959
      %s3962 = scalar_lea.vmem %s348, 224
      %v3963 = vld [vmem:[%s3962] sm:$0xff]
      %v3964 = vld [vmem:[%s3962 + $0x8] sm:$0xff]
      %v3965 = vld [vmem:[%s3962 + $0x10] sm:$0xff]
      %v3966 = vld [vmem:[%s3962 + $0x18] sm:$0xff]
      %v3967 = vld [vmem:[#allocation2] sm:$0xff]
      %v3968 = vld [vmem:[#allocation3] sm:$0xff]
      %v3969 = vld [vmem:[%s4] sm:$0xff]
      %v3970 = vld [vmem:[%s4 + $0x8] sm:$0xff]
      %v3971 = vld [vmem:[%s4 + $0x10] sm:$0xff]
      %v3972 = vld [vmem:[%s4 + $0x18] sm:$0xff]
      %v3973 = vld [vmem:[%s4 + $0x20] sm:$0xff]
      %v3974 = vld [vmem:[%s4 + $0x28] sm:$0xff]
      %v3975 = vld [vmem:[%s4 + $0x30] sm:$0xff]
      %v3976 = vld [vmem:[%s4 + $0x38] sm:$0xff]
      %v3977 = vld [vmem:[%s4 + $0x40] sm:$0xff]
      %v3978 = vld [vmem:[%s4 + $0x48] sm:$0xff]
      %v3979 = vld [vmem:[%s4 + $0x50] sm:$0xff]
      %v3980 = vld [vmem:[%s4 + $0x58] sm:$0xff]
      %v3981 = vld [vmem:[%s4 + $0x60] sm:$0xff]
      %v3982 = vld [vmem:[%s4 + $0x68] sm:$0xff]
      %v3983 = vld [vmem:[%s4 + $0x70] sm:$0xff]
      %v3984 = vld [vmem:[%s4 + $0x78] sm:$0xff]
      %v3985 = vld [vmem:[%s4 + $0x80] sm:$0xff]
      %v3986 = vld [vmem:[%s4 + $0x88] sm:$0xff]
      %v3987 = vld [vmem:[%s4 + $0x90] sm:$0xff]
      %v3988 = vld [vmem:[%s4 + $0x98] sm:$0xff]
      %v3989 = vld [vmem:[%s4 + $0xa0] sm:$0xff]
      %v3990 = vld [vmem:[%s4 + $0xa8] sm:$0xff]
      %v3991 = vld [vmem:[%s4 + $0xb0] sm:$0xff]
      %v3992 = vld [vmem:[%s4 + $0xb8] sm:$0xff]
      %v3993 = vld [vmem:[%s4 + $0xc0] sm:$0xff]
      %v3994 = vld [vmem:[%s4 + $0xc8] sm:$0xff]
      %v3995 = vld [vmem:[%s4 + $0xd0] sm:$0xff]
      %v3996 = vld [vmem:[%s4 + $0xd8] sm:$0xff]
      %v3997 = vld [vmem:[%s4 + $0xe0] sm:$0xff]
      %v3998 = vld [vmem:[%s4 + $0xe8] sm:$0xff]
      %v3999 = vld [vmem:[%s4 + $0xf0] sm:$0xff]
      %v4000 = vld [vmem:[%s4 + $0xf8] sm:$0xff]
      %v4001 = vld [vmem:[%s4 + $0x100] sm:$0xff]
      %v4002 = vld [vmem:[%s4 + $0x108] sm:$0xff]
      %v4003 = vld [vmem:[%s4 + $0x110] sm:$0xff]
      %v4004 = vld [vmem:[%s4 + $0x118] sm:$0xff]
      %v4005 = vld [vmem:[%s4 + $0x120] sm:$0xff]
      %v4006 = vld [vmem:[%s4 + $0x128] sm:$0xff]
      %v4007 = vld [vmem:[%s4 + $0x130] sm:$0xff]
      %v4008 = vld [vmem:[%s4 + $0x138] sm:$0xff]
      %v4009 = vld [vmem:[%s4 + $0x140] sm:$0xff]
      %v4010 = vld [vmem:[%s4 + $0x148] sm:$0xff]
      %v4011 = vld [vmem:[%s4 + $0x150] sm:$0xff]
      %v4012 = vld [vmem:[%s4 + $0x158] sm:$0xff]
      %v4013 = vld [vmem:[%s4 + $0x160] sm:$0xff]
      %v4014 = vld [vmem:[%s4 + $0x168] sm:$0xff]
      %v4015 = vld [vmem:[%s4 + $0x170] sm:$0xff]
      %v4016 = vld [vmem:[%s4 + $0x178] sm:$0xff]
      %v4017 = vld [vmem:[%s4 + $0x180] sm:$0xff]
      %v4018 = vld [vmem:[%s4 + $0x188] sm:$0xff]
      %v4019 = vld [vmem:[%s4 + $0x190] sm:$0xff]
      %v4020 = vld [vmem:[%s4 + $0x198] sm:$0xff]
      %v4021 = vld [vmem:[%s4 + $0x1a0] sm:$0xff]
      %v4022 = vld [vmem:[%s4 + $0x1a8] sm:$0xff]
      %v4023 = vld [vmem:[%s4 + $0x1b0] sm:$0xff]
      %v4024 = vld [vmem:[%s4 + $0x1b8] sm:$0xff]
      %v4025 = vld [vmem:[%s4 + $0x1c0] sm:$0xff]
      %v4026 = vld [vmem:[%s4 + $0x1c8] sm:$0xff]
      %v4027 = vld [vmem:[%s4 + $0x1d0] sm:$0xff]
      %v4028 = vld [vmem:[%s4 + $0x1d8] sm:$0xff]
      %v4029 = vld [vmem:[%s4 + $0x1e0] sm:$0xff]
      %v4030 = vld [vmem:[%s4 + $0x1e8] sm:$0xff]
      %v4031 = vld [vmem:[%s4 + $0x1f0] sm:$0xff]
      %v4032 = vld [vmem:[%s4 + $0x1f8] sm:$0xff]
      %4033 = vmatprep.subr.mxu0 %v3970
      %4034 = vmatpush1.msra.mxu0 %v3969
      %4035 = vmatprep.subr.mxu0 %v3974
      %4036 = vmatpush1.msra.mxu0 %v3973
      %4037 = vmatprep.subr.mxu0 %v3978
      %4038 = vmatpush1.msra.mxu0 %v3977
      %4039 = vmatprep.subr.mxu0 %v3982
      %4040 = vmatpush1.msra.mxu0 %v3981
      %4041 = vmatprep.subr.mxu0 %v3986
      %4042 = vmatpush1.msra.mxu0 %v3985
      %4043 = vmatprep.subr.mxu0 %v3990
      %4044 = vmatpush1.msra.mxu0 %v3989
      %4045 = vmatprep.subr.mxu0 %v3994
      %4046 = vmatpush1.msra.mxu0 %v3993
      %4047 = vmatprep.subr.mxu0 %v3998
      %4048 = vmatpush1.msra.mxu0 %v3997
      %4049 = vmatprep.subr.mxu0 %v4002
      %4050 = vmatpush1.msra.mxu0 %v4001
      %4051 = vmatprep.subr.mxu0 %v4006
      %4052 = vmatpush1.msra.mxu0 %v4005
      %4053 = vmatprep.subr.mxu0 %v4010
      %4054 = vmatpush1.msra.mxu0 %v4009
      %4055 = vmatprep.subr.mxu0 %v4014
      %4056 = vmatpush1.msra.mxu0 %v4013
      %4057 = vmatprep.subr.mxu0 %v4018
      %4058 = vmatpush1.msra.mxu0 %v4017
      %4059 = vmatprep.subr.mxu0 %v4022
      %4060 = vmatpush1.msra.mxu0 %v4021
      %4061 = vmatprep.subr.mxu0 %v4026
      %4062 = vmatpush1.msra.mxu0 %v4025
      %4063 = vmatprep.subr.mxu0 %v4030
      %4064 = vmatpush1.msra.mxu0 %v4029
      %4065 = vmatprep.subr.mxu0 0.0
      %4066 = vmatpush1.msra.mxu0 0.0
      %4067 = vmatprep.subr.mxu0 0.0
      %4068 = vmatpush1.msra.mxu0 0.0
      %4069 = vmatprep.subr.mxu0 0.0
      %4070 = vmatpush1.msra.mxu0 0.0
      %4071 = vmatprep.subr.mxu0 0.0
      %4072 = vmatpush1.msra.mxu0 0.0
      %4073 = vmatprep.subr.mxu0 0.0
      %4074 = vmatpush1.msra.mxu0 0.0
      %4075 = vmatprep.subr.mxu0 0.0
      %4076 = vmatpush1.msra.mxu0 0.0
      %4077 = vmatprep.subr.mxu0 0.0
      %4078 = vmatpush1.msra.mxu0 0.0
      %4079 = vmatprep.subr.mxu0 0.0
      %4080 = vmatpush1.msra.mxu0 0.0
      %4081 = vmatprep.subr.mxu0 0.0
      %4082 = vmatpush1.msra.mxu0 0.0
      %4083 = vmatprep.subr.mxu0 0.0
      %4084 = vmatpush1.msra.mxu0 0.0
      %4085 = vmatprep.subr.mxu0 0.0
      %4086 = vmatpush1.msra.mxu0 0.0
      %4087 = vmatprep.subr.mxu0 0.0
      %4088 = vmatpush1.msra.mxu0 0.0
      %4089 = vmatprep.subr.mxu0 0.0
      %4090 = vmatpush1.msra.mxu0 0.0
      %4091 = vmatprep.subr.mxu0 0.0
      %4092 = vmatpush1.msra.mxu0 0.0
      %4093 = vmatprep.subr.mxu0 0.0
      %4094 = vmatpush1.msra.mxu0 0.0
      %4095 = vmatprep.subr.mxu0 0.0
      %4096 = vmatpush1.msra.mxu0 0.0
      %4097 = vmatprep.mubr.f32.mxu0 0.0
      %4098 = vmatmul.mubr.f32.gmra.mrb[0].mxu0 %v3967
      %v4099 = vpop.f32.mrb[0].mxu0
      %v4100 = vadd.f32 0.0, %v4099
      %v4101 = vpop.f32.mrb[0].mxu0
      %v4102 = vadd.f32 0.0, %v4101
      %4103 = vdwg.mxu0
      %4104 = vmatprep.subr.mxu0 %v3972
      %4105 = vmatpush1.msra.mxu0 %v3971
      %4106 = vmatprep.subr.mxu0 %v3976
      %4107 = vmatpush1.msra.mxu0 %v3975
      %4108 = vmatprep.subr.mxu0 %v3980
      %4109 = vmatpush1.msra.mxu0 %v3979
      %4110 = vmatprep.subr.mxu0 %v3984
      %4111 = vmatpush1.msra.mxu0 %v3983
      %4112 = vmatprep.subr.mxu0 %v3988
      %4113 = vmatpush1.msra.mxu0 %v3987
      %4114 = vmatprep.subr.mxu0 %v3992
      %4115 = vmatpush1.msra.mxu0 %v3991
      %4116 = vmatprep.subr.mxu0 %v3996
      %4117 = vmatpush1.msra.mxu0 %v3995
      %4118 = vmatprep.subr.mxu0 %v4000
      %4119 = vmatpush1.msra.mxu0 %v3999
      %4120 = vmatprep.subr.mxu0 %v4004
      %4121 = vmatpush1.msra.mxu0 %v4003
      %4122 = vmatprep.subr.mxu0 %v4008
      %4123 = vmatpush1.msra.mxu0 %v4007
      %4124 = vmatprep.subr.mxu0 %v4012
      %4125 = vmatpush1.msra.mxu0 %v4011
      %4126 = vmatprep.subr.mxu0 %v4016
      %4127 = vmatpush1.msra.mxu0 %v4015
      %4128 = vmatprep.subr.mxu0 %v4020
      %4129 = vmatpush1.msra.mxu0 %v4019
      %4130 = vmatprep.subr.mxu0 %v4024
      %4131 = vmatpush1.msra.mxu0 %v4023
      %4132 = vmatprep.subr.mxu0 %v4028
      %4133 = vmatpush1.msra.mxu0 %v4027
      %4134 = vmatprep.subr.mxu0 %v4032
      %4135 = vmatpush1.msra.mxu0 %v4031
      %4136 = vmatprep.subr.mxu0 0.0
      %4137 = vmatpush1.msra.mxu0 0.0
      %4138 = vmatprep.subr.mxu0 0.0
      %4139 = vmatpush1.msra.mxu0 0.0
      %4140 = vmatprep.subr.mxu0 0.0
      %4141 = vmatpush1.msra.mxu0 0.0
      %4142 = vmatprep.subr.mxu0 0.0
      %4143 = vmatpush1.msra.mxu0 0.0
      %4144 = vmatprep.subr.mxu0 0.0
      %4145 = vmatpush1.msra.mxu0 0.0
      %4146 = vmatprep.subr.mxu0 0.0
      %4147 = vmatpush1.msra.mxu0 0.0
      %4148 = vmatprep.subr.mxu0 0.0
      %4149 = vmatpush1.msra.mxu0 0.0
      %4150 = vmatprep.subr.mxu0 0.0
      %4151 = vmatpush1.msra.mxu0 0.0
      %4152 = vmatprep.subr.mxu0 0.0
      %4153 = vmatpush1.msra.mxu0 0.0
      %4154 = vmatprep.subr.mxu0 0.0
      %4155 = vmatpush1.msra.mxu0 0.0
      %4156 = vmatprep.subr.mxu0 0.0
      %4157 = vmatpush1.msra.mxu0 0.0
      %4158 = vmatprep.subr.mxu0 0.0
      %4159 = vmatpush1.msra.mxu0 0.0
      %4160 = vmatprep.subr.mxu0 0.0
      %4161 = vmatpush1.msra.mxu0 0.0
      %4162 = vmatprep.subr.mxu0 0.0
      %4163 = vmatpush1.msra.mxu0 0.0
      %4164 = vmatprep.subr.mxu0 0.0
      %4165 = vmatpush1.msra.mxu0 0.0
      %4166 = vmatprep.subr.mxu0 0.0
      %4167 = vmatpush1.msra.mxu0 0.0
      %4168 = vmatprep.mubr.f32.mxu0 0.0
      %4169 = vmatmul.mubr.f32.gmra.mrb[0].mxu0 %v3967
      %v4170 = vpop.f32.mrb[0].mxu0
      %v4171 = vadd.f32 0.0, %v4170
      %v4172 = vpop.f32.mrb[0].mxu0
      %v4173 = vadd.f32 0.0, %v4172
      %4174 = vdwg.mxu0
      %v4175 = vadd.f32 %v3963, %v4100
      %v4176 = vadd.f32 %v3964, %v4102
      %v4177 = vadd.f32 %v3965, %v4171
      %v4178 = vadd.f32 %v3966, %v4173
      %v4179 = vxor.u32 %v4175, 2147483648
      %v4180 = vmul.f32 %v4179, 1.442695
      %v4181 = vpow.pop %v4180
      %v4182 = vadd.f32 %v4181, 1.0
      %v4183 = vrcp.pop %v4182
      %v4184 = vmul.f32 1.0, %v4183
      %v4185 = vxor.u32 %v4176, 2147483648
      %v4186 = vmul.f32 %v4185, 1.442695
      %v4187 = vpow.pop %v4186
      %v4188 = vadd.f32 %v4187, 1.0
      %v4189 = vrcp.pop %v4188
      %v4190 = vmul.f32 1.0, %v4189
      %v4191 = vtanh.pop %v4177
      %v4192 = vxor.u32 %v4178, 2147483648
      %v4193 = vmul.f32 %v4192, 1.442695
      %v4194 = vpow.pop %v4193
      %v4195 = vadd.f32 %v4194, 1.0
      %v4196 = vrcp.pop %v4195
      %v4197 = vmul.f32 1.0, %v4196
      %v4198 = vmul.f32 %v4190, %v3968
      %v4199 = vmul.f32 %v4184, %v4191
      %v4200 = vadd.f32 %v4198, %v4199
      %v4201 = vtanh.pop %v4200
      %v4202 = vmul.f32 %v4197, %v4201
      %4203 = vst [vmem:[#allocation2] sm:$0xff] %v4202
      %4204 = vst [vmem:[#allocation3] sm:$0xff] %v4200
      %s4205 = scalar_lea.vmem %s363, 56
      %v4206 = vld [vmem:[%s4205] sm:$0xff]
      %4208 = vset.pattern.permute.xlu0 0
      %4209 = vperm.xlu0 %4208, %v4206
      %v4210 = vpop.permute.xlu0 %4209
      %v4212 = vmul.f32 %v4202, %v4210
      %s4213 = scalar_lea.vmem %s377, 56
      %4214 = vst [vmem:[%s4213] sm:$0xff] %v4212
      %v4215 = vld [vmem:[%s356] sm:$0xff]
      %v4216 = vld [vmem:[%s356 + $0x8] sm:$0xff]
      %v4217 = vld [vmem:[%s356 + $0x10] sm:$0xff]
      %v4218 = vld [vmem:[%s356 + $0x18] sm:$0xff]
      %v4219 = vld [vmem:[#allocation4] sm:$0xff]
      %v4220 = vld [vmem:[#allocation5] sm:$0xff]
      %v4221 = vld [vmem:[%s5] sm:$0xff]
      %v4222 = vld [vmem:[%s5 + $0x8] sm:$0xff]
      %v4223 = vld [vmem:[%s5 + $0x10] sm:$0xff]
      %v4224 = vld [vmem:[%s5 + $0x18] sm:$0xff]
      %v4225 = vld [vmem:[%s5 + $0x20] sm:$0xff]
      %v4226 = vld [vmem:[%s5 + $0x28] sm:$0xff]
      %v4227 = vld [vmem:[%s5 + $0x30] sm:$0xff]
      %v4228 = vld [vmem:[%s5 + $0x38] sm:$0xff]
      %v4229 = vld [vmem:[%s5 + $0x40] sm:$0xff]
      %v4230 = vld [vmem:[%s5 + $0x48] sm:$0xff]
      %v4231 = vld [vmem:[%s5 + $0x50] sm:$0xff]
      %v4232 = vld [vmem:[%s5 + $0x58] sm:$0xff]
      %v4233 = vld [vmem:[%s5 + $0x60] sm:$0xff]
      %v4234 = vld [vmem:[%s5 + $0x68] sm:$0xff]
      %v4235 = vld [vmem:[%s5 + $0x70] sm:$0xff]
      %v4236 = vld [vmem:[%s5 + $0x78] sm:$0xff]
      %v4237 = vld [vmem:[%s5 + $0x80] sm:$0xff]
      %v4238 = vld [vmem:[%s5 + $0x88] sm:$0xff]
      %v4239 = vld [vmem:[%s5 + $0x90] sm:$0xff]
      %v4240 = vld [vmem:[%s5 + $0x98] sm:$0xff]
      %v4241 = vld [vmem:[%s5 + $0xa0] sm:$0xff]
      %v4242 = vld [vmem:[%s5 + $0xa8] sm:$0xff]
      %v4243 = vld [vmem:[%s5 + $0xb0] sm:$0xff]
      %v4244 = vld [vmem:[%s5 + $0xb8] sm:$0xff]
      %v4245 = vld [vmem:[%s5 + $0xc0] sm:$0xff]
      %v4246 = vld [vmem:[%s5 + $0xc8] sm:$0xff]
      %v4247 = vld [vmem:[%s5 + $0xd0] sm:$0xff]
      %v4248 = vld [vmem:[%s5 + $0xd8] sm:$0xff]
      %v4249 = vld [vmem:[%s5 + $0xe0] sm:$0xff]
      %v4250 = vld [vmem:[%s5 + $0xe8] sm:$0xff]
      %v4251 = vld [vmem:[%s5 + $0xf0] sm:$0xff]
      %v4252 = vld [vmem:[%s5 + $0xf8] sm:$0xff]
      %v4253 = vld [vmem:[%s5 + $0x100] sm:$0xff]
      %v4254 = vld [vmem:[%s5 + $0x108] sm:$0xff]
      %v4255 = vld [vmem:[%s5 + $0x110] sm:$0xff]
      %v4256 = vld [vmem:[%s5 + $0x118] sm:$0xff]
      %v4257 = vld [vmem:[%s5 + $0x120] sm:$0xff]
      %v4258 = vld [vmem:[%s5 + $0x128] sm:$0xff]
      %v4259 = vld [vmem:[%s5 + $0x130] sm:$0xff]
      %v4260 = vld [vmem:[%s5 + $0x138] sm:$0xff]
      %v4261 = vld [vmem:[%s5 + $0x140] sm:$0xff]
      %v4262 = vld [vmem:[%s5 + $0x148] sm:$0xff]
      %v4263 = vld [vmem:[%s5 + $0x150] sm:$0xff]
      %v4264 = vld [vmem:[%s5 + $0x158] sm:$0xff]
      %v4265 = vld [vmem:[%s5 + $0x160] sm:$0xff]
      %v4266 = vld [vmem:[%s5 + $0x168] sm:$0xff]
      %v4267 = vld [vmem:[%s5 + $0x170] sm:$0xff]
      %v4268 = vld [vmem:[%s5 + $0x178] sm:$0xff]
      %v4269 = vld [vmem:[%s5 + $0x180] sm:$0xff]
      %v4270 = vld [vmem:[%s5 + $0x188] sm:$0xff]
      %v4271 = vld [vmem:[%s5 + $0x190] sm:$0xff]
      %v4272 = vld [vmem:[%s5 + $0x198] sm:$0xff]
      %v4273 = vld [vmem:[%s5 + $0x1a0] sm:$0xff]
      %v4274 = vld [vmem:[%s5 + $0x1a8] sm:$0xff]
      %v4275 = vld [vmem:[%s5 + $0x1b0] sm:$0xff]
      %v4276 = vld [vmem:[%s5 + $0x1b8] sm:$0xff]
      %v4277 = vld [vmem:[%s5 + $0x1c0] sm:$0xff]
      %v4278 = vld [vmem:[%s5 + $0x1c8] sm:$0xff]
      %v4279 = vld [vmem:[%s5 + $0x1d0] sm:$0xff]
      %v4280 = vld [vmem:[%s5 + $0x1d8] sm:$0xff]
      %v4281 = vld [vmem:[%s5 + $0x1e0] sm:$0xff]
      %v4282 = vld [vmem:[%s5 + $0x1e8] sm:$0xff]
      %v4283 = vld [vmem:[%s5 + $0x1f0] sm:$0xff]
      %v4284 = vld [vmem:[%s5 + $0x1f8] sm:$0xff]
      %4285 = vmatprep.subr.mxu0 %v4222
      %4286 = vmatpush1.msra.mxu0 %v4221
      %4287 = vmatprep.subr.mxu0 %v4226
      %4288 = vmatpush1.msra.mxu0 %v4225
      %4289 = vmatprep.subr.mxu0 %v4230
      %4290 = vmatpush1.msra.mxu0 %v4229
      %4291 = vmatprep.subr.mxu0 %v4234
      %4292 = vmatpush1.msra.mxu0 %v4233
      %4293 = vmatprep.subr.mxu0 %v4238
      %4294 = vmatpush1.msra.mxu0 %v4237
      %4295 = vmatprep.subr.mxu0 %v4242
      %4296 = vmatpush1.msra.mxu0 %v4241
      %4297 = vmatprep.subr.mxu0 %v4246
      %4298 = vmatpush1.msra.mxu0 %v4245
      %4299 = vmatprep.subr.mxu0 %v4250
      %4300 = vmatpush1.msra.mxu0 %v4249
      %4301 = vmatprep.subr.mxu0 %v4254
      %4302 = vmatpush1.msra.mxu0 %v4253
      %4303 = vmatprep.subr.mxu0 %v4258
      %4304 = vmatpush1.msra.mxu0 %v4257
      %4305 = vmatprep.subr.mxu0 %v4262
      %4306 = vmatpush1.msra.mxu0 %v4261
      %4307 = vmatprep.subr.mxu0 %v4266
      %4308 = vmatpush1.msra.mxu0 %v4265
      %4309 = vmatprep.subr.mxu0 %v4270
      %4310 = vmatpush1.msra.mxu0 %v4269
      %4311 = vmatprep.subr.mxu0 %v4274
      %4312 = vmatpush1.msra.mxu0 %v4273
      %4313 = vmatprep.subr.mxu0 %v4278
      %4314 = vmatpush1.msra.mxu0 %v4277
      %4315 = vmatprep.subr.mxu0 %v4282
      %4316 = vmatpush1.msra.mxu0 %v4281
      %4317 = vmatprep.subr.mxu0 0.0
      %4318 = vmatpush1.msra.mxu0 0.0
      %4319 = vmatprep.subr.mxu0 0.0
      %4320 = vmatpush1.msra.mxu0 0.0
      %4321 = vmatprep.subr.mxu0 0.0
      %4322 = vmatpush1.msra.mxu0 0.0
      %4323 = vmatprep.subr.mxu0 0.0
      %4324 = vmatpush1.msra.mxu0 0.0
      %4325 = vmatprep.subr.mxu0 0.0
      %4326 = vmatpush1.msra.mxu0 0.0
      %4327 = vmatprep.subr.mxu0 0.0
      %4328 = vmatpush1.msra.mxu0 0.0
      %4329 = vmatprep.subr.mxu0 0.0
      %4330 = vmatpush1.msra.mxu0 0.0
      %4331 = vmatprep.subr.mxu0 0.0
      %4332 = vmatpush1.msra.mxu0 0.0
      %4333 = vmatprep.subr.mxu0 0.0
      %4334 = vmatpush1.msra.mxu0 0.0
      %4335 = vmatprep.subr.mxu0 0.0
      %4336 = vmatpush1.msra.mxu0 0.0
      %4337 = vmatprep.subr.mxu0 0.0
      %4338 = vmatpush1.msra.mxu0 0.0
      %4339 = vmatprep.subr.mxu0 0.0
      %4340 = vmatpush1.msra.mxu0 0.0
      %4341 = vmatprep.subr.mxu0 0.0
      %4342 = vmatpush1.msra.mxu0 0.0
      %4343 = vmatprep.subr.mxu0 0.0
      %4344 = vmatpush1.msra.mxu0 0.0
      %4345 = vmatprep.subr.mxu0 0.0
      %4346 = vmatpush1.msra.mxu0 0.0
      %4347 = vmatprep.subr.mxu0 0.0
      %4348 = vmatpush1.msra.mxu0 0.0
      %4349 = vmatprep.mubr.f32.mxu0 0.0
      %4350 = vmatmul.mubr.f32.gmra.mrb[0].mxu0 %v4219
      %v4351 = vpop.f32.mrb[0].mxu0
      %v4352 = vadd.f32 0.0, %v4351
      %v4353 = vpop.f32.mrb[0].mxu0
      %v4354 = vadd.f32 0.0, %v4353
      %4355 = vdwg.mxu0
      %4356 = vmatprep.subr.mxu0 %v4224
      %4357 = vmatpush1.msra.mxu0 %v4223
      %4358 = vmatprep.subr.mxu0 %v4228
      %4359 = vmatpush1.msra.mxu0 %v4227
      %4360 = vmatprep.subr.mxu0 %v4232
      %4361 = vmatpush1.msra.mxu0 %v4231
      %4362 = vmatprep.subr.mxu0 %v4236
      %4363 = vmatpush1.msra.mxu0 %v4235
      %4364 = vmatprep.subr.mxu0 %v4240
      %4365 = vmatpush1.msra.mxu0 %v4239
      %4366 = vmatprep.subr.mxu0 %v4244
      %4367 = vmatpush1.msra.mxu0 %v4243
      %4368 = vmatprep.subr.mxu0 %v4248
      %4369 = vmatpush1.msra.mxu0 %v4247
      %4370 = vmatprep.subr.mxu0 %v4252
      %4371 = vmatpush1.msra.mxu0 %v4251
      %4372 = vmatprep.subr.mxu0 %v4256
      %4373 = vmatpush1.msra.mxu0 %v4255
      %4374 = vmatprep.subr.mxu0 %v4260
      %4375 = vmatpush1.msra.mxu0 %v4259
      %4376 = vmatprep.subr.mxu0 %v4264
      %4377 = vmatpush1.msra.mxu0 %v4263
      %4378 = vmatprep.subr.mxu0 %v4268
      %4379 = vmatpush1.msra.mxu0 %v4267
      %4380 = vmatprep.subr.mxu0 %v4272
      %4381 = vmatpush1.msra.mxu0 %v4271
      %4382 = vmatprep.subr.mxu0 %v4276
      %4383 = vmatpush1.msra.mxu0 %v4275
      %4384 = vmatprep.subr.mxu0 %v4280
      %4385 = vmatpush1.msra.mxu0 %v4279
      %4386 = vmatprep.subr.mxu0 %v4284
      %4387 = vmatpush1.msra.mxu0 %v4283
      %4388 = vmatprep.subr.mxu0 0.0
      %4389 = vmatpush1.msra.mxu0 0.0
      %4390 = vmatprep.subr.mxu0 0.0
      %4391 = vmatpush1.msra.mxu0 0.0
      %4392 = vmatprep.subr.mxu0 0.0
      %4393 = vmatpush1.msra.mxu0 0.0
      %4394 = vmatprep.subr.mxu0 0.0
      %4395 = vmatpush1.msra.mxu0 0.0
      %4396 = vmatprep.subr.mxu0 0.0
      %4397 = vmatpush1.msra.mxu0 0.0
      %4398 = vmatprep.subr.mxu0 0.0
      %4399 = vmatpush1.msra.mxu0 0.0
      %4400 = vmatprep.subr.mxu0 0.0
      %4401 = vmatpush1.msra.mxu0 0.0
      %4402 = vmatprep.subr.mxu0 0.0
      %4403 = vmatpush1.msra.mxu0 0.0
      %4404 = vmatprep.subr.mxu0 0.0
      %4405 = vmatpush1.msra.mxu0 0.0
      %4406 = vmatprep.subr.mxu0 0.0
      %4407 = vmatpush1.msra.mxu0 0.0
      %4408 = vmatprep.subr.mxu0 0.0
      %4409 = vmatpush1.msra.mxu0 0.0
      %4410 = vmatprep.subr.mxu0 0.0
      %4411 = vmatpush1.msra.mxu0 0.0
      %4412 = vmatprep.subr.mxu0 0.0
      %4413 = vmatpush1.msra.mxu0 0.0
      %4414 = vmatprep.subr.mxu0 0.0
      %4415 = vmatpush1.msra.mxu0 0.0
      %4416 = vmatprep.subr.mxu0 0.0
      %4417 = vmatpush1.msra.mxu0 0.0
      %4418 = vmatprep.subr.mxu0 0.0
      %4419 = vmatpush1.msra.mxu0 0.0
      %4420 = vmatprep.mubr.f32.mxu0 0.0
      %4421 = vmatmul.mubr.f32.gmra.mrb[0].mxu0 %v4219
      %v4422 = vpop.f32.mrb[0].mxu0
      %v4423 = vadd.f32 0.0, %v4422
      %v4424 = vpop.f32.mrb[0].mxu0
      %v4425 = vadd.f32 0.0, %v4424
      %4426 = vdwg.mxu0
      %v4427 = vadd.f32 %v4215, %v4352
      %v4428 = vadd.f32 %v4216, %v4354
      %v4429 = vadd.f32 %v4217, %v4423
      %v4430 = vadd.f32 %v4218, %v4425
      %v4431 = vxor.u32 %v4427, 2147483648
      %v4432 = vmul.f32 %v4431, 1.442695
      %v4433 = vpow.pop %v4432
      %v4434 = vadd.f32 %v4433, 1.0
      %v4435 = vrcp.pop %v4434
      %v4436 = vmul.f32 1.0, %v4435
      %v4437 = vxor.u32 %v4428, 2147483648
      %v4438 = vmul.f32 %v4437, 1.442695
      %v4439 = vpow.pop %v4438
      %v4440 = vadd.f32 %v4439, 1.0
      %v4441 = vrcp.pop %v4440
      %v4442 = vmul.f32 1.0, %v4441
      %v4443 = vtanh.pop %v4429
      %v4444 = vxor.u32 %v4430, 2147483648
      %v4445 = vmul.f32 %v4444, 1.442695
      %v4446 = vpow.pop %v4445
      %v4447 = vadd.f32 %v4446, 1.0
      %v4448 = vrcp.pop %v4447
      %v4449 = vmul.f32 1.0, %v4448
      %v4450 = vmul.f32 %v4442, %v4220
      %v4451 = vmul.f32 %v4436, %v4443
      %v4452 = vadd.f32 %v4450, %v4451
      %v4453 = vtanh.pop %v4452
      %v4454 = vmul.f32 %v4449, %v4453
      %v4455 = vld [vmem:[%s370] sm:$0xff]
      %vm4456 = vcmp.gt.f32.partialorder %v4455, 0.0
      %v4457 = vsel %vm4456, 1, 0
      %4458 = vset.pattern.permute.xlu0 0
      %4459 = vperm.xlu0 %4458, %v4457
      %v4460 = vpop.permute.xlu0 %4459
      %vm4461 = vcmp.eq.s32.totalorder %v4460, 1
      %v4462 = vsel %vm4461, %v4454, %v4219
      %4463 = vst [vmem:[#allocation4] sm:$0xff] %v4462
      %v4464 = vld [vmem:[#allocation5] sm:$0xff]
      %v4465 = vsel %vm4461, %v4452, %v4464
      %4466 = vst [vmem:[#allocation5] sm:$0xff] %v4465
      %v4467 = vld [vmem:[#allocation4] sm:$0xff]
      %4468 = vst [vmem:[%s384] sm:$0xff] %v4467
      %s4469 = smul.u32 8, %s19
      %p4470 = scmp.lt.s32.totalorder %s4469, 15
      %s4471 = scalar_select %p4470, %s4469, 15
      %s4472 = smul.addr %s4471, 8
      %s4473 = scalar_lea.vmem %s6, %s4472
      %s4474 = ssub.s32 1, %s19
      %s4475 = smul.u32 8, %s4474
      %p4476 = scmp.lt.s32.totalorder %s4475, 15
      %s4477 = scalar_select %p4476, %s4475, 15
      %s4478 = smul.addr %s4477, 8
      %s4479 = scalar_lea.vmem %s7, %s4478
      // Predicated region
      $region49: #{bilstm_forward.9} parent=43 // pred_check
        %p4480 = pneg %p187
      $region50: #{bilstm_forward.9} parent=43 // pred_check_branch
        %4482 = sbr.rel (%p4480) target = $region52
      $region51: #{bilstm_forward.9} parent=43 // pred_region
        %s4483 = smul.u32 8, %s19
      $region52: #{bilstm_forward.9} parent=43 // pred_fallthru
        _
      // Predicated region
      $region53: #{bilstm_forward.9} parent=43 // pred_check
        %p4484 = pneg %p215
      $region54: #{bilstm_forward.9} parent=43 // pred_check_branch
        %4486 = sbr.rel (%p4484) target = $region56
      $region55: #{bilstm_forward.9} parent=43 // pred_region
        %s4487 = ssub.s32 1, %s19
        %s4488 = smul.u32 8, %s4487
      $region56: #{bilstm_forward.9} parent=43 // pred_fallthru
        _
    $region44: #{bilstm_forward.9} parent=5 // pred_fallthru
      _
    %p4489 = scmp.le.s32.totalorder 2, %s14
    // Predicated region
    $region57: #{bilstm_forward.9} parent=5 // pred_check
      %p4490 = pneg %p4489
    $region58: #{bilstm_forward.9} parent=5 // pred_check_branch
      %4492 = sbr.rel (%p4490) target = $region60
    $region59: #{bilstm_forward.9} parent=5 // pred_region
      %s4493 = ssub.s32 %s14, 2
      // Predicated region
      $region61: #{bilstm_forward.9} parent=59 // pred_check
        %p4494 = pneg %p193
      $region62: #{bilstm_forward.9} parent=59 // pred_check_branch
        %4496 = sbr.rel (%p4494) target = $region64
      $region63: #{bilstm_forward.9} parent=59 // pred_region
        %s4497 = smul.u32 8, %s20
        %p4498 = scmp.lt.s32.totalorder %s4497, 15
        %s4499 = scalar_select %p4498, %s4497, 15
        %s4500 = smul.addr %s4499, 8
        %s4501 = scalar_lea.vmem %s6, %s4500
      $region64: #{bilstm_forward.9} parent=59 // pred_fallthru
        _
      // Predicated region
      $region65: #{bilstm_forward.9} parent=59 // pred_check
        %p4502 = pneg %p221
      $region66: #{bilstm_forward.9} parent=59 // pred_check_branch
        %4504 = sbr.rel (%p4502) target = $region68
      $region67: #{bilstm_forward.9} parent=59 // pred_region
        %s4505 = ssub.s32 1, %s20
        %s4506 = smul.u32 8, %s4505
        %p4507 = scmp.lt.s32.totalorder %s4506, 15
        %s4508 = scalar_select %p4507, %s4506, 15
        %s4509 = smul.addr %s4508, 8
        %s4510 = scalar_lea.vmem %s7, %s4509
      $region68: #{bilstm_forward.9} parent=59 // pred_fallthru
        _
    $region60: #{bilstm_forward.9} parent=5 // pred_fallthru
      _
  $region6: #{bilstm_forward.9} parent=0 // loop_footer
    %s18 = sadd.s32 1, %s14
  $region7: #{bilstm_forward.9} parent=0 // loop_footer_branch
    %13 = sbr.rel target = $region3
  $region8: #{bilstm_forward.9} parent=0 // loop_exit
    _

</llo_original>
